<compile_context>
chip_gen: v5e
topology: v5e:2x2
jax: 0.10.0
libtpu: 0.0.40
codegen_flags: <defaults>
</compile_context>

<pallas_src>
import math
import jax
import jax.numpy as jnp
from jax.experimental import pallas as pl
from jax.experimental.pallas import tpu as pltpu

SCALES = 4
KS = 3
BN_EPS = 1e-5


def _dw3x3_reflect(t, w9):
    """Depthwise 3x3 conv, stride 1, reflect-by-1 padding (PyTorch 'reflect').

    t:  (H, W, Cc) f32
    w9: (KS*KS, Cc) f32 per-tap, per-channel weights
    """
    H, W, _ = t.shape
    # Single reflect-pad per pass (requires H, W >= 2, as PyTorch does).
    p = jnp.concatenate([t[1:2], t, t[H - 2:H - 1]], axis=0)
    p = jnp.concatenate([p[:, 1:2], p, p[:, W - 2:W - 1]], axis=1)
    acc = p[0:H, 0:W, :] * w9[0]
    for tap in range(1, KS * KS):
        dh, dw = divmod(tap, KS)
        acc = acc + p[dh:dh + H, dw:dw + W, :] * w9[tap]
    return acc


def convblock_kernel(x_ref, w12_ref, b12_ref, dwb_ref, dwg_ref, db_ref,
                     wp_ref, bp_ref, ls_ref, o_ref, out2_ref):
    H, W, C = x_ref.shape
    Cg = C // SCALES
    HW = H * W

    # ---- fused 1x1 convs (gate | conv1) on the MXU -------------------------
    # BatchNorm's per-channel affine was folded into w12/b12 by the wrapper,
    # so the matmul input is the raw tile.
    out12 = jnp.dot(x_ref[...].astype(jnp.float32).reshape(HW, C), w12_ref[...],
                    preferred_element_type=jnp.float32) + b12_ref[...]
    out_v = jax.nn.sigmoid(out12[:, :C])            # (HW, C) sigmoid gate
    out1 = out12[:, C:].reshape(H, W, C)            # (H, W, C) conv1 output

    # ---- Res2Net hierarchical depthwise 3x3, reflect padding ---------------
    # Linearity: conv_s(x_s + y_{s-1}) = conv_s(x_s) + conv_s(y_{s-1}).
    # conv_s(x_s) for every scale in one full-width pass; only the serial
    # corrections conv_s(y_{s-1}) run at Cg width.
    base = _dw3x3_reflect(out1, dwb_ref[...])       # (H, W, C)
    dwg = dwg_ref[...]                              # (SCALES*KS*KS, Cg)
    db = db_ref[...]                                # (SCALES, Cg)

    prev = base[:, :, 0:Cg] + db[0]
    out2_ref[:, :, 0:Cg] = prev                     # write into scratch slot 0
    for s in range(1, SCALES):
        corr = _dw3x3_reflect(prev, dwg[s * KS * KS:(s + 1) * KS * KS])
        prev = base[:, :, s * Cg:(s + 1) * Cg] + corr + db[s]
        out2_ref[:, :, s * Cg:(s + 1) * Cg] = prev  # scratch slot s

    # ---- gate, projection, layer_scale, residual ---------------------------
    gated = out2_ref[...].reshape(HW, C) * out_v
    proj = jnp.dot(gated, wp_ref[...],
                   preferred_element_type=jnp.float32) + bp_ref[...]
    # Re-read the input tile for the residual (don't keep it live all along).
    res = ls_ref[...] * proj + x_ref[...].astype(jnp.float32).reshape(HW, C)
    o_ref[...] = res.reshape(H, W, C).astype(o_ref.dtype)


def convblock_pallas(x_nchw, p):
    # NCHW <-> NHWC transposes fuse into the surrounding jit; production code
    # should hand NHWC straight in.
    x = jnp.transpose(x_nchw, (0, 2, 3, 1))
    N, H, W, C = x.shape
    Cg = C // SCALES
    assert C % SCALES == 0 and H >= 2 and W >= 2  # reflect-pad restriction

    # ---- BatchNorm2d (train mode): global batch statistics pre-pass --------
    xf = x.astype(jnp.float32)
    mean = jnp.mean(xf, axis=(0, 1, 2))
    var = jnp.mean(jnp.square(xf - mean), axis=(0, 1, 2))   # biased, two-pass
    bn_scale = p['gamma'][0] * jax.lax.rsqrt(var + BN_EPS)  # (C,)
    bn_shift = p['beta'][0] - mean * bn_scale                # (C,)

    # ---- fuse the two shared-input 1x1 convs; fold BN affine into them -----
    w12_raw = jnp.concatenate([p['w1g'], p['w1']], axis=1)   # (C, 2C)
    b12_raw = jnp.concatenate([p['b1g'], p['b1']], axis=1)   # (1, 2C)
    w12 = bn_scale[:, None] * w12_raw
    b12 = b12_raw + bn_shift[None, :] @ w12_raw

    flops = N * H * W * (2 * C * (2 * C) + 2 * C * C            # two matmuls
                         + 2 * KS * KS * C                       # full-width dw
                         + 2 * KS * KS * (SCALES - 1) * Cg       # corrections
                         + 8 * C)                                # gate/scale/res
    cost = pl.CostEstimate(
        flops=flops,
        transcendentals=N * H * W * C,
        bytes_accessed=4 * (2 * N * H * W * C + 3 * C * C
                            + (SCALES + 1) * KS * KS * Cg + 6 * C))

    def full(shape):
        return pl.BlockSpec(shape, lambda n, _s=shape: (0,) * len(_s))

    img = pl.BlockSpec((None, H, W, C), lambda n: (n, 0, 0, 0))

    out = pl.pallas_call(
        convblock_kernel,
        out_shape=jax.ShapeDtypeStruct((N, H, W, C), x.dtype),
        grid=(N,),
        in_specs=[img,                          # x (one image per grid step)
                  full((C, 2 * C)),             # fused 1x1 weights (BN folded)
                  full((1, 2 * C)),             # fused 1x1 bias
                  full((KS * KS, C)),           # full-width depthwise taps
                  full((SCALES * KS * KS, Cg)), # per-scale depthwise taps
                  full((SCALES, Cg)),           # depthwise biases
                  full((C, C)),                 # projection weight
                  full((1, C)),                 # projection bias
                  full((1, C))],                # layer_scale
        out_specs=img,
        scratch_shapes=[pltpu.VMEM((H, W, C), jnp.float32)],    # out2 buffer
        compiler_params=pltpu.CompilerParams(
            dimension_semantics=("parallel",),
            vmem_limit_bytes=32 * 1024 * 1024),
        cost_estimate=cost,
    )(x, w12, b12, p['dwb'], p['dwg'], p['db'], p['wp'], p['bp'], p['ls'])
    return jnp.transpose(out, (0, 3, 1, 2))


def init_params(key, dim, net_depth, kernel_size=KS, scales=SCALES):
    """Deterministic synthetic init mirroring Res2NetBottleneck._init_weights."""
    assert dim % scales == 0
    Cg = dim // scales
    gain = (8 * net_depth) ** (-1 / 4)

    def tn(k, shape, fan_in, fan_out):
        std = gain * math.sqrt(2.0 / float(fan_in + fan_out))
        return std * jax.random.truncated_normal(k, -2.0, 2.0, shape, jnp.float32)

    keys = jax.random.split(key, 4)
    # PyTorch 1x1 conv weights are (out, in, 1, 1): fan_in = fan_out = dim
    w1g_pt = tn(keys[0], (dim, dim), dim, dim)
    w1_pt = tn(keys[1], (dim, dim), dim, dim)
    wp_pt = tn(keys[2], (dim, dim), dim, dim)
    # depthwise conv weights: (Cg, 1, k, k); fan_in=k*k, fan_out=Cg*k*k
    dw_pt = tn(keys[3], (scales, Cg, kernel_size, kernel_size),
               kernel_size * kernel_size, Cg * kernel_size * kernel_size)

    # Mirror the PyTorch quirk: scale branch s uses conv2[(s-1) % scales].
    order = [(s - 1) % scales for s in range(scales)]
    dw_k = jnp.stack([jnp.transpose(dw_pt[i], (1, 2, 0)) for i in order], 0)  # (S,k,k,Cg)
    dwg = dw_k.reshape(scales * kernel_size * kernel_size, Cg)                # (S*9, Cg)
    # full-width per-tap weights: dwb[tap, s*Cg + c] = dw_k[s, dh, dw, c]
    dwb = jnp.transpose(dw_k, (1, 2, 0, 3)).reshape(
        kernel_size * kernel_size, scales * Cg)                               # (9, C)

    return dict(
        gamma=jnp.ones((1, dim), jnp.float32),      # BN weight (default init)
        beta=jnp.zeros((1, dim), jnp.float32),      # BN bias
        w1g=w1g_pt.T, b1g=jnp.zeros((1, dim), jnp.float32),
        w1=w1_pt.T, b1=jnp.zeros((1, dim), jnp.float32),
        dwb=dwb, dwg=dwg, db=jnp.zeros((scales, Cg), jnp.float32),
        wp=wp_pt.T, bp=jnp.zeros((1, dim), jnp.float32),
        ls=jnp.ones((1, dim), jnp.float32),         # layer_scale = ones(dim)
    )


def convblock_ref(x_nchw, p, scales=SCALES, ks=KS):
    """Pure-JAX reference (independent lowering path) for verification."""
    x = jnp.transpose(x_nchw, (0, 2, 3, 1)).astype(jnp.float32)
    N, H, W, C = x.shape
    Cg = C // scales
    mean = jnp.mean(x, axis=(0, 1, 2))
    var = jnp.mean((x - mean) ** 2, axis=(0, 1, 2))
    normed = (x - mean) * jax.lax.rsqrt(var + BN_EPS) * p['gamma'][0] + p['beta'][0]
    out_v = jax.nn.sigmoid(jnp.einsum('nhwc,cd->nhwd', normed, p['w1g']) + p['b1g'][0])
    out1 = jnp.einsum('nhwc,cd->nhwd', normed, p['w1']) + p['b1'][0]
    dw = p['dwg'].reshape(scales, ks, ks, Cg)
    ys, prev = [], None
    for s in range(scales):
        inp = out1[..., s * Cg:(s + 1) * Cg]
        if prev is not None:
            inp = inp + prev
        padded = jnp.pad(inp, ((0, 0), (1, 1), (1, 1), (0, 0)), mode='reflect')
        w = dw[s][:, :, None, :]                                   # HWIO (k,k,1,Cg)
        y = jax.lax.conv_general_dilated(
            padded, w, window_strides=(1, 1), padding='VALID',
            dimension_numbers=('NHWC', 'HWIO', 'NHWC'),
            feature_group_count=Cg) + p['db'][s]
        ys.append(y)
        prev = y
    out2 = jnp.concatenate(ys, axis=-1)
    proj = jnp.einsum('nhwc,cd->nhwd', out2 * out_v, p['wp']) + p['bp'][0]
    res = p['ls'][0] * proj + x
    return jnp.transpose(res, (0, 3, 1, 2))


if __name__ == "__main__":
    key = jax.random.PRNGKey(0)
    kx, kp = jax.random.split(key)
    N, C, H, W = 2, 8, 16, 16          # dim=8 (divisible by scales=4)
    net_depth = 4
    x = jax.random.normal(kx, (N, C, H, W), jnp.float32)
    params = init_params(kp, C, net_depth)

    fwd = jax.jit(convblock_pallas)    # fuses transposes / BN pre-pass / fold
    out = jax.block_until_ready(fwd(x, params))
    assert out.shape == x.shape and out.dtype == x.dtype

    ref = convblock_ref(x, params)
    if not jnp.allclose(out, ref, atol=2e-2, rtol=2e-2):
        raise AssertionError(
            f"kernel/ref mismatch, max abs err = {jnp.max(jnp.abs(out - ref))}")
    print("KERNEL_OK")
</pallas_src>

<mosaic_0001>
module attributes {stable_mosaic.version = 11 : i64} {
  func.func @convblock_kernel(%arg0: i32, %arg1: memref<1x16x16x8xf32, #tpu.memory_space<vmem>>, %arg2: memref<8x16xf32, #tpu.memory_space<vmem>>, %arg3: memref<1x16xf32, #tpu.memory_space<vmem>>, %arg4: memref<9x8xf32, #tpu.memory_space<vmem>>, %arg5: memref<36x2xf32, #tpu.memory_space<vmem>>, %arg6: memref<4x2xf32, #tpu.memory_space<vmem>>, %arg7: memref<8x8xf32, #tpu.memory_space<vmem>>, %arg8: memref<1x8xf32, #tpu.memory_space<vmem>>, %arg9: memref<1x8xf32, #tpu.memory_space<vmem>>, %arg10: memref<1x16x16x8xf32, #tpu.memory_space<vmem>>, %arg11: memref<16x16x8xf32, #tpu.memory_space<vmem>>) attributes {dimension_semantics = [#tpu.dimension_semantics<parallel>], iteration_bounds = array<i64: 2>, scalar_prefetch = 0 : i64, scratch_operands = 1 : i64, tpu.core_type = #tpu.core_type<tc>, window_params = [{transform_indices = @transform_0, window_bounds = array<i64: 1, 16, 16, 8>}, {pipeline_mode = #tpu.pipeline_mode<synchronous>, transform_indices = @transform_1, window_bounds = array<i64: 8, 16>}, {pipeline_mode = #tpu.pipeline_mode<synchronous>, transform_indices = @transform_2, window_bounds = array<i64: 1, 16>}, {pipeline_mode = #tpu.pipeline_mode<synchronous>, transform_indices = @transform_3, window_bounds = array<i64: 9, 8>}, {pipeline_mode = #tpu.pipeline_mode<synchronous>, transform_indices = @transform_4, window_bounds = array<i64: 36, 2>}, {pipeline_mode = #tpu.pipeline_mode<synchronous>, transform_indices = @transform_5, window_bounds = array<i64: 4, 2>}, {pipeline_mode = #tpu.pipeline_mode<synchronous>, transform_indices = @transform_6, window_bounds = array<i64: 8, 8>}, {pipeline_mode = #tpu.pipeline_mode<synchronous>, transform_indices = @transform_7, window_bounds = array<i64: 1, 8>}, {pipeline_mode = #tpu.pipeline_mode<synchronous>, transform_indices = @transform_8, window_bounds = array<i64: 1, 8>}, {transform_indices = @transform_9, window_bounds = array<i64: 1, 16, 16, 8>}]} {
    %c0 = arith.constant 0 : index
    %c0_0 = arith.constant 0 : index
    %c0_1 = arith.constant 0 : index
    %c0_2 = arith.constant 0 : index
    %0 = vector.load %arg1[%c0, %c0_0, %c0_1, %c0_2] : memref<1x16x16x8xf32, #tpu.memory_space<vmem>>, vector<1x16x16x8xf32>
    %1 = vector.shape_cast %0 : vector<1x16x16x8xf32> to vector<16x16x8xf32>
    %2 = vector.shape_cast %1 : vector<16x16x8xf32> to vector<256x8xf32>
    %c0_3 = arith.constant 0 : index
    %c0_4 = arith.constant 0 : index
    %3 = vector.load %arg2[%c0_3, %c0_4] : memref<8x16xf32, #tpu.memory_space<vmem>>, vector<8x16xf32>
    %cst = arith.constant dense<0.000000e+00> : vector<256x16xf32>
    %4 = tpu.matmul %2, %3, %cst {dimension_numbers = #tpu.dot_dimension_numbers<[1], [0], [0], [1], [0, 0, 1, 1], [], []>} : vector<256x8xf32>, vector<8x16xf32>, vector<256x16xf32> -> vector<256x16xf32>
    %c0_5 = arith.constant 0 : index
    %c0_6 = arith.constant 0 : index
    %5 = vector.load %arg3[%c0_5, %c0_6] : memref<1x16xf32, #tpu.memory_space<vmem>>, vector<1x16xf32>
    %6 = vector.broadcast %5 : vector<1x16xf32> to vector<256x16xf32>
    %7 = arith.addf %4, %6 : vector<256x16xf32>
    %8 = vector.extract_strided_slice %7 {offsets = [0, 0], sizes = [256, 8], strides = [1, 1]} : vector<256x16xf32> to vector<256x8xf32>
    %9 = arith.negf %8 : vector<256x8xf32>
    %10 = math.exp %9 : vector<256x8xf32>
    %cst_7 = arith.constant 1.000000e+00 : f32
    %11 = vector.broadcast %cst_7 : f32 to vector<256x8xf32>
    %12 = arith.addf %11, %10 : vector<256x8xf32>
    %13 = arith.divf %11, %12 : vector<256x8xf32>
    %14 = vector.extract_strided_slice %7 {offsets = [0, 8], sizes = [256, 8], strides = [1, 1]} : vector<256x16xf32> to vector<256x8xf32>
    %15 = vector.shape_cast %14 : vector<256x8xf32> to vector<16x16x8xf32>
    %c0_8 = arith.constant 0 : index
    %c0_9 = arith.constant 0 : index
    %16 = vector.load %arg4[%c0_8, %c0_9] : memref<9x8xf32, #tpu.memory_space<vmem>>, vector<9x8xf32>
    %17 = vector.extract_strided_slice %15 {offsets = [1, 0, 0], sizes = [1, 16, 8], strides = [1, 1, 1]} : vector<16x16x8xf32> to vector<1x16x8xf32>
    %18 = vector.extract_strided_slice %15 {offsets = [14, 0, 0], sizes = [1, 16, 8], strides = [1, 1, 1]} : vector<16x16x8xf32> to vector<1x16x8xf32>
    %19 = tpu.concatenate %17, %15, %18 in 0 : vector<1x16x8xf32>, vector<16x16x8xf32>, vector<1x16x8xf32> -> vector<18x16x8xf32>
    %20 = vector.extract_strided_slice %19 {offsets = [0, 1, 0], sizes = [18, 1, 8], strides = [1, 1, 1]} : vector<18x16x8xf32> to vector<18x1x8xf32>
    %21 = vector.extract_strided_slice %19 {offsets = [0, 14, 0], sizes = [18, 1, 8], strides = [1, 1, 1]} : vector<18x16x8xf32> to vector<18x1x8xf32>
    %22 = tpu.concatenate %20, %19, %21 in 1 : vector<18x1x8xf32>, vector<18x16x8xf32>, vector<18x1x8xf32> -> vector<18x18x8xf32>
    %23 = vector.extract_strided_slice %22 {offsets = [0, 0, 0], sizes = [16, 16, 8], strides = [1, 1, 1]} : vector<18x18x8xf32> to vector<16x16x8xf32>
    %24 = vector.extract_strided_slice %16 {offsets = [0, 0], sizes = [1, 8], strides = [1, 1]} : vector<9x8xf32> to vector<1x8xf32>
    %25 = vector.shape_cast %24 : vector<1x8xf32> to vector<8xf32>
    %26 = vector.shape_cast %25 : vector<8xf32> to vector<1x1x8xf32>
    %27 = vector.broadcast %26 : vector<1x1x8xf32> to vector<16x16x8xf32>
    %28 = arith.mulf %23, %27 : vector<16x16x8xf32>
    %29 = vector.extract_strided_slice %22 {offsets = [0, 1, 0], sizes = [16, 16, 8], strides = [1, 1, 1]} : vector<18x18x8xf32> to vector<16x16x8xf32>
    %30 = vector.extract_strided_slice %16 {offsets = [1, 0], sizes = [1, 8], strides = [1, 1]} : vector<9x8xf32> to vector<1x8xf32>
    %31 = vector.shape_cast %30 : vector<1x8xf32> to vector<8xf32>
    %32 = vector.shape_cast %31 : vector<8xf32> to vector<1x1x8xf32>
    %33 = vector.broadcast %32 : vector<1x1x8xf32> to vector<16x16x8xf32>
    %34 = arith.mulf %29, %33 : vector<16x16x8xf32>
    %35 = arith.addf %28, %34 : vector<16x16x8xf32>
    %36 = vector.extract_strided_slice %22 {offsets = [0, 2, 0], sizes = [16, 16, 8], strides = [1, 1, 1]} : vector<18x18x8xf32> to vector<16x16x8xf32>
    %37 = vector.extract_strided_slice %16 {offsets = [2, 0], sizes = [1, 8], strides = [1, 1]} : vector<9x8xf32> to vector<1x8xf32>
    %38 = vector.shape_cast %37 : vector<1x8xf32> to vector<8xf32>
    %39 = vector.shape_cast %38 : vector<8xf32> to vector<1x1x8xf32>
    %40 = vector.broadcast %39 : vector<1x1x8xf32> to vector<16x16x8xf32>
    %41 = arith.mulf %36, %40 : vector<16x16x8xf32>
    %42 = arith.addf %35, %41 : vector<16x16x8xf32>
    %43 = vector.extract_strided_slice %22 {offsets = [1, 0, 0], sizes = [16, 16, 8], strides = [1, 1, 1]} : vector<18x18x8xf32> to vector<16x16x8xf32>
    %44 = vector.extract_strided_slice %16 {offsets = [3, 0], sizes = [1, 8], strides = [1, 1]} : vector<9x8xf32> to vector<1x8xf32>
    %45 = vector.shape_cast %44 : vector<1x8xf32> to vector<8xf32>
    %46 = vector.shape_cast %45 : vector<8xf32> to vector<1x1x8xf32>
    %47 = vector.broadcast %46 : vector<1x1x8xf32> to vector<16x16x8xf32>
    %48 = arith.mulf %43, %47 : vector<16x16x8xf32>
    %49 = arith.addf %42, %48 : vector<16x16x8xf32>
    %50 = vector.extract_strided_slice %22 {offsets = [1, 1, 0], sizes = [16, 16, 8], strides = [1, 1, 1]} : vector<18x18x8xf32> to vector<16x16x8xf32>
    %51 = vector.extract_strided_slice %16 {offsets = [4, 0], sizes = [1, 8], strides = [1, 1]} : vector<9x8xf32> to vector<1x8xf32>
    %52 = vector.shape_cast %51 : vector<1x8xf32> to vector<8xf32>
    %53 = vector.shape_cast %52 : vector<8xf32> to vector<1x1x8xf32>
    %54 = vector.broadcast %53 : vector<1x1x8xf32> to vector<16x16x8xf32>
    %55 = arith.mulf %50, %54 : vector<16x16x8xf32>
    %56 = arith.addf %49, %55 : vector<16x16x8xf32>
    %57 = vector.extract_strided_slice %22 {offsets = [1, 2, 0], sizes = [16, 16, 8], strides = [1, 1, 1]} : vector<18x18x8xf32> to vector<16x16x8xf32>
    %58 = vector.extract_strided_slice %16 {offsets = [5, 0], sizes = [1, 8], strides = [1, 1]} : vector<9x8xf32> to vector<1x8xf32>
    %59 = vector.shape_cast %58 : vector<1x8xf32> to vector<8xf32>
    %60 = vector.shape_cast %59 : vector<8xf32> to vector<1x1x8xf32>
    %61 = vector.broadcast %60 : vector<1x1x8xf32> to vector<16x16x8xf32>
    %62 = arith.mulf %57, %61 : vector<16x16x8xf32>
    %63 = arith.addf %56, %62 : vector<16x16x8xf32>
    %64 = vector.extract_strided_slice %22 {offsets = [2, 0, 0], sizes = [16, 16, 8], strides = [1, 1, 1]} : vector<18x18x8xf32> to vector<16x16x8xf32>
    %65 = vector.extract_strided_slice %16 {offsets = [6, 0], sizes = [1, 8], strides = [1, 1]} : vector<9x8xf32> to vector<1x8xf32>
    %66 = vector.shape_cast %65 : vector<1x8xf32> to vector<8xf32>
    %67 = vector.shape_cast %66 : vector<8xf32> to vector<1x1x8xf32>
    %68 = vector.broadcast %67 : vector<1x1x8xf32> to vector<16x16x8xf32>
    %69 = arith.mulf %64, %68 : vector<16x16x8xf32>
    %70 = arith.addf %63, %69 : vector<16x16x8xf32>
    %71 = vector.extract_strided_slice %22 {offsets = [2, 1, 0], sizes = [16, 16, 8], strides = [1, 1, 1]} : vector<18x18x8xf32> to vector<16x16x8xf32>
    %72 = vector.extract_strided_slice %16 {offsets = [7, 0], sizes = [1, 8], strides = [1, 1]} : vector<9x8xf32> to vector<1x8xf32>
    %73 = vector.shape_cast %72 : vector<1x8xf32> to vector<8xf32>
    %74 = vector.shape_cast %73 : vector<8xf32> to vector<1x1x8xf32>
    %75 = vector.broadcast %74 : vector<1x1x8xf32> to vector<16x16x8xf32>
    %76 = arith.mulf %71, %75 : vector<16x16x8xf32>
    %77 = arith.addf %70, %76 : vector<16x16x8xf32>
    %78 = vector.extract_strided_slice %22 {offsets = [2, 2, 0], sizes = [16, 16, 8], strides = [1, 1, 1]} : vector<18x18x8xf32> to vector<16x16x8xf32>
    %79 = vector.extract_strided_slice %16 {offsets = [8, 0], sizes = [1, 8], strides = [1, 1]} : vector<9x8xf32> to vector<1x8xf32>
    %80 = vector.shape_cast %79 : vector<1x8xf32> to vector<8xf32>
    %81 = vector.shape_cast %80 : vector<8xf32> to vector<1x1x8xf32>
    %82 = vector.broadcast %81 : vector<1x1x8xf32> to vector<16x16x8xf32>
    %83 = arith.mulf %78, %82 : vector<16x16x8xf32>
    %84 = arith.addf %77, %83 : vector<16x16x8xf32>
    %c0_10 = arith.constant 0 : index
    %c0_11 = arith.constant 0 : index
    %85 = vector.load %arg5[%c0_10, %c0_11] : memref<36x2xf32, #tpu.memory_space<vmem>>, vector<36x2xf32>
    %c0_12 = arith.constant 0 : index
    %c0_13 = arith.constant 0 : index
    %86 = vector.load %arg6[%c0_12, %c0_13] : memref<4x2xf32, #tpu.memory_space<vmem>>, vector<4x2xf32>
    %87 = vector.extract_strided_slice %84 {offsets = [0, 0, 0], sizes = [16, 16, 2], strides = [1, 1, 1]} : vector<16x16x8xf32> to vector<16x16x2xf32>
    %88 = vector.extract_strided_slice %86 {offsets = [0, 0], sizes = [1, 2], strides = [1, 1]} : vector<4x2xf32> to vector<1x2xf32>
    %89 = vector.shape_cast %88 : vector<1x2xf32> to vector<2xf32>
    %90 = vector.shape_cast %89 : vector<2xf32> to vector<1x1x2xf32>
    %91 = vector.broadcast %90 : vector<1x1x2xf32> to vector<16x16x2xf32>
    %92 = arith.addf %87, %91 : vector<16x16x2xf32>
    %c0_14 = arith.constant 0 : index
    %c0_15 = arith.constant 0 : index
    %c0_16 = arith.constant 0 : index
    %93 = vector.load %arg11[%c0_14, %c0_15, %c0_16] : memref<16x16x8xf32, #tpu.memory_space<vmem>>, vector<16x16x2xf32>
    tpu.vector_store %arg11[%c0_14, %c0_15, %c0_16], %92 {strides = array<i32>} : memref<16x16x8xf32, #tpu.memory_space<vmem>>, vector<16x16x2xf32>,
    %94 = vector.extract_strided_slice %85 {offsets = [9, 0], sizes = [9, 2], strides = [1, 1]} : vector<36x2xf32> to vector<9x2xf32>
    %95 = vector.extract_strided_slice %92 {offsets = [1, 0, 0], sizes = [1, 16, 2], strides = [1, 1, 1]} : vector<16x16x2xf32> to vector<1x16x2xf32>
    %96 = vector.extract_strided_slice %92 {offsets = [14, 0, 0], sizes = [1, 16, 2], strides = [1, 1, 1]} : vector<16x16x2xf32> to vector<1x16x2xf32>
    %97 = tpu.concatenate %95, %92, %96 in 0 : vector<1x16x2xf32>, vector<16x16x2xf32>, vector<1x16x2xf32> -> vector<18x16x2xf32>
    %98 = vector.extract_strided_slice %97 {offsets = [0, 1, 0], sizes = [18, 1, 2], strides = [1, 1, 1]} : vector<18x16x2xf32> to vector<18x1x2xf32>
    %99 = vector.extract_strided_slice %97 {offsets = [0, 14, 0], sizes = [18, 1, 2], strides = [1, 1, 1]} : vector<18x16x2xf32> to vector<18x1x2xf32>
    %100 = tpu.concatenate %98, %97, %99 in 1 : vector<18x1x2xf32>, vector<18x16x2xf32>, vector<18x1x2xf32> -> vector<18x18x2xf32>
    %101 = vector.extract_strided_slice %100 {offsets = [0, 0, 0], sizes = [16, 16, 2], strides = [1, 1, 1]} : vector<18x18x2xf32> to vector<16x16x2xf32>
    %102 = vector.extract_strided_slice %94 {offsets = [0, 0], sizes = [1, 2], strides = [1, 1]} : vector<9x2xf32> to vector<1x2xf32>
    %103 = vector.shape_cast %102 : vector<1x2xf32> to vector<2xf32>
    %104 = vector.shape_cast %103 : vector<2xf32> to vector<1x1x2xf32>
    %105 = vector.broadcast %104 : vector<1x1x2xf32> to vector<16x16x2xf32>
    %106 = arith.mulf %101, %105 : vector<16x16x2xf32>
    %107 = vector.extract_strided_slice %100 {offsets = [0, 1, 0], sizes = [16, 16, 2], strides = [1, 1, 1]} : vector<18x18x2xf32> to vector<16x16x2xf32>
    %108 = vector.extract_strided_slice %94 {offsets = [1, 0], sizes = [1, 2], strides = [1, 1]} : vector<9x2xf32> to vector<1x2xf32>
    %109 = vector.shape_cast %108 : vector<1x2xf32> to vector<2xf32>
    %110 = vector.shape_cast %109 : vector<2xf32> to vector<1x1x2xf32>
    %111 = vector.broadcast %110 : vector<1x1x2xf32> to vector<16x16x2xf32>
    %112 = arith.mulf %107, %111 : vector<16x16x2xf32>
    %113 = arith.addf %106, %112 : vector<16x16x2xf32>
    %114 = vector.extract_strided_slice %100 {offsets = [0, 2, 0], sizes = [16, 16, 2], strides = [1, 1, 1]} : vector<18x18x2xf32> to vector<16x16x2xf32>
    %115 = vector.extract_strided_slice %94 {offsets = [2, 0], sizes = [1, 2], strides = [1, 1]} : vector<9x2xf32> to vector<1x2xf32>
    %116 = vector.shape_cast %115 : vector<1x2xf32> to vector<2xf32>
    %117 = vector.shape_cast %116 : vector<2xf32> to vector<1x1x2xf32>
    %118 = vector.broadcast %117 : vector<1x1x2xf32> to vector<16x16x2xf32>
    %119 = arith.mulf %114, %118 : vector<16x16x2xf32>
    %120 = arith.addf %113, %119 : vector<16x16x2xf32>
    %121 = vector.extract_strided_slice %100 {offsets = [1, 0, 0], sizes = [16, 16, 2], strides = [1, 1, 1]} : vector<18x18x2xf32> to vector<16x16x2xf32>
    %122 = vector.extract_strided_slice %94 {offsets = [3, 0], sizes = [1, 2], strides = [1, 1]} : vector<9x2xf32> to vector<1x2xf32>
    %123 = vector.shape_cast %122 : vector<1x2xf32> to vector<2xf32>
    %124 = vector.shape_cast %123 : vector<2xf32> to vector<1x1x2xf32>
    %125 = vector.broadcast %124 : vector<1x1x2xf32> to vector<16x16x2xf32>
    %126 = arith.mulf %121, %125 : vector<16x16x2xf32>
    %127 = arith.addf %120, %126 : vector<16x16x2xf32>
    %128 = vector.extract_strided_slice %100 {offsets = [1, 1, 0], sizes = [16, 16, 2], strides = [1, 1, 1]} : vector<18x18x2xf32> to vector<16x16x2xf32>
    %129 = vector.extract_strided_slice %94 {offsets = [4, 0], sizes = [1, 2], strides = [1, 1]} : vector<9x2xf32> to vector<1x2xf32>
    %130 = vector.shape_cast %129 : vector<1x2xf32> to vector<2xf32>
    %131 = vector.shape_cast %130 : vector<2xf32> to vector<1x1x2xf32>
    %132 = vector.broadcast %131 : vector<1x1x2xf32> to vector<16x16x2xf32>
    %133 = arith.mulf %128, %132 : vector<16x16x2xf32>
    %134 = arith.addf %127, %133 : vector<16x16x2xf32>
    %135 = vector.extract_strided_slice %100 {offsets = [1, 2, 0], sizes = [16, 16, 2], strides = [1, 1, 1]} : vector<18x18x2xf32> to vector<16x16x2xf32>
    %136 = vector.extract_strided_slice %94 {offsets = [5, 0], sizes = [1, 2], strides = [1, 1]} : vector<9x2xf32> to vector<1x2xf32>
    %137 = vector.shape_cast %136 : vector<1x2xf32> to vector<2xf32>
    %138 = vector.shape_cast %137 : vector<2xf32> to vector<1x1x2xf32>
    %139 = vector.broadcast %138 : vector<1x1x2xf32> to vector<16x16x2xf32>
    %140 = arith.mulf %135, %139 : vector<16x16x2xf32>
    %141 = arith.addf %134, %140 : vector<16x16x2xf32>
    %142 = vector.extract_strided_slice %100 {offsets = [2, 0, 0], sizes = [16, 16, 2], strides = [1, 1, 1]} : vector<18x18x2xf32> to vector<16x16x2xf32>
    %143 = vector.extract_strided_slice %94 {offsets = [6, 0], sizes = [1, 2], strides = [1, 1]} : vector<9x2xf32> to vector<1x2xf32>
    %144 = vector.shape_cast %143 : vector<1x2xf32> to vector<2xf32>
    %145 = vector.shape_cast %144 : vector<2xf32> to vector<1x1x2xf32>
    %146 = vector.broadcast %145 : vector<1x1x2xf32> to vector<16x16x2xf32>
    %147 = arith.mulf %142, %146 : vector<16x16x2xf32>
    %148 = arith.addf %141, %147 : vector<16x16x2xf32>
    %149 = vector.extract_strided_slice %100 {offsets = [2, 1, 0], sizes = [16, 16, 2], strides = [1, 1, 1]} : vector<18x18x2xf32> to vector<16x16x2xf32>
    %150 = vector.extract_strided_slice %94 {offsets = [7, 0], sizes = [1, 2], strides = [1, 1]} : vector<9x2xf32> to vector<1x2xf32>
    %151 = vector.shape_cast %150 : vector<1x2xf32> to vector<2xf32>
    %152 = vector.shape_cast %151 : vector<2xf32> to vector<1x1x2xf32>
    %153 = vector.broadcast %152 : vector<1x1x2xf32> to vector<16x16x2xf32>
    %154 = arith.mulf %149, %153 : vector<16x16x2xf32>
    %155 = arith.addf %148, %154 : vector<16x16x2xf32>
    %156 = vector.extract_strided_slice %100 {offsets = [2, 2, 0], sizes = [16, 16, 2], strides = [1, 1, 1]} : vector<18x18x2xf32> to vector<16x16x2xf32>
    %157 = vector.extract_strided_slice %94 {offsets = [8, 0], sizes = [1, 2], strides = [1, 1]} : vector<9x2xf32> to vector<1x2xf32>
    %158 = vector.shape_cast %157 : vector<1x2xf32> to vector<2xf32>
    %159 = vector.shape_cast %158 : vector<2xf32> to vector<1x1x2xf32>
    %160 = vector.broadcast %159 : vector<1x1x2xf32> to vector<16x16x2xf32>
    %161 = arith.mulf %156, %160 : vector<16x16x2xf32>
    %162 = arith.addf %155, %161 : vector<16x16x2xf32>
    %163 = vector.extract_strided_slice %84 {offsets = [0, 0, 2], sizes = [16, 16, 2], strides = [1, 1, 1]} : vector<16x16x8xf32> to vector<16x16x2xf32>
    %164 = arith.addf %163, %162 : vector<16x16x2xf32>
    %165 = vector.extract_strided_slice %86 {offsets = [1, 0], sizes = [1, 2], strides = [1, 1]} : vector<4x2xf32> to vector<1x2xf32>
    %166 = vector.shape_cast %165 : vector<1x2xf32> to vector<2xf32>
    %167 = vector.shape_cast %166 : vector<2xf32> to vector<1x1x2xf32>
    %168 = vector.broadcast %167 : vector<1x1x2xf32> to vector<16x16x2xf32>
    %169 = arith.addf %164, %168 : vector<16x16x2xf32>
    %c0_17 = arith.constant 0 : index
    %c0_18 = arith.constant 0 : index
    %c2 = arith.constant 2 : index
    %170 = vector.load %arg11[%c0_17, %c0_18, %c2] : memref<16x16x8xf32, #tpu.memory_space<vmem>>, vector<16x16x2xf32>
    tpu.vector_store %arg11[%c0_17, %c0_18, %c2], %169 {strides = array<i32>} : memref<16x16x8xf32, #tpu.memory_space<vmem>>, vector<16x16x2xf32>,
    %171 = vector.extract_strided_slice %85 {offsets = [18, 0], sizes = [9, 2], strides = [1, 1]} : vector<36x2xf32> to vector<9x2xf32>
    %172 = vector.extract_strided_slice %169 {offsets = [1, 0, 0], sizes = [1, 16, 2], strides = [1, 1, 1]} : vector<16x16x2xf32> to vector<1x16x2xf32>
    %173 = vector.extract_strided_slice %169 {offsets = [14, 0, 0], sizes = [1, 16, 2], strides = [1, 1, 1]} : vector<16x16x2xf32> to vector<1x16x2xf32>
    %174 = tpu.concatenate %172, %169, %173 in 0 : vector<1x16x2xf32>, vector<16x16x2xf32>, vector<1x16x2xf32> -> vector<18x16x2xf32>
    %175 = vector.extract_strided_slice %174 {offsets = [0, 1, 0], sizes = [18, 1, 2], strides = [1, 1, 1]} : vector<18x16x2xf32> to vector<18x1x2xf32>
    %176 = vector.extract_strided_slice %174 {offsets = [0, 14, 0], sizes = [18, 1, 2], strides = [1, 1, 1]} : vector<18x16x2xf32> to vector<18x1x2xf32>
    %177 = tpu.concatenate %175, %174, %176 in 1 : vector<18x1x2xf32>, vector<18x16x2xf32>, vector<18x1x2xf32> -> vector<18x18x2xf32>
    %178 = vector.extract_strided_slice %177 {offsets = [0, 0, 0], sizes = [16, 16, 2], strides = [1, 1, 1]} : vector<18x18x2xf32> to vector<16x16x2xf32>
    %179 = vector.extract_strided_slice %171 {offsets = [0, 0], sizes = [1, 2], strides = [1, 1]} : vector<9x2xf32> to vector<1x2xf32>
    %180 = vector.shape_cast %179 : vector<1x2xf32> to vector<2xf32>
    %181 = vector.shape_cast %180 : vector<2xf32> to vector<1x1x2xf32>
    %182 = vector.broadcast %181 : vector<1x1x2xf32> to vector<16x16x2xf32>
    %183 = arith.mulf %178, %182 : vector<16x16x2xf32>
    %184 = vector.extract_strided_slice %177 {offsets = [0, 1, 0], sizes = [16, 16, 2], strides = [1, 1, 1]} : vector<18x18x2xf32> to vector<16x16x2xf32>
    %185 = vector.extract_strided_slice %171 {offsets = [1, 0], sizes = [1, 2], strides = [1, 1]} : vector<9x2xf32> to vector<1x2xf32>
    %186 = vector.shape_cast %185 : vector<1x2xf32> to vector<2xf32>
    %187 = vector.shape_cast %186 : vector<2xf32> to vector<1x1x2xf32>
    %188 = vector.broadcast %187 : vector<1x1x2xf32> to vector<16x16x2xf32>
    %189 = arith.mulf %184, %188 : vector<16x16x2xf32>
    %190 = arith.addf %183, %189 : vector<16x16x2xf32>
    %191 = vector.extract_strided_slice %177 {offsets = [0, 2, 0], sizes = [16, 16, 2], strides = [1, 1, 1]} : vector<18x18x2xf32> to vector<16x16x2xf32>
    %192 = vector.extract_strided_slice %171 {offsets = [2, 0], sizes = [1, 2], strides = [1, 1]} : vector<9x2xf32> to vector<1x2xf32>
    %193 = vector.shape_cast %192 : vector<1x2xf32> to vector<2xf32>
    %194 = vector.shape_cast %193 : vector<2xf32> to vector<1x1x2xf32>
    %195 = vector.broadcast %194 : vector<1x1x2xf32> to vector<16x16x2xf32>
    %196 = arith.mulf %191, %195 : vector<16x16x2xf32>
    %197 = arith.addf %190, %196 : vector<16x16x2xf32>
    %198 = vector.extract_strided_slice %177 {offsets = [1, 0, 0], sizes = [16, 16, 2], strides = [1, 1, 1]} : vector<18x18x2xf32> to vector<16x16x2xf32>
    %199 = vector.extract_strided_slice %171 {offsets = [3, 0], sizes = [1, 2], strides = [1, 1]} : vector<9x2xf32> to vector<1x2xf32>
    %200 = vector.shape_cast %199 : vector<1x2xf32> to vector<2xf32>
    %201 = vector.shape_cast %200 : vector<2xf32> to vector<1x1x2xf32>
    %202 = vector.broadcast %201 : vector<1x1x2xf32> to vector<16x16x2xf32>
    %203 = arith.mulf %198, %202 : vector<16x16x2xf32>
    %204 = arith.addf %197, %203 : vector<16x16x2xf32>
    %205 = vector.extract_strided_slice %177 {offsets = [1, 1, 0], sizes = [16, 16, 2], strides = [1, 1, 1]} : vector<18x18x2xf32> to vector<16x16x2xf32>
    %206 = vector.extract_strided_slice %171 {offsets = [4, 0], sizes = [1, 2], strides = [1, 1]} : vector<9x2xf32> to vector<1x2xf32>
    %207 = vector.shape_cast %206 : vector<1x2xf32> to vector<2xf32>
    %208 = vector.shape_cast %207 : vector<2xf32> to vector<1x1x2xf32>
    %209 = vector.broadcast %208 : vector<1x1x2xf32> to vector<16x16x2xf32>
    %210 = arith.mulf %205, %209 : vector<16x16x2xf32>
    %211 = arith.addf %204, %210 : vector<16x16x2xf32>
    %212 = vector.extract_strided_slice %177 {offsets = [1, 2, 0], sizes = [16, 16, 2], strides = [1, 1, 1]} : vector<18x18x2xf32> to vector<16x16x2xf32>
    %213 = vector.extract_strided_slice %171 {offsets = [5, 0], sizes = [1, 2], strides = [1, 1]} : vector<9x2xf32> to vector<1x2xf32>
    %214 = vector.shape_cast %213 : vector<1x2xf32> to vector<2xf32>
    %215 = vector.shape_cast %214 : vector<2xf32> to vector<1x1x2xf32>
    %216 = vector.broadcast %215 : vector<1x1x2xf32> to vector<16x16x2xf32>
    %217 = arith.mulf %212, %216 : vector<16x16x2xf32>
    %218 = arith.addf %211, %217 : vector<16x16x2xf32>
    %219 = vector.extract_strided_slice %177 {offsets = [2, 0, 0], sizes = [16, 16, 2], strides = [1, 1, 1]} : vector<18x18x2xf32> to vector<16x16x2xf32>
    %220 = vector.extract_strided_slice %171 {offsets = [6, 0], sizes = [1, 2], strides = [1, 1]} : vector<9x2xf32> to vector<1x2xf32>
    %221 = vector.shape_cast %220 : vector<1x2xf32> to vector<2xf32>
    %222 = vector.shape_cast %221 : vector<2xf32> to vector<1x1x2xf32>
    %223 = vector.broadcast %222 : vector<1x1x2xf32> to vector<16x16x2xf32>
    %224 = arith.mulf %219, %223 : vector<16x16x2xf32>
    %225 = arith.addf %218, %224 : vector<16x16x2xf32>
    %226 = vector.extract_strided_slice %177 {offsets = [2, 1, 0], sizes = [16, 16, 2], strides = [1, 1, 1]} : vector<18x18x2xf32> to vector<16x16x2xf32>
    %227 = vector.extract_strided_slice %171 {offsets = [7, 0], sizes = [1, 2], strides = [1, 1]} : vector<9x2xf32> to vector<1x2xf32>
    %228 = vector.shape_cast %227 : vector<1x2xf32> to vector<2xf32>
    %229 = vector.shape_cast %228 : vector<2xf32> to vector<1x1x2xf32>
    %230 = vector.broadcast %229 : vector<1x1x2xf32> to vector<16x16x2xf32>
    %231 = arith.mulf %226, %230 : vector<16x16x2xf32>
    %232 = arith.addf %225, %231 : vector<16x16x2xf32>
    %233 = vector.extract_strided_slice %177 {offsets = [2, 2, 0], sizes = [16, 16, 2], strides = [1, 1, 1]} : vector<18x18x2xf32> to vector<16x16x2xf32>
    %234 = vector.extract_strided_slice %171 {offsets = [8, 0], sizes = [1, 2], strides = [1, 1]} : vector<9x2xf32> to vector<1x2xf32>
    %235 = vector.shape_cast %234 : vector<1x2xf32> to vector<2xf32>
    %236 = vector.shape_cast %235 : vector<2xf32> to vector<1x1x2xf32>
    %237 = vector.broadcast %236 : vector<1x1x2xf32> to vector<16x16x2xf32>
    %238 = arith.mulf %233, %237 : vector<16x16x2xf32>
    %239 = arith.addf %232, %238 : vector<16x16x2xf32>
    %240 = vector.extract_strided_slice %84 {offsets = [0, 0, 4], sizes = [16, 16, 2], strides = [1, 1, 1]} : vector<16x16x8xf32> to vector<16x16x2xf32>
    %241 = arith.addf %240, %239 : vector<16x16x2xf32>
    %242 = vector.extract_strided_slice %86 {offsets = [2, 0], sizes = [1, 2], strides = [1, 1]} : vector<4x2xf32> to vector<1x2xf32>
    %243 = vector.shape_cast %242 : vector<1x2xf32> to vector<2xf32>
    %244 = vector.shape_cast %243 : vector<2xf32> to vector<1x1x2xf32>
    %245 = vector.broadcast %244 : vector<1x1x2xf32> to vector<16x16x2xf32>
    %246 = arith.addf %241, %245 : vector<16x16x2xf32>
    %c0_19 = arith.constant 0 : index
    %c0_20 = arith.constant 0 : index
    %c4 = arith.constant 4 : index
    %247 = vector.load %arg11[%c0_19, %c0_20, %c4] : memref<16x16x8xf32, #tpu.memory_space<vmem>>, vector<16x16x2xf32>
    tpu.vector_store %arg11[%c0_19, %c0_20, %c4], %246 {strides = array<i32>} : memref<16x16x8xf32, #tpu.memory_space<vmem>>, vector<16x16x2xf32>,
    %248 = vector.extract_strided_slice %85 {offsets = [27, 0], sizes = [9, 2], strides = [1, 1]} : vector<36x2xf32> to vector<9x2xf32>
    %249 = vector.extract_strided_slice %246 {offsets = [1, 0, 0], sizes = [1, 16, 2], strides = [1, 1, 1]} : vector<16x16x2xf32> to vector<1x16x2xf32>
    %250 = vector.extract_strided_slice %246 {offsets = [14, 0, 0], sizes = [1, 16, 2], strides = [1, 1, 1]} : vector<16x16x2xf32> to vector<1x16x2xf32>
    %251 = tpu.concatenate %249, %246, %250 in 0 : vector<1x16x2xf32>, vector<16x16x2xf32>, vector<1x16x2xf32> -> vector<18x16x2xf32>
    %252 = vector.extract_strided_slice %251 {offsets = [0, 1, 0], sizes = [18, 1, 2], strides = [1, 1, 1]} : vector<18x16x2xf32> to vector<18x1x2xf32>
    %253 = vector.extract_strided_slice %251 {offsets = [0, 14, 0], sizes = [18, 1, 2], strides = [1, 1, 1]} : vector<18x16x2xf32> to vector<18x1x2xf32>
    %254 = tpu.concatenate %252, %251, %253 in 1 : vector<18x1x2xf32>, vector<18x16x2xf32>, vector<18x1x2xf32> -> vector<18x18x2xf32>
    %255 = vector.extract_strided_slice %254 {offsets = [0, 0, 0], sizes = [16, 16, 2], strides = [1, 1, 1]} : vector<18x18x2xf32> to vector<16x16x2xf32>
    %256 = vector.extract_strided_slice %248 {offsets = [0, 0], sizes = [1, 2], strides = [1, 1]} : vector<9x2xf32> to vector<1x2xf32>
    %257 = vector.shape_cast %256 : vector<1x2xf32> to vector<2xf32>
    %258 = vector.shape_cast %257 : vector<2xf32> to vector<1x1x2xf32>
    %259 = vector.broadcast %258 : vector<1x1x2xf32> to vector<16x16x2xf32>
    %260 = arith.mulf %255, %259 : vector<16x16x2xf32>
    %261 = vector.extract_strided_slice %254 {offsets = [0, 1, 0], sizes = [16, 16, 2], strides = [1, 1, 1]} : vector<18x18x2xf32> to vector<16x16x2xf32>
    %262 = vector.extract_strided_slice %248 {offsets = [1, 0], sizes = [1, 2], strides = [1, 1]} : vector<9x2xf32> to vector<1x2xf32>
    %263 = vector.shape_cast %262 : vector<1x2xf32> to vector<2xf32>
    %264 = vector.shape_cast %263 : vector<2xf32> to vector<1x1x2xf32>
    %265 = vector.broadcast %264 : vector<1x1x2xf32> to vector<16x16x2xf32>
    %266 = arith.mulf %261, %265 : vector<16x16x2xf32>
    %267 = arith.addf %260, %266 : vector<16x16x2xf32>
    %268 = vector.extract_strided_slice %254 {offsets = [0, 2, 0], sizes = [16, 16, 2], strides = [1, 1, 1]} : vector<18x18x2xf32> to vector<16x16x2xf32>
    %269 = vector.extract_strided_slice %248 {offsets = [2, 0], sizes = [1, 2], strides = [1, 1]} : vector<9x2xf32> to vector<1x2xf32>
    %270 = vector.shape_cast %269 : vector<1x2xf32> to vector<2xf32>
    %271 = vector.shape_cast %270 : vector<2xf32> to vector<1x1x2xf32>
    %272 = vector.broadcast %271 : vector<1x1x2xf32> to vector<16x16x2xf32>
    %273 = arith.mulf %268, %272 : vector<16x16x2xf32>
    %274 = arith.addf %267, %273 : vector<16x16x2xf32>
    %275 = vector.extract_strided_slice %254 {offsets = [1, 0, 0], sizes = [16, 16, 2], strides = [1, 1, 1]} : vector<18x18x2xf32> to vector<16x16x2xf32>
    %276 = vector.extract_strided_slice %248 {offsets = [3, 0], sizes = [1, 2], strides = [1, 1]} : vector<9x2xf32> to vector<1x2xf32>
    %277 = vector.shape_cast %276 : vector<1x2xf32> to vector<2xf32>
    %278 = vector.shape_cast %277 : vector<2xf32> to vector<1x1x2xf32>
    %279 = vector.broadcast %278 : vector<1x1x2xf32> to vector<16x16x2xf32>
    %280 = arith.mulf %275, %279 : vector<16x16x2xf32>
    %281 = arith.addf %274, %280 : vector<16x16x2xf32>
    %282 = vector.extract_strided_slice %254 {offsets = [1, 1, 0], sizes = [16, 16, 2], strides = [1, 1, 1]} : vector<18x18x2xf32> to vector<16x16x2xf32>
    %283 = vector.extract_strided_slice %248 {offsets = [4, 0], sizes = [1, 2], strides = [1, 1]} : vector<9x2xf32> to vector<1x2xf32>
    %284 = vector.shape_cast %283 : vector<1x2xf32> to vector<2xf32>
    %285 = vector.shape_cast %284 : vector<2xf32> to vector<1x1x2xf32>
    %286 = vector.broadcast %285 : vector<1x1x2xf32> to vector<16x16x2xf32>
    %287 = arith.mulf %282, %286 : vector<16x16x2xf32>
    %288 = arith.addf %281, %287 : vector<16x16x2xf32>
    %289 = vector.extract_strided_slice %254 {offsets = [1, 2, 0], sizes = [16, 16, 2], strides = [1, 1, 1]} : vector<18x18x2xf32> to vector<16x16x2xf32>
    %290 = vector.extract_strided_slice %248 {offsets = [5, 0], sizes = [1, 2], strides = [1, 1]} : vector<9x2xf32> to vector<1x2xf32>
    %291 = vector.shape_cast %290 : vector<1x2xf32> to vector<2xf32>
    %292 = vector.shape_cast %291 : vector<2xf32> to vector<1x1x2xf32>
    %293 = vector.broadcast %292 : vector<1x1x2xf32> to vector<16x16x2xf32>
    %294 = arith.mulf %289, %293 : vector<16x16x2xf32>
    %295 = arith.addf %288, %294 : vector<16x16x2xf32>
    %296 = vector.extract_strided_slice %254 {offsets = [2, 0, 0], sizes = [16, 16, 2], strides = [1, 1, 1]} : vector<18x18x2xf32> to vector<16x16x2xf32>
    %297 = vector.extract_strided_slice %248 {offsets = [6, 0], sizes = [1, 2], strides = [1, 1]} : vector<9x2xf32> to vector<1x2xf32>
    %298 = vector.shape_cast %297 : vector<1x2xf32> to vector<2xf32>
    %299 = vector.shape_cast %298 : vector<2xf32> to vector<1x1x2xf32>
    %300 = vector.broadcast %299 : vector<1x1x2xf32> to vector<16x16x2xf32>
    %301 = arith.mulf %296, %300 : vector<16x16x2xf32>
    %302 = arith.addf %295, %301 : vector<16x16x2xf32>
    %303 = vector.extract_strided_slice %254 {offsets = [2, 1, 0], sizes = [16, 16, 2], strides = [1, 1, 1]} : vector<18x18x2xf32> to vector<16x16x2xf32>
    %304 = vector.extract_strided_slice %248 {offsets = [7, 0], sizes = [1, 2], strides = [1, 1]} : vector<9x2xf32> to vector<1x2xf32>
    %305 = vector.shape_cast %304 : vector<1x2xf32> to vector<2xf32>
    %306 = vector.shape_cast %305 : vector<2xf32> to vector<1x1x2xf32>
    %307 = vector.broadcast %306 : vector<1x1x2xf32> to vector<16x16x2xf32>
    %308 = arith.mulf %303, %307 : vector<16x16x2xf32>
    %309 = arith.addf %302, %308 : vector<16x16x2xf32>
    %310 = vector.extract_strided_slice %254 {offsets = [2, 2, 0], sizes = [16, 16, 2], strides = [1, 1, 1]} : vector<18x18x2xf32> to vector<16x16x2xf32>
    %311 = vector.extract_strided_slice %248 {offsets = [8, 0], sizes = [1, 2], strides = [1, 1]} : vector<9x2xf32> to vector<1x2xf32>
    %312 = vector.shape_cast %311 : vector<1x2xf32> to vector<2xf32>
    %313 = vector.shape_cast %312 : vector<2xf32> to vector<1x1x2xf32>
    %314 = vector.broadcast %313 : vector<1x1x2xf32> to vector<16x16x2xf32>
    %315 = arith.mulf %310, %314 : vector<16x16x2xf32>
    %316 = arith.addf %309, %315 : vector<16x16x2xf32>
    %317 = vector.extract_strided_slice %84 {offsets = [0, 0, 6], sizes = [16, 16, 2], strides = [1, 1, 1]} : vector<16x16x8xf32> to vector<16x16x2xf32>
    %318 = arith.addf %317, %316 : vector<16x16x2xf32>
    %319 = vector.extract_strided_slice %86 {offsets = [3, 0], sizes = [1, 2], strides = [1, 1]} : vector<4x2xf32> to vector<1x2xf32>
    %320 = vector.shape_cast %319 : vector<1x2xf32> to vector<2xf32>
    %321 = vector.shape_cast %320 : vector<2xf32> to vector<1x1x2xf32>
    %322 = vector.broadcast %321 : vector<1x1x2xf32> to vector<16x16x2xf32>
    %323 = arith.addf %318, %322 : vector<16x16x2xf32>
    %c0_21 = arith.constant 0 : index
    %c0_22 = arith.constant 0 : index
    %c6 = arith.constant 6 : index
    %324 = vector.load %arg11[%c0_21, %c0_22, %c6] : memref<16x16x8xf32, #tpu.memory_space<vmem>>, vector<16x16x2xf32>
    tpu.vector_store %arg11[%c0_21, %c0_22, %c6], %323 {strides = array<i32>} : memref<16x16x8xf32, #tpu.memory_space<vmem>>, vector<16x16x2xf32>,
    %c0_23 = arith.constant 0 : index
    %c0_24 = arith.constant 0 : index
    %c0_25 = arith.constant 0 : index
    %325 = vector.load %arg11[%c0_23, %c0_24, %c0_25] : memref<16x16x8xf32, #tpu.memory_space<vmem>>, vector<16x16x8xf32>
    %326 = vector.shape_cast %325 : vector<16x16x8xf32> to vector<256x8xf32>
    %327 = arith.mulf %326, %13 : vector<256x8xf32>
    %c0_26 = arith.constant 0 : index
    %c0_27 = arith.constant 0 : index
    %328 = vector.load %arg7[%c0_26, %c0_27] : memref<8x8xf32, #tpu.memory_space<vmem>>, vector<8x8xf32>
    %cst_28 = arith.constant dense<0.000000e+00> : vector<256x8xf32>
    %329 = tpu.matmul %327, %328, %cst_28 {dimension_numbers = #tpu.dot_dimension_numbers<[1], [0], [0], [1], [0, 0, 1, 1], [], []>} : vector<256x8xf32>, vector<8x8xf32>, vector<256x8xf32> -> vector<256x8xf32>
    %c0_29 = arith.constant 0 : index
    %c0_30 = arith.constant 0 : index
    %330 = vector.load %arg8[%c0_29, %c0_30] : memref<1x8xf32, #tpu.memory_space<vmem>>, vector<1x8xf32>
    %331 = vector.broadcast %330 : vector<1x8xf32> to vector<256x8xf32>
    %332 = arith.addf %329, %331 : vector<256x8xf32>
    %c0_31 = arith.constant 0 : index
    %c0_32 = arith.constant 0 : index
    %333 = vector.load %arg9[%c0_31, %c0_32] : memref<1x8xf32, #tpu.memory_space<vmem>>, vector<1x8xf32>
    %334 = vector.broadcast %333 : vector<1x8xf32> to vector<256x8xf32>
    %335 = arith.mulf %334, %332 : vector<256x8xf32>
    %c0_33 = arith.constant 0 : index
    %c0_34 = arith.constant 0 : index
    %c0_35 = arith.constant 0 : index
    %c0_36 = arith.constant 0 : index
    %336 = vector.load %arg1[%c0_33, %c0_34, %c0_35, %c0_36] : memref<1x16x16x8xf32, #tpu.memory_space<vmem>>, vector<1x16x16x8xf32>
    %337 = vector.shape_cast %336 : vector<1x16x16x8xf32> to vector<16x16x8xf32>
    %338 = vector.shape_cast %337 : vector<16x16x8xf32> to vector<256x8xf32>
    %339 = arith.addf %335, %338 : vector<256x8xf32>
    %340 = vector.shape_cast %339 : vector<256x8xf32> to vector<16x16x8xf32>
    %c0_37 = arith.constant 0 : index
    %c0_38 = arith.constant 0 : index
    %c0_39 = arith.constant 0 : index
    %c0_40 = arith.constant 0 : index
    %341 = vector.load %arg10[%c0_37, %c0_38, %c0_39, %c0_40] : memref<1x16x16x8xf32, #tpu.memory_space<vmem>>, vector<1x16x16x8xf32>
    %342 = vector.shape_cast %341 : vector<1x16x16x8xf32> to vector<16x16x8xf32>
    %343 = vector.shape_cast %340 : vector<16x16x8xf32> to vector<1x16x16x8xf32>
    tpu.vector_store %arg10[%c0_37, %c0_38, %c0_39, %c0_40], %343 {strides = array<i32>} : memref<1x16x16x8xf32, #tpu.memory_space<vmem>>, vector<1x16x16x8xf32>,
    return
  }
  func.func @transform_0(%arg0: i32) -> (i32, i32, i32, i32) {
    %c0_i32 = arith.constant 0 : i32
    %c0_i32_0 = arith.constant 0 : i32
    %c0_i32_1 = arith.constant 0 : i32
    %c0_i32_2 = arith.constant 0 : i32
    return %arg0, %c0_i32, %c0_i32_0, %c0_i32_1 : i32, i32, i32, i32
  }
  func.func @transform_1(%arg0: i32) -> (i32, i32) {
    %c0_i32 = arith.constant 0 : i32
    %c0_i32_0 = arith.constant 0 : i32
    %c0_i32_1 = arith.constant 0 : i32
    return %c0_i32, %c0_i32_0 : i32, i32
  }
  func.func @transform_2(%arg0: i32) -> (i32, i32) {
    %c0_i32 = arith.constant 0 : i32
    %c0_i32_0 = arith.constant 0 : i32
    %c0_i32_1 = arith.constant 0 : i32
    return %c0_i32, %c0_i32_0 : i32, i32
  }
  func.func @transform_3(%arg0: i32) -> (i32, i32) {
    %c0_i32 = arith.constant 0 : i32
    %c0_i32_0 = arith.constant 0 : i32
    %c0_i32_1 = arith.constant 0 : i32
    return %c0_i32, %c0_i32_0 : i32, i32
  }
  func.func @transform_4(%arg0: i32) -> (i32, i32) {
    %c0_i32 = arith.constant 0 : i32
    %c0_i32_0 = arith.constant 0 : i32
    %c0_i32_1 = arith.constant 0 : i32
    return %c0_i32, %c0_i32_0 : i32, i32
  }
  func.func @transform_5(%arg0: i32) -> (i32, i32) {
    %c0_i32 = arith.constant 0 : i32
    %c0_i32_0 = arith.constant 0 : i32
    %c0_i32_1 = arith.constant 0 : i32
    return %c0_i32, %c0_i32_0 : i32, i32
  }
  func.func @transform_6(%arg0: i32) -> (i32, i32) {
    %c0_i32 = arith.constant 0 : i32
    %c0_i32_0 = arith.constant 0 : i32
    %c0_i32_1 = arith.constant 0 : i32
    return %c0_i32, %c0_i32_0 : i32, i32
  }
  func.func @transform_7(%arg0: i32) -> (i32, i32) {
    %c0_i32 = arith.constant 0 : i32
    %c0_i32_0 = arith.constant 0 : i32
    %c0_i32_1 = arith.constant 0 : i32
    return %c0_i32, %c0_i32_0 : i32, i32
  }
  func.func @transform_8(%arg0: i32) -> (i32, i32) {
    %c0_i32 = arith.constant 0 : i32
    %c0_i32_0 = arith.constant 0 : i32
    %c0_i32_1 = arith.constant 0 : i32
    return %c0_i32, %c0_i32_0 : i32, i32
  }
  func.func @transform_9(%arg0: i32) -> (i32, i32, i32, i32) {
    %c0_i32 = arith.constant 0 : i32
    %c0_i32_0 = arith.constant 0 : i32
    %c0_i32_1 = arith.constant 0 : i32
    %c0_i32_2 = arith.constant 0 : i32
    return %arg0, %c0_i32, %c0_i32_0, %c0_i32_1 : i32, i32, i32, i32
  }
}

</mosaic_0001>

<llo_original>
// kernel: convblock_pallas.1
$region0: #{convblock_pallas.1}
  #allocation0 [shape = 'u32[]', space=smem, size = 0x4, offset = 0x4, fixed_abs, tag = 'smem constant byte address 0x4 - core index']
  #allocation1 [shape = 'u32[72,128]{1,0:T(1,128)}', space=vmem, size = 0x9000, scoped, tag = 'internal scratch']
  #allocation2 [shape = 'f32[16,16,8]{2,1,0:T(8,128)}', space=vmem, size = 0x20000, scoped, tag = 'scratch operand']
  %s0 = inlined_call_operand.vmem [shape: f32[2,16,16,8], index: 0, kind: input, shape index: {}]
  %s1 = inlined_call_operand.vmem [shape: f32[8,16], index: 1, kind: input, shape index: {}]
  %s2 = inlined_call_operand.vmem [shape: f32[1,16], index: 2, kind: input, shape index: {}]
  %s3 = inlined_call_operand.vmem [shape: f32[9,8], index: 3, kind: input, shape index: {}]
  %s4 = inlined_call_operand.vmem [shape: f32[36,2], index: 4, kind: input, shape index: {}]
  %s5 = inlined_call_operand.vmem [shape: f32[4,2], index: 5, kind: input, shape index: {}]
  %s6 = inlined_call_operand.vmem [shape: f32[8,8], index: 6, kind: input, shape index: {}]
  %s7 = inlined_call_operand.vmem [shape: f32[1,8], index: 7, kind: input, shape index: {}]
  %s8 = inlined_call_operand.vmem [shape: f32[1,8], index: 8, kind: input, shape index: {}]
  %s9 = inlined_call_operand.vmem [shape: f32[2,16,16,8], index: 9, kind: output, shape index: {}]
  %s10 = sld [smem:[#allocation0]]
  $region69: #{convblock_pallas.1} parent=0
    _
  %s12 = ssub.s32 1, %s10
  %s13 = scalar_select 0, %s12, %s10
  loop: start=0, step=1, limit=4
  $region2: #{convblock_pallas.1} parent=0 // loop_pre_header
    _
  $region3: #{convblock_pallas.1} parent=0 // loop_header
    %s15 = sphi 0, %s19
    %p16 = scmp.ge.s32.totalorder %s15, 4
    %s25 = sphi 0, %s27
    %s28 = sphi 0, %s25
    %s29 = sphi 0, %s28
    %s45 = sphi 0, %s29
    %s49 = sphi 0, %s49
    %s51 = sphi 0, %s49
    %s52 = sphi 0, %s51
    %s66 = sphi 0, %s52
    %s70 = sphi 0, %s70
    %s72 = sphi 0, %s70
    %s73 = sphi 0, %s72
    %s87 = sphi 0, %s73
    %s91 = sphi 0, %s91
    %s93 = sphi 0, %s91
    %s94 = sphi 0, %s93
    %s108 = sphi 0, %s94
    %s112 = sphi 0, %s112
    %s114 = sphi 0, %s112
    %s115 = sphi 0, %s114
    %s129 = sphi 0, %s115
    %s133 = sphi 0, %s133
    %s135 = sphi 0, %s133
    %s136 = sphi 0, %s135
    %s150 = sphi 0, %s136
    %s154 = sphi 0, %s154
    %s156 = sphi 0, %s154
    %s157 = sphi 0, %s156
    %s171 = sphi 0, %s157
    %s175 = sphi 0, %s175
    %s177 = sphi 0, %s175
    %s178 = sphi 0, %s177
    %s192 = sphi 0, %s178
    %s196 = sphi 0, %s196
    %s198 = sphi 0, %s196
    %s199 = sphi 0, %s198
    %s213 = sphi 0, %s199
    %s219 = sphi 0, %s221
    %s222 = sphi 0, %s219
    %s223 = sphi 0, %s222
    %s239 = sphi 0, %s223
  $region4: #{convblock_pallas.1} parent=0 // loop_header_branch
    %18 = sbr.rel (%p16) target = $region8
  $region5: #{convblock_pallas.1} parent=0 // loop_body
    %s20 = ssub.s32 %s15, 1
    %s21 = ssub.s32 %s15, 2
    %s22 = sadd.s32 %s15, 1
    %s23 = ssub.s32 %s15, %s22
    %p24 = scmp.eq.s32.totalorder %s23, 0
    %s26 = sadd.s32 %s25, 1
    %s27 = scalar_select %p24, %s25, %s26
    %p30 = pneg %p24
    %p31 = scmp.eq.s32.totalorder %s15, 1
    %p32 = por %p30, %p31
    %p33 = scmp.ne.s32.totalorder %s25, %s28
    %p34 = scmp.eq.s32.totalorder %s15, 0
    %p35 = por %p33, %p34
    %p36 = scmp.ne.s32.totalorder %s25, %s28
    %p37 = scmp.eq.s32.totalorder %s20, 1
    %p38 = por %p36, %p37
    %p39 = scmp.ne.s32.totalorder %s28, %s29
    %p40 = scmp.eq.s32.totalorder %s20, 0
    %p41 = por %p39, %p40
    %p42 = scmp.ne.s32.totalorder %s28, %s29
    %p43 = scmp.eq.s32.totalorder %s21, 1
    %p44 = por %p42, %p43
    %p46 = scmp.ne.s32.totalorder %s29, %s45
    %p47 = scmp.eq.s32.totalorder %s21, 0
    %p48 = por %p46, %p47
    %s50 = sadd.s32 %s49, 1
    %p53 = scmp.eq.s32.totalorder %s15, 1
    %p54 = scmp.ne.s32.totalorder %s49, %s51
    %p55 = scmp.eq.s32.totalorder %s15, 0
    %p56 = por %p54, %p55
    %p57 = scmp.ne.s32.totalorder %s49, %s51
    %p58 = scmp.eq.s32.totalorder %s20, 1
    %p59 = por %p57, %p58
    %p60 = scmp.ne.s32.totalorder %s51, %s52
    %p61 = scmp.eq.s32.totalorder %s20, 0
    %p62 = por %p60, %p61
    %p63 = scmp.ne.s32.totalorder %s51, %s52
    %p64 = scmp.eq.s32.totalorder %s21, 1
    %p65 = por %p63, %p64
    %p67 = scmp.ne.s32.totalorder %s52, %s66
    %p68 = scmp.eq.s32.totalorder %s21, 0
    %p69 = por %p67, %p68
    %s71 = sadd.s32 %s70, 1
    %p74 = scmp.eq.s32.totalorder %s15, 1
    %p75 = scmp.ne.s32.totalorder %s70, %s72
    %p76 = scmp.eq.s32.totalorder %s15, 0
    %p77 = por %p75, %p76
    %p78 = scmp.ne.s32.totalorder %s70, %s72
    %p79 = scmp.eq.s32.totalorder %s20, 1
    %p80 = por %p78, %p79
    %p81 = scmp.ne.s32.totalorder %s72, %s73
    %p82 = scmp.eq.s32.totalorder %s20, 0
    %p83 = por %p81, %p82
    %p84 = scmp.ne.s32.totalorder %s72, %s73
    %p85 = scmp.eq.s32.totalorder %s21, 1
    %p86 = por %p84, %p85
    %p88 = scmp.ne.s32.totalorder %s73, %s87
    %p89 = scmp.eq.s32.totalorder %s21, 0
    %p90 = por %p88, %p89
    %s92 = sadd.s32 %s91, 1
    %p95 = scmp.eq.s32.totalorder %s15, 1
    %p96 = scmp.ne.s32.totalorder %s91, %s93
    %p97 = scmp.eq.s32.totalorder %s15, 0
    %p98 = por %p96, %p97
    %p99 = scmp.ne.s32.totalorder %s91, %s93
    %p100 = scmp.eq.s32.totalorder %s20, 1
    %p101 = por %p99, %p100
    %p102 = scmp.ne.s32.totalorder %s93, %s94
    %p103 = scmp.eq.s32.totalorder %s20, 0
    %p104 = por %p102, %p103
    %p105 = scmp.ne.s32.totalorder %s93, %s94
    %p106 = scmp.eq.s32.totalorder %s21, 1
    %p107 = por %p105, %p106
    %p109 = scmp.ne.s32.totalorder %s94, %s108
    %p110 = scmp.eq.s32.totalorder %s21, 0
    %p111 = por %p109, %p110
    %s113 = sadd.s32 %s112, 1
    %p116 = scmp.eq.s32.totalorder %s15, 1
    %p117 = scmp.ne.s32.totalorder %s112, %s114
    %p118 = scmp.eq.s32.totalorder %s15, 0
    %p119 = por %p117, %p118
    %p120 = scmp.ne.s32.totalorder %s112, %s114
    %p121 = scmp.eq.s32.totalorder %s20, 1
    %p122 = por %p120, %p121
    %p123 = scmp.ne.s32.totalorder %s114, %s115
    %p124 = scmp.eq.s32.totalorder %s20, 0
    %p125 = por %p123, %p124
    %p126 = scmp.ne.s32.totalorder %s114, %s115
    %p127 = scmp.eq.s32.totalorder %s21, 1
    %p128 = por %p126, %p127
    %p130 = scmp.ne.s32.totalorder %s115, %s129
    %p131 = scmp.eq.s32.totalorder %s21, 0
    %p132 = por %p130, %p131
    %s134 = sadd.s32 %s133, 1
    %p137 = scmp.eq.s32.totalorder %s15, 1
    %p138 = scmp.ne.s32.totalorder %s133, %s135
    %p139 = scmp.eq.s32.totalorder %s15, 0
    %p140 = por %p138, %p139
    %p141 = scmp.ne.s32.totalorder %s133, %s135
    %p142 = scmp.eq.s32.totalorder %s20, 1
    %p143 = por %p141, %p142
    %p144 = scmp.ne.s32.totalorder %s135, %s136
    %p145 = scmp.eq.s32.totalorder %s20, 0
    %p146 = por %p144, %p145
    %p147 = scmp.ne.s32.totalorder %s135, %s136
    %p148 = scmp.eq.s32.totalorder %s21, 1
    %p149 = por %p147, %p148
    %p151 = scmp.ne.s32.totalorder %s136, %s150
    %p152 = scmp.eq.s32.totalorder %s21, 0
    %p153 = por %p151, %p152
    %s155 = sadd.s32 %s154, 1
    %p158 = scmp.eq.s32.totalorder %s15, 1
    %p159 = scmp.ne.s32.totalorder %s154, %s156
    %p160 = scmp.eq.s32.totalorder %s15, 0
    %p161 = por %p159, %p160
    %p162 = scmp.ne.s32.totalorder %s154, %s156
    %p163 = scmp.eq.s32.totalorder %s20, 1
    %p164 = por %p162, %p163
    %p165 = scmp.ne.s32.totalorder %s156, %s157
    %p166 = scmp.eq.s32.totalorder %s20, 0
    %p167 = por %p165, %p166
    %p168 = scmp.ne.s32.totalorder %s156, %s157
    %p169 = scmp.eq.s32.totalorder %s21, 1
    %p170 = por %p168, %p169
    %p172 = scmp.ne.s32.totalorder %s157, %s171
    %p173 = scmp.eq.s32.totalorder %s21, 0
    %p174 = por %p172, %p173
    %s176 = sadd.s32 %s175, 1
    %p179 = scmp.eq.s32.totalorder %s15, 1
    %p180 = scmp.ne.s32.totalorder %s175, %s177
    %p181 = scmp.eq.s32.totalorder %s15, 0
    %p182 = por %p180, %p181
    %p183 = scmp.ne.s32.totalorder %s175, %s177
    %p184 = scmp.eq.s32.totalorder %s20, 1
    %p185 = por %p183, %p184
    %p186 = scmp.ne.s32.totalorder %s177, %s178
    %p187 = scmp.eq.s32.totalorder %s20, 0
    %p188 = por %p186, %p187
    %p189 = scmp.ne.s32.totalorder %s177, %s178
    %p190 = scmp.eq.s32.totalorder %s21, 1
    %p191 = por %p189, %p190
    %p193 = scmp.ne.s32.totalorder %s178, %s192
    %p194 = scmp.eq.s32.totalorder %s21, 0
    %p195 = por %p193, %p194
    %s197 = sadd.s32 %s196, 1
    %p200 = scmp.eq.s32.totalorder %s15, 1
    %p201 = scmp.ne.s32.totalorder %s196, %s198
    %p202 = scmp.eq.s32.totalorder %s15, 0
    %p203 = por %p201, %p202
    %p204 = scmp.ne.s32.totalorder %s196, %s198
    %p205 = scmp.eq.s32.totalorder %s20, 1
    %p206 = por %p204, %p205
    %p207 = scmp.ne.s32.totalorder %s198, %s199
    %p208 = scmp.eq.s32.totalorder %s20, 0
    %p209 = por %p207, %p208
    %p210 = scmp.ne.s32.totalorder %s198, %s199
    %p211 = scmp.eq.s32.totalorder %s21, 1
    %p212 = por %p210, %p211
    %p214 = scmp.ne.s32.totalorder %s199, %s213
    %p215 = scmp.eq.s32.totalorder %s21, 0
    %p216 = por %p214, %p215
    %s217 = ssub.s32 %s15, %s22
    %p218 = scmp.eq.s32.totalorder %s217, 0
    %s220 = sadd.s32 %s219, 1
    %s221 = scalar_select %p218, %s219, %s220
    %p224 = pneg %p218
    %p225 = scmp.eq.s32.totalorder %s15, 1
    %p226 = por %p224, %p225
    %p227 = scmp.ne.s32.totalorder %s219, %s222
    %p228 = scmp.eq.s32.totalorder %s15, 0
    %p229 = por %p227, %p228
    %p230 = scmp.ne.s32.totalorder %s219, %s222
    %p231 = scmp.eq.s32.totalorder %s20, 1
    %p232 = por %p230, %p231
    %p233 = scmp.ne.s32.totalorder %s222, %s223
    %p234 = scmp.eq.s32.totalorder %s20, 0
    %p235 = por %p233, %p234
    %p236 = scmp.ne.s32.totalorder %s222, %s223
    %p237 = scmp.eq.s32.totalorder %s21, 1
    %p238 = por %p236, %p237
    %p240 = scmp.ne.s32.totalorder %s223, %s239
    %p241 = scmp.eq.s32.totalorder %s21, 0
    %p242 = por %p240, %p241
    %p243 = scmp.le.s32.totalorder 1, %s15
    %p244 = scmp.lt.s32.totalorder %s15, 3
    %p245 = pnand %p243, %p244
    %p246 = pneg %p245
    // Predicated region
    $region9: #{convblock_pallas.1} parent=5 // pred_check
      _
    $region10: #{convblock_pallas.1} parent=5 // pred_check_branch
      %248 = sbr.rel (%p245) target = $region12
    $region11: #{convblock_pallas.1} parent=5 // pred_region
      %s249 = ssub.s32 %s15, 1
      // Predicated region
      $region13: #{convblock_pallas.1} parent=11 // pred_check
        %p250 = pneg %p62
      $region14: #{convblock_pallas.1} parent=11 // pred_check_branch
        %252 = sbr.rel (%p250) target = $region16
      $region15: #{convblock_pallas.1} parent=11 // pred_region
        _
      $region16: #{convblock_pallas.1} parent=11 // pred_fallthru
        _
      // Predicated region
      $region17: #{convblock_pallas.1} parent=11 // pred_check
        %p253 = pneg %p83
      $region18: #{convblock_pallas.1} parent=11 // pred_check_branch
        %255 = sbr.rel (%p253) target = $region20
      $region19: #{convblock_pallas.1} parent=11 // pred_region
        _
      $region20: #{convblock_pallas.1} parent=11 // pred_fallthru
        _
      // Predicated region
      $region21: #{convblock_pallas.1} parent=11 // pred_check
        %p256 = pneg %p104
      $region22: #{convblock_pallas.1} parent=11 // pred_check_branch
        %258 = sbr.rel (%p256) target = $region24
      $region23: #{convblock_pallas.1} parent=11 // pred_region
        _
      $region24: #{convblock_pallas.1} parent=11 // pred_fallthru
        _
      // Predicated region
      $region25: #{convblock_pallas.1} parent=11 // pred_check
        %p259 = pneg %p125
      $region26: #{convblock_pallas.1} parent=11 // pred_check_branch
        %261 = sbr.rel (%p259) target = $region28
      $region27: #{convblock_pallas.1} parent=11 // pred_region
        _
      $region28: #{convblock_pallas.1} parent=11 // pred_fallthru
        _
      // Predicated region
      $region29: #{convblock_pallas.1} parent=11 // pred_check
        %p262 = pneg %p146
      $region30: #{convblock_pallas.1} parent=11 // pred_check_branch
        %264 = sbr.rel (%p262) target = $region32
      $region31: #{convblock_pallas.1} parent=11 // pred_region
        _
      $region32: #{convblock_pallas.1} parent=11 // pred_fallthru
        _
      // Predicated region
      $region33: #{convblock_pallas.1} parent=11 // pred_check
        %p265 = pneg %p167
      $region34: #{convblock_pallas.1} parent=11 // pred_check_branch
        %267 = sbr.rel (%p265) target = $region36
      $region35: #{convblock_pallas.1} parent=11 // pred_region
        _
      $region36: #{convblock_pallas.1} parent=11 // pred_fallthru
        _
      // Predicated region
      $region37: #{convblock_pallas.1} parent=11 // pred_check
        %p268 = pneg %p188
      $region38: #{convblock_pallas.1} parent=11 // pred_check_branch
        %270 = sbr.rel (%p268) target = $region40
      $region39: #{convblock_pallas.1} parent=11 // pred_region
        _
      $region40: #{convblock_pallas.1} parent=11 // pred_fallthru
        _
      // Predicated region
      $region41: #{convblock_pallas.1} parent=11 // pred_check
        %p271 = pneg %p209
      $region42: #{convblock_pallas.1} parent=11 // pred_check_branch
        %273 = sbr.rel (%p271) target = $region44
      $region43: #{convblock_pallas.1} parent=11 // pred_region
        _
      $region44: #{convblock_pallas.1} parent=11 // pred_fallthru
        _
    $region12: #{convblock_pallas.1} parent=5 // pred_fallthru
      _
    %p274 = scmp.lt.s32.totalorder %s15, 2
    // Predicated region
    $region45: #{convblock_pallas.1} parent=5 // pred_check
      %p275 = pneg %p274
    $region46: #{convblock_pallas.1} parent=5 // pred_check_branch
      %277 = sbr.rel (%p275) target = $region48
    $region47: #{convblock_pallas.1} parent=5 // pred_region
      // Predicated region
      $region49: #{convblock_pallas.1} parent=47 // pred_check
        %p278 = pneg %p35
      $region50: #{convblock_pallas.1} parent=47 // pred_check_branch
        %280 = sbr.rel (%p278) target = $region52
      $region51: #{convblock_pallas.1} parent=47 // pred_region
        %p281 = scmp.lt.s32.totalorder %s15, 1
        %s282 = scalar_select %p281, %s15, 1
        %s283 = smul.addr %s282, 32
        %s284 = smul.addr %s283, 8
        %s285 = scalar_lea.vmem %s0, %s284
      $region52: #{convblock_pallas.1} parent=47 // pred_fallthru
        _
    $region48: #{convblock_pallas.1} parent=5 // pred_fallthru
      _
    %p286 = scmp.le.s32.totalorder 1, %s15
    %p287 = scmp.lt.s32.totalorder %s15, 3
    %p288 = pnand %p286, %p287
    %p289 = pneg %p288
    // Predicated region
    $region53: #{convblock_pallas.1} parent=5 // pred_check
      _
    $region54: #{convblock_pallas.1} parent=5 // pred_check_branch
      %291 = sbr.rel (%p288) target = $region56
    $region55: #{convblock_pallas.1} parent=5 // pred_region
      %s292 = ssub.s32 %s15, 1
      %p293 = scmp.lt.s32.totalorder %s20, 1
      %s294 = scalar_select %p293, %s20, 1
      %s295 = smul.addr %s294, 32
      %s296 = smul.addr %s295, 8
      %s297 = scalar_lea.vmem %s0, %s296
      %p298 = pneg %p41
      %p299 = pneg %p38
      %p300 = pneg %p62
      %p301 = pneg %p59
      %p302 = pneg %p83
      %p303 = pneg %p80
      %p304 = pneg %p104
      %p305 = pneg %p101
      %p306 = pneg %p125
      %p307 = pneg %p122
      %p308 = pneg %p146
      %p309 = pneg %p143
      %p310 = pneg %p167
      %p311 = pneg %p164
      %p312 = pneg %p188
      %p313 = pneg %p185
      %p314 = pneg %p209
      %p315 = pneg %p206
      %p316 = pneg %p235
      %p317 = pneg %p232
      %p318 = scmp.lt.s32.totalorder %s20, 1
      %s319 = scalar_select %p318, %s20, 1
      %s320 = smul.addr %s319, 32
      %s321 = smul.addr %s320, 8
      %s322 = scalar_lea.vmem %s9, %s321
      %p323 = scmp.lt.s32.totalorder %s20, 1
      %s324 = scalar_select %p323, %s20, 1
      %s325 = smul.addr %s324, 32
      %s326 = smul.addr %s325, 8
      %s327 = scalar_lea.vmem %s0, %s326
      %p328 = scmp.lt.s32.totalorder %s20, 1
      %s329 = scalar_select %p328, %s20, 1
      %s330 = smul.addr %s329, 32
      %s331 = smul.addr %s330, 8
      %s332 = scalar_lea.vmem %s9, %s331
      %v333 = vld [vmem:[%s327] sm:$0xff]
      %v334 = vld [vmem:[%s327 + $0x8] sm:$0xff]
      %v335 = vld [vmem:[%s327 + $0x10] sm:$0xff]
      %v336 = vld [vmem:[%s327 + $0x18] sm:$0xff]
      %v337 = vld [vmem:[%s327 + $0x20] sm:$0xff]
      %v338 = vld [vmem:[%s327 + $0x28] sm:$0xff]
      %v339 = vld [vmem:[%s327 + $0x30] sm:$0xff]
      %v340 = vld [vmem:[%s327 + $0x38] sm:$0xff]
      %v341 = vld [vmem:[%s327 + $0x40] sm:$0xff]
      %v342 = vld [vmem:[%s327 + $0x48] sm:$0xff]
      %v343 = vld [vmem:[%s327 + $0x50] sm:$0xff]
      %v344 = vld [vmem:[%s327 + $0x58] sm:$0xff]
      %v345 = vld [vmem:[%s327 + $0x60] sm:$0xff]
      %v346 = vld [vmem:[%s327 + $0x68] sm:$0xff]
      %v347 = vld [vmem:[%s327 + $0x70] sm:$0xff]
      %v348 = vld [vmem:[%s327 + $0x78] sm:$0xff]
      %v349 = vld [vmem:[%s327 + $0x80] sm:$0xff]
      %v350 = vld [vmem:[%s327 + $0x88] sm:$0xff]
      %v351 = vld [vmem:[%s327 + $0x90] sm:$0xff]
      %v352 = vld [vmem:[%s327 + $0x98] sm:$0xff]
      %v353 = vld [vmem:[%s327 + $0xa0] sm:$0xff]
      %v354 = vld [vmem:[%s327 + $0xa8] sm:$0xff]
      %v355 = vld [vmem:[%s327 + $0xb0] sm:$0xff]
      %v356 = vld [vmem:[%s327 + $0xb8] sm:$0xff]
      %v357 = vld [vmem:[%s327 + $0xc0] sm:$0xff]
      %v358 = vld [vmem:[%s327 + $0xc8] sm:$0xff]
      %v359 = vld [vmem:[%s327 + $0xd0] sm:$0xff]
      %v360 = vld [vmem:[%s327 + $0xd8] sm:$0xff]
      %v361 = vld [vmem:[%s327 + $0xe0] sm:$0xff]
      %v362 = vld [vmem:[%s327 + $0xe8] sm:$0xff]
      %v363 = vld [vmem:[%s327 + $0xf0] sm:$0xff]
      %v364 = vld [vmem:[%s327 + $0xf8] sm:$0xff]
      %v365 = vld [vmem:[%s1] sm:$0xff]
      %v366 = vld [vmem:[%s2] sm:$0x1]
      %v368 = vperm.slane %v366, 0
      %vm370 = vcmask 64512
      %v372 = vsel %vm370, %v333, 0
      %v375 = vsel %vm370, %v334, 0
      %v378 = vsel %vm370, %v335, 0
      %v381 = vsel %vm370, %v336, 0
      %v384 = vsel %vm370, %v337, 0
      %v387 = vsel %vm370, %v338, 0
      %v390 = vsel %vm370, %v339, 0
      %v393 = vsel %vm370, %v340, 0
      %v396 = vsel %vm370, %v341, 0
      %v399 = vsel %vm370, %v342, 0
      %v402 = vsel %vm370, %v343, 0
      %v405 = vsel %vm370, %v344, 0
      %v408 = vsel %vm370, %v345, 0
      %v411 = vsel %vm370, %v346, 0
      %v414 = vsel %vm370, %v347, 0
      %v417 = vsel %vm370, %v348, 0
      %v420 = vsel %vm370, %v349, 0
      %v423 = vsel %vm370, %v350, 0
      %v426 = vsel %vm370, %v351, 0
      %v429 = vsel %vm370, %v352, 0
      %v432 = vsel %vm370, %v353, 0
      %v435 = vsel %vm370, %v354, 0
      %v438 = vsel %vm370, %v355, 0
      %v441 = vsel %vm370, %v356, 0
      %v444 = vsel %vm370, %v357, 0
      %v447 = vsel %vm370, %v358, 0
      %v450 = vsel %vm370, %v359, 0
      %v453 = vsel %vm370, %v360, 0
      %v456 = vsel %vm370, %v361, 0
      %v459 = vsel %vm370, %v362, 0
      %v462 = vsel %vm370, %v363, 0
      %v465 = vsel %vm370, %v364, 0
      %467 = vmatpush.msra.mxu0 0.0
      %468 = vmatpush.msra.mxu0 0.0
      %469 = vmatpush.msra.mxu0 0.0
      %470 = vmatpush.msra.mxu0 0.0
      %471 = vmatpush.msra.mxu0 0.0
      %472 = vmatpush.msra.mxu0 0.0
      %473 = vmatpush.msra.mxu0 0.0
      %474 = vmatpush.msra.mxu0 0.0
      %475 = vmatpush.msra.mxu0 0.0
      %476 = vmatpush.msra.mxu0 0.0
      %477 = vmatpush.msra.mxu0 0.0
      %478 = vmatpush.msra.mxu0 0.0
      %479 = vmatpush.msra.mxu0 0.0
      %480 = vmatpush.msra.mxu0 0.0
      %481 = vmatpush.msra.mxu0 0.0
      %482 = vmatpush.msra.mxu0 %v365
      %483 = vmatmul.f32.gmra.mxu0 %v372
      %v484 = vpop.f32.mrf.mxu0
      %v485 = vadd.f32 %v368, %v484
      %486 = vmatmul.f32.gmra.mxu0 %v375
      %v487 = vpop.f32.mrf.mxu0
      %v488 = vadd.f32 %v368, %v487
      %489 = vmatmul.f32.gmra.mxu0 %v378
      %v490 = vpop.f32.mrf.mxu0
      %v491 = vadd.f32 %v368, %v490
      %492 = vmatmul.f32.gmra.mxu0 %v381
      %v493 = vpop.f32.mrf.mxu0
      %v494 = vadd.f32 %v368, %v493
      %495 = vmatmul.f32.gmra.mxu0 %v384
      %v496 = vpop.f32.mrf.mxu0
      %v497 = vadd.f32 %v368, %v496
      %498 = vmatmul.f32.gmra.mxu0 %v387
      %v499 = vpop.f32.mrf.mxu0
      %v500 = vadd.f32 %v368, %v499
      %501 = vmatmul.f32.gmra.mxu0 %v390
      %v502 = vpop.f32.mrf.mxu0
      %v503 = vadd.f32 %v368, %v502
      %504 = vmatmul.f32.gmra.mxu0 %v393
      %v505 = vpop.f32.mrf.mxu0
      %v506 = vadd.f32 %v368, %v505
      %507 = vmatmul.f32.gmra.mxu0 %v396
      %v508 = vpop.f32.mrf.mxu0
      %v509 = vadd.f32 %v368, %v508
      %510 = vmatmul.f32.gmra.mxu0 %v399
      %v511 = vpop.f32.mrf.mxu0
      %v512 = vadd.f32 %v368, %v511
      %513 = vmatmul.f32.gmra.mxu0 %v402
      %v514 = vpop.f32.mrf.mxu0
      %v515 = vadd.f32 %v368, %v514
      %516 = vmatmul.f32.gmra.mxu0 %v405
      %v517 = vpop.f32.mrf.mxu0
      %v518 = vadd.f32 %v368, %v517
      %519 = vmatmul.f32.gmra.mxu0 %v408
      %v520 = vpop.f32.mrf.mxu0
      %v521 = vadd.f32 %v368, %v520
      %522 = vmatmul.f32.gmra.mxu0 %v411
      %v523 = vpop.f32.mrf.mxu0
      %v524 = vadd.f32 %v368, %v523
      %525 = vmatmul.f32.gmra.mxu0 %v414
      %v526 = vpop.f32.mrf.mxu0
      %v527 = vadd.f32 %v368, %v526
      %528 = vmatmul.f32.gmra.mxu0 %v417
      %v529 = vpop.f32.mrf.mxu0
      %v530 = vadd.f32 %v368, %v529
      %531 = vmatmul.f32.gmra.mxu0 %v420
      %v532 = vpop.f32.mrf.mxu0
      %v533 = vadd.f32 %v368, %v532
      %534 = vmatmul.f32.gmra.mxu0 %v423
      %v535 = vpop.f32.mrf.mxu0
      %v536 = vadd.f32 %v368, %v535
      %537 = vmatmul.f32.gmra.mxu0 %v426
      %v538 = vpop.f32.mrf.mxu0
      %v539 = vadd.f32 %v368, %v538
      %540 = vmatmul.f32.gmra.mxu0 %v429
      %v541 = vpop.f32.mrf.mxu0
      %v542 = vadd.f32 %v368, %v541
      %543 = vmatmul.f32.gmra.mxu0 %v432
      %v544 = vpop.f32.mrf.mxu0
      %v545 = vadd.f32 %v368, %v544
      %546 = vmatmul.f32.gmra.mxu0 %v435
      %v547 = vpop.f32.mrf.mxu0
      %v548 = vadd.f32 %v368, %v547
      %549 = vmatmul.f32.gmra.mxu0 %v438
      %v550 = vpop.f32.mrf.mxu0
      %v551 = vadd.f32 %v368, %v550
      %552 = vmatmul.f32.gmra.mxu0 %v441
      %v553 = vpop.f32.mrf.mxu0
      %v554 = vadd.f32 %v368, %v553
      %555 = vmatmul.f32.gmra.mxu0 %v444
      %v556 = vpop.f32.mrf.mxu0
      %v557 = vadd.f32 %v368, %v556
      %558 = vmatmul.f32.gmra.mxu0 %v447
      %v559 = vpop.f32.mrf.mxu0
      %v560 = vadd.f32 %v368, %v559
      %561 = vmatmul.f32.gmra.mxu0 %v450
      %v562 = vpop.f32.mrf.mxu0
      %v563 = vadd.f32 %v368, %v562
      %564 = vmatmul.f32.gmra.mxu0 %v453
      %v565 = vpop.f32.mrf.mxu0
      %v566 = vadd.f32 %v368, %v565
      %567 = vmatmul.f32.gmra.mxu0 %v456
      %v568 = vpop.f32.mrf.mxu0
      %v569 = vadd.f32 %v368, %v568
      %570 = vmatmul.f32.gmra.mxu0 %v459
      %v571 = vpop.f32.mrf.mxu0
      %v572 = vadd.f32 %v368, %v571
      %573 = vmatmul.f32.gmra.mxu0 %v462
      %v574 = vpop.f32.mrf.mxu0
      %v575 = vadd.f32 %v368, %v574
      %576 = vmatmul.f32.gmra.mxu0 %v465
      %v577 = vpop.f32.mrf.mxu0
      %v578 = vadd.f32 %v368, %v577
      %579 = vdwg.mxu0
      %v580 = vxor.u32 %v485, 2147483648
      %v581 = vxor.u32 %v488, 2147483648
      %v582 = vxor.u32 %v491, 2147483648
      %v583 = vxor.u32 %v494, 2147483648
      %v584 = vxor.u32 %v497, 2147483648
      %v585 = vxor.u32 %v500, 2147483648
      %v586 = vxor.u32 %v503, 2147483648
      %v587 = vxor.u32 %v506, 2147483648
      %v588 = vxor.u32 %v509, 2147483648
      %v589 = vxor.u32 %v512, 2147483648
      %v590 = vxor.u32 %v515, 2147483648
      %v591 = vxor.u32 %v518, 2147483648
      %v592 = vxor.u32 %v521, 2147483648
      %v593 = vxor.u32 %v524, 2147483648
      %v594 = vxor.u32 %v527, 2147483648
      %v595 = vxor.u32 %v530, 2147483648
      %v596 = vxor.u32 %v533, 2147483648
      %v597 = vxor.u32 %v536, 2147483648
      %v598 = vxor.u32 %v539, 2147483648
      %v599 = vxor.u32 %v542, 2147483648
      %v600 = vxor.u32 %v545, 2147483648
      %v601 = vxor.u32 %v548, 2147483648
      %v602 = vxor.u32 %v551, 2147483648
      %v603 = vxor.u32 %v554, 2147483648
      %v604 = vxor.u32 %v557, 2147483648
      %v605 = vxor.u32 %v560, 2147483648
      %v606 = vxor.u32 %v563, 2147483648
      %v607 = vxor.u32 %v566, 2147483648
      %v608 = vxor.u32 %v569, 2147483648
      %v609 = vxor.u32 %v572, 2147483648
      %v610 = vxor.u32 %v575, 2147483648
      %v611 = vxor.u32 %v578, 2147483648
      %v612 = vmul.f32 %v580, 1.442695
      %v613 = vpow.pop %v612
      %v614 = vmul.f32 %v581, 1.442695
      %v615 = vpow.pop %v614
      %v616 = vmul.f32 %v582, 1.442695
      %v617 = vpow.pop %v616
      %v618 = vmul.f32 %v583, 1.442695
      %v619 = vpow.pop %v618
      %v620 = vmul.f32 %v584, 1.442695
      %v621 = vpow.pop %v620
      %v622 = vmul.f32 %v585, 1.442695
      %v623 = vpow.pop %v622
      %v624 = vmul.f32 %v586, 1.442695
      %v625 = vpow.pop %v624
      %v626 = vmul.f32 %v587, 1.442695
      %v627 = vpow.pop %v626
      %v628 = vmul.f32 %v588, 1.442695
      %v629 = vpow.pop %v628
      %v630 = vmul.f32 %v589, 1.442695
      %v631 = vpow.pop %v630
      %v632 = vmul.f32 %v590, 1.442695
      %v633 = vpow.pop %v632
      %v634 = vmul.f32 %v591, 1.442695
      %v635 = vpow.pop %v634
      %v636 = vmul.f32 %v592, 1.442695
      %v637 = vpow.pop %v636
      %v638 = vmul.f32 %v593, 1.442695
      %v639 = vpow.pop %v638
      %v640 = vmul.f32 %v594, 1.442695
      %v641 = vpow.pop %v640
      %v642 = vmul.f32 %v595, 1.442695
      %v643 = vpow.pop %v642
      %v644 = vmul.f32 %v596, 1.442695
      %v645 = vpow.pop %v644
      %v646 = vmul.f32 %v597, 1.442695
      %v647 = vpow.pop %v646
      %v648 = vmul.f32 %v598, 1.442695
      %v649 = vpow.pop %v648
      %v650 = vmul.f32 %v599, 1.442695
      %v651 = vpow.pop %v650
      %v652 = vmul.f32 %v600, 1.442695
      %v653 = vpow.pop %v652
      %v654 = vmul.f32 %v601, 1.442695
      %v655 = vpow.pop %v654
      %v656 = vmul.f32 %v602, 1.442695
      %v657 = vpow.pop %v656
      %v658 = vmul.f32 %v603, 1.442695
      %v659 = vpow.pop %v658
      %v660 = vmul.f32 %v604, 1.442695
      %v661 = vpow.pop %v660
      %v662 = vmul.f32 %v605, 1.442695
      %v663 = vpow.pop %v662
      %v664 = vmul.f32 %v606, 1.442695
      %v665 = vpow.pop %v664
      %v666 = vmul.f32 %v607, 1.442695
      %v667 = vpow.pop %v666
      %v668 = vmul.f32 %v608, 1.442695
      %v669 = vpow.pop %v668
      %v670 = vmul.f32 %v609, 1.442695
      %v671 = vpow.pop %v670
      %v672 = vmul.f32 %v610, 1.442695
      %v673 = vpow.pop %v672
      %v674 = vmul.f32 %v611, 1.442695
      %v675 = vpow.pop %v674
      %v676 = vadd.f32 %v613, 1.0
      %v677 = vadd.f32 %v615, 1.0
      %v678 = vadd.f32 %v617, 1.0
      %v679 = vadd.f32 %v619, 1.0
      %v680 = vadd.f32 %v621, 1.0
      %v681 = vadd.f32 %v623, 1.0
      %v682 = vadd.f32 %v625, 1.0
      %v683 = vadd.f32 %v627, 1.0
      %v684 = vadd.f32 %v629, 1.0
      %v685 = vadd.f32 %v631, 1.0
      %v686 = vadd.f32 %v633, 1.0
      %v687 = vadd.f32 %v635, 1.0
      %v688 = vadd.f32 %v637, 1.0
      %v689 = vadd.f32 %v639, 1.0
      %v690 = vadd.f32 %v641, 1.0
      %v691 = vadd.f32 %v643, 1.0
      %v692 = vadd.f32 %v645, 1.0
      %v693 = vadd.f32 %v647, 1.0
      %v694 = vadd.f32 %v649, 1.0
      %v695 = vadd.f32 %v651, 1.0
      %v696 = vadd.f32 %v653, 1.0
      %v697 = vadd.f32 %v655, 1.0
      %v698 = vadd.f32 %v657, 1.0
      %v699 = vadd.f32 %v659, 1.0
      %v700 = vadd.f32 %v661, 1.0
      %v701 = vadd.f32 %v663, 1.0
      %v702 = vadd.f32 %v665, 1.0
      %v703 = vadd.f32 %v667, 1.0
      %v704 = vadd.f32 %v669, 1.0
      %v705 = vadd.f32 %v671, 1.0
      %v706 = vadd.f32 %v673, 1.0
      %v707 = vadd.f32 %v675, 1.0
      %v708 = vrcp.pop %v676
      %v709 = vmul.f32 %v676, %v708
      %v710 = vsub.f32 1.0, %v709
      %v711 = vmul.f32 %v708, %v710
      %v712 = vadd.f32 %v708, %v711
      %vm713 = vweird.f32 %v676
      %vm714 = vweird.f32 %v708
      %vm715 = vmor %vm713, %vm714
      %v716 = vsel %vm715, %v708, %v712
      %v717 = vand.u32 2147483647, %v676
      %vm718 = vcmp.eq.f32.partialorder %v717, 8.507059e+37
      %v719 = vand.u32 %v676, 2147483648
      %v720 = vor.u32 1.1754944e-38, %v719
      %v721 = vsel %vm718, %v720, %v716
      %v722 = vmul.f32 1.0, %v721
      %v723 = vrcp.pop %v677
      %v724 = vmul.f32 %v677, %v723
      %v725 = vsub.f32 1.0, %v724
      %v726 = vmul.f32 %v723, %v725
      %v727 = vadd.f32 %v723, %v726
      %vm728 = vweird.f32 %v677
      %vm729 = vweird.f32 %v723
      %vm730 = vmor %vm728, %vm729
      %v731 = vsel %vm730, %v723, %v727
      %v732 = vand.u32 2147483647, %v677
      %vm733 = vcmp.eq.f32.partialorder %v732, 8.507059e+37
      %v734 = vand.u32 %v677, 2147483648
      %v735 = vor.u32 1.1754944e-38, %v734
      %v736 = vsel %vm733, %v735, %v731
      %v737 = vmul.f32 1.0, %v736
      %v738 = vrcp.pop %v678
      %v739 = vmul.f32 %v678, %v738
      %v740 = vsub.f32 1.0, %v739
      %v741 = vmul.f32 %v738, %v740
      %v742 = vadd.f32 %v738, %v741
      %vm743 = vweird.f32 %v678
      %vm744 = vweird.f32 %v738
      %vm745 = vmor %vm743, %vm744
      %v746 = vsel %vm745, %v738, %v742
      %v747 = vand.u32 2147483647, %v678
      %vm748 = vcmp.eq.f32.partialorder %v747, 8.507059e+37
      %v749 = vand.u32 %v678, 2147483648
      %v750 = vor.u32 1.1754944e-38, %v749
      %v751 = vsel %vm748, %v750, %v746
      %v752 = vmul.f32 1.0, %v751
      %v753 = vrcp.pop %v679
      %v754 = vmul.f32 %v679, %v753
      %v755 = vsub.f32 1.0, %v754
      %v756 = vmul.f32 %v753, %v755
      %v757 = vadd.f32 %v753, %v756
      %vm758 = vweird.f32 %v679
      %vm759 = vweird.f32 %v753
      %vm760 = vmor %vm758, %vm759
      %v761 = vsel %vm760, %v753, %v757
      %v762 = vand.u32 2147483647, %v679
      %vm763 = vcmp.eq.f32.partialorder %v762, 8.507059e+37
      %v764 = vand.u32 %v679, 2147483648
      %v765 = vor.u32 1.1754944e-38, %v764
      %v766 = vsel %vm763, %v765, %v761
      %v767 = vmul.f32 1.0, %v766
      %v768 = vrcp.pop %v680
      %v769 = vmul.f32 %v680, %v768
      %v770 = vsub.f32 1.0, %v769
      %v771 = vmul.f32 %v768, %v770
      %v772 = vadd.f32 %v768, %v771
      %vm773 = vweird.f32 %v680
      %vm774 = vweird.f32 %v768
      %vm775 = vmor %vm773, %vm774
      %v776 = vsel %vm775, %v768, %v772
      %v777 = vand.u32 2147483647, %v680
      %vm778 = vcmp.eq.f32.partialorder %v777, 8.507059e+37
      %v779 = vand.u32 %v680, 2147483648
      %v780 = vor.u32 1.1754944e-38, %v779
      %v781 = vsel %vm778, %v780, %v776
      %v782 = vmul.f32 1.0, %v781
      %v783 = vrcp.pop %v681
      %v784 = vmul.f32 %v681, %v783
      %v785 = vsub.f32 1.0, %v784
      %v786 = vmul.f32 %v783, %v785
      %v787 = vadd.f32 %v783, %v786
      %vm788 = vweird.f32 %v681
      %vm789 = vweird.f32 %v783
      %vm790 = vmor %vm788, %vm789
      %v791 = vsel %vm790, %v783, %v787
      %v792 = vand.u32 2147483647, %v681
      %vm793 = vcmp.eq.f32.partialorder %v792, 8.507059e+37
      %v794 = vand.u32 %v681, 2147483648
      %v795 = vor.u32 1.1754944e-38, %v794
      %v796 = vsel %vm793, %v795, %v791
      %v797 = vmul.f32 1.0, %v796
      %v798 = vrcp.pop %v682
      %v799 = vmul.f32 %v682, %v798
      %v800 = vsub.f32 1.0, %v799
      %v801 = vmul.f32 %v798, %v800
      %v802 = vadd.f32 %v798, %v801
      %vm803 = vweird.f32 %v682
      %vm804 = vweird.f32 %v798
      %vm805 = vmor %vm803, %vm804
      %v806 = vsel %vm805, %v798, %v802
      %v807 = vand.u32 2147483647, %v682
      %vm808 = vcmp.eq.f32.partialorder %v807, 8.507059e+37
      %v809 = vand.u32 %v682, 2147483648
      %v810 = vor.u32 1.1754944e-38, %v809
      %v811 = vsel %vm808, %v810, %v806
      %v812 = vmul.f32 1.0, %v811
      %v813 = vrcp.pop %v683
      %v814 = vmul.f32 %v683, %v813
      %v815 = vsub.f32 1.0, %v814
      %v816 = vmul.f32 %v813, %v815
      %v817 = vadd.f32 %v813, %v816
      %vm818 = vweird.f32 %v683
      %vm819 = vweird.f32 %v813
      %vm820 = vmor %vm818, %vm819
      %v821 = vsel %vm820, %v813, %v817
      %v822 = vand.u32 2147483647, %v683
      %vm823 = vcmp.eq.f32.partialorder %v822, 8.507059e+37
      %v824 = vand.u32 %v683, 2147483648
      %v825 = vor.u32 1.1754944e-38, %v824
      %v826 = vsel %vm823, %v825, %v821
      %v827 = vmul.f32 1.0, %v826
      %v828 = vrcp.pop %v684
      %v829 = vmul.f32 %v684, %v828
      %v830 = vsub.f32 1.0, %v829
      %v831 = vmul.f32 %v828, %v830
      %v832 = vadd.f32 %v828, %v831
      %vm833 = vweird.f32 %v684
      %vm834 = vweird.f32 %v828
      %vm835 = vmor %vm833, %vm834
      %v836 = vsel %vm835, %v828, %v832
      %v837 = vand.u32 2147483647, %v684
      %vm838 = vcmp.eq.f32.partialorder %v837, 8.507059e+37
      %v839 = vand.u32 %v684, 2147483648
      %v840 = vor.u32 1.1754944e-38, %v839
      %v841 = vsel %vm838, %v840, %v836
      %v842 = vmul.f32 1.0, %v841
      %v843 = vrcp.pop %v685
      %v844 = vmul.f32 %v685, %v843
      %v845 = vsub.f32 1.0, %v844
      %v846 = vmul.f32 %v843, %v845
      %v847 = vadd.f32 %v843, %v846
      %vm848 = vweird.f32 %v685
      %vm849 = vweird.f32 %v843
      %vm850 = vmor %vm848, %vm849
      %v851 = vsel %vm850, %v843, %v847
      %v852 = vand.u32 2147483647, %v685
      %vm853 = vcmp.eq.f32.partialorder %v852, 8.507059e+37
      %v854 = vand.u32 %v685, 2147483648
      %v855 = vor.u32 1.1754944e-38, %v854
      %v856 = vsel %vm853, %v855, %v851
      %v857 = vmul.f32 1.0, %v856
      %v858 = vrcp.pop %v686
      %v859 = vmul.f32 %v686, %v858
      %v860 = vsub.f32 1.0, %v859
      %v861 = vmul.f32 %v858, %v860
      %v862 = vadd.f32 %v858, %v861
      %vm863 = vweird.f32 %v686
      %vm864 = vweird.f32 %v858
      %vm865 = vmor %vm863, %vm864
      %v866 = vsel %vm865, %v858, %v862
      %v867 = vand.u32 2147483647, %v686
      %vm868 = vcmp.eq.f32.partialorder %v867, 8.507059e+37
      %v869 = vand.u32 %v686, 2147483648
      %v870 = vor.u32 1.1754944e-38, %v869
      %v871 = vsel %vm868, %v870, %v866
      %v872 = vmul.f32 1.0, %v871
      %v873 = vrcp.pop %v687
      %v874 = vmul.f32 %v687, %v873
      %v875 = vsub.f32 1.0, %v874
      %v876 = vmul.f32 %v873, %v875
      %v877 = vadd.f32 %v873, %v876
      %vm878 = vweird.f32 %v687
      %vm879 = vweird.f32 %v873
      %vm880 = vmor %vm878, %vm879
      %v881 = vsel %vm880, %v873, %v877
      %v882 = vand.u32 2147483647, %v687
      %vm883 = vcmp.eq.f32.partialorder %v882, 8.507059e+37
      %v884 = vand.u32 %v687, 2147483648
      %v885 = vor.u32 1.1754944e-38, %v884
      %v886 = vsel %vm883, %v885, %v881
      %v887 = vmul.f32 1.0, %v886
      %v888 = vrcp.pop %v688
      %v889 = vmul.f32 %v688, %v888
      %v890 = vsub.f32 1.0, %v889
      %v891 = vmul.f32 %v888, %v890
      %v892 = vadd.f32 %v888, %v891
      %vm893 = vweird.f32 %v688
      %vm894 = vweird.f32 %v888
      %vm895 = vmor %vm893, %vm894
      %v896 = vsel %vm895, %v888, %v892
      %v897 = vand.u32 2147483647, %v688
      %vm898 = vcmp.eq.f32.partialorder %v897, 8.507059e+37
      %v899 = vand.u32 %v688, 2147483648
      %v900 = vor.u32 1.1754944e-38, %v899
      %v901 = vsel %vm898, %v900, %v896
      %v902 = vmul.f32 1.0, %v901
      %v903 = vrcp.pop %v689
      %v904 = vmul.f32 %v689, %v903
      %v905 = vsub.f32 1.0, %v904
      %v906 = vmul.f32 %v903, %v905
      %v907 = vadd.f32 %v903, %v906
      %vm908 = vweird.f32 %v689
      %vm909 = vweird.f32 %v903
      %vm910 = vmor %vm908, %vm909
      %v911 = vsel %vm910, %v903, %v907
      %v912 = vand.u32 2147483647, %v689
      %vm913 = vcmp.eq.f32.partialorder %v912, 8.507059e+37
      %v914 = vand.u32 %v689, 2147483648
      %v915 = vor.u32 1.1754944e-38, %v914
      %v916 = vsel %vm913, %v915, %v911
      %v917 = vmul.f32 1.0, %v916
      %v918 = vrcp.pop %v690
      %v919 = vmul.f32 %v690, %v918
      %v920 = vsub.f32 1.0, %v919
      %v921 = vmul.f32 %v918, %v920
      %v922 = vadd.f32 %v918, %v921
      %vm923 = vweird.f32 %v690
      %vm924 = vweird.f32 %v918
      %vm925 = vmor %vm923, %vm924
      %v926 = vsel %vm925, %v918, %v922
      %v927 = vand.u32 2147483647, %v690
      %vm928 = vcmp.eq.f32.partialorder %v927, 8.507059e+37
      %v929 = vand.u32 %v690, 2147483648
      %v930 = vor.u32 1.1754944e-38, %v929
      %v931 = vsel %vm928, %v930, %v926
      %v932 = vmul.f32 1.0, %v931
      %v933 = vrcp.pop %v691
      %v934 = vmul.f32 %v691, %v933
      %v935 = vsub.f32 1.0, %v934
      %v936 = vmul.f32 %v933, %v935
      %v937 = vadd.f32 %v933, %v936
      %vm938 = vweird.f32 %v691
      %vm939 = vweird.f32 %v933
      %vm940 = vmor %vm938, %vm939
      %v941 = vsel %vm940, %v933, %v937
      %v942 = vand.u32 2147483647, %v691
      %vm943 = vcmp.eq.f32.partialorder %v942, 8.507059e+37
      %v944 = vand.u32 %v691, 2147483648
      %v945 = vor.u32 1.1754944e-38, %v944
      %v946 = vsel %vm943, %v945, %v941
      %v947 = vmul.f32 1.0, %v946
      %v948 = vrcp.pop %v692
      %v949 = vmul.f32 %v692, %v948
      %v950 = vsub.f32 1.0, %v949
      %v951 = vmul.f32 %v948, %v950
      %v952 = vadd.f32 %v948, %v951
      %vm953 = vweird.f32 %v692
      %vm954 = vweird.f32 %v948
      %vm955 = vmor %vm953, %vm954
      %v956 = vsel %vm955, %v948, %v952
      %v957 = vand.u32 2147483647, %v692
      %vm958 = vcmp.eq.f32.partialorder %v957, 8.507059e+37
      %v959 = vand.u32 %v692, 2147483648
      %v960 = vor.u32 1.1754944e-38, %v959
      %v961 = vsel %vm958, %v960, %v956
      %v962 = vmul.f32 1.0, %v961
      %v963 = vrcp.pop %v693
      %v964 = vmul.f32 %v693, %v963
      %v965 = vsub.f32 1.0, %v964
      %v966 = vmul.f32 %v963, %v965
      %v967 = vadd.f32 %v963, %v966
      %vm968 = vweird.f32 %v693
      %vm969 = vweird.f32 %v963
      %vm970 = vmor %vm968, %vm969
      %v971 = vsel %vm970, %v963, %v967
      %v972 = vand.u32 2147483647, %v693
      %vm973 = vcmp.eq.f32.partialorder %v972, 8.507059e+37
      %v974 = vand.u32 %v693, 2147483648
      %v975 = vor.u32 1.1754944e-38, %v974
      %v976 = vsel %vm973, %v975, %v971
      %v977 = vmul.f32 1.0, %v976
      %v978 = vrcp.pop %v694
      %v979 = vmul.f32 %v694, %v978
      %v980 = vsub.f32 1.0, %v979
      %v981 = vmul.f32 %v978, %v980
      %v982 = vadd.f32 %v978, %v981
      %vm983 = vweird.f32 %v694
      %vm984 = vweird.f32 %v978
      %vm985 = vmor %vm983, %vm984
      %v986 = vsel %vm985, %v978, %v982
      %v987 = vand.u32 2147483647, %v694
      %vm988 = vcmp.eq.f32.partialorder %v987, 8.507059e+37
      %v989 = vand.u32 %v694, 2147483648
      %v990 = vor.u32 1.1754944e-38, %v989
      %v991 = vsel %vm988, %v990, %v986
      %v992 = vmul.f32 1.0, %v991
      %v993 = vrcp.pop %v695
      %v994 = vmul.f32 %v695, %v993
      %v995 = vsub.f32 1.0, %v994
      %v996 = vmul.f32 %v993, %v995
      %v997 = vadd.f32 %v993, %v996
      %vm998 = vweird.f32 %v695
      %vm999 = vweird.f32 %v993
      %vm1000 = vmor %vm998, %vm999
      %v1001 = vsel %vm1000, %v993, %v997
      %v1002 = vand.u32 2147483647, %v695
      %vm1003 = vcmp.eq.f32.partialorder %v1002, 8.507059e+37
      %v1004 = vand.u32 %v695, 2147483648
      %v1005 = vor.u32 1.1754944e-38, %v1004
      %v1006 = vsel %vm1003, %v1005, %v1001
      %v1007 = vmul.f32 1.0, %v1006
      %v1008 = vrcp.pop %v696
      %v1009 = vmul.f32 %v696, %v1008
      %v1010 = vsub.f32 1.0, %v1009
      %v1011 = vmul.f32 %v1008, %v1010
      %v1012 = vadd.f32 %v1008, %v1011
      %vm1013 = vweird.f32 %v696
      %vm1014 = vweird.f32 %v1008
      %vm1015 = vmor %vm1013, %vm1014
      %v1016 = vsel %vm1015, %v1008, %v1012
      %v1017 = vand.u32 2147483647, %v696
      %vm1018 = vcmp.eq.f32.partialorder %v1017, 8.507059e+37
      %v1019 = vand.u32 %v696, 2147483648
      %v1020 = vor.u32 1.1754944e-38, %v1019
      %v1021 = vsel %vm1018, %v1020, %v1016
      %v1022 = vmul.f32 1.0, %v1021
      %v1023 = vrcp.pop %v697
      %v1024 = vmul.f32 %v697, %v1023
      %v1025 = vsub.f32 1.0, %v1024
      %v1026 = vmul.f32 %v1023, %v1025
      %v1027 = vadd.f32 %v1023, %v1026
      %vm1028 = vweird.f32 %v697
      %vm1029 = vweird.f32 %v1023
      %vm1030 = vmor %vm1028, %vm1029
      %v1031 = vsel %vm1030, %v1023, %v1027
      %v1032 = vand.u32 2147483647, %v697
      %vm1033 = vcmp.eq.f32.partialorder %v1032, 8.507059e+37
      %v1034 = vand.u32 %v697, 2147483648
      %v1035 = vor.u32 1.1754944e-38, %v1034
      %v1036 = vsel %vm1033, %v1035, %v1031
      %v1037 = vmul.f32 1.0, %v1036
      %v1038 = vrcp.pop %v698
      %v1039 = vmul.f32 %v698, %v1038
      %v1040 = vsub.f32 1.0, %v1039
      %v1041 = vmul.f32 %v1038, %v1040
      %v1042 = vadd.f32 %v1038, %v1041
      %vm1043 = vweird.f32 %v698
      %vm1044 = vweird.f32 %v1038
      %vm1045 = vmor %vm1043, %vm1044
      %v1046 = vsel %vm1045, %v1038, %v1042
      %v1047 = vand.u32 2147483647, %v698
      %vm1048 = vcmp.eq.f32.partialorder %v1047, 8.507059e+37
      %v1049 = vand.u32 %v698, 2147483648
      %v1050 = vor.u32 1.1754944e-38, %v1049
      %v1051 = vsel %vm1048, %v1050, %v1046
      %v1052 = vmul.f32 1.0, %v1051
      %v1053 = vrcp.pop %v699
      %v1054 = vmul.f32 %v699, %v1053
      %v1055 = vsub.f32 1.0, %v1054
      %v1056 = vmul.f32 %v1053, %v1055
      %v1057 = vadd.f32 %v1053, %v1056
      %vm1058 = vweird.f32 %v699
      %vm1059 = vweird.f32 %v1053
      %vm1060 = vmor %vm1058, %vm1059
      %v1061 = vsel %vm1060, %v1053, %v1057
      %v1062 = vand.u32 2147483647, %v699
      %vm1063 = vcmp.eq.f32.partialorder %v1062, 8.507059e+37
      %v1064 = vand.u32 %v699, 2147483648
      %v1065 = vor.u32 1.1754944e-38, %v1064
      %v1066 = vsel %vm1063, %v1065, %v1061
      %v1067 = vmul.f32 1.0, %v1066
      %v1068 = vrcp.pop %v700
      %v1069 = vmul.f32 %v700, %v1068
      %v1070 = vsub.f32 1.0, %v1069
      %v1071 = vmul.f32 %v1068, %v1070
      %v1072 = vadd.f32 %v1068, %v1071
      %vm1073 = vweird.f32 %v700
      %vm1074 = vweird.f32 %v1068
      %vm1075 = vmor %vm1073, %vm1074
      %v1076 = vsel %vm1075, %v1068, %v1072
      %v1077 = vand.u32 2147483647, %v700
      %vm1078 = vcmp.eq.f32.partialorder %v1077, 8.507059e+37
      %v1079 = vand.u32 %v700, 2147483648
      %v1080 = vor.u32 1.1754944e-38, %v1079
      %v1081 = vsel %vm1078, %v1080, %v1076
      %v1082 = vmul.f32 1.0, %v1081
      %v1083 = vrcp.pop %v701
      %v1084 = vmul.f32 %v701, %v1083
      %v1085 = vsub.f32 1.0, %v1084
      %v1086 = vmul.f32 %v1083, %v1085
      %v1087 = vadd.f32 %v1083, %v1086
      %vm1088 = vweird.f32 %v701
      %vm1089 = vweird.f32 %v1083
      %vm1090 = vmor %vm1088, %vm1089
      %v1091 = vsel %vm1090, %v1083, %v1087
      %v1092 = vand.u32 2147483647, %v701
      %vm1093 = vcmp.eq.f32.partialorder %v1092, 8.507059e+37
      %v1094 = vand.u32 %v701, 2147483648
      %v1095 = vor.u32 1.1754944e-38, %v1094
      %v1096 = vsel %vm1093, %v1095, %v1091
      %v1097 = vmul.f32 1.0, %v1096
      %v1098 = vrcp.pop %v702
      %v1099 = vmul.f32 %v702, %v1098
      %v1100 = vsub.f32 1.0, %v1099
      %v1101 = vmul.f32 %v1098, %v1100
      %v1102 = vadd.f32 %v1098, %v1101
      %vm1103 = vweird.f32 %v702
      %vm1104 = vweird.f32 %v1098
      %vm1105 = vmor %vm1103, %vm1104
      %v1106 = vsel %vm1105, %v1098, %v1102
      %v1107 = vand.u32 2147483647, %v702
      %vm1108 = vcmp.eq.f32.partialorder %v1107, 8.507059e+37
      %v1109 = vand.u32 %v702, 2147483648
      %v1110 = vor.u32 1.1754944e-38, %v1109
      %v1111 = vsel %vm1108, %v1110, %v1106
      %v1112 = vmul.f32 1.0, %v1111
      %v1113 = vrcp.pop %v703
      %v1114 = vmul.f32 %v703, %v1113
      %v1115 = vsub.f32 1.0, %v1114
      %v1116 = vmul.f32 %v1113, %v1115
      %v1117 = vadd.f32 %v1113, %v1116
      %vm1118 = vweird.f32 %v703
      %vm1119 = vweird.f32 %v1113
      %vm1120 = vmor %vm1118, %vm1119
      %v1121 = vsel %vm1120, %v1113, %v1117
      %v1122 = vand.u32 2147483647, %v703
      %vm1123 = vcmp.eq.f32.partialorder %v1122, 8.507059e+37
      %v1124 = vand.u32 %v703, 2147483648
      %v1125 = vor.u32 1.1754944e-38, %v1124
      %v1126 = vsel %vm1123, %v1125, %v1121
      %v1127 = vmul.f32 1.0, %v1126
      %v1128 = vrcp.pop %v704
      %v1129 = vmul.f32 %v704, %v1128
      %v1130 = vsub.f32 1.0, %v1129
      %v1131 = vmul.f32 %v1128, %v1130
      %v1132 = vadd.f32 %v1128, %v1131
      %vm1133 = vweird.f32 %v704
      %vm1134 = vweird.f32 %v1128
      %vm1135 = vmor %vm1133, %vm1134
      %v1136 = vsel %vm1135, %v1128, %v1132
      %v1137 = vand.u32 2147483647, %v704
      %vm1138 = vcmp.eq.f32.partialorder %v1137, 8.507059e+37
      %v1139 = vand.u32 %v704, 2147483648
      %v1140 = vor.u32 1.1754944e-38, %v1139
      %v1141 = vsel %vm1138, %v1140, %v1136
      %v1142 = vmul.f32 1.0, %v1141
      %v1143 = vrcp.pop %v705
      %v1144 = vmul.f32 %v705, %v1143
      %v1145 = vsub.f32 1.0, %v1144
      %v1146 = vmul.f32 %v1143, %v1145
      %v1147 = vadd.f32 %v1143, %v1146
      %vm1148 = vweird.f32 %v705
      %vm1149 = vweird.f32 %v1143
      %vm1150 = vmor %vm1148, %vm1149
      %v1151 = vsel %vm1150, %v1143, %v1147
      %v1152 = vand.u32 2147483647, %v705
      %vm1153 = vcmp.eq.f32.partialorder %v1152, 8.507059e+37
      %v1154 = vand.u32 %v705, 2147483648
      %v1155 = vor.u32 1.1754944e-38, %v1154
      %v1156 = vsel %vm1153, %v1155, %v1151
      %v1157 = vmul.f32 1.0, %v1156
      %v1158 = vrcp.pop %v706
      %v1159 = vmul.f32 %v706, %v1158
      %v1160 = vsub.f32 1.0, %v1159
      %v1161 = vmul.f32 %v1158, %v1160
      %v1162 = vadd.f32 %v1158, %v1161
      %vm1163 = vweird.f32 %v706
      %vm1164 = vweird.f32 %v1158
      %vm1165 = vmor %vm1163, %vm1164
      %v1166 = vsel %vm1165, %v1158, %v1162
      %v1167 = vand.u32 2147483647, %v706
      %vm1168 = vcmp.eq.f32.partialorder %v1167, 8.507059e+37
      %v1169 = vand.u32 %v706, 2147483648
      %v1170 = vor.u32 1.1754944e-38, %v1169
      %v1171 = vsel %vm1168, %v1170, %v1166
      %v1172 = vmul.f32 1.0, %v1171
      %v1173 = vrcp.pop %v707
      %v1174 = vmul.f32 %v707, %v1173
      %v1175 = vsub.f32 1.0, %v1174
      %v1176 = vmul.f32 %v1173, %v1175
      %v1177 = vadd.f32 %v1173, %v1176
      %vm1178 = vweird.f32 %v707
      %vm1179 = vweird.f32 %v1173
      %vm1180 = vmor %vm1178, %vm1179
      %v1181 = vsel %vm1180, %v1173, %v1177
      %v1182 = vand.u32 2147483647, %v707
      %vm1183 = vcmp.eq.f32.partialorder %v1182, 8.507059e+37
      %v1184 = vand.u32 %v707, 2147483648
      %v1185 = vor.u32 1.1754944e-38, %v1184
      %v1186 = vsel %vm1183, %v1185, %v1181
      %v1187 = vmul.f32 1.0, %v1186
      %v1188 = vld [vmem:[%s3] sm:$0xff]
      %v1189 = vld [vmem:[%s3 + $0x8] sm:$0x1]
      %v1206 = vrot.slane %v491, 1
      %v1207 = vrot.slane %v485, 1
      %v1208 = vrot.slane %v497, 1
      %v1209 = vrot.slane %v503, 1
      %v1210 = vrot.slane %v509, 1
      %v1211 = vrot.slane %v515, 1
      %v1212 = vrot.slane %v521, 1
      %v1213 = vrot.slane %v527, 1
      %v1214 = vrot.slane %v533, 1
      %v1215 = vrot.slane %v539, 1
      %v1216 = vrot.slane %v545, 1
      %v1217 = vrot.slane %v551, 1
      %v1218 = vrot.slane %v557, 1
      %v1219 = vrot.slane %v563, 1
      %v1220 = vrot.slane %v569, 1
      %v1221 = vrot.slane %v575, 1
      %vm1254 = vcmask 1040384
      %v1255 = vrot.slane %v491, 7
      %v1256 = vrot.slane %v494, 7
      %v1257 = vsel %vm1254, %v1255, %v1256
      %v1258 = vrot.slane %v485, 7
      %v1259 = vrot.slane %v488, 7
      %v1260 = vsel %vm1254, %v1258, %v1259
      %v1261 = vrot.slane %v497, 7
      %v1262 = vrot.slane %v500, 7
      %v1263 = vsel %vm1254, %v1261, %v1262
      %v1264 = vrot.slane %v503, 7
      %v1265 = vrot.slane %v506, 7
      %v1266 = vsel %vm1254, %v1264, %v1265
      %v1267 = vrot.slane %v509, 7
      %v1268 = vrot.slane %v512, 7
      %v1269 = vsel %vm1254, %v1267, %v1268
      %v1270 = vrot.slane %v515, 7
      %v1271 = vrot.slane %v518, 7
      %v1272 = vsel %vm1254, %v1270, %v1271
      %v1273 = vrot.slane %v521, 7
      %v1274 = vrot.slane %v524, 7
      %v1275 = vsel %vm1254, %v1273, %v1274
      %v1276 = vrot.slane %v527, 7
      %v1277 = vrot.slane %v530, 7
      %v1278 = vsel %vm1254, %v1276, %v1277
      %v1279 = vrot.slane %v533, 7
      %v1280 = vrot.slane %v536, 7
      %v1281 = vsel %vm1254, %v1279, %v1280
      %v1282 = vrot.slane %v539, 7
      %v1283 = vrot.slane %v542, 7
      %v1284 = vsel %vm1254, %v1282, %v1283
      %v1285 = vrot.slane %v545, 7
      %v1286 = vrot.slane %v548, 7
      %v1287 = vsel %vm1254, %v1285, %v1286
      %v1288 = vrot.slane %v551, 7
      %v1289 = vrot.slane %v554, 7
      %v1290 = vsel %vm1254, %v1288, %v1289
      %v1291 = vrot.slane %v557, 7
      %v1292 = vrot.slane %v560, 7
      %v1293 = vsel %vm1254, %v1291, %v1292
      %v1294 = vrot.slane %v563, 7
      %v1295 = vrot.slane %v566, 7
      %v1296 = vsel %vm1254, %v1294, %v1295
      %v1297 = vrot.slane %v569, 7
      %v1298 = vrot.slane %v572, 7
      %v1299 = vsel %vm1254, %v1297, %v1298
      %v1300 = vrot.slane %v575, 7
      %v1301 = vrot.slane %v578, 7
      %v1302 = vsel %vm1254, %v1300, %v1301
      %v1351 = vrot.slane %v494, 5
      %v1352 = vrot.slane %v488, 5
      %v1353 = vrot.slane %v500, 5
      %v1354 = vrot.slane %v506, 5
      %v1355 = vrot.slane %v512, 5
      %v1356 = vrot.slane %v518, 5
      %v1357 = vrot.slane %v524, 5
      %v1358 = vrot.slane %v530, 5
      %v1359 = vrot.slane %v536, 5
      %v1360 = vrot.slane %v542, 5
      %v1361 = vrot.slane %v548, 5
      %v1362 = vrot.slane %v554, 5
      %v1363 = vrot.slane %v560, 5
      %v1364 = vrot.slane %v566, 5
      %v1365 = vrot.slane %v572, 5
      %v1366 = vrot.slane %v578, 5
      %v1383 = vsel %vm1254, %v1206, %v1255
      %v1384 = vsel %vm1254, %v1207, %v1258
      %v1385 = vsel %vm1254, %v1208, %v1261
      %v1386 = vsel %vm1254, %v1209, %v1264
      %v1387 = vsel %vm1254, %v1210, %v1267
      %v1388 = vsel %vm1254, %v1211, %v1270
      %v1389 = vsel %vm1254, %v1212, %v1273
      %v1390 = vsel %vm1254, %v1213, %v1276
      %v1391 = vsel %vm1254, %v1214, %v1279
      %v1392 = vsel %vm1254, %v1215, %v1282
      %v1393 = vsel %vm1254, %v1216, %v1285
      %v1394 = vsel %vm1254, %v1217, %v1288
      %v1395 = vsel %vm1254, %v1218, %v1291
      %v1396 = vsel %vm1254, %v1219, %v1294
      %v1397 = vsel %vm1254, %v1220, %v1297
      %v1398 = vsel %vm1254, %v1221, %v1300
      %v1399 = vsel %vm1254, %v1256, %v1351
      %v1400 = vsel %vm1254, %v1259, %v1352
      %v1401 = vsel %vm1254, %v1262, %v1353
      %v1402 = vsel %vm1254, %v1265, %v1354
      %v1403 = vsel %vm1254, %v1268, %v1355
      %v1404 = vsel %vm1254, %v1271, %v1356
      %v1405 = vsel %vm1254, %v1274, %v1357
      %v1406 = vsel %vm1254, %v1277, %v1358
      %v1407 = vsel %vm1254, %v1280, %v1359
      %v1408 = vsel %vm1254, %v1283, %v1360
      %v1409 = vsel %vm1254, %v1286, %v1361
      %v1410 = vsel %vm1254, %v1289, %v1362
      %v1411 = vsel %vm1254, %v1292, %v1363
      %v1412 = vsel %vm1254, %v1295, %v1364
      %v1413 = vsel %vm1254, %v1298, %v1365
      %v1414 = vsel %vm1254, %v1301, %v1366
      %v1415 = vperm.slane %v1188, 0
      %1417 = vrot.lane.b32.xlu0 %v1415, 8
      %v1418 = vpop.permute.xlu0 %1417
      %v1420 = vmul.f32 %v1383, %v1418
      %v1421 = vmul.f32 %v1257, %v1418
      %v1422 = vmul.f32 %v1384, %v1418
      %v1423 = vmul.f32 %v1260, %v1418
      %v1424 = vmul.f32 %v1385, %v1418
      %v1425 = vmul.f32 %v1263, %v1418
      %v1426 = vmul.f32 %v1386, %v1418
      %v1427 = vmul.f32 %v1266, %v1418
      %v1428 = vmul.f32 %v1387, %v1418
      %v1429 = vmul.f32 %v1269, %v1418
      %v1430 = vmul.f32 %v1388, %v1418
      %v1431 = vmul.f32 %v1272, %v1418
      %v1432 = vmul.f32 %v1389, %v1418
      %v1433 = vmul.f32 %v1275, %v1418
      %v1434 = vmul.f32 %v1390, %v1418
      %v1435 = vmul.f32 %v1278, %v1418
      %v1436 = vmul.f32 %v1391, %v1418
      %v1437 = vmul.f32 %v1281, %v1418
      %v1438 = vmul.f32 %v1392, %v1418
      %v1439 = vmul.f32 %v1284, %v1418
      %v1440 = vmul.f32 %v1393, %v1418
      %v1441 = vmul.f32 %v1287, %v1418
      %v1442 = vmul.f32 %v1394, %v1418
      %v1443 = vmul.f32 %v1290, %v1418
      %v1444 = vmul.f32 %v1395, %v1418
      %v1445 = vmul.f32 %v1293, %v1418
      %v1446 = vmul.f32 %v1396, %v1418
      %v1447 = vmul.f32 %v1296, %v1418
      %v1448 = vmul.f32 %v1397, %v1418
      %v1449 = vmul.f32 %v1299, %v1418
      %v1450 = vperm.slane %v1188, 1
      %1452 = vrot.lane.b32.xlu0 %v1450, 8
      %v1453 = vpop.permute.xlu0 %1452
      %v1455 = vmul.f32 %v1383, %v1453
      %v1456 = vmul.f32 %v1257, %v1453
      %v1457 = vmul.f32 %v1399, %v1453
      %v1458 = vmul.f32 %v1384, %v1453
      %v1459 = vmul.f32 %v1260, %v1453
      %v1460 = vmul.f32 %v1400, %v1453
      %v1461 = vmul.f32 %v1385, %v1453
      %v1462 = vmul.f32 %v1263, %v1453
      %v1463 = vmul.f32 %v1401, %v1453
      %v1464 = vmul.f32 %v1386, %v1453
      %v1465 = vmul.f32 %v1266, %v1453
      %v1466 = vmul.f32 %v1402, %v1453
      %v1467 = vmul.f32 %v1387, %v1453
      %v1468 = vmul.f32 %v1269, %v1453
      %v1469 = vmul.f32 %v1403, %v1453
      %v1470 = vmul.f32 %v1388, %v1453
      %v1471 = vmul.f32 %v1272, %v1453
      %v1472 = vmul.f32 %v1404, %v1453
      %v1473 = vmul.f32 %v1389, %v1453
      %v1474 = vmul.f32 %v1275, %v1453
      %v1475 = vmul.f32 %v1405, %v1453
      %v1476 = vmul.f32 %v1390, %v1453
      %v1477 = vmul.f32 %v1278, %v1453
      %v1478 = vmul.f32 %v1406, %v1453
      %v1479 = vmul.f32 %v1391, %v1453
      %v1480 = vmul.f32 %v1281, %v1453
      %v1481 = vmul.f32 %v1407, %v1453
      %v1482 = vmul.f32 %v1392, %v1453
      %v1483 = vmul.f32 %v1284, %v1453
      %v1484 = vmul.f32 %v1408, %v1453
      %v1485 = vmul.f32 %v1393, %v1453
      %v1486 = vmul.f32 %v1287, %v1453
      %v1487 = vmul.f32 %v1409, %v1453
      %v1488 = vmul.f32 %v1394, %v1453
      %v1489 = vmul.f32 %v1290, %v1453
      %v1490 = vmul.f32 %v1410, %v1453
      %v1491 = vmul.f32 %v1395, %v1453
      %v1492 = vmul.f32 %v1293, %v1453
      %v1493 = vmul.f32 %v1411, %v1453
      %v1494 = vmul.f32 %v1396, %v1453
      %v1495 = vmul.f32 %v1296, %v1453
      %v1496 = vmul.f32 %v1412, %v1453
      %v1497 = vmul.f32 %v1397, %v1453
      %v1498 = vmul.f32 %v1299, %v1453
      %v1499 = vmul.f32 %v1413, %v1453
      %vm1545 = vcmask 1046528
      %v1546 = vrot.slane %v1455, 1
      %v1547 = vrot.slane %v1456, 1
      %v1548 = vsel %vm1545, %v1546, %v1547
      %v1549 = vrot.slane %v1457, 1
      %v1550 = vsel %vm1545, %v1547, %v1549
      %v1551 = vrot.slane %v1458, 1
      %v1552 = vrot.slane %v1459, 1
      %v1553 = vsel %vm1545, %v1551, %v1552
      %v1554 = vrot.slane %v1460, 1
      %v1555 = vsel %vm1545, %v1552, %v1554
      %v1556 = vrot.slane %v1461, 1
      %v1557 = vrot.slane %v1462, 1
      %v1558 = vsel %vm1545, %v1556, %v1557
      %v1559 = vrot.slane %v1463, 1
      %v1560 = vsel %vm1545, %v1557, %v1559
      %v1561 = vrot.slane %v1464, 1
      %v1562 = vrot.slane %v1465, 1
      %v1563 = vsel %vm1545, %v1561, %v1562
      %v1564 = vrot.slane %v1466, 1
      %v1565 = vsel %vm1545, %v1562, %v1564
      %v1566 = vrot.slane %v1467, 1
      %v1567 = vrot.slane %v1468, 1
      %v1568 = vsel %vm1545, %v1566, %v1567
      %v1569 = vrot.slane %v1469, 1
      %v1570 = vsel %vm1545, %v1567, %v1569
      %v1571 = vrot.slane %v1470, 1
      %v1572 = vrot.slane %v1471, 1
      %v1573 = vsel %vm1545, %v1571, %v1572
      %v1574 = vrot.slane %v1472, 1
      %v1575 = vsel %vm1545, %v1572, %v1574
      %v1576 = vrot.slane %v1473, 1
      %v1577 = vrot.slane %v1474, 1
      %v1578 = vsel %vm1545, %v1576, %v1577
      %v1579 = vrot.slane %v1475, 1
      %v1580 = vsel %vm1545, %v1577, %v1579
      %v1581 = vrot.slane %v1476, 1
      %v1582 = vrot.slane %v1477, 1
      %v1583 = vsel %vm1545, %v1581, %v1582
      %v1584 = vrot.slane %v1478, 1
      %v1585 = vsel %vm1545, %v1582, %v1584
      %v1586 = vrot.slane %v1479, 1
      %v1587 = vrot.slane %v1480, 1
      %v1588 = vsel %vm1545, %v1586, %v1587
      %v1589 = vrot.slane %v1481, 1
      %v1590 = vsel %vm1545, %v1587, %v1589
      %v1591 = vrot.slane %v1482, 1
      %v1592 = vrot.slane %v1483, 1
      %v1593 = vsel %vm1545, %v1591, %v1592
      %v1594 = vrot.slane %v1484, 1
      %v1595 = vsel %vm1545, %v1592, %v1594
      %v1596 = vrot.slane %v1485, 1
      %v1597 = vrot.slane %v1486, 1
      %v1598 = vsel %vm1545, %v1596, %v1597
      %v1599 = vrot.slane %v1487, 1
      %v1600 = vsel %vm1545, %v1597, %v1599
      %v1601 = vrot.slane %v1488, 1
      %v1602 = vrot.slane %v1489, 1
      %v1603 = vsel %vm1545, %v1601, %v1602
      %v1604 = vrot.slane %v1490, 1
      %v1605 = vsel %vm1545, %v1602, %v1604
      %v1606 = vrot.slane %v1491, 1
      %v1607 = vrot.slane %v1492, 1
      %v1608 = vsel %vm1545, %v1606, %v1607
      %v1609 = vrot.slane %v1493, 1
      %v1610 = vsel %vm1545, %v1607, %v1609
      %v1611 = vrot.slane %v1494, 1
      %v1612 = vrot.slane %v1495, 1
      %v1613 = vsel %vm1545, %v1611, %v1612
      %v1614 = vrot.slane %v1496, 1
      %v1615 = vsel %vm1545, %v1612, %v1614
      %v1616 = vrot.slane %v1497, 1
      %v1617 = vrot.slane %v1498, 1
      %v1618 = vsel %vm1545, %v1616, %v1617
      %v1619 = vrot.slane %v1499, 1
      %v1620 = vsel %vm1545, %v1617, %v1619
      %v1651 = vadd.f32 %v1420, %v1548
      %v1652 = vadd.f32 %v1421, %v1550
      %v1653 = vadd.f32 %v1422, %v1553
      %v1654 = vadd.f32 %v1423, %v1555
      %v1655 = vadd.f32 %v1424, %v1558
      %v1656 = vadd.f32 %v1425, %v1560
      %v1657 = vadd.f32 %v1426, %v1563
      %v1658 = vadd.f32 %v1427, %v1565
      %v1659 = vadd.f32 %v1428, %v1568
      %v1660 = vadd.f32 %v1429, %v1570
      %v1661 = vadd.f32 %v1430, %v1573
      %v1662 = vadd.f32 %v1431, %v1575
      %v1663 = vadd.f32 %v1432, %v1578
      %v1664 = vadd.f32 %v1433, %v1580
      %v1665 = vadd.f32 %v1434, %v1583
      %v1666 = vadd.f32 %v1435, %v1585
      %v1667 = vadd.f32 %v1436, %v1588
      %v1668 = vadd.f32 %v1437, %v1590
      %v1669 = vadd.f32 %v1438, %v1593
      %v1670 = vadd.f32 %v1439, %v1595
      %v1671 = vadd.f32 %v1440, %v1598
      %v1672 = vadd.f32 %v1441, %v1600
      %v1673 = vadd.f32 %v1442, %v1603
      %v1674 = vadd.f32 %v1443, %v1605
      %v1675 = vadd.f32 %v1444, %v1608
      %v1676 = vadd.f32 %v1445, %v1610
      %v1677 = vadd.f32 %v1446, %v1613
      %v1678 = vadd.f32 %v1447, %v1615
      %v1679 = vadd.f32 %v1448, %v1618
      %v1680 = vadd.f32 %v1449, %v1620
      %v1681 = vperm.slane %v1188, 2
      %1683 = vrot.lane.b32.xlu0 %v1681, 8
      %v1684 = vpop.permute.xlu0 %1683
      %v1686 = vmul.f32 %v1383, %v1684
      %v1687 = vmul.f32 %v1257, %v1684
      %v1688 = vmul.f32 %v1399, %v1684
      %v1689 = vmul.f32 %v1384, %v1684
      %v1690 = vmul.f32 %v1260, %v1684
      %v1691 = vmul.f32 %v1400, %v1684
      %v1692 = vmul.f32 %v1385, %v1684
      %v1693 = vmul.f32 %v1263, %v1684
      %v1694 = vmul.f32 %v1401, %v1684
      %v1695 = vmul.f32 %v1386, %v1684
      %v1696 = vmul.f32 %v1266, %v1684
      %v1697 = vmul.f32 %v1402, %v1684
      %v1698 = vmul.f32 %v1387, %v1684
      %v1699 = vmul.f32 %v1269, %v1684
      %v1700 = vmul.f32 %v1403, %v1684
      %v1701 = vmul.f32 %v1388, %v1684
      %v1702 = vmul.f32 %v1272, %v1684
      %v1703 = vmul.f32 %v1404, %v1684
      %v1704 = vmul.f32 %v1389, %v1684
      %v1705 = vmul.f32 %v1275, %v1684
      %v1706 = vmul.f32 %v1405, %v1684
      %v1707 = vmul.f32 %v1390, %v1684
      %v1708 = vmul.f32 %v1278, %v1684
      %v1709 = vmul.f32 %v1406, %v1684
      %v1710 = vmul.f32 %v1391, %v1684
      %v1711 = vmul.f32 %v1281, %v1684
      %v1712 = vmul.f32 %v1407, %v1684
      %v1713 = vmul.f32 %v1392, %v1684
      %v1714 = vmul.f32 %v1284, %v1684
      %v1715 = vmul.f32 %v1408, %v1684
      %v1716 = vmul.f32 %v1393, %v1684
      %v1717 = vmul.f32 %v1287, %v1684
      %v1718 = vmul.f32 %v1409, %v1684
      %v1719 = vmul.f32 %v1394, %v1684
      %v1720 = vmul.f32 %v1290, %v1684
      %v1721 = vmul.f32 %v1410, %v1684
      %v1722 = vmul.f32 %v1395, %v1684
      %v1723 = vmul.f32 %v1293, %v1684
      %v1724 = vmul.f32 %v1411, %v1684
      %v1725 = vmul.f32 %v1396, %v1684
      %v1726 = vmul.f32 %v1296, %v1684
      %v1727 = vmul.f32 %v1412, %v1684
      %v1728 = vmul.f32 %v1397, %v1684
      %v1729 = vmul.f32 %v1299, %v1684
      %v1730 = vmul.f32 %v1413, %v1684
      %vm1776 = vcmask 1045504
      %v1777 = vrot.slane %v1686, 2
      %v1778 = vrot.slane %v1687, 2
      %v1779 = vsel %vm1776, %v1777, %v1778
      %v1780 = vrot.slane %v1688, 2
      %v1781 = vsel %vm1776, %v1778, %v1780
      %v1782 = vrot.slane %v1689, 2
      %v1783 = vrot.slane %v1690, 2
      %v1784 = vsel %vm1776, %v1782, %v1783
      %v1785 = vrot.slane %v1691, 2
      %v1786 = vsel %vm1776, %v1783, %v1785
      %v1787 = vrot.slane %v1692, 2
      %v1788 = vrot.slane %v1693, 2
      %v1789 = vsel %vm1776, %v1787, %v1788
      %v1790 = vrot.slane %v1694, 2
      %v1791 = vsel %vm1776, %v1788, %v1790
      %v1792 = vrot.slane %v1695, 2
      %v1793 = vrot.slane %v1696, 2
      %v1794 = vsel %vm1776, %v1792, %v1793
      %v1795 = vrot.slane %v1697, 2
      %v1796 = vsel %vm1776, %v1793, %v1795
      %v1797 = vrot.slane %v1698, 2
      %v1798 = vrot.slane %v1699, 2
      %v1799 = vsel %vm1776, %v1797, %v1798
      %v1800 = vrot.slane %v1700, 2
      %v1801 = vsel %vm1776, %v1798, %v1800
      %v1802 = vrot.slane %v1701, 2
      %v1803 = vrot.slane %v1702, 2
      %v1804 = vsel %vm1776, %v1802, %v1803
      %v1805 = vrot.slane %v1703, 2
      %v1806 = vsel %vm1776, %v1803, %v1805
      %v1807 = vrot.slane %v1704, 2
      %v1808 = vrot.slane %v1705, 2
      %v1809 = vsel %vm1776, %v1807, %v1808
      %v1810 = vrot.slane %v1706, 2
      %v1811 = vsel %vm1776, %v1808, %v1810
      %v1812 = vrot.slane %v1707, 2
      %v1813 = vrot.slane %v1708, 2
      %v1814 = vsel %vm1776, %v1812, %v1813
      %v1815 = vrot.slane %v1709, 2
      %v1816 = vsel %vm1776, %v1813, %v1815
      %v1817 = vrot.slane %v1710, 2
      %v1818 = vrot.slane %v1711, 2
      %v1819 = vsel %vm1776, %v1817, %v1818
      %v1820 = vrot.slane %v1712, 2
      %v1821 = vsel %vm1776, %v1818, %v1820
      %v1822 = vrot.slane %v1713, 2
      %v1823 = vrot.slane %v1714, 2
      %v1824 = vsel %vm1776, %v1822, %v1823
      %v1825 = vrot.slane %v1715, 2
      %v1826 = vsel %vm1776, %v1823, %v1825
      %v1827 = vrot.slane %v1716, 2
      %v1828 = vrot.slane %v1717, 2
      %v1829 = vsel %vm1776, %v1827, %v1828
      %v1830 = vrot.slane %v1718, 2
      %v1831 = vsel %vm1776, %v1828, %v1830
      %v1832 = vrot.slane %v1719, 2
      %v1833 = vrot.slane %v1720, 2
      %v1834 = vsel %vm1776, %v1832, %v1833
      %v1835 = vrot.slane %v1721, 2
      %v1836 = vsel %vm1776, %v1833, %v1835
      %v1837 = vrot.slane %v1722, 2
      %v1838 = vrot.slane %v1723, 2
      %v1839 = vsel %vm1776, %v1837, %v1838
      %v1840 = vrot.slane %v1724, 2
      %v1841 = vsel %vm1776, %v1838, %v1840
      %v1842 = vrot.slane %v1725, 2
      %v1843 = vrot.slane %v1726, 2
      %v1844 = vsel %vm1776, %v1842, %v1843
      %v1845 = vrot.slane %v1727, 2
      %v1846 = vsel %vm1776, %v1843, %v1845
      %v1847 = vrot.slane %v1728, 2
      %v1848 = vrot.slane %v1729, 2
      %v1849 = vsel %vm1776, %v1847, %v1848
      %v1850 = vrot.slane %v1730, 2
      %v1851 = vsel %vm1776, %v1848, %v1850
      %v1882 = vadd.f32 %v1651, %v1779
      %v1883 = vadd.f32 %v1652, %v1781
      %v1884 = vadd.f32 %v1653, %v1784
      %v1885 = vadd.f32 %v1654, %v1786
      %v1886 = vadd.f32 %v1655, %v1789
      %v1887 = vadd.f32 %v1656, %v1791
      %v1888 = vadd.f32 %v1657, %v1794
      %v1889 = vadd.f32 %v1658, %v1796
      %v1890 = vadd.f32 %v1659, %v1799
      %v1891 = vadd.f32 %v1660, %v1801
      %v1892 = vadd.f32 %v1661, %v1804
      %v1893 = vadd.f32 %v1662, %v1806
      %v1894 = vadd.f32 %v1663, %v1809
      %v1895 = vadd.f32 %v1664, %v1811
      %v1896 = vadd.f32 %v1665, %v1814
      %v1897 = vadd.f32 %v1666, %v1816
      %v1898 = vadd.f32 %v1667, %v1819
      %v1899 = vadd.f32 %v1668, %v1821
      %v1900 = vadd.f32 %v1669, %v1824
      %v1901 = vadd.f32 %v1670, %v1826
      %v1902 = vadd.f32 %v1671, %v1829
      %v1903 = vadd.f32 %v1672, %v1831
      %v1904 = vadd.f32 %v1673, %v1834
      %v1905 = vadd.f32 %v1674, %v1836
      %v1906 = vadd.f32 %v1675, %v1839
      %v1907 = vadd.f32 %v1676, %v1841
      %v1908 = vadd.f32 %v1677, %v1844
      %v1909 = vadd.f32 %v1678, %v1846
      %v1910 = vadd.f32 %v1679, %v1849
      %v1911 = vadd.f32 %v1680, %v1851
      %v1912 = vperm.slane %v1188, 3
      %1914 = vrot.lane.b32.xlu0 %v1912, 8
      %v1915 = vpop.permute.xlu0 %1914
      %v1917 = vmul.f32 %v1384, %v1915
      %v1918 = vmul.f32 %v1260, %v1915
      %v1919 = vmul.f32 %v1383, %v1915
      %v1920 = vmul.f32 %v1257, %v1915
      %v1921 = vmul.f32 %v1385, %v1915
      %v1922 = vmul.f32 %v1263, %v1915
      %v1923 = vmul.f32 %v1386, %v1915
      %v1924 = vmul.f32 %v1266, %v1915
      %v1925 = vmul.f32 %v1387, %v1915
      %v1926 = vmul.f32 %v1269, %v1915
      %v1927 = vmul.f32 %v1388, %v1915
      %v1928 = vmul.f32 %v1272, %v1915
      %v1929 = vmul.f32 %v1389, %v1915
      %v1930 = vmul.f32 %v1275, %v1915
      %v1931 = vmul.f32 %v1390, %v1915
      %v1932 = vmul.f32 %v1278, %v1915
      %v1933 = vmul.f32 %v1391, %v1915
      %v1934 = vmul.f32 %v1281, %v1915
      %v1935 = vmul.f32 %v1392, %v1915
      %v1936 = vmul.f32 %v1284, %v1915
      %v1937 = vmul.f32 %v1393, %v1915
      %v1938 = vmul.f32 %v1287, %v1915
      %v1939 = vmul.f32 %v1394, %v1915
      %v1940 = vmul.f32 %v1290, %v1915
      %v1941 = vmul.f32 %v1395, %v1915
      %v1942 = vmul.f32 %v1293, %v1915
      %v1943 = vmul.f32 %v1396, %v1915
      %v1944 = vmul.f32 %v1296, %v1915
      %v1945 = vmul.f32 %v1397, %v1915
      %v1946 = vmul.f32 %v1299, %v1915
      %v1947 = vmul.f32 %v1398, %v1915
      %v1948 = vmul.f32 %v1302, %v1915
      %v1949 = vadd.f32 %v1882, %v1917
      %v1950 = vadd.f32 %v1883, %v1918
      %v1951 = vadd.f32 %v1884, %v1919
      %v1952 = vadd.f32 %v1885, %v1920
      %v1953 = vadd.f32 %v1882, %v1921
      %v1954 = vadd.f32 %v1883, %v1922
      %v1955 = vadd.f32 %v1886, %v1923
      %v1956 = vadd.f32 %v1887, %v1924
      %v1957 = vadd.f32 %v1888, %v1925
      %v1958 = vadd.f32 %v1889, %v1926
      %v1959 = vadd.f32 %v1890, %v1927
      %v1960 = vadd.f32 %v1891, %v1928
      %v1961 = vadd.f32 %v1892, %v1929
      %v1962 = vadd.f32 %v1893, %v1930
      %v1963 = vadd.f32 %v1894, %v1931
      %v1964 = vadd.f32 %v1895, %v1932
      %v1965 = vadd.f32 %v1896, %v1933
      %v1966 = vadd.f32 %v1897, %v1934
      %v1967 = vadd.f32 %v1898, %v1935
      %v1968 = vadd.f32 %v1899, %v1936
      %v1969 = vadd.f32 %v1900, %v1937
      %v1970 = vadd.f32 %v1901, %v1938
      %v1971 = vadd.f32 %v1902, %v1939
      %v1972 = vadd.f32 %v1903, %v1940
      %v1973 = vadd.f32 %v1904, %v1941
      %v1974 = vadd.f32 %v1905, %v1942
      %v1975 = vadd.f32 %v1906, %v1943
      %v1976 = vadd.f32 %v1907, %v1944
      %v1977 = vadd.f32 %v1908, %v1945
      %v1978 = vadd.f32 %v1909, %v1946
      %v1979 = vadd.f32 %v1910, %v1947
      %v1980 = vadd.f32 %v1911, %v1948
      %v1981 = vperm.slane %v1188, 4
      %1983 = vrot.lane.b32.xlu0 %v1981, 8
      %v1984 = vpop.permute.xlu0 %1983
      %v1986 = vmul.f32 %v1384, %v1984
      %v1987 = vmul.f32 %v1260, %v1984
      %v1988 = vmul.f32 %v1400, %v1984
      %v1989 = vmul.f32 %v1383, %v1984
      %v1990 = vmul.f32 %v1257, %v1984
      %v1991 = vmul.f32 %v1399, %v1984
      %v1992 = vmul.f32 %v1385, %v1984
      %v1993 = vmul.f32 %v1263, %v1984
      %v1994 = vmul.f32 %v1401, %v1984
      %v1995 = vmul.f32 %v1386, %v1984
      %v1996 = vmul.f32 %v1266, %v1984
      %v1997 = vmul.f32 %v1402, %v1984
      %v1998 = vmul.f32 %v1387, %v1984
      %v1999 = vmul.f32 %v1269, %v1984
      %v2000 = vmul.f32 %v1403, %v1984
      %v2001 = vmul.f32 %v1388, %v1984
      %v2002 = vmul.f32 %v1272, %v1984
      %v2003 = vmul.f32 %v1404, %v1984
      %v2004 = vmul.f32 %v1389, %v1984
      %v2005 = vmul.f32 %v1275, %v1984
      %v2006 = vmul.f32 %v1405, %v1984
      %v2007 = vmul.f32 %v1390, %v1984
      %v2008 = vmul.f32 %v1278, %v1984
      %v2009 = vmul.f32 %v1406, %v1984
      %v2010 = vmul.f32 %v1391, %v1984
      %v2011 = vmul.f32 %v1281, %v1984
      %v2012 = vmul.f32 %v1407, %v1984
      %v2013 = vmul.f32 %v1392, %v1984
      %v2014 = vmul.f32 %v1284, %v1984
      %v2015 = vmul.f32 %v1408, %v1984
      %v2016 = vmul.f32 %v1393, %v1984
      %v2017 = vmul.f32 %v1287, %v1984
      %v2018 = vmul.f32 %v1409, %v1984
      %v2019 = vmul.f32 %v1394, %v1984
      %v2020 = vmul.f32 %v1290, %v1984
      %v2021 = vmul.f32 %v1410, %v1984
      %v2022 = vmul.f32 %v1395, %v1984
      %v2023 = vmul.f32 %v1293, %v1984
      %v2024 = vmul.f32 %v1411, %v1984
      %v2025 = vmul.f32 %v1396, %v1984
      %v2026 = vmul.f32 %v1296, %v1984
      %v2027 = vmul.f32 %v1412, %v1984
      %v2028 = vmul.f32 %v1397, %v1984
      %v2029 = vmul.f32 %v1299, %v1984
      %v2030 = vmul.f32 %v1413, %v1984
      %v2031 = vmul.f32 %v1398, %v1984
      %v2032 = vmul.f32 %v1302, %v1984
      %v2033 = vmul.f32 %v1414, %v1984
      %v2082 = vrot.slane %v1986, 1
      %v2083 = vrot.slane %v1987, 1
      %v2084 = vsel %vm1545, %v2082, %v2083
      %v2085 = vrot.slane %v1988, 1
      %v2086 = vsel %vm1545, %v2083, %v2085
      %v2087 = vrot.slane %v1989, 1
      %v2088 = vrot.slane %v1990, 1
      %v2089 = vsel %vm1545, %v2087, %v2088
      %v2090 = vrot.slane %v1991, 1
      %v2091 = vsel %vm1545, %v2088, %v2090
      %v2092 = vrot.slane %v1992, 1
      %v2093 = vrot.slane %v1993, 1
      %v2094 = vsel %vm1545, %v2092, %v2093
      %v2095 = vrot.slane %v1994, 1
      %v2096 = vsel %vm1545, %v2093, %v2095
      %v2097 = vrot.slane %v1995, 1
      %v2098 = vrot.slane %v1996, 1
      %v2099 = vsel %vm1545, %v2097, %v2098
      %v2100 = vrot.slane %v1997, 1
      %v2101 = vsel %vm1545, %v2098, %v2100
      %v2102 = vrot.slane %v1998, 1
      %v2103 = vrot.slane %v1999, 1
      %v2104 = vsel %vm1545, %v2102, %v2103
      %v2105 = vrot.slane %v2000, 1
      %v2106 = vsel %vm1545, %v2103, %v2105
      %v2107 = vrot.slane %v2001, 1
      %v2108 = vrot.slane %v2002, 1
      %v2109 = vsel %vm1545, %v2107, %v2108
      %v2110 = vrot.slane %v2003, 1
      %v2111 = vsel %vm1545, %v2108, %v2110
      %v2112 = vrot.slane %v2004, 1
      %v2113 = vrot.slane %v2005, 1
      %v2114 = vsel %vm1545, %v2112, %v2113
      %v2115 = vrot.slane %v2006, 1
      %v2116 = vsel %vm1545, %v2113, %v2115
      %v2117 = vrot.slane %v2007, 1
      %v2118 = vrot.slane %v2008, 1
      %v2119 = vsel %vm1545, %v2117, %v2118
      %v2120 = vrot.slane %v2009, 1
      %v2121 = vsel %vm1545, %v2118, %v2120
      %v2122 = vrot.slane %v2010, 1
      %v2123 = vrot.slane %v2011, 1
      %v2124 = vsel %vm1545, %v2122, %v2123
      %v2125 = vrot.slane %v2012, 1
      %v2126 = vsel %vm1545, %v2123, %v2125
      %v2127 = vrot.slane %v2013, 1
      %v2128 = vrot.slane %v2014, 1
      %v2129 = vsel %vm1545, %v2127, %v2128
      %v2130 = vrot.slane %v2015, 1
      %v2131 = vsel %vm1545, %v2128, %v2130
      %v2132 = vrot.slane %v2016, 1
      %v2133 = vrot.slane %v2017, 1
      %v2134 = vsel %vm1545, %v2132, %v2133
      %v2135 = vrot.slane %v2018, 1
      %v2136 = vsel %vm1545, %v2133, %v2135
      %v2137 = vrot.slane %v2019, 1
      %v2138 = vrot.slane %v2020, 1
      %v2139 = vsel %vm1545, %v2137, %v2138
      %v2140 = vrot.slane %v2021, 1
      %v2141 = vsel %vm1545, %v2138, %v2140
      %v2142 = vrot.slane %v2022, 1
      %v2143 = vrot.slane %v2023, 1
      %v2144 = vsel %vm1545, %v2142, %v2143
      %v2145 = vrot.slane %v2024, 1
      %v2146 = vsel %vm1545, %v2143, %v2145
      %v2147 = vrot.slane %v2025, 1
      %v2148 = vrot.slane %v2026, 1
      %v2149 = vsel %vm1545, %v2147, %v2148
      %v2150 = vrot.slane %v2027, 1
      %v2151 = vsel %vm1545, %v2148, %v2150
      %v2152 = vrot.slane %v2028, 1
      %v2153 = vrot.slane %v2029, 1
      %v2154 = vsel %vm1545, %v2152, %v2153
      %v2155 = vrot.slane %v2030, 1
      %v2156 = vsel %vm1545, %v2153, %v2155
      %v2157 = vrot.slane %v2031, 1
      %v2158 = vrot.slane %v2032, 1
      %v2159 = vsel %vm1545, %v2157, %v2158
      %v2160 = vrot.slane %v2033, 1
      %v2161 = vsel %vm1545, %v2158, %v2160
      %v2194 = vadd.f32 %v1949, %v2084
      %v2195 = vadd.f32 %v1950, %v2086
      %v2196 = vadd.f32 %v1951, %v2089
      %v2197 = vadd.f32 %v1952, %v2091
      %v2198 = vadd.f32 %v1953, %v2094
      %v2199 = vadd.f32 %v1954, %v2096
      %v2200 = vadd.f32 %v1955, %v2099
      %v2201 = vadd.f32 %v1956, %v2101
      %v2202 = vadd.f32 %v1957, %v2104
      %v2203 = vadd.f32 %v1958, %v2106
      %v2204 = vadd.f32 %v1959, %v2109
      %v2205 = vadd.f32 %v1960, %v2111
      %v2206 = vadd.f32 %v1961, %v2114
      %v2207 = vadd.f32 %v1962, %v2116
      %v2208 = vadd.f32 %v1963, %v2119
      %v2209 = vadd.f32 %v1964, %v2121
      %v2210 = vadd.f32 %v1965, %v2124
      %v2211 = vadd.f32 %v1966, %v2126
      %v2212 = vadd.f32 %v1967, %v2129
      %v2213 = vadd.f32 %v1968, %v2131
      %v2214 = vadd.f32 %v1969, %v2134
      %v2215 = vadd.f32 %v1970, %v2136
      %v2216 = vadd.f32 %v1971, %v2139
      %v2217 = vadd.f32 %v1972, %v2141
      %v2218 = vadd.f32 %v1973, %v2144
      %v2219 = vadd.f32 %v1974, %v2146
      %v2220 = vadd.f32 %v1975, %v2149
      %v2221 = vadd.f32 %v1976, %v2151
      %v2222 = vadd.f32 %v1977, %v2154
      %v2223 = vadd.f32 %v1978, %v2156
      %v2224 = vadd.f32 %v1979, %v2159
      %v2225 = vadd.f32 %v1980, %v2161
      %v2226 = vperm.slane %v1188, 5
      %2228 = vrot.lane.b32.xlu0 %v2226, 8
      %v2229 = vpop.permute.xlu0 %2228
      %v2231 = vmul.f32 %v1384, %v2229
      %v2232 = vmul.f32 %v1260, %v2229
      %v2233 = vmul.f32 %v1400, %v2229
      %v2234 = vmul.f32 %v1383, %v2229
      %v2235 = vmul.f32 %v1257, %v2229
      %v2236 = vmul.f32 %v1399, %v2229
      %v2237 = vmul.f32 %v1385, %v2229
      %v2238 = vmul.f32 %v1263, %v2229
      %v2239 = vmul.f32 %v1401, %v2229
      %v2240 = vmul.f32 %v1386, %v2229
      %v2241 = vmul.f32 %v1266, %v2229
      %v2242 = vmul.f32 %v1402, %v2229
      %v2243 = vmul.f32 %v1387, %v2229
      %v2244 = vmul.f32 %v1269, %v2229
      %v2245 = vmul.f32 %v1403, %v2229
      %v2246 = vmul.f32 %v1388, %v2229
      %v2247 = vmul.f32 %v1272, %v2229
      %v2248 = vmul.f32 %v1404, %v2229
      %v2249 = vmul.f32 %v1389, %v2229
      %v2250 = vmul.f32 %v1275, %v2229
      %v2251 = vmul.f32 %v1405, %v2229
      %v2252 = vmul.f32 %v1390, %v2229
      %v2253 = vmul.f32 %v1278, %v2229
      %v2254 = vmul.f32 %v1406, %v2229
      %v2255 = vmul.f32 %v1391, %v2229
      %v2256 = vmul.f32 %v1281, %v2229
      %v2257 = vmul.f32 %v1407, %v2229
      %v2258 = vmul.f32 %v1392, %v2229
      %v2259 = vmul.f32 %v1284, %v2229
      %v2260 = vmul.f32 %v1408, %v2229
      %v2261 = vmul.f32 %v1393, %v2229
      %v2262 = vmul.f32 %v1287, %v2229
      %v2263 = vmul.f32 %v1409, %v2229
      %v2264 = vmul.f32 %v1394, %v2229
      %v2265 = vmul.f32 %v1290, %v2229
      %v2266 = vmul.f32 %v1410, %v2229
      %v2267 = vmul.f32 %v1395, %v2229
      %v2268 = vmul.f32 %v1293, %v2229
      %v2269 = vmul.f32 %v1411, %v2229
      %v2270 = vmul.f32 %v1396, %v2229
      %v2271 = vmul.f32 %v1296, %v2229
      %v2272 = vmul.f32 %v1412, %v2229
      %v2273 = vmul.f32 %v1397, %v2229
      %v2274 = vmul.f32 %v1299, %v2229
      %v2275 = vmul.f32 %v1413, %v2229
      %v2276 = vmul.f32 %v1398, %v2229
      %v2277 = vmul.f32 %v1302, %v2229
      %v2278 = vmul.f32 %v1414, %v2229
      %v2327 = vrot.slane %v2231, 2
      %v2328 = vrot.slane %v2232, 2
      %v2329 = vsel %vm1776, %v2327, %v2328
      %v2330 = vrot.slane %v2233, 2
      %v2331 = vsel %vm1776, %v2328, %v2330
      %v2332 = vrot.slane %v2234, 2
      %v2333 = vrot.slane %v2235, 2
      %v2334 = vsel %vm1776, %v2332, %v2333
      %v2335 = vrot.slane %v2236, 2
      %v2336 = vsel %vm1776, %v2333, %v2335
      %v2337 = vrot.slane %v2237, 2
      %v2338 = vrot.slane %v2238, 2
      %v2339 = vsel %vm1776, %v2337, %v2338
      %v2340 = vrot.slane %v2239, 2
      %v2341 = vsel %vm1776, %v2338, %v2340
      %v2342 = vrot.slane %v2240, 2
      %v2343 = vrot.slane %v2241, 2
      %v2344 = vsel %vm1776, %v2342, %v2343
      %v2345 = vrot.slane %v2242, 2
      %v2346 = vsel %vm1776, %v2343, %v2345
      %v2347 = vrot.slane %v2243, 2
      %v2348 = vrot.slane %v2244, 2
      %v2349 = vsel %vm1776, %v2347, %v2348
      %v2350 = vrot.slane %v2245, 2
      %v2351 = vsel %vm1776, %v2348, %v2350
      %v2352 = vrot.slane %v2246, 2
      %v2353 = vrot.slane %v2247, 2
      %v2354 = vsel %vm1776, %v2352, %v2353
      %v2355 = vrot.slane %v2248, 2
      %v2356 = vsel %vm1776, %v2353, %v2355
      %v2357 = vrot.slane %v2249, 2
      %v2358 = vrot.slane %v2250, 2
      %v2359 = vsel %vm1776, %v2357, %v2358
      %v2360 = vrot.slane %v2251, 2
      %v2361 = vsel %vm1776, %v2358, %v2360
      %v2362 = vrot.slane %v2252, 2
      %v2363 = vrot.slane %v2253, 2
      %v2364 = vsel %vm1776, %v2362, %v2363
      %v2365 = vrot.slane %v2254, 2
      %v2366 = vsel %vm1776, %v2363, %v2365
      %v2367 = vrot.slane %v2255, 2
      %v2368 = vrot.slane %v2256, 2
      %v2369 = vsel %vm1776, %v2367, %v2368
      %v2370 = vrot.slane %v2257, 2
      %v2371 = vsel %vm1776, %v2368, %v2370
      %v2372 = vrot.slane %v2258, 2
      %v2373 = vrot.slane %v2259, 2
      %v2374 = vsel %vm1776, %v2372, %v2373
      %v2375 = vrot.slane %v2260, 2
      %v2376 = vsel %vm1776, %v2373, %v2375
      %v2377 = vrot.slane %v2261, 2
      %v2378 = vrot.slane %v2262, 2
      %v2379 = vsel %vm1776, %v2377, %v2378
      %v2380 = vrot.slane %v2263, 2
      %v2381 = vsel %vm1776, %v2378, %v2380
      %v2382 = vrot.slane %v2264, 2
      %v2383 = vrot.slane %v2265, 2
      %v2384 = vsel %vm1776, %v2382, %v2383
      %v2385 = vrot.slane %v2266, 2
      %v2386 = vsel %vm1776, %v2383, %v2385
      %v2387 = vrot.slane %v2267, 2
      %v2388 = vrot.slane %v2268, 2
      %v2389 = vsel %vm1776, %v2387, %v2388
      %v2390 = vrot.slane %v2269, 2
      %v2391 = vsel %vm1776, %v2388, %v2390
      %v2392 = vrot.slane %v2270, 2
      %v2393 = vrot.slane %v2271, 2
      %v2394 = vsel %vm1776, %v2392, %v2393
      %v2395 = vrot.slane %v2272, 2
      %v2396 = vsel %vm1776, %v2393, %v2395
      %v2397 = vrot.slane %v2273, 2
      %v2398 = vrot.slane %v2274, 2
      %v2399 = vsel %vm1776, %v2397, %v2398
      %v2400 = vrot.slane %v2275, 2
      %v2401 = vsel %vm1776, %v2398, %v2400
      %v2402 = vrot.slane %v2276, 2
      %v2403 = vrot.slane %v2277, 2
      %v2404 = vsel %vm1776, %v2402, %v2403
      %v2405 = vrot.slane %v2278, 2
      %v2406 = vsel %vm1776, %v2403, %v2405
      %v2439 = vadd.f32 %v2194, %v2329
      %v2440 = vadd.f32 %v2195, %v2331
      %v2441 = vadd.f32 %v2196, %v2334
      %v2442 = vadd.f32 %v2197, %v2336
      %v2443 = vadd.f32 %v2198, %v2339
      %v2444 = vadd.f32 %v2199, %v2341
      %v2445 = vadd.f32 %v2200, %v2344
      %v2446 = vadd.f32 %v2201, %v2346
      %v2447 = vadd.f32 %v2202, %v2349
      %v2448 = vadd.f32 %v2203, %v2351
      %v2449 = vadd.f32 %v2204, %v2354
      %v2450 = vadd.f32 %v2205, %v2356
      %v2451 = vadd.f32 %v2206, %v2359
      %v2452 = vadd.f32 %v2207, %v2361
      %v2453 = vadd.f32 %v2208, %v2364
      %v2454 = vadd.f32 %v2209, %v2366
      %v2455 = vadd.f32 %v2210, %v2369
      %v2456 = vadd.f32 %v2211, %v2371
      %v2457 = vadd.f32 %v2212, %v2374
      %v2458 = vadd.f32 %v2213, %v2376
      %v2459 = vadd.f32 %v2214, %v2379
      %v2460 = vadd.f32 %v2215, %v2381
      %v2461 = vadd.f32 %v2216, %v2384
      %v2462 = vadd.f32 %v2217, %v2386
      %v2463 = vadd.f32 %v2218, %v2389
      %v2464 = vadd.f32 %v2219, %v2391
      %v2465 = vadd.f32 %v2220, %v2394
      %v2466 = vadd.f32 %v2221, %v2396
      %v2467 = vadd.f32 %v2222, %v2399
      %v2468 = vadd.f32 %v2223, %v2401
      %v2469 = vadd.f32 %v2224, %v2404
      %v2470 = vadd.f32 %v2225, %v2406
      %v2471 = vperm.slane %v1188, 6
      %2473 = vrot.lane.b32.xlu0 %v2471, 8
      %v2474 = vpop.permute.xlu0 %2473
      %v2476 = vmul.f32 %v1383, %v2474
      %v2477 = vmul.f32 %v1257, %v2474
      %v2478 = vmul.f32 %v1385, %v2474
      %v2479 = vmul.f32 %v1263, %v2474
      %v2480 = vmul.f32 %v1386, %v2474
      %v2481 = vmul.f32 %v1266, %v2474
      %v2482 = vmul.f32 %v1387, %v2474
      %v2483 = vmul.f32 %v1269, %v2474
      %v2484 = vmul.f32 %v1388, %v2474
      %v2485 = vmul.f32 %v1272, %v2474
      %v2486 = vmul.f32 %v1389, %v2474
      %v2487 = vmul.f32 %v1275, %v2474
      %v2488 = vmul.f32 %v1390, %v2474
      %v2489 = vmul.f32 %v1278, %v2474
      %v2490 = vmul.f32 %v1391, %v2474
      %v2491 = vmul.f32 %v1281, %v2474
      %v2492 = vmul.f32 %v1392, %v2474
      %v2493 = vmul.f32 %v1284, %v2474
      %v2494 = vmul.f32 %v1393, %v2474
      %v2495 = vmul.f32 %v1287, %v2474
      %v2496 = vmul.f32 %v1394, %v2474
      %v2497 = vmul.f32 %v1290, %v2474
      %v2498 = vmul.f32 %v1395, %v2474
      %v2499 = vmul.f32 %v1293, %v2474
      %v2500 = vmul.f32 %v1396, %v2474
      %v2501 = vmul.f32 %v1296, %v2474
      %v2502 = vmul.f32 %v1397, %v2474
      %v2503 = vmul.f32 %v1299, %v2474
      %v2504 = vmul.f32 %v1398, %v2474
      %v2505 = vmul.f32 %v1302, %v2474
      %v2506 = vadd.f32 %v2439, %v2476
      %v2507 = vadd.f32 %v2440, %v2477
      %v2508 = vadd.f32 %v2441, %v2478
      %v2509 = vadd.f32 %v2442, %v2479
      %v2510 = vadd.f32 %v2443, %v2480
      %v2511 = vadd.f32 %v2444, %v2481
      %v2512 = vadd.f32 %v2445, %v2482
      %v2513 = vadd.f32 %v2446, %v2483
      %v2514 = vadd.f32 %v2447, %v2484
      %v2515 = vadd.f32 %v2448, %v2485
      %v2516 = vadd.f32 %v2449, %v2486
      %v2517 = vadd.f32 %v2450, %v2487
      %v2518 = vadd.f32 %v2451, %v2488
      %v2519 = vadd.f32 %v2452, %v2489
      %v2520 = vadd.f32 %v2453, %v2490
      %v2521 = vadd.f32 %v2454, %v2491
      %v2522 = vadd.f32 %v2455, %v2492
      %v2523 = vadd.f32 %v2456, %v2493
      %v2524 = vadd.f32 %v2457, %v2494
      %v2525 = vadd.f32 %v2458, %v2495
      %v2526 = vadd.f32 %v2459, %v2496
      %v2527 = vadd.f32 %v2460, %v2497
      %v2528 = vadd.f32 %v2461, %v2498
      %v2529 = vadd.f32 %v2462, %v2499
      %v2530 = vadd.f32 %v2463, %v2500
      %v2531 = vadd.f32 %v2464, %v2501
      %v2532 = vadd.f32 %v2465, %v2502
      %v2533 = vadd.f32 %v2466, %v2503
      %v2534 = vadd.f32 %v2467, %v2504
      %v2535 = vadd.f32 %v2468, %v2505
      %v2536 = vadd.f32 %v2469, %v2502
      %v2537 = vadd.f32 %v2470, %v2503
      %v2538 = vperm.slane %v1188, 7
      %2540 = vrot.lane.b32.xlu0 %v2538, 8
      %v2541 = vpop.permute.xlu0 %2540
      %v2543 = vmul.f32 %v1383, %v2541
      %v2544 = vmul.f32 %v1257, %v2541
      %v2545 = vmul.f32 %v1399, %v2541
      %v2546 = vmul.f32 %v1385, %v2541
      %v2547 = vmul.f32 %v1263, %v2541
      %v2548 = vmul.f32 %v1401, %v2541
      %v2549 = vmul.f32 %v1386, %v2541
      %v2550 = vmul.f32 %v1266, %v2541
      %v2551 = vmul.f32 %v1402, %v2541
      %v2552 = vmul.f32 %v1387, %v2541
      %v2553 = vmul.f32 %v1269, %v2541
      %v2554 = vmul.f32 %v1403, %v2541
      %v2555 = vmul.f32 %v1388, %v2541
      %v2556 = vmul.f32 %v1272, %v2541
      %v2557 = vmul.f32 %v1404, %v2541
      %v2558 = vmul.f32 %v1389, %v2541
      %v2559 = vmul.f32 %v1275, %v2541
      %v2560 = vmul.f32 %v1405, %v2541
      %v2561 = vmul.f32 %v1390, %v2541
      %v2562 = vmul.f32 %v1278, %v2541
      %v2563 = vmul.f32 %v1406, %v2541
      %v2564 = vmul.f32 %v1391, %v2541
      %v2565 = vmul.f32 %v1281, %v2541
      %v2566 = vmul.f32 %v1407, %v2541
      %v2567 = vmul.f32 %v1392, %v2541
      %v2568 = vmul.f32 %v1284, %v2541
      %v2569 = vmul.f32 %v1408, %v2541
      %v2570 = vmul.f32 %v1393, %v2541
      %v2571 = vmul.f32 %v1287, %v2541
      %v2572 = vmul.f32 %v1409, %v2541
      %v2573 = vmul.f32 %v1394, %v2541
      %v2574 = vmul.f32 %v1290, %v2541
      %v2575 = vmul.f32 %v1410, %v2541
      %v2576 = vmul.f32 %v1395, %v2541
      %v2577 = vmul.f32 %v1293, %v2541
      %v2578 = vmul.f32 %v1411, %v2541
      %v2579 = vmul.f32 %v1396, %v2541
      %v2580 = vmul.f32 %v1296, %v2541
      %v2581 = vmul.f32 %v1412, %v2541
      %v2582 = vmul.f32 %v1397, %v2541
      %v2583 = vmul.f32 %v1299, %v2541
      %v2584 = vmul.f32 %v1413, %v2541
      %v2585 = vmul.f32 %v1398, %v2541
      %v2586 = vmul.f32 %v1302, %v2541
      %v2587 = vmul.f32 %v1414, %v2541
      %v2633 = vrot.slane %v2543, 1
      %v2634 = vrot.slane %v2544, 1
      %v2635 = vsel %vm1545, %v2633, %v2634
      %v2636 = vrot.slane %v2545, 1
      %v2637 = vsel %vm1545, %v2634, %v2636
      %v2638 = vrot.slane %v2546, 1
      %v2639 = vrot.slane %v2547, 1
      %v2640 = vsel %vm1545, %v2638, %v2639
      %v2641 = vrot.slane %v2548, 1
      %v2642 = vsel %vm1545, %v2639, %v2641
      %v2643 = vrot.slane %v2549, 1
      %v2644 = vrot.slane %v2550, 1
      %v2645 = vsel %vm1545, %v2643, %v2644
      %v2646 = vrot.slane %v2551, 1
      %v2647 = vsel %vm1545, %v2644, %v2646
      %v2648 = vrot.slane %v2552, 1
      %v2649 = vrot.slane %v2553, 1
      %v2650 = vsel %vm1545, %v2648, %v2649
      %v2651 = vrot.slane %v2554, 1
      %v2652 = vsel %vm1545, %v2649, %v2651
      %v2653 = vrot.slane %v2555, 1
      %v2654 = vrot.slane %v2556, 1
      %v2655 = vsel %vm1545, %v2653, %v2654
      %v2656 = vrot.slane %v2557, 1
      %v2657 = vsel %vm1545, %v2654, %v2656
      %v2658 = vrot.slane %v2558, 1
      %v2659 = vrot.slane %v2559, 1
      %v2660 = vsel %vm1545, %v2658, %v2659
      %v2661 = vrot.slane %v2560, 1
      %v2662 = vsel %vm1545, %v2659, %v2661
      %v2663 = vrot.slane %v2561, 1
      %v2664 = vrot.slane %v2562, 1
      %v2665 = vsel %vm1545, %v2663, %v2664
      %v2666 = vrot.slane %v2563, 1
      %v2667 = vsel %vm1545, %v2664, %v2666
      %v2668 = vrot.slane %v2564, 1
      %v2669 = vrot.slane %v2565, 1
      %v2670 = vsel %vm1545, %v2668, %v2669
      %v2671 = vrot.slane %v2566, 1
      %v2672 = vsel %vm1545, %v2669, %v2671
      %v2673 = vrot.slane %v2567, 1
      %v2674 = vrot.slane %v2568, 1
      %v2675 = vsel %vm1545, %v2673, %v2674
      %v2676 = vrot.slane %v2569, 1
      %v2677 = vsel %vm1545, %v2674, %v2676
      %v2678 = vrot.slane %v2570, 1
      %v2679 = vrot.slane %v2571, 1
      %v2680 = vsel %vm1545, %v2678, %v2679
      %v2681 = vrot.slane %v2572, 1
      %v2682 = vsel %vm1545, %v2679, %v2681
      %v2683 = vrot.slane %v2573, 1
      %v2684 = vrot.slane %v2574, 1
      %v2685 = vsel %vm1545, %v2683, %v2684
      %v2686 = vrot.slane %v2575, 1
      %v2687 = vsel %vm1545, %v2684, %v2686
      %v2688 = vrot.slane %v2576, 1
      %v2689 = vrot.slane %v2577, 1
      %v2690 = vsel %vm1545, %v2688, %v2689
      %v2691 = vrot.slane %v2578, 1
      %v2692 = vsel %vm1545, %v2689, %v2691
      %v2693 = vrot.slane %v2579, 1
      %v2694 = vrot.slane %v2580, 1
      %v2695 = vsel %vm1545, %v2693, %v2694
      %v2696 = vrot.slane %v2581, 1
      %v2697 = vsel %vm1545, %v2694, %v2696
      %v2698 = vrot.slane %v2582, 1
      %v2699 = vrot.slane %v2583, 1
      %v2700 = vsel %vm1545, %v2698, %v2699
      %v2701 = vrot.slane %v2584, 1
      %v2702 = vsel %vm1545, %v2699, %v2701
      %v2703 = vrot.slane %v2585, 1
      %v2704 = vrot.slane %v2586, 1
      %v2705 = vsel %vm1545, %v2703, %v2704
      %v2706 = vrot.slane %v2587, 1
      %v2707 = vsel %vm1545, %v2704, %v2706
      %v2738 = vadd.f32 %v2506, %v2635
      %v2739 = vadd.f32 %v2507, %v2637
      %v2740 = vadd.f32 %v2508, %v2640
      %v2741 = vadd.f32 %v2509, %v2642
      %v2742 = vadd.f32 %v2510, %v2645
      %v2743 = vadd.f32 %v2511, %v2647
      %v2744 = vadd.f32 %v2512, %v2650
      %v2745 = vadd.f32 %v2513, %v2652
      %v2746 = vadd.f32 %v2514, %v2655
      %v2747 = vadd.f32 %v2515, %v2657
      %v2748 = vadd.f32 %v2516, %v2660
      %v2749 = vadd.f32 %v2517, %v2662
      %v2750 = vadd.f32 %v2518, %v2665
      %v2751 = vadd.f32 %v2519, %v2667
      %v2752 = vadd.f32 %v2520, %v2670
      %v2753 = vadd.f32 %v2521, %v2672
      %v2754 = vadd.f32 %v2522, %v2675
      %v2755 = vadd.f32 %v2523, %v2677
      %v2756 = vadd.f32 %v2524, %v2680
      %v2757 = vadd.f32 %v2525, %v2682
      %v2758 = vadd.f32 %v2526, %v2685
      %v2759 = vadd.f32 %v2527, %v2687
      %v2760 = vadd.f32 %v2528, %v2690
      %v2761 = vadd.f32 %v2529, %v2692
      %v2762 = vadd.f32 %v2530, %v2695
      %v2763 = vadd.f32 %v2531, %v2697
      %v2764 = vadd.f32 %v2532, %v2700
      %v2765 = vadd.f32 %v2533, %v2702
      %v2766 = vadd.f32 %v2534, %v2705
      %v2767 = vadd.f32 %v2535, %v2707
      %v2768 = vadd.f32 %v2536, %v2700
      %v2769 = vadd.f32 %v2537, %v2702
      %v2770 = vperm.slane %v1189, 0
      %2772 = vrot.lane.b32.xlu0 %v2770, 8
      %v2773 = vpop.permute.xlu0 %2772
      %v2775 = vmul.f32 %v1383, %v2773
      %v2776 = vmul.f32 %v1257, %v2773
      %v2777 = vmul.f32 %v1399, %v2773
      %v2778 = vmul.f32 %v1385, %v2773
      %v2779 = vmul.f32 %v1263, %v2773
      %v2780 = vmul.f32 %v1401, %v2773
      %v2781 = vmul.f32 %v1386, %v2773
      %v2782 = vmul.f32 %v1266, %v2773
      %v2783 = vmul.f32 %v1402, %v2773
      %v2784 = vmul.f32 %v1387, %v2773
      %v2785 = vmul.f32 %v1269, %v2773
      %v2786 = vmul.f32 %v1403, %v2773
      %v2787 = vmul.f32 %v1388, %v2773
      %v2788 = vmul.f32 %v1272, %v2773
      %v2789 = vmul.f32 %v1404, %v2773
      %v2790 = vmul.f32 %v1389, %v2773
      %v2791 = vmul.f32 %v1275, %v2773
      %v2792 = vmul.f32 %v1405, %v2773
      %v2793 = vmul.f32 %v1390, %v2773
      %v2794 = vmul.f32 %v1278, %v2773
      %v2795 = vmul.f32 %v1406, %v2773
      %v2796 = vmul.f32 %v1391, %v2773
      %v2797 = vmul.f32 %v1281, %v2773
      %v2798 = vmul.f32 %v1407, %v2773
      %v2799 = vmul.f32 %v1392, %v2773
      %v2800 = vmul.f32 %v1284, %v2773
      %v2801 = vmul.f32 %v1408, %v2773
      %v2802 = vmul.f32 %v1393, %v2773
      %v2803 = vmul.f32 %v1287, %v2773
      %v2804 = vmul.f32 %v1409, %v2773
      %v2805 = vmul.f32 %v1394, %v2773
      %v2806 = vmul.f32 %v1290, %v2773
      %v2807 = vmul.f32 %v1410, %v2773
      %v2808 = vmul.f32 %v1395, %v2773
      %v2809 = vmul.f32 %v1293, %v2773
      %v2810 = vmul.f32 %v1411, %v2773
      %v2811 = vmul.f32 %v1396, %v2773
      %v2812 = vmul.f32 %v1296, %v2773
      %v2813 = vmul.f32 %v1412, %v2773
      %v2814 = vmul.f32 %v1397, %v2773
      %v2815 = vmul.f32 %v1299, %v2773
      %v2816 = vmul.f32 %v1413, %v2773
      %v2817 = vmul.f32 %v1398, %v2773
      %v2818 = vmul.f32 %v1302, %v2773
      %v2819 = vmul.f32 %v1414, %v2773
      %v2865 = vrot.slane %v2775, 2
      %v2866 = vrot.slane %v2776, 2
      %v2867 = vsel %vm1776, %v2865, %v2866
      %v2868 = vrot.slane %v2777, 2
      %v2869 = vsel %vm1776, %v2866, %v2868
      %v2870 = vrot.slane %v2778, 2
      %v2871 = vrot.slane %v2779, 2
      %v2872 = vsel %vm1776, %v2870, %v2871
      %v2873 = vrot.slane %v2780, 2
      %v2874 = vsel %vm1776, %v2871, %v2873
      %v2875 = vrot.slane %v2781, 2
      %v2876 = vrot.slane %v2782, 2
      %v2877 = vsel %vm1776, %v2875, %v2876
      %v2878 = vrot.slane %v2783, 2
      %v2879 = vsel %vm1776, %v2876, %v2878
      %v2880 = vrot.slane %v2784, 2
      %v2881 = vrot.slane %v2785, 2
      %v2882 = vsel %vm1776, %v2880, %v2881
      %v2883 = vrot.slane %v2786, 2
      %v2884 = vsel %vm1776, %v2881, %v2883
      %v2885 = vrot.slane %v2787, 2
      %v2886 = vrot.slane %v2788, 2
      %v2887 = vsel %vm1776, %v2885, %v2886
      %v2888 = vrot.slane %v2789, 2
      %v2889 = vsel %vm1776, %v2886, %v2888
      %v2890 = vrot.slane %v2790, 2
      %v2891 = vrot.slane %v2791, 2
      %v2892 = vsel %vm1776, %v2890, %v2891
      %v2893 = vrot.slane %v2792, 2
      %v2894 = vsel %vm1776, %v2891, %v2893
      %v2895 = vrot.slane %v2793, 2
      %v2896 = vrot.slane %v2794, 2
      %v2897 = vsel %vm1776, %v2895, %v2896
      %v2898 = vrot.slane %v2795, 2
      %v2899 = vsel %vm1776, %v2896, %v2898
      %v2900 = vrot.slane %v2796, 2
      %v2901 = vrot.slane %v2797, 2
      %v2902 = vsel %vm1776, %v2900, %v2901
      %v2903 = vrot.slane %v2798, 2
      %v2904 = vsel %vm1776, %v2901, %v2903
      %v2905 = vrot.slane %v2799, 2
      %v2906 = vrot.slane %v2800, 2
      %v2907 = vsel %vm1776, %v2905, %v2906
      %v2908 = vrot.slane %v2801, 2
      %v2909 = vsel %vm1776, %v2906, %v2908
      %v2910 = vrot.slane %v2802, 2
      %v2911 = vrot.slane %v2803, 2
      %v2912 = vsel %vm1776, %v2910, %v2911
      %v2913 = vrot.slane %v2804, 2
      %v2914 = vsel %vm1776, %v2911, %v2913
      %v2915 = vrot.slane %v2805, 2
      %v2916 = vrot.slane %v2806, 2
      %v2917 = vsel %vm1776, %v2915, %v2916
      %v2918 = vrot.slane %v2807, 2
      %v2919 = vsel %vm1776, %v2916, %v2918
      %v2920 = vrot.slane %v2808, 2
      %v2921 = vrot.slane %v2809, 2
      %v2922 = vsel %vm1776, %v2920, %v2921
      %v2923 = vrot.slane %v2810, 2
      %v2924 = vsel %vm1776, %v2921, %v2923
      %v2925 = vrot.slane %v2811, 2
      %v2926 = vrot.slane %v2812, 2
      %v2927 = vsel %vm1776, %v2925, %v2926
      %v2928 = vrot.slane %v2813, 2
      %v2929 = vsel %vm1776, %v2926, %v2928
      %v2930 = vrot.slane %v2814, 2
      %v2931 = vrot.slane %v2815, 2
      %v2932 = vsel %vm1776, %v2930, %v2931
      %v2933 = vrot.slane %v2816, 2
      %v2934 = vsel %vm1776, %v2931, %v2933
      %v2935 = vrot.slane %v2817, 2
      %v2936 = vrot.slane %v2818, 2
      %v2937 = vsel %vm1776, %v2935, %v2936
      %v2938 = vrot.slane %v2819, 2
      %v2939 = vsel %vm1776, %v2936, %v2938
      %v2970 = vadd.f32 %v2738, %v2867
      %v2971 = vadd.f32 %v2739, %v2869
      %v2972 = vadd.f32 %v2740, %v2872
      %v2973 = vadd.f32 %v2741, %v2874
      %v2974 = vadd.f32 %v2742, %v2877
      %v2975 = vadd.f32 %v2743, %v2879
      %v2976 = vadd.f32 %v2744, %v2882
      %v2977 = vadd.f32 %v2745, %v2884
      %v2978 = vadd.f32 %v2746, %v2887
      %v2979 = vadd.f32 %v2747, %v2889
      %v2980 = vadd.f32 %v2748, %v2892
      %v2981 = vadd.f32 %v2749, %v2894
      %v2982 = vadd.f32 %v2750, %v2897
      %v2983 = vadd.f32 %v2751, %v2899
      %v2984 = vadd.f32 %v2752, %v2902
      %v2985 = vadd.f32 %v2753, %v2904
      %v2986 = vadd.f32 %v2754, %v2907
      %v2987 = vadd.f32 %v2755, %v2909
      %v2988 = vadd.f32 %v2756, %v2912
      %v2989 = vadd.f32 %v2757, %v2914
      %v2990 = vadd.f32 %v2758, %v2917
      %v2991 = vadd.f32 %v2759, %v2919
      %v2992 = vadd.f32 %v2760, %v2922
      %v2993 = vadd.f32 %v2761, %v2924
      %v2994 = vadd.f32 %v2762, %v2927
      %v2995 = vadd.f32 %v2763, %v2929
      %v2996 = vadd.f32 %v2764, %v2932
      %v2997 = vadd.f32 %v2765, %v2934
      %v2998 = vadd.f32 %v2766, %v2937
      %v2999 = vadd.f32 %v2767, %v2939
      %v3000 = vadd.f32 %v2768, %v2932
      %v3001 = vadd.f32 %v2769, %v2934
      %v3002 = vld [vmem:[%s4 + $0x8] sm:$0xff]
      %v3003 = vld [vmem:[%s4 + $0x10] sm:$0xff]
      %v3004 = vld [vmem:[%s4 + $0x18] sm:$0xff]
      %v3005 = vld [vmem:[%s4 + $0x20] sm:$0xf]
      %v3006 = vld [vmem:[%s5] sm:$0xf]
      %v3007 = vperm.slane %v3006, 0
      %3009 = vrot.lane.b32.xlu0 %v3007, 8
      %v3010 = vpop.permute.xlu0 %3009
      %v3012 = vadd.f32 %v2970, %v3010
      %v3013 = vadd.f32 %v2971, %v3010
      %v3014 = vadd.f32 %v2972, %v3010
      %v3015 = vadd.f32 %v2973, %v3010
      %v3016 = vadd.f32 %v2974, %v3010
      %v3017 = vadd.f32 %v2975, %v3010
      %v3018 = vadd.f32 %v2976, %v3010
      %v3019 = vadd.f32 %v2977, %v3010
      %v3020 = vadd.f32 %v2978, %v3010
      %v3021 = vadd.f32 %v2979, %v3010
      %v3022 = vadd.f32 %v2980, %v3010
      %v3023 = vadd.f32 %v2981, %v3010
      %v3024 = vadd.f32 %v2982, %v3010
      %v3025 = vadd.f32 %v2983, %v3010
      %v3026 = vadd.f32 %v2984, %v3010
      %v3027 = vadd.f32 %v2985, %v3010
      %v3028 = vadd.f32 %v2986, %v3010
      %v3029 = vadd.f32 %v2987, %v3010
      %v3030 = vadd.f32 %v2988, %v3010
      %v3031 = vadd.f32 %v2989, %v3010
      %v3032 = vadd.f32 %v2990, %v3010
      %v3033 = vadd.f32 %v2991, %v3010
      %v3034 = vadd.f32 %v2992, %v3010
      %v3035 = vadd.f32 %v2993, %v3010
      %v3036 = vadd.f32 %v2994, %v3010
      %v3037 = vadd.f32 %v2995, %v3010
      %v3038 = vadd.f32 %v2996, %v3010
      %v3039 = vadd.f32 %v2997, %v3010
      %v3040 = vadd.f32 %v2998, %v3010
      %v3041 = vadd.f32 %v2999, %v3010
      %v3042 = vadd.f32 %v3000, %v3010
      %v3043 = vadd.f32 %v3001, %v3010
      %3076 = vrot.lane.b32.xlu0 %v3012, 120
      %v3077 = vpop.permute.xlu0 %3076
      %3078 = vrot.lane.b32.xlu0 %v3013, 120
      %v3079 = vpop.permute.xlu0 %3078
      %3080 = vrot.lane.b32.xlu0 %v3014, 120
      %v3081 = vpop.permute.xlu0 %3080
      %3082 = vrot.lane.b32.xlu0 %v3015, 120
      %v3083 = vpop.permute.xlu0 %3082
      %3084 = vrot.lane.b32.xlu0 %v3016, 120
      %v3085 = vpop.permute.xlu0 %3084
      %3086 = vrot.lane.b32.xlu0 %v3017, 120
      %v3087 = vpop.permute.xlu0 %3086
      %3088 = vrot.lane.b32.xlu0 %v3018, 120
      %v3089 = vpop.permute.xlu0 %3088
      %3090 = vrot.lane.b32.xlu0 %v3019, 120
      %v3091 = vpop.permute.xlu0 %3090
      %3092 = vrot.lane.b32.xlu0 %v3020, 120
      %v3093 = vpop.permute.xlu0 %3092
      %3094 = vrot.lane.b32.xlu0 %v3021, 120
      %v3095 = vpop.permute.xlu0 %3094
      %3096 = vrot.lane.b32.xlu0 %v3022, 120
      %v3097 = vpop.permute.xlu0 %3096
      %3098 = vrot.lane.b32.xlu0 %v3023, 120
      %v3099 = vpop.permute.xlu0 %3098
      %3100 = vrot.lane.b32.xlu0 %v3024, 120
      %v3101 = vpop.permute.xlu0 %3100
      %3102 = vrot.lane.b32.xlu0 %v3025, 120
      %v3103 = vpop.permute.xlu0 %3102
      %3104 = vrot.lane.b32.xlu0 %v3026, 120
      %v3105 = vpop.permute.xlu0 %3104
      %3106 = vrot.lane.b32.xlu0 %v3027, 120
      %v3107 = vpop.permute.xlu0 %3106
      %3108 = vrot.lane.b32.xlu0 %v3028, 120
      %v3109 = vpop.permute.xlu0 %3108
      %3110 = vrot.lane.b32.xlu0 %v3029, 120
      %v3111 = vpop.permute.xlu0 %3110
      %3112 = vrot.lane.b32.xlu0 %v3030, 120
      %v3113 = vpop.permute.xlu0 %3112
      %3114 = vrot.lane.b32.xlu0 %v3031, 120
      %v3115 = vpop.permute.xlu0 %3114
      %3116 = vrot.lane.b32.xlu0 %v3032, 120
      %v3117 = vpop.permute.xlu0 %3116
      %3118 = vrot.lane.b32.xlu0 %v3033, 120
      %v3119 = vpop.permute.xlu0 %3118
      %3120 = vrot.lane.b32.xlu0 %v3034, 120
      %v3121 = vpop.permute.xlu0 %3120
      %3122 = vrot.lane.b32.xlu0 %v3035, 120
      %v3123 = vpop.permute.xlu0 %3122
      %3124 = vrot.lane.b32.xlu0 %v3036, 120
      %v3125 = vpop.permute.xlu0 %3124
      %3126 = vrot.lane.b32.xlu0 %v3037, 120
      %v3127 = vpop.permute.xlu0 %3126
      %3128 = vrot.lane.b32.xlu0 %v3038, 120
      %v3129 = vpop.permute.xlu0 %3128
      %3130 = vrot.lane.b32.xlu0 %v3039, 120
      %v3131 = vpop.permute.xlu0 %3130
      %3132 = vrot.lane.b32.xlu0 %v3040, 120
      %v3133 = vpop.permute.xlu0 %3132
      %3134 = vrot.lane.b32.xlu0 %v3041, 120
      %v3135 = vpop.permute.xlu0 %3134
      %3136 = vrot.lane.b32.xlu0 %v3042, 120
      %v3137 = vpop.permute.xlu0 %3136
      %3138 = vrot.lane.b32.xlu0 %v3043, 120
      %v3139 = vpop.permute.xlu0 %3138
      %vm3172 = vcmask 15360
      %3173 = vst.msk [vmem:[#allocation2] sm:$0xff] %vm3172, %v3077
      %3174 = vst.msk [vmem:[#allocation2 + $0x8] sm:$0xff] %vm3172, %v3079
      %3175 = vst.msk [vmem:[#allocation2 + $0x10] sm:$0xff] %vm3172, %v3081
      %3176 = vst.msk [vmem:[#allocation2 + $0x18] sm:$0xff] %vm3172, %v3083
      %3177 = vst.msk [vmem:[#allocation2 + $0x20] sm:$0xff] %vm3172, %v3085
      %3178 = vst.msk [vmem:[#allocation2 + $0x28] sm:$0xff] %vm3172, %v3087
      %3179 = vst.msk [vmem:[#allocation2 + $0x30] sm:$0xff] %vm3172, %v3089
      %3180 = vst.msk [vmem:[#allocation2 + $0x38] sm:$0xff] %vm3172, %v3091
      %3181 = vst.msk [vmem:[#allocation2 + $0x40] sm:$0xff] %vm3172, %v3093
      %3182 = vst.msk [vmem:[#allocation2 + $0x48] sm:$0xff] %vm3172, %v3095
      %3183 = vst.msk [vmem:[#allocation2 + $0x50] sm:$0xff] %vm3172, %v3097
      %3184 = vst.msk [vmem:[#allocation2 + $0x58] sm:$0xff] %vm3172, %v3099
      %3185 = vst.msk [vmem:[#allocation2 + $0x60] sm:$0xff] %vm3172, %v3101
      %3186 = vst.msk [vmem:[#allocation2 + $0x68] sm:$0xff] %vm3172, %v3103
      %3187 = vst.msk [vmem:[#allocation2 + $0x70] sm:$0xff] %vm3172, %v3105
      %3188 = vst.msk [vmem:[#allocation2 + $0x78] sm:$0xff] %vm3172, %v3107
      %3189 = vst.msk [vmem:[#allocation2 + $0x80] sm:$0xff] %vm3172, %v3109
      %3190 = vst.msk [vmem:[#allocation2 + $0x88] sm:$0xff] %vm3172, %v3111
      %3191 = vst.msk [vmem:[#allocation2 + $0x90] sm:$0xff] %vm3172, %v3113
      %3192 = vst.msk [vmem:[#allocation2 + $0x98] sm:$0xff] %vm3172, %v3115
      %3193 = vst.msk [vmem:[#allocation2 + $0xa0] sm:$0xff] %vm3172, %v3117
      %3194 = vst.msk [vmem:[#allocation2 + $0xa8] sm:$0xff] %vm3172, %v3119
      %3195 = vst.msk [vmem:[#allocation2 + $0xb0] sm:$0xff] %vm3172, %v3121
      %3196 = vst.msk [vmem:[#allocation2 + $0xb8] sm:$0xff] %vm3172, %v3123
      %3197 = vst.msk [vmem:[#allocation2 + $0xc0] sm:$0xff] %vm3172, %v3125
      %3198 = vst.msk [vmem:[#allocation2 + $0xc8] sm:$0xff] %vm3172, %v3127
      %3199 = vst.msk [vmem:[#allocation2 + $0xd0] sm:$0xff] %vm3172, %v3129
      %3200 = vst.msk [vmem:[#allocation2 + $0xd8] sm:$0xff] %vm3172, %v3131
      %3201 = vst.msk [vmem:[#allocation2 + $0xe0] sm:$0xff] %vm3172, %v3133
      %3202 = vst.msk [vmem:[#allocation2 + $0xe8] sm:$0xff] %vm3172, %v3135
      %3203 = vst.msk [vmem:[#allocation2 + $0xf0] sm:$0xff] %vm3172, %v3137
      %3204 = vst.msk [vmem:[#allocation2 + $0xf8] sm:$0xff] %vm3172, %v3139
      %v3205 = vrot.slane %v3014, 1
      %v3206 = vrot.slane %v3012, 1
      %v3207 = vrot.slane %v3016, 1
      %v3208 = vrot.slane %v3018, 1
      %v3209 = vrot.slane %v3020, 1
      %v3210 = vrot.slane %v3022, 1
      %v3211 = vrot.slane %v3024, 1
      %v3212 = vrot.slane %v3026, 1
      %v3213 = vrot.slane %v3028, 1
      %v3214 = vrot.slane %v3030, 1
      %v3215 = vrot.slane %v3032, 1
      %v3216 = vrot.slane %v3034, 1
      %v3217 = vrot.slane %v3036, 1
      %v3218 = vrot.slane %v3038, 1
      %v3219 = vrot.slane %v3040, 1
      %v3220 = vrot.slane %v3042, 1
      %v3237 = vrot.slane %v3014, 7
      %v3238 = vrot.slane %v3015, 7
      %v3239 = vsel %vm1254, %v3237, %v3238
      %v3240 = vrot.slane %v3012, 7
      %v3241 = vrot.slane %v3013, 7
      %v3242 = vsel %vm1254, %v3240, %v3241
      %v3243 = vrot.slane %v3016, 7
      %v3244 = vrot.slane %v3017, 7
      %v3245 = vsel %vm1254, %v3243, %v3244
      %v3246 = vrot.slane %v3018, 7
      %v3247 = vrot.slane %v3019, 7
      %v3248 = vsel %vm1254, %v3246, %v3247
      %v3249 = vrot.slane %v3020, 7
      %v3250 = vrot.slane %v3021, 7
      %v3251 = vsel %vm1254, %v3249, %v3250
      %v3252 = vrot.slane %v3022, 7
      %v3253 = vrot.slane %v3023, 7
      %v3254 = vsel %vm1254, %v3252, %v3253
      %v3255 = vrot.slane %v3024, 7
      %v3256 = vrot.slane %v3025, 7
      %v3257 = vsel %vm1254, %v3255, %v3256
      %v3258 = vrot.slane %v3026, 7
      %v3259 = vrot.slane %v3027, 7
      %v3260 = vsel %vm1254, %v3258, %v3259
      %v3261 = vrot.slane %v3028, 7
      %v3262 = vrot.slane %v3029, 7
      %v3263 = vsel %vm1254, %v3261, %v3262
      %v3264 = vrot.slane %v3030, 7
      %v3265 = vrot.slane %v3031, 7
      %v3266 = vsel %vm1254, %v3264, %v3265
      %v3267 = vrot.slane %v3032, 7
      %v3268 = vrot.slane %v3033, 7
      %v3269 = vsel %vm1254, %v3267, %v3268
      %v3270 = vrot.slane %v3034, 7
      %v3271 = vrot.slane %v3035, 7
      %v3272 = vsel %vm1254, %v3270, %v3271
      %v3273 = vrot.slane %v3036, 7
      %v3274 = vrot.slane %v3037, 7
      %v3275 = vsel %vm1254, %v3273, %v3274
      %v3276 = vrot.slane %v3038, 7
      %v3277 = vrot.slane %v3039, 7
      %v3278 = vsel %vm1254, %v3276, %v3277
      %v3279 = vrot.slane %v3040, 7
      %v3280 = vrot.slane %v3041, 7
      %v3281 = vsel %vm1254, %v3279, %v3280
      %v3282 = vrot.slane %v3042, 7
      %v3283 = vrot.slane %v3043, 7
      %v3284 = vsel %vm1254, %v3282, %v3283
      %v3333 = vrot.slane %v3015, 5
      %v3334 = vrot.slane %v3013, 5
      %v3335 = vrot.slane %v3017, 5
      %v3336 = vrot.slane %v3019, 5
      %v3337 = vrot.slane %v3021, 5
      %v3338 = vrot.slane %v3023, 5
      %v3339 = vrot.slane %v3025, 5
      %v3340 = vrot.slane %v3027, 5
      %v3341 = vrot.slane %v3029, 5
      %v3342 = vrot.slane %v3031, 5
      %v3343 = vrot.slane %v3033, 5
      %v3344 = vrot.slane %v3035, 5
      %v3345 = vrot.slane %v3037, 5
      %v3346 = vrot.slane %v3039, 5
      %v3347 = vrot.slane %v3041, 5
      %v3348 = vrot.slane %v3043, 5
      %v3365 = vsel %vm1254, %v3205, %v3237
      %v3366 = vsel %vm1254, %v3206, %v3240
      %v3367 = vsel %vm1254, %v3207, %v3243
      %v3368 = vsel %vm1254, %v3208, %v3246
      %v3369 = vsel %vm1254, %v3209, %v3249
      %v3370 = vsel %vm1254, %v3210, %v3252
      %v3371 = vsel %vm1254, %v3211, %v3255
      %v3372 = vsel %vm1254, %v3212, %v3258
      %v3373 = vsel %vm1254, %v3213, %v3261
      %v3374 = vsel %vm1254, %v3214, %v3264
      %v3375 = vsel %vm1254, %v3215, %v3267
      %v3376 = vsel %vm1254, %v3216, %v3270
      %v3377 = vsel %vm1254, %v3217, %v3273
      %v3378 = vsel %vm1254, %v3218, %v3276
      %v3379 = vsel %vm1254, %v3219, %v3279
      %v3380 = vsel %vm1254, %v3220, %v3282
      %v3381 = vsel %vm1254, %v3238, %v3333
      %v3382 = vsel %vm1254, %v3241, %v3334
      %v3383 = vsel %vm1254, %v3244, %v3335
      %v3384 = vsel %vm1254, %v3247, %v3336
      %v3385 = vsel %vm1254, %v3250, %v3337
      %v3386 = vsel %vm1254, %v3253, %v3338
      %v3387 = vsel %vm1254, %v3256, %v3339
      %v3388 = vsel %vm1254, %v3259, %v3340
      %v3389 = vsel %vm1254, %v3262, %v3341
      %v3390 = vsel %vm1254, %v3265, %v3342
      %v3391 = vsel %vm1254, %v3268, %v3343
      %v3392 = vsel %vm1254, %v3271, %v3344
      %v3393 = vsel %vm1254, %v3274, %v3345
      %v3394 = vsel %vm1254, %v3277, %v3346
      %v3395 = vsel %vm1254, %v3280, %v3347
      %v3396 = vsel %vm1254, %v3283, %v3348
      %v3397 = vperm.slane %v3002, 1
      %3399 = vrot.lane.b32.xlu0 %v3397, 8
      %v3400 = vpop.permute.xlu0 %3399
      %v3402 = vmul.f32 %v3365, %v3400
      %v3403 = vmul.f32 %v3239, %v3400
      %v3404 = vmul.f32 %v3366, %v3400
      %v3405 = vmul.f32 %v3242, %v3400
      %v3406 = vmul.f32 %v3367, %v3400
      %v3407 = vmul.f32 %v3245, %v3400
      %v3408 = vmul.f32 %v3368, %v3400
      %v3409 = vmul.f32 %v3248, %v3400
      %v3410 = vmul.f32 %v3369, %v3400
      %v3411 = vmul.f32 %v3251, %v3400
      %v3412 = vmul.f32 %v3370, %v3400
      %v3413 = vmul.f32 %v3254, %v3400
      %v3414 = vmul.f32 %v3371, %v3400
      %v3415 = vmul.f32 %v3257, %v3400
      %v3416 = vmul.f32 %v3372, %v3400
      %v3417 = vmul.f32 %v3260, %v3400
      %v3418 = vmul.f32 %v3373, %v3400
      %v3419 = vmul.f32 %v3263, %v3400
      %v3420 = vmul.f32 %v3374, %v3400
      %v3421 = vmul.f32 %v3266, %v3400
      %v3422 = vmul.f32 %v3375, %v3400
      %v3423 = vmul.f32 %v3269, %v3400
      %v3424 = vmul.f32 %v3376, %v3400
      %v3425 = vmul.f32 %v3272, %v3400
      %v3426 = vmul.f32 %v3377, %v3400
      %v3427 = vmul.f32 %v3275, %v3400
      %v3428 = vmul.f32 %v3378, %v3400
      %v3429 = vmul.f32 %v3278, %v3400
      %v3430 = vmul.f32 %v3379, %v3400
      %v3431 = vmul.f32 %v3281, %v3400
      %v3432 = vperm.slane %v3002, 2
      %3434 = vrot.lane.b32.xlu0 %v3432, 8
      %v3435 = vpop.permute.xlu0 %3434
      %v3437 = vmul.f32 %v3365, %v3435
      %v3438 = vmul.f32 %v3239, %v3435
      %v3439 = vmul.f32 %v3381, %v3435
      %v3440 = vmul.f32 %v3366, %v3435
      %v3441 = vmul.f32 %v3242, %v3435
      %v3442 = vmul.f32 %v3382, %v3435
      %v3443 = vmul.f32 %v3367, %v3435
      %v3444 = vmul.f32 %v3245, %v3435
      %v3445 = vmul.f32 %v3383, %v3435
      %v3446 = vmul.f32 %v3368, %v3435
      %v3447 = vmul.f32 %v3248, %v3435
      %v3448 = vmul.f32 %v3384, %v3435
      %v3449 = vmul.f32 %v3369, %v3435
      %v3450 = vmul.f32 %v3251, %v3435
      %v3451 = vmul.f32 %v3385, %v3435
      %v3452 = vmul.f32 %v3370, %v3435
      %v3453 = vmul.f32 %v3254, %v3435
      %v3454 = vmul.f32 %v3386, %v3435
      %v3455 = vmul.f32 %v3371, %v3435
      %v3456 = vmul.f32 %v3257, %v3435
      %v3457 = vmul.f32 %v3387, %v3435
      %v3458 = vmul.f32 %v3372, %v3435
      %v3459 = vmul.f32 %v3260, %v3435
      %v3460 = vmul.f32 %v3388, %v3435
      %v3461 = vmul.f32 %v3373, %v3435
      %v3462 = vmul.f32 %v3263, %v3435
      %v3463 = vmul.f32 %v3389, %v3435
      %v3464 = vmul.f32 %v3374, %v3435
      %v3465 = vmul.f32 %v3266, %v3435
      %v3466 = vmul.f32 %v3390, %v3435
      %v3467 = vmul.f32 %v3375, %v3435
      %v3468 = vmul.f32 %v3269, %v3435
      %v3469 = vmul.f32 %v3391, %v3435
      %v3470 = vmul.f32 %v3376, %v3435
      %v3471 = vmul.f32 %v3272, %v3435
      %v3472 = vmul.f32 %v3392, %v3435
      %v3473 = vmul.f32 %v3377, %v3435
      %v3474 = vmul.f32 %v3275, %v3435
      %v3475 = vmul.f32 %v3393, %v3435
      %v3476 = vmul.f32 %v3378, %v3435
      %v3477 = vmul.f32 %v3278, %v3435
      %v3478 = vmul.f32 %v3394, %v3435
      %v3479 = vmul.f32 %v3379, %v3435
      %v3480 = vmul.f32 %v3281, %v3435
      %v3481 = vmul.f32 %v3395, %v3435
      %v3527 = vrot.slane %v3437, 1
      %v3528 = vrot.slane %v3438, 1
      %v3529 = vsel %vm1545, %v3527, %v3528
      %v3530 = vrot.slane %v3439, 1
      %v3531 = vsel %vm1545, %v3528, %v3530
      %v3532 = vrot.slane %v3440, 1
      %v3533 = vrot.slane %v3441, 1
      %v3534 = vsel %vm1545, %v3532, %v3533
      %v3535 = vrot.slane %v3442, 1
      %v3536 = vsel %vm1545, %v3533, %v3535
      %v3537 = vrot.slane %v3443, 1
      %v3538 = vrot.slane %v3444, 1
      %v3539 = vsel %vm1545, %v3537, %v3538
      %v3540 = vrot.slane %v3445, 1
      %v3541 = vsel %vm1545, %v3538, %v3540
      %v3542 = vrot.slane %v3446, 1
      %v3543 = vrot.slane %v3447, 1
      %v3544 = vsel %vm1545, %v3542, %v3543
      %v3545 = vrot.slane %v3448, 1
      %v3546 = vsel %vm1545, %v3543, %v3545
      %v3547 = vrot.slane %v3449, 1
      %v3548 = vrot.slane %v3450, 1
      %v3549 = vsel %vm1545, %v3547, %v3548
      %v3550 = vrot.slane %v3451, 1
      %v3551 = vsel %vm1545, %v3548, %v3550
      %v3552 = vrot.slane %v3452, 1
      %v3553 = vrot.slane %v3453, 1
      %v3554 = vsel %vm1545, %v3552, %v3553
      %v3555 = vrot.slane %v3454, 1
      %v3556 = vsel %vm1545, %v3553, %v3555
      %v3557 = vrot.slane %v3455, 1
      %v3558 = vrot.slane %v3456, 1
      %v3559 = vsel %vm1545, %v3557, %v3558
      %v3560 = vrot.slane %v3457, 1
      %v3561 = vsel %vm1545, %v3558, %v3560
      %v3562 = vrot.slane %v3458, 1
      %v3563 = vrot.slane %v3459, 1
      %v3564 = vsel %vm1545, %v3562, %v3563
      %v3565 = vrot.slane %v3460, 1
      %v3566 = vsel %vm1545, %v3563, %v3565
      %v3567 = vrot.slane %v3461, 1
      %v3568 = vrot.slane %v3462, 1
      %v3569 = vsel %vm1545, %v3567, %v3568
      %v3570 = vrot.slane %v3463, 1
      %v3571 = vsel %vm1545, %v3568, %v3570
      %v3572 = vrot.slane %v3464, 1
      %v3573 = vrot.slane %v3465, 1
      %v3574 = vsel %vm1545, %v3572, %v3573
      %v3575 = vrot.slane %v3466, 1
      %v3576 = vsel %vm1545, %v3573, %v3575
      %v3577 = vrot.slane %v3467, 1
      %v3578 = vrot.slane %v3468, 1
      %v3579 = vsel %vm1545, %v3577, %v3578
      %v3580 = vrot.slane %v3469, 1
      %v3581 = vsel %vm1545, %v3578, %v3580
      %v3582 = vrot.slane %v3470, 1
      %v3583 = vrot.slane %v3471, 1
      %v3584 = vsel %vm1545, %v3582, %v3583
      %v3585 = vrot.slane %v3472, 1
      %v3586 = vsel %vm1545, %v3583, %v3585
      %v3587 = vrot.slane %v3473, 1
      %v3588 = vrot.slane %v3474, 1
      %v3589 = vsel %vm1545, %v3587, %v3588
      %v3590 = vrot.slane %v3475, 1
      %v3591 = vsel %vm1545, %v3588, %v3590
      %v3592 = vrot.slane %v3476, 1
      %v3593 = vrot.slane %v3477, 1
      %v3594 = vsel %vm1545, %v3592, %v3593
      %v3595 = vrot.slane %v3478, 1
      %v3596 = vsel %vm1545, %v3593, %v3595
      %v3597 = vrot.slane %v3479, 1
      %v3598 = vrot.slane %v3480, 1
      %v3599 = vsel %vm1545, %v3597, %v3598
      %v3600 = vrot.slane %v3481, 1
      %v3601 = vsel %vm1545, %v3598, %v3600
      %v3632 = vadd.f32 %v3402, %v3529
      %v3633 = vadd.f32 %v3403, %v3531
      %v3634 = vadd.f32 %v3404, %v3534
      %v3635 = vadd.f32 %v3405, %v3536
      %v3636 = vadd.f32 %v3406, %v3539
      %v3637 = vadd.f32 %v3407, %v3541
      %v3638 = vadd.f32 %v3408, %v3544
      %v3639 = vadd.f32 %v3409, %v3546
      %v3640 = vadd.f32 %v3410, %v3549
      %v3641 = vadd.f32 %v3411, %v3551
      %v3642 = vadd.f32 %v3412, %v3554
      %v3643 = vadd.f32 %v3413, %v3556
      %v3644 = vadd.f32 %v3414, %v3559
      %v3645 = vadd.f32 %v3415, %v3561
      %v3646 = vadd.f32 %v3416, %v3564
      %v3647 = vadd.f32 %v3417, %v3566
      %v3648 = vadd.f32 %v3418, %v3569
      %v3649 = vadd.f32 %v3419, %v3571
      %v3650 = vadd.f32 %v3420, %v3574
      %v3651 = vadd.f32 %v3421, %v3576
      %v3652 = vadd.f32 %v3422, %v3579
      %v3653 = vadd.f32 %v3423, %v3581
      %v3654 = vadd.f32 %v3424, %v3584
      %v3655 = vadd.f32 %v3425, %v3586
      %v3656 = vadd.f32 %v3426, %v3589
      %v3657 = vadd.f32 %v3427, %v3591
      %v3658 = vadd.f32 %v3428, %v3594
      %v3659 = vadd.f32 %v3429, %v3596
      %v3660 = vadd.f32 %v3430, %v3599
      %v3661 = vadd.f32 %v3431, %v3601
      %v3662 = vperm.slane %v3002, 3
      %3664 = vrot.lane.b32.xlu0 %v3662, 8
      %v3665 = vpop.permute.xlu0 %3664
      %v3667 = vmul.f32 %v3365, %v3665
      %v3668 = vmul.f32 %v3239, %v3665
      %v3669 = vmul.f32 %v3381, %v3665
      %v3670 = vmul.f32 %v3366, %v3665
      %v3671 = vmul.f32 %v3242, %v3665
      %v3672 = vmul.f32 %v3382, %v3665
      %v3673 = vmul.f32 %v3367, %v3665
      %v3674 = vmul.f32 %v3245, %v3665
      %v3675 = vmul.f32 %v3383, %v3665
      %v3676 = vmul.f32 %v3368, %v3665
      %v3677 = vmul.f32 %v3248, %v3665
      %v3678 = vmul.f32 %v3384, %v3665
      %v3679 = vmul.f32 %v3369, %v3665
      %v3680 = vmul.f32 %v3251, %v3665
      %v3681 = vmul.f32 %v3385, %v3665
      %v3682 = vmul.f32 %v3370, %v3665
      %v3683 = vmul.f32 %v3254, %v3665
      %v3684 = vmul.f32 %v3386, %v3665
      %v3685 = vmul.f32 %v3371, %v3665
      %v3686 = vmul.f32 %v3257, %v3665
      %v3687 = vmul.f32 %v3387, %v3665
      %v3688 = vmul.f32 %v3372, %v3665
      %v3689 = vmul.f32 %v3260, %v3665
      %v3690 = vmul.f32 %v3388, %v3665
      %v3691 = vmul.f32 %v3373, %v3665
      %v3692 = vmul.f32 %v3263, %v3665
      %v3693 = vmul.f32 %v3389, %v3665
      %v3694 = vmul.f32 %v3374, %v3665
      %v3695 = vmul.f32 %v3266, %v3665
      %v3696 = vmul.f32 %v3390, %v3665
      %v3697 = vmul.f32 %v3375, %v3665
      %v3698 = vmul.f32 %v3269, %v3665
      %v3699 = vmul.f32 %v3391, %v3665
      %v3700 = vmul.f32 %v3376, %v3665
      %v3701 = vmul.f32 %v3272, %v3665
      %v3702 = vmul.f32 %v3392, %v3665
      %v3703 = vmul.f32 %v3377, %v3665
      %v3704 = vmul.f32 %v3275, %v3665
      %v3705 = vmul.f32 %v3393, %v3665
      %v3706 = vmul.f32 %v3378, %v3665
      %v3707 = vmul.f32 %v3278, %v3665
      %v3708 = vmul.f32 %v3394, %v3665
      %v3709 = vmul.f32 %v3379, %v3665
      %v3710 = vmul.f32 %v3281, %v3665
      %v3711 = vmul.f32 %v3395, %v3665
      %v3757 = vrot.slane %v3667, 2
      %v3758 = vrot.slane %v3668, 2
      %v3759 = vsel %vm1776, %v3757, %v3758
      %v3760 = vrot.slane %v3669, 2
      %v3761 = vsel %vm1776, %v3758, %v3760
      %v3762 = vrot.slane %v3670, 2
      %v3763 = vrot.slane %v3671, 2
      %v3764 = vsel %vm1776, %v3762, %v3763
      %v3765 = vrot.slane %v3672, 2
      %v3766 = vsel %vm1776, %v3763, %v3765
      %v3767 = vrot.slane %v3673, 2
      %v3768 = vrot.slane %v3674, 2
      %v3769 = vsel %vm1776, %v3767, %v3768
      %v3770 = vrot.slane %v3675, 2
      %v3771 = vsel %vm1776, %v3768, %v3770
      %v3772 = vrot.slane %v3676, 2
      %v3773 = vrot.slane %v3677, 2
      %v3774 = vsel %vm1776, %v3772, %v3773
      %v3775 = vrot.slane %v3678, 2
      %v3776 = vsel %vm1776, %v3773, %v3775
      %v3777 = vrot.slane %v3679, 2
      %v3778 = vrot.slane %v3680, 2
      %v3779 = vsel %vm1776, %v3777, %v3778
      %v3780 = vrot.slane %v3681, 2
      %v3781 = vsel %vm1776, %v3778, %v3780
      %v3782 = vrot.slane %v3682, 2
      %v3783 = vrot.slane %v3683, 2
      %v3784 = vsel %vm1776, %v3782, %v3783
      %v3785 = vrot.slane %v3684, 2
      %v3786 = vsel %vm1776, %v3783, %v3785
      %v3787 = vrot.slane %v3685, 2
      %v3788 = vrot.slane %v3686, 2
      %v3789 = vsel %vm1776, %v3787, %v3788
      %v3790 = vrot.slane %v3687, 2
      %v3791 = vsel %vm1776, %v3788, %v3790
      %v3792 = vrot.slane %v3688, 2
      %v3793 = vrot.slane %v3689, 2
      %v3794 = vsel %vm1776, %v3792, %v3793
      %v3795 = vrot.slane %v3690, 2
      %v3796 = vsel %vm1776, %v3793, %v3795
      %v3797 = vrot.slane %v3691, 2
      %v3798 = vrot.slane %v3692, 2
      %v3799 = vsel %vm1776, %v3797, %v3798
      %v3800 = vrot.slane %v3693, 2
      %v3801 = vsel %vm1776, %v3798, %v3800
      %v3802 = vrot.slane %v3694, 2
      %v3803 = vrot.slane %v3695, 2
      %v3804 = vsel %vm1776, %v3802, %v3803
      %v3805 = vrot.slane %v3696, 2
      %v3806 = vsel %vm1776, %v3803, %v3805
      %v3807 = vrot.slane %v3697, 2
      %v3808 = vrot.slane %v3698, 2
      %v3809 = vsel %vm1776, %v3807, %v3808
      %v3810 = vrot.slane %v3699, 2
      %v3811 = vsel %vm1776, %v3808, %v3810
      %v3812 = vrot.slane %v3700, 2
      %v3813 = vrot.slane %v3701, 2
      %v3814 = vsel %vm1776, %v3812, %v3813
      %v3815 = vrot.slane %v3702, 2
      %v3816 = vsel %vm1776, %v3813, %v3815
      %v3817 = vrot.slane %v3703, 2
      %v3818 = vrot.slane %v3704, 2
      %v3819 = vsel %vm1776, %v3817, %v3818
      %v3820 = vrot.slane %v3705, 2
      %v3821 = vsel %vm1776, %v3818, %v3820
      %v3822 = vrot.slane %v3706, 2
      %v3823 = vrot.slane %v3707, 2
      %v3824 = vsel %vm1776, %v3822, %v3823
      %v3825 = vrot.slane %v3708, 2
      %v3826 = vsel %vm1776, %v3823, %v3825
      %v3827 = vrot.slane %v3709, 2
      %v3828 = vrot.slane %v3710, 2
      %v3829 = vsel %vm1776, %v3827, %v3828
      %v3830 = vrot.slane %v3711, 2
      %v3831 = vsel %vm1776, %v3828, %v3830
      %v3862 = vadd.f32 %v3632, %v3759
      %v3863 = vadd.f32 %v3633, %v3761
      %v3864 = vadd.f32 %v3634, %v3764
      %v3865 = vadd.f32 %v3635, %v3766
      %v3866 = vadd.f32 %v3636, %v3769
      %v3867 = vadd.f32 %v3637, %v3771
      %v3868 = vadd.f32 %v3638, %v3774
      %v3869 = vadd.f32 %v3639, %v3776
      %v3870 = vadd.f32 %v3640, %v3779
      %v3871 = vadd.f32 %v3641, %v3781
      %v3872 = vadd.f32 %v3642, %v3784
      %v3873 = vadd.f32 %v3643, %v3786
      %v3874 = vadd.f32 %v3644, %v3789
      %v3875 = vadd.f32 %v3645, %v3791
      %v3876 = vadd.f32 %v3646, %v3794
      %v3877 = vadd.f32 %v3647, %v3796
      %v3878 = vadd.f32 %v3648, %v3799
      %v3879 = vadd.f32 %v3649, %v3801
      %v3880 = vadd.f32 %v3650, %v3804
      %v3881 = vadd.f32 %v3651, %v3806
      %v3882 = vadd.f32 %v3652, %v3809
      %v3883 = vadd.f32 %v3653, %v3811
      %v3884 = vadd.f32 %v3654, %v3814
      %v3885 = vadd.f32 %v3655, %v3816
      %v3886 = vadd.f32 %v3656, %v3819
      %v3887 = vadd.f32 %v3657, %v3821
      %v3888 = vadd.f32 %v3658, %v3824
      %v3889 = vadd.f32 %v3659, %v3826
      %v3890 = vadd.f32 %v3660, %v3829
      %v3891 = vadd.f32 %v3661, %v3831
      %v3892 = vperm.slane %v3002, 4
      %3894 = vrot.lane.b32.xlu0 %v3892, 8
      %v3895 = vpop.permute.xlu0 %3894
      %v3897 = vmul.f32 %v3366, %v3895
      %v3898 = vmul.f32 %v3242, %v3895
      %v3899 = vmul.f32 %v3365, %v3895
      %v3900 = vmul.f32 %v3239, %v3895
      %v3901 = vmul.f32 %v3367, %v3895
      %v3902 = vmul.f32 %v3245, %v3895
      %v3903 = vmul.f32 %v3368, %v3895
      %v3904 = vmul.f32 %v3248, %v3895
      %v3905 = vmul.f32 %v3369, %v3895
      %v3906 = vmul.f32 %v3251, %v3895
      %v3907 = vmul.f32 %v3370, %v3895
      %v3908 = vmul.f32 %v3254, %v3895
      %v3909 = vmul.f32 %v3371, %v3895
      %v3910 = vmul.f32 %v3257, %v3895
      %v3911 = vmul.f32 %v3372, %v3895
      %v3912 = vmul.f32 %v3260, %v3895
      %v3913 = vmul.f32 %v3373, %v3895
      %v3914 = vmul.f32 %v3263, %v3895
      %v3915 = vmul.f32 %v3374, %v3895
      %v3916 = vmul.f32 %v3266, %v3895
      %v3917 = vmul.f32 %v3375, %v3895
      %v3918 = vmul.f32 %v3269, %v3895
      %v3919 = vmul.f32 %v3376, %v3895
      %v3920 = vmul.f32 %v3272, %v3895
      %v3921 = vmul.f32 %v3377, %v3895
      %v3922 = vmul.f32 %v3275, %v3895
      %v3923 = vmul.f32 %v3378, %v3895
      %v3924 = vmul.f32 %v3278, %v3895
      %v3925 = vmul.f32 %v3379, %v3895
      %v3926 = vmul.f32 %v3281, %v3895
      %v3927 = vmul.f32 %v3380, %v3895
      %v3928 = vmul.f32 %v3284, %v3895
      %v3929 = vadd.f32 %v3862, %v3897
      %v3930 = vadd.f32 %v3863, %v3898
      %v3931 = vadd.f32 %v3864, %v3899
      %v3932 = vadd.f32 %v3865, %v3900
      %v3933 = vadd.f32 %v3862, %v3901
      %v3934 = vadd.f32 %v3863, %v3902
      %v3935 = vadd.f32 %v3866, %v3903
      %v3936 = vadd.f32 %v3867, %v3904
      %v3937 = vadd.f32 %v3868, %v3905
      %v3938 = vadd.f32 %v3869, %v3906
      %v3939 = vadd.f32 %v3870, %v3907
      %v3940 = vadd.f32 %v3871, %v3908
      %v3941 = vadd.f32 %v3872, %v3909
      %v3942 = vadd.f32 %v3873, %v3910
      %v3943 = vadd.f32 %v3874, %v3911
      %v3944 = vadd.f32 %v3875, %v3912
      %v3945 = vadd.f32 %v3876, %v3913
      %v3946 = vadd.f32 %v3877, %v3914
      %v3947 = vadd.f32 %v3878, %v3915
      %v3948 = vadd.f32 %v3879, %v3916
      %v3949 = vadd.f32 %v3880, %v3917
      %v3950 = vadd.f32 %v3881, %v3918
      %v3951 = vadd.f32 %v3882, %v3919
      %v3952 = vadd.f32 %v3883, %v3920
      %v3953 = vadd.f32 %v3884, %v3921
      %v3954 = vadd.f32 %v3885, %v3922
      %v3955 = vadd.f32 %v3886, %v3923
      %v3956 = vadd.f32 %v3887, %v3924
      %v3957 = vadd.f32 %v3888, %v3925
      %v3958 = vadd.f32 %v3889, %v3926
      %v3959 = vadd.f32 %v3890, %v3927
      %v3960 = vadd.f32 %v3891, %v3928
      %v3961 = vperm.slane %v3002, 5
      %3963 = vrot.lane.b32.xlu0 %v3961, 8
      %v3964 = vpop.permute.xlu0 %3963
      %v3966 = vmul.f32 %v3366, %v3964
      %v3967 = vmul.f32 %v3242, %v3964
      %v3968 = vmul.f32 %v3382, %v3964
      %v3969 = vmul.f32 %v3365, %v3964
      %v3970 = vmul.f32 %v3239, %v3964
      %v3971 = vmul.f32 %v3381, %v3964
      %v3972 = vmul.f32 %v3367, %v3964
      %v3973 = vmul.f32 %v3245, %v3964
      %v3974 = vmul.f32 %v3383, %v3964
      %v3975 = vmul.f32 %v3368, %v3964
      %v3976 = vmul.f32 %v3248, %v3964
      %v3977 = vmul.f32 %v3384, %v3964
      %v3978 = vmul.f32 %v3369, %v3964
      %v3979 = vmul.f32 %v3251, %v3964
      %v3980 = vmul.f32 %v3385, %v3964
      %v3981 = vmul.f32 %v3370, %v3964
      %v3982 = vmul.f32 %v3254, %v3964
      %v3983 = vmul.f32 %v3386, %v3964
      %v3984 = vmul.f32 %v3371, %v3964
      %v3985 = vmul.f32 %v3257, %v3964
      %v3986 = vmul.f32 %v3387, %v3964
      %v3987 = vmul.f32 %v3372, %v3964
      %v3988 = vmul.f32 %v3260, %v3964
      %v3989 = vmul.f32 %v3388, %v3964
      %v3990 = vmul.f32 %v3373, %v3964
      %v3991 = vmul.f32 %v3263, %v3964
      %v3992 = vmul.f32 %v3389, %v3964
      %v3993 = vmul.f32 %v3374, %v3964
      %v3994 = vmul.f32 %v3266, %v3964
      %v3995 = vmul.f32 %v3390, %v3964
      %v3996 = vmul.f32 %v3375, %v3964
      %v3997 = vmul.f32 %v3269, %v3964
      %v3998 = vmul.f32 %v3391, %v3964
      %v3999 = vmul.f32 %v3376, %v3964
      %v4000 = vmul.f32 %v3272, %v3964
      %v4001 = vmul.f32 %v3392, %v3964
      %v4002 = vmul.f32 %v3377, %v3964
      %v4003 = vmul.f32 %v3275, %v3964
      %v4004 = vmul.f32 %v3393, %v3964
      %v4005 = vmul.f32 %v3378, %v3964
      %v4006 = vmul.f32 %v3278, %v3964
      %v4007 = vmul.f32 %v3394, %v3964
      %v4008 = vmul.f32 %v3379, %v3964
      %v4009 = vmul.f32 %v3281, %v3964
      %v4010 = vmul.f32 %v3395, %v3964
      %v4011 = vmul.f32 %v3380, %v3964
      %v4012 = vmul.f32 %v3284, %v3964
      %v4013 = vmul.f32 %v3396, %v3964
      %v4062 = vrot.slane %v3966, 1
      %v4063 = vrot.slane %v3967, 1
      %v4064 = vsel %vm1545, %v4062, %v4063
      %v4065 = vrot.slane %v3968, 1
      %v4066 = vsel %vm1545, %v4063, %v4065
      %v4067 = vrot.slane %v3969, 1
      %v4068 = vrot.slane %v3970, 1
      %v4069 = vsel %vm1545, %v4067, %v4068
      %v4070 = vrot.slane %v3971, 1
      %v4071 = vsel %vm1545, %v4068, %v4070
      %v4072 = vrot.slane %v3972, 1
      %v4073 = vrot.slane %v3973, 1
      %v4074 = vsel %vm1545, %v4072, %v4073
      %v4075 = vrot.slane %v3974, 1
      %v4076 = vsel %vm1545, %v4073, %v4075
      %v4077 = vrot.slane %v3975, 1
      %v4078 = vrot.slane %v3976, 1
      %v4079 = vsel %vm1545, %v4077, %v4078
      %v4080 = vrot.slane %v3977, 1
      %v4081 = vsel %vm1545, %v4078, %v4080
      %v4082 = vrot.slane %v3978, 1
      %v4083 = vrot.slane %v3979, 1
      %v4084 = vsel %vm1545, %v4082, %v4083
      %v4085 = vrot.slane %v3980, 1
      %v4086 = vsel %vm1545, %v4083, %v4085
      %v4087 = vrot.slane %v3981, 1
      %v4088 = vrot.slane %v3982, 1
      %v4089 = vsel %vm1545, %v4087, %v4088
      %v4090 = vrot.slane %v3983, 1
      %v4091 = vsel %vm1545, %v4088, %v4090
      %v4092 = vrot.slane %v3984, 1
      %v4093 = vrot.slane %v3985, 1
      %v4094 = vsel %vm1545, %v4092, %v4093
      %v4095 = vrot.slane %v3986, 1
      %v4096 = vsel %vm1545, %v4093, %v4095
      %v4097 = vrot.slane %v3987, 1
      %v4098 = vrot.slane %v3988, 1
      %v4099 = vsel %vm1545, %v4097, %v4098
      %v4100 = vrot.slane %v3989, 1
      %v4101 = vsel %vm1545, %v4098, %v4100
      %v4102 = vrot.slane %v3990, 1
      %v4103 = vrot.slane %v3991, 1
      %v4104 = vsel %vm1545, %v4102, %v4103
      %v4105 = vrot.slane %v3992, 1
      %v4106 = vsel %vm1545, %v4103, %v4105
      %v4107 = vrot.slane %v3993, 1
      %v4108 = vrot.slane %v3994, 1
      %v4109 = vsel %vm1545, %v4107, %v4108
      %v4110 = vrot.slane %v3995, 1
      %v4111 = vsel %vm1545, %v4108, %v4110
      %v4112 = vrot.slane %v3996, 1
      %v4113 = vrot.slane %v3997, 1
      %v4114 = vsel %vm1545, %v4112, %v4113
      %v4115 = vrot.slane %v3998, 1
      %v4116 = vsel %vm1545, %v4113, %v4115
      %v4117 = vrot.slane %v3999, 1
      %v4118 = vrot.slane %v4000, 1
      %v4119 = vsel %vm1545, %v4117, %v4118
      %v4120 = vrot.slane %v4001, 1
      %v4121 = vsel %vm1545, %v4118, %v4120
      %v4122 = vrot.slane %v4002, 1
      %v4123 = vrot.slane %v4003, 1
      %v4124 = vsel %vm1545, %v4122, %v4123
      %v4125 = vrot.slane %v4004, 1
      %v4126 = vsel %vm1545, %v4123, %v4125
      %v4127 = vrot.slane %v4005, 1
      %v4128 = vrot.slane %v4006, 1
      %v4129 = vsel %vm1545, %v4127, %v4128
      %v4130 = vrot.slane %v4007, 1
      %v4131 = vsel %vm1545, %v4128, %v4130
      %v4132 = vrot.slane %v4008, 1
      %v4133 = vrot.slane %v4009, 1
      %v4134 = vsel %vm1545, %v4132, %v4133
      %v4135 = vrot.slane %v4010, 1
      %v4136 = vsel %vm1545, %v4133, %v4135
      %v4137 = vrot.slane %v4011, 1
      %v4138 = vrot.slane %v4012, 1
      %v4139 = vsel %vm1545, %v4137, %v4138
      %v4140 = vrot.slane %v4013, 1
      %v4141 = vsel %vm1545, %v4138, %v4140
      %v4174 = vadd.f32 %v3929, %v4064
      %v4175 = vadd.f32 %v3930, %v4066
      %v4176 = vadd.f32 %v3931, %v4069
      %v4177 = vadd.f32 %v3932, %v4071
      %v4178 = vadd.f32 %v3933, %v4074
      %v4179 = vadd.f32 %v3934, %v4076
      %v4180 = vadd.f32 %v3935, %v4079
      %v4181 = vadd.f32 %v3936, %v4081
      %v4182 = vadd.f32 %v3937, %v4084
      %v4183 = vadd.f32 %v3938, %v4086
      %v4184 = vadd.f32 %v3939, %v4089
      %v4185 = vadd.f32 %v3940, %v4091
      %v4186 = vadd.f32 %v3941, %v4094
      %v4187 = vadd.f32 %v3942, %v4096
      %v4188 = vadd.f32 %v3943, %v4099
      %v4189 = vadd.f32 %v3944, %v4101
      %v4190 = vadd.f32 %v3945, %v4104
      %v4191 = vadd.f32 %v3946, %v4106
      %v4192 = vadd.f32 %v3947, %v4109
      %v4193 = vadd.f32 %v3948, %v4111
      %v4194 = vadd.f32 %v3949, %v4114
      %v4195 = vadd.f32 %v3950, %v4116
      %v4196 = vadd.f32 %v3951, %v4119
      %v4197 = vadd.f32 %v3952, %v4121
      %v4198 = vadd.f32 %v3953, %v4124
      %v4199 = vadd.f32 %v3954, %v4126
      %v4200 = vadd.f32 %v3955, %v4129
      %v4201 = vadd.f32 %v3956, %v4131
      %v4202 = vadd.f32 %v3957, %v4134
      %v4203 = vadd.f32 %v3958, %v4136
      %v4204 = vadd.f32 %v3959, %v4139
      %v4205 = vadd.f32 %v3960, %v4141
      %v4206 = vperm.slane %v3002, 6
      %4208 = vrot.lane.b32.xlu0 %v4206, 8
      %v4209 = vpop.permute.xlu0 %4208
      %v4211 = vmul.f32 %v3366, %v4209
      %v4212 = vmul.f32 %v3242, %v4209
      %v4213 = vmul.f32 %v3382, %v4209
      %v4214 = vmul.f32 %v3365, %v4209
      %v4215 = vmul.f32 %v3239, %v4209
      %v4216 = vmul.f32 %v3381, %v4209
      %v4217 = vmul.f32 %v3367, %v4209
      %v4218 = vmul.f32 %v3245, %v4209
      %v4219 = vmul.f32 %v3383, %v4209
      %v4220 = vmul.f32 %v3368, %v4209
      %v4221 = vmul.f32 %v3248, %v4209
      %v4222 = vmul.f32 %v3384, %v4209
      %v4223 = vmul.f32 %v3369, %v4209
      %v4224 = vmul.f32 %v3251, %v4209
      %v4225 = vmul.f32 %v3385, %v4209
      %v4226 = vmul.f32 %v3370, %v4209
      %v4227 = vmul.f32 %v3254, %v4209
      %v4228 = vmul.f32 %v3386, %v4209
      %v4229 = vmul.f32 %v3371, %v4209
      %v4230 = vmul.f32 %v3257, %v4209
      %v4231 = vmul.f32 %v3387, %v4209
      %v4232 = vmul.f32 %v3372, %v4209
      %v4233 = vmul.f32 %v3260, %v4209
      %v4234 = vmul.f32 %v3388, %v4209
      %v4235 = vmul.f32 %v3373, %v4209
      %v4236 = vmul.f32 %v3263, %v4209
      %v4237 = vmul.f32 %v3389, %v4209
      %v4238 = vmul.f32 %v3374, %v4209
      %v4239 = vmul.f32 %v3266, %v4209
      %v4240 = vmul.f32 %v3390, %v4209
      %v4241 = vmul.f32 %v3375, %v4209
      %v4242 = vmul.f32 %v3269, %v4209
      %v4243 = vmul.f32 %v3391, %v4209
      %v4244 = vmul.f32 %v3376, %v4209
      %v4245 = vmul.f32 %v3272, %v4209
      %v4246 = vmul.f32 %v3392, %v4209
      %v4247 = vmul.f32 %v3377, %v4209
      %v4248 = vmul.f32 %v3275, %v4209
      %v4249 = vmul.f32 %v3393, %v4209
      %v4250 = vmul.f32 %v3378, %v4209
      %v4251 = vmul.f32 %v3278, %v4209
      %v4252 = vmul.f32 %v3394, %v4209
      %v4253 = vmul.f32 %v3379, %v4209
      %v4254 = vmul.f32 %v3281, %v4209
      %v4255 = vmul.f32 %v3395, %v4209
      %v4256 = vmul.f32 %v3380, %v4209
      %v4257 = vmul.f32 %v3284, %v4209
      %v4258 = vmul.f32 %v3396, %v4209
      %v4307 = vrot.slane %v4211, 2
      %v4308 = vrot.slane %v4212, 2
      %v4309 = vsel %vm1776, %v4307, %v4308
      %v4310 = vrot.slane %v4213, 2
      %v4311 = vsel %vm1776, %v4308, %v4310
      %v4312 = vrot.slane %v4214, 2
      %v4313 = vrot.slane %v4215, 2
      %v4314 = vsel %vm1776, %v4312, %v4313
      %v4315 = vrot.slane %v4216, 2
      %v4316 = vsel %vm1776, %v4313, %v4315
      %v4317 = vrot.slane %v4217, 2
      %v4318 = vrot.slane %v4218, 2
      %v4319 = vsel %vm1776, %v4317, %v4318
      %v4320 = vrot.slane %v4219, 2
      %v4321 = vsel %vm1776, %v4318, %v4320
      %v4322 = vrot.slane %v4220, 2
      %v4323 = vrot.slane %v4221, 2
      %v4324 = vsel %vm1776, %v4322, %v4323
      %v4325 = vrot.slane %v4222, 2
      %v4326 = vsel %vm1776, %v4323, %v4325
      %v4327 = vrot.slane %v4223, 2
      %v4328 = vrot.slane %v4224, 2
      %v4329 = vsel %vm1776, %v4327, %v4328
      %v4330 = vrot.slane %v4225, 2
      %v4331 = vsel %vm1776, %v4328, %v4330
      %v4332 = vrot.slane %v4226, 2
      %v4333 = vrot.slane %v4227, 2
      %v4334 = vsel %vm1776, %v4332, %v4333
      %v4335 = vrot.slane %v4228, 2
      %v4336 = vsel %vm1776, %v4333, %v4335
      %v4337 = vrot.slane %v4229, 2
      %v4338 = vrot.slane %v4230, 2
      %v4339 = vsel %vm1776, %v4337, %v4338
      %v4340 = vrot.slane %v4231, 2
      %v4341 = vsel %vm1776, %v4338, %v4340
      %v4342 = vrot.slane %v4232, 2
      %v4343 = vrot.slane %v4233, 2
      %v4344 = vsel %vm1776, %v4342, %v4343
      %v4345 = vrot.slane %v4234, 2
      %v4346 = vsel %vm1776, %v4343, %v4345
      %v4347 = vrot.slane %v4235, 2
      %v4348 = vrot.slane %v4236, 2
      %v4349 = vsel %vm1776, %v4347, %v4348
      %v4350 = vrot.slane %v4237, 2
      %v4351 = vsel %vm1776, %v4348, %v4350
      %v4352 = vrot.slane %v4238, 2
      %v4353 = vrot.slane %v4239, 2
      %v4354 = vsel %vm1776, %v4352, %v4353
      %v4355 = vrot.slane %v4240, 2
      %v4356 = vsel %vm1776, %v4353, %v4355
      %v4357 = vrot.slane %v4241, 2
      %v4358 = vrot.slane %v4242, 2
      %v4359 = vsel %vm1776, %v4357, %v4358
      %v4360 = vrot.slane %v4243, 2
      %v4361 = vsel %vm1776, %v4358, %v4360
      %v4362 = vrot.slane %v4244, 2
      %v4363 = vrot.slane %v4245, 2
      %v4364 = vsel %vm1776, %v4362, %v4363
      %v4365 = vrot.slane %v4246, 2
      %v4366 = vsel %vm1776, %v4363, %v4365
      %v4367 = vrot.slane %v4247, 2
      %v4368 = vrot.slane %v4248, 2
      %v4369 = vsel %vm1776, %v4367, %v4368
      %v4370 = vrot.slane %v4249, 2
      %v4371 = vsel %vm1776, %v4368, %v4370
      %v4372 = vrot.slane %v4250, 2
      %v4373 = vrot.slane %v4251, 2
      %v4374 = vsel %vm1776, %v4372, %v4373
      %v4375 = vrot.slane %v4252, 2
      %v4376 = vsel %vm1776, %v4373, %v4375
      %v4377 = vrot.slane %v4253, 2
      %v4378 = vrot.slane %v4254, 2
      %v4379 = vsel %vm1776, %v4377, %v4378
      %v4380 = vrot.slane %v4255, 2
      %v4381 = vsel %vm1776, %v4378, %v4380
      %v4382 = vrot.slane %v4256, 2
      %v4383 = vrot.slane %v4257, 2
      %v4384 = vsel %vm1776, %v4382, %v4383
      %v4385 = vrot.slane %v4258, 2
      %v4386 = vsel %vm1776, %v4383, %v4385
      %v4419 = vadd.f32 %v4174, %v4309
      %v4420 = vadd.f32 %v4175, %v4311
      %v4421 = vadd.f32 %v4176, %v4314
      %v4422 = vadd.f32 %v4177, %v4316
      %v4423 = vadd.f32 %v4178, %v4319
      %v4424 = vadd.f32 %v4179, %v4321
      %v4425 = vadd.f32 %v4180, %v4324
      %v4426 = vadd.f32 %v4181, %v4326
      %v4427 = vadd.f32 %v4182, %v4329
      %v4428 = vadd.f32 %v4183, %v4331
      %v4429 = vadd.f32 %v4184, %v4334
      %v4430 = vadd.f32 %v4185, %v4336
      %v4431 = vadd.f32 %v4186, %v4339
      %v4432 = vadd.f32 %v4187, %v4341
      %v4433 = vadd.f32 %v4188, %v4344
      %v4434 = vadd.f32 %v4189, %v4346
      %v4435 = vadd.f32 %v4190, %v4349
      %v4436 = vadd.f32 %v4191, %v4351
      %v4437 = vadd.f32 %v4192, %v4354
      %v4438 = vadd.f32 %v4193, %v4356
      %v4439 = vadd.f32 %v4194, %v4359
      %v4440 = vadd.f32 %v4195, %v4361
      %v4441 = vadd.f32 %v4196, %v4364
      %v4442 = vadd.f32 %v4197, %v4366
      %v4443 = vadd.f32 %v4198, %v4369
      %v4444 = vadd.f32 %v4199, %v4371
      %v4445 = vadd.f32 %v4200, %v4374
      %v4446 = vadd.f32 %v4201, %v4376
      %v4447 = vadd.f32 %v4202, %v4379
      %v4448 = vadd.f32 %v4203, %v4381
      %v4449 = vadd.f32 %v4204, %v4384
      %v4450 = vadd.f32 %v4205, %v4386
      %v4451 = vperm.slane %v3002, 7
      %4453 = vrot.lane.b32.xlu0 %v4451, 8
      %v4454 = vpop.permute.xlu0 %4453
      %v4456 = vmul.f32 %v3365, %v4454
      %v4457 = vmul.f32 %v3239, %v4454
      %v4458 = vmul.f32 %v3367, %v4454
      %v4459 = vmul.f32 %v3245, %v4454
      %v4460 = vmul.f32 %v3368, %v4454
      %v4461 = vmul.f32 %v3248, %v4454
      %v4462 = vmul.f32 %v3369, %v4454
      %v4463 = vmul.f32 %v3251, %v4454
      %v4464 = vmul.f32 %v3370, %v4454
      %v4465 = vmul.f32 %v3254, %v4454
      %v4466 = vmul.f32 %v3371, %v4454
      %v4467 = vmul.f32 %v3257, %v4454
      %v4468 = vmul.f32 %v3372, %v4454
      %v4469 = vmul.f32 %v3260, %v4454
      %v4470 = vmul.f32 %v3373, %v4454
      %v4471 = vmul.f32 %v3263, %v4454
      %v4472 = vmul.f32 %v3374, %v4454
      %v4473 = vmul.f32 %v3266, %v4454
      %v4474 = vmul.f32 %v3375, %v4454
      %v4475 = vmul.f32 %v3269, %v4454
      %v4476 = vmul.f32 %v3376, %v4454
      %v4477 = vmul.f32 %v3272, %v4454
      %v4478 = vmul.f32 %v3377, %v4454
      %v4479 = vmul.f32 %v3275, %v4454
      %v4480 = vmul.f32 %v3378, %v4454
      %v4481 = vmul.f32 %v3278, %v4454
      %v4482 = vmul.f32 %v3379, %v4454
      %v4483 = vmul.f32 %v3281, %v4454
      %v4484 = vmul.f32 %v3380, %v4454
      %v4485 = vmul.f32 %v3284, %v4454
      %v4486 = vadd.f32 %v4419, %v4456
      %v4487 = vadd.f32 %v4420, %v4457
      %v4488 = vadd.f32 %v4421, %v4458
      %v4489 = vadd.f32 %v4422, %v4459
      %v4490 = vadd.f32 %v4423, %v4460
      %v4491 = vadd.f32 %v4424, %v4461
      %v4492 = vadd.f32 %v4425, %v4462
      %v4493 = vadd.f32 %v4426, %v4463
      %v4494 = vadd.f32 %v4427, %v4464
      %v4495 = vadd.f32 %v4428, %v4465
      %v4496 = vadd.f32 %v4429, %v4466
      %v4497 = vadd.f32 %v4430, %v4467
      %v4498 = vadd.f32 %v4431, %v4468
      %v4499 = vadd.f32 %v4432, %v4469
      %v4500 = vadd.f32 %v4433, %v4470
      %v4501 = vadd.f32 %v4434, %v4471
      %v4502 = vadd.f32 %v4435, %v4472
      %v4503 = vadd.f32 %v4436, %v4473
      %v4504 = vadd.f32 %v4437, %v4474
      %v4505 = vadd.f32 %v4438, %v4475
      %v4506 = vadd.f32 %v4439, %v4476
      %v4507 = vadd.f32 %v4440, %v4477
      %v4508 = vadd.f32 %v4441, %v4478
      %v4509 = vadd.f32 %v4442, %v4479
      %v4510 = vadd.f32 %v4443, %v4480
      %v4511 = vadd.f32 %v4444, %v4481
      %v4512 = vadd.f32 %v4445, %v4482
      %v4513 = vadd.f32 %v4446, %v4483
      %v4514 = vadd.f32 %v4447, %v4484
      %v4515 = vadd.f32 %v4448, %v4485
      %v4516 = vadd.f32 %v4449, %v4482
      %v4517 = vadd.f32 %v4450, %v4483
      %v4518 = vperm.slane %v3003, 0
      %4520 = vrot.lane.b32.xlu0 %v4518, 8
      %v4521 = vpop.permute.xlu0 %4520
      %v4523 = vmul.f32 %v3365, %v4521
      %v4524 = vmul.f32 %v3239, %v4521
      %v4525 = vmul.f32 %v3381, %v4521
      %v4526 = vmul.f32 %v3367, %v4521
      %v4527 = vmul.f32 %v3245, %v4521
      %v4528 = vmul.f32 %v3383, %v4521
      %v4529 = vmul.f32 %v3368, %v4521
      %v4530 = vmul.f32 %v3248, %v4521
      %v4531 = vmul.f32 %v3384, %v4521
      %v4532 = vmul.f32 %v3369, %v4521
      %v4533 = vmul.f32 %v3251, %v4521
      %v4534 = vmul.f32 %v3385, %v4521
      %v4535 = vmul.f32 %v3370, %v4521
      %v4536 = vmul.f32 %v3254, %v4521
      %v4537 = vmul.f32 %v3386, %v4521
      %v4538 = vmul.f32 %v3371, %v4521
      %v4539 = vmul.f32 %v3257, %v4521
      %v4540 = vmul.f32 %v3387, %v4521
      %v4541 = vmul.f32 %v3372, %v4521
      %v4542 = vmul.f32 %v3260, %v4521
      %v4543 = vmul.f32 %v3388, %v4521
      %v4544 = vmul.f32 %v3373, %v4521
      %v4545 = vmul.f32 %v3263, %v4521
      %v4546 = vmul.f32 %v3389, %v4521
      %v4547 = vmul.f32 %v3374, %v4521
      %v4548 = vmul.f32 %v3266, %v4521
      %v4549 = vmul.f32 %v3390, %v4521
      %v4550 = vmul.f32 %v3375, %v4521
      %v4551 = vmul.f32 %v3269, %v4521
      %v4552 = vmul.f32 %v3391, %v4521
      %v4553 = vmul.f32 %v3376, %v4521
      %v4554 = vmul.f32 %v3272, %v4521
      %v4555 = vmul.f32 %v3392, %v4521
      %v4556 = vmul.f32 %v3377, %v4521
      %v4557 = vmul.f32 %v3275, %v4521
      %v4558 = vmul.f32 %v3393, %v4521
      %v4559 = vmul.f32 %v3378, %v4521
      %v4560 = vmul.f32 %v3278, %v4521
      %v4561 = vmul.f32 %v3394, %v4521
      %v4562 = vmul.f32 %v3379, %v4521
      %v4563 = vmul.f32 %v3281, %v4521
      %v4564 = vmul.f32 %v3395, %v4521
      %v4565 = vmul.f32 %v3380, %v4521
      %v4566 = vmul.f32 %v3284, %v4521
      %v4567 = vmul.f32 %v3396, %v4521
      %v4613 = vrot.slane %v4523, 1
      %v4614 = vrot.slane %v4524, 1
      %v4615 = vsel %vm1545, %v4613, %v4614
      %v4616 = vrot.slane %v4525, 1
      %v4617 = vsel %vm1545, %v4614, %v4616
      %v4618 = vrot.slane %v4526, 1
      %v4619 = vrot.slane %v4527, 1
      %v4620 = vsel %vm1545, %v4618, %v4619
      %v4621 = vrot.slane %v4528, 1
      %v4622 = vsel %vm1545, %v4619, %v4621
      %v4623 = vrot.slane %v4529, 1
      %v4624 = vrot.slane %v4530, 1
      %v4625 = vsel %vm1545, %v4623, %v4624
      %v4626 = vrot.slane %v4531, 1
      %v4627 = vsel %vm1545, %v4624, %v4626
      %v4628 = vrot.slane %v4532, 1
      %v4629 = vrot.slane %v4533, 1
      %v4630 = vsel %vm1545, %v4628, %v4629
      %v4631 = vrot.slane %v4534, 1
      %v4632 = vsel %vm1545, %v4629, %v4631
      %v4633 = vrot.slane %v4535, 1
      %v4634 = vrot.slane %v4536, 1
      %v4635 = vsel %vm1545, %v4633, %v4634
      %v4636 = vrot.slane %v4537, 1
      %v4637 = vsel %vm1545, %v4634, %v4636
      %v4638 = vrot.slane %v4538, 1
      %v4639 = vrot.slane %v4539, 1
      %v4640 = vsel %vm1545, %v4638, %v4639
      %v4641 = vrot.slane %v4540, 1
      %v4642 = vsel %vm1545, %v4639, %v4641
      %v4643 = vrot.slane %v4541, 1
      %v4644 = vrot.slane %v4542, 1
      %v4645 = vsel %vm1545, %v4643, %v4644
      %v4646 = vrot.slane %v4543, 1
      %v4647 = vsel %vm1545, %v4644, %v4646
      %v4648 = vrot.slane %v4544, 1
      %v4649 = vrot.slane %v4545, 1
      %v4650 = vsel %vm1545, %v4648, %v4649
      %v4651 = vrot.slane %v4546, 1
      %v4652 = vsel %vm1545, %v4649, %v4651
      %v4653 = vrot.slane %v4547, 1
      %v4654 = vrot.slane %v4548, 1
      %v4655 = vsel %vm1545, %v4653, %v4654
      %v4656 = vrot.slane %v4549, 1
      %v4657 = vsel %vm1545, %v4654, %v4656
      %v4658 = vrot.slane %v4550, 1
      %v4659 = vrot.slane %v4551, 1
      %v4660 = vsel %vm1545, %v4658, %v4659
      %v4661 = vrot.slane %v4552, 1
      %v4662 = vsel %vm1545, %v4659, %v4661
      %v4663 = vrot.slane %v4553, 1
      %v4664 = vrot.slane %v4554, 1
      %v4665 = vsel %vm1545, %v4663, %v4664
      %v4666 = vrot.slane %v4555, 1
      %v4667 = vsel %vm1545, %v4664, %v4666
      %v4668 = vrot.slane %v4556, 1
      %v4669 = vrot.slane %v4557, 1
      %v4670 = vsel %vm1545, %v4668, %v4669
      %v4671 = vrot.slane %v4558, 1
      %v4672 = vsel %vm1545, %v4669, %v4671
      %v4673 = vrot.slane %v4559, 1
      %v4674 = vrot.slane %v4560, 1
      %v4675 = vsel %vm1545, %v4673, %v4674
      %v4676 = vrot.slane %v4561, 1
      %v4677 = vsel %vm1545, %v4674, %v4676
      %v4678 = vrot.slane %v4562, 1
      %v4679 = vrot.slane %v4563, 1
      %v4680 = vsel %vm1545, %v4678, %v4679
      %v4681 = vrot.slane %v4564, 1
      %v4682 = vsel %vm1545, %v4679, %v4681
      %v4683 = vrot.slane %v4565, 1
      %v4684 = vrot.slane %v4566, 1
      %v4685 = vsel %vm1545, %v4683, %v4684
      %v4686 = vrot.slane %v4567, 1
      %v4687 = vsel %vm1545, %v4684, %v4686
      %v4718 = vadd.f32 %v4486, %v4615
      %v4719 = vadd.f32 %v4487, %v4617
      %v4720 = vadd.f32 %v4488, %v4620
      %v4721 = vadd.f32 %v4489, %v4622
      %v4722 = vadd.f32 %v4490, %v4625
      %v4723 = vadd.f32 %v4491, %v4627
      %v4724 = vadd.f32 %v4492, %v4630
      %v4725 = vadd.f32 %v4493, %v4632
      %v4726 = vadd.f32 %v4494, %v4635
      %v4727 = vadd.f32 %v4495, %v4637
      %v4728 = vadd.f32 %v4496, %v4640
      %v4729 = vadd.f32 %v4497, %v4642
      %v4730 = vadd.f32 %v4498, %v4645
      %v4731 = vadd.f32 %v4499, %v4647
      %v4732 = vadd.f32 %v4500, %v4650
      %v4733 = vadd.f32 %v4501, %v4652
      %v4734 = vadd.f32 %v4502, %v4655
      %v4735 = vadd.f32 %v4503, %v4657
      %v4736 = vadd.f32 %v4504, %v4660
      %v4737 = vadd.f32 %v4505, %v4662
      %v4738 = vadd.f32 %v4506, %v4665
      %v4739 = vadd.f32 %v4507, %v4667
      %v4740 = vadd.f32 %v4508, %v4670
      %v4741 = vadd.f32 %v4509, %v4672
      %v4742 = vadd.f32 %v4510, %v4675
      %v4743 = vadd.f32 %v4511, %v4677
      %v4744 = vadd.f32 %v4512, %v4680
      %v4745 = vadd.f32 %v4513, %v4682
      %v4746 = vadd.f32 %v4514, %v4685
      %v4747 = vadd.f32 %v4515, %v4687
      %v4748 = vadd.f32 %v4516, %v4680
      %v4749 = vadd.f32 %v4517, %v4682
      %v4750 = vperm.slane %v3003, 1
      %4752 = vrot.lane.b32.xlu0 %v4750, 8
      %v4753 = vpop.permute.xlu0 %4752
      %v4755 = vmul.f32 %v3365, %v4753
      %v4756 = vmul.f32 %v3239, %v4753
      %v4757 = vmul.f32 %v3381, %v4753
      %v4758 = vmul.f32 %v3367, %v4753
      %v4759 = vmul.f32 %v3245, %v4753
      %v4760 = vmul.f32 %v3383, %v4753
      %v4761 = vmul.f32 %v3368, %v4753
      %v4762 = vmul.f32 %v3248, %v4753
      %v4763 = vmul.f32 %v3384, %v4753
      %v4764 = vmul.f32 %v3369, %v4753
      %v4765 = vmul.f32 %v3251, %v4753
      %v4766 = vmul.f32 %v3385, %v4753
      %v4767 = vmul.f32 %v3370, %v4753
      %v4768 = vmul.f32 %v3254, %v4753
      %v4769 = vmul.f32 %v3386, %v4753
      %v4770 = vmul.f32 %v3371, %v4753
      %v4771 = vmul.f32 %v3257, %v4753
      %v4772 = vmul.f32 %v3387, %v4753
      %v4773 = vmul.f32 %v3372, %v4753
      %v4774 = vmul.f32 %v3260, %v4753
      %v4775 = vmul.f32 %v3388, %v4753
      %v4776 = vmul.f32 %v3373, %v4753
      %v4777 = vmul.f32 %v3263, %v4753
      %v4778 = vmul.f32 %v3389, %v4753
      %v4779 = vmul.f32 %v3374, %v4753
      %v4780 = vmul.f32 %v3266, %v4753
      %v4781 = vmul.f32 %v3390, %v4753
      %v4782 = vmul.f32 %v3375, %v4753
      %v4783 = vmul.f32 %v3269, %v4753
      %v4784 = vmul.f32 %v3391, %v4753
      %v4785 = vmul.f32 %v3376, %v4753
      %v4786 = vmul.f32 %v3272, %v4753
      %v4787 = vmul.f32 %v3392, %v4753
      %v4788 = vmul.f32 %v3377, %v4753
      %v4789 = vmul.f32 %v3275, %v4753
      %v4790 = vmul.f32 %v3393, %v4753
      %v4791 = vmul.f32 %v3378, %v4753
      %v4792 = vmul.f32 %v3278, %v4753
      %v4793 = vmul.f32 %v3394, %v4753
      %v4794 = vmul.f32 %v3379, %v4753
      %v4795 = vmul.f32 %v3281, %v4753
      %v4796 = vmul.f32 %v3395, %v4753
      %v4797 = vmul.f32 %v3380, %v4753
      %v4798 = vmul.f32 %v3284, %v4753
      %v4799 = vmul.f32 %v3396, %v4753
      %v4845 = vrot.slane %v4755, 2
      %v4846 = vrot.slane %v4756, 2
      %v4847 = vsel %vm1776, %v4845, %v4846
      %v4848 = vrot.slane %v4757, 2
      %v4849 = vsel %vm1776, %v4846, %v4848
      %v4850 = vrot.slane %v4758, 2
      %v4851 = vrot.slane %v4759, 2
      %v4852 = vsel %vm1776, %v4850, %v4851
      %v4853 = vrot.slane %v4760, 2
      %v4854 = vsel %vm1776, %v4851, %v4853
      %v4855 = vrot.slane %v4761, 2
      %v4856 = vrot.slane %v4762, 2
      %v4857 = vsel %vm1776, %v4855, %v4856
      %v4858 = vrot.slane %v4763, 2
      %v4859 = vsel %vm1776, %v4856, %v4858
      %v4860 = vrot.slane %v4764, 2
      %v4861 = vrot.slane %v4765, 2
      %v4862 = vsel %vm1776, %v4860, %v4861
      %v4863 = vrot.slane %v4766, 2
      %v4864 = vsel %vm1776, %v4861, %v4863
      %v4865 = vrot.slane %v4767, 2
      %v4866 = vrot.slane %v4768, 2
      %v4867 = vsel %vm1776, %v4865, %v4866
      %v4868 = vrot.slane %v4769, 2
      %v4869 = vsel %vm1776, %v4866, %v4868
      %v4870 = vrot.slane %v4770, 2
      %v4871 = vrot.slane %v4771, 2
      %v4872 = vsel %vm1776, %v4870, %v4871
      %v4873 = vrot.slane %v4772, 2
      %v4874 = vsel %vm1776, %v4871, %v4873
      %v4875 = vrot.slane %v4773, 2
      %v4876 = vrot.slane %v4774, 2
      %v4877 = vsel %vm1776, %v4875, %v4876
      %v4878 = vrot.slane %v4775, 2
      %v4879 = vsel %vm1776, %v4876, %v4878
      %v4880 = vrot.slane %v4776, 2
      %v4881 = vrot.slane %v4777, 2
      %v4882 = vsel %vm1776, %v4880, %v4881
      %v4883 = vrot.slane %v4778, 2
      %v4884 = vsel %vm1776, %v4881, %v4883
      %v4885 = vrot.slane %v4779, 2
      %v4886 = vrot.slane %v4780, 2
      %v4887 = vsel %vm1776, %v4885, %v4886
      %v4888 = vrot.slane %v4781, 2
      %v4889 = vsel %vm1776, %v4886, %v4888
      %v4890 = vrot.slane %v4782, 2
      %v4891 = vrot.slane %v4783, 2
      %v4892 = vsel %vm1776, %v4890, %v4891
      %v4893 = vrot.slane %v4784, 2
      %v4894 = vsel %vm1776, %v4891, %v4893
      %v4895 = vrot.slane %v4785, 2
      %v4896 = vrot.slane %v4786, 2
      %v4897 = vsel %vm1776, %v4895, %v4896
      %v4898 = vrot.slane %v4787, 2
      %v4899 = vsel %vm1776, %v4896, %v4898
      %v4900 = vrot.slane %v4788, 2
      %v4901 = vrot.slane %v4789, 2
      %v4902 = vsel %vm1776, %v4900, %v4901
      %v4903 = vrot.slane %v4790, 2
      %v4904 = vsel %vm1776, %v4901, %v4903
      %v4905 = vrot.slane %v4791, 2
      %v4906 = vrot.slane %v4792, 2
      %v4907 = vsel %vm1776, %v4905, %v4906
      %v4908 = vrot.slane %v4793, 2
      %v4909 = vsel %vm1776, %v4906, %v4908
      %v4910 = vrot.slane %v4794, 2
      %v4911 = vrot.slane %v4795, 2
      %v4912 = vsel %vm1776, %v4910, %v4911
      %v4913 = vrot.slane %v4796, 2
      %v4914 = vsel %vm1776, %v4911, %v4913
      %v4915 = vrot.slane %v4797, 2
      %v4916 = vrot.slane %v4798, 2
      %v4917 = vsel %vm1776, %v4915, %v4916
      %v4918 = vrot.slane %v4799, 2
      %v4919 = vsel %vm1776, %v4916, %v4918
      %v4950 = vadd.f32 %v4718, %v4847
      %v4951 = vadd.f32 %v4719, %v4849
      %v4952 = vadd.f32 %v4720, %v4852
      %v4953 = vadd.f32 %v4721, %v4854
      %v4954 = vadd.f32 %v4722, %v4857
      %v4955 = vadd.f32 %v4723, %v4859
      %v4956 = vadd.f32 %v4724, %v4862
      %v4957 = vadd.f32 %v4725, %v4864
      %v4958 = vadd.f32 %v4726, %v4867
      %v4959 = vadd.f32 %v4727, %v4869
      %v4960 = vadd.f32 %v4728, %v4872
      %v4961 = vadd.f32 %v4729, %v4874
      %v4962 = vadd.f32 %v4730, %v4877
      %v4963 = vadd.f32 %v4731, %v4879
      %v4964 = vadd.f32 %v4732, %v4882
      %v4965 = vadd.f32 %v4733, %v4884
      %v4966 = vadd.f32 %v4734, %v4887
      %v4967 = vadd.f32 %v4735, %v4889
      %v4968 = vadd.f32 %v4736, %v4892
      %v4969 = vadd.f32 %v4737, %v4894
      %v4970 = vadd.f32 %v4738, %v4897
      %v4971 = vadd.f32 %v4739, %v4899
      %v4972 = vadd.f32 %v4740, %v4902
      %v4973 = vadd.f32 %v4741, %v4904
      %v4974 = vadd.f32 %v4742, %v4907
      %v4975 = vadd.f32 %v4743, %v4909
      %v4976 = vadd.f32 %v4744, %v4912
      %v4977 = vadd.f32 %v4745, %v4914
      %v4978 = vadd.f32 %v4746, %v4917
      %v4979 = vadd.f32 %v4747, %v4919
      %v4980 = vadd.f32 %v4748, %v4912
      %v4981 = vadd.f32 %v4749, %v4914
      %5014 = vrot.lane.b32.xlu0 %v4950, 2
      %v5015 = vpop.permute.xlu0 %5014
      %5016 = vrot.lane.b32.xlu0 %v4951, 2
      %v5017 = vpop.permute.xlu0 %5016
      %5018 = vrot.lane.b32.xlu0 %v4952, 2
      %v5019 = vpop.permute.xlu0 %5018
      %5020 = vrot.lane.b32.xlu0 %v4953, 2
      %v5021 = vpop.permute.xlu0 %5020
      %5022 = vrot.lane.b32.xlu0 %v4954, 2
      %v5023 = vpop.permute.xlu0 %5022
      %5024 = vrot.lane.b32.xlu0 %v4955, 2
      %v5025 = vpop.permute.xlu0 %5024
      %5026 = vrot.lane.b32.xlu0 %v4956, 2
      %v5027 = vpop.permute.xlu0 %5026
      %5028 = vrot.lane.b32.xlu0 %v4957, 2
      %v5029 = vpop.permute.xlu0 %5028
      %5030 = vrot.lane.b32.xlu0 %v4958, 2
      %v5031 = vpop.permute.xlu0 %5030
      %5032 = vrot.lane.b32.xlu0 %v4959, 2
      %v5033 = vpop.permute.xlu0 %5032
      %5034 = vrot.lane.b32.xlu0 %v4960, 2
      %v5035 = vpop.permute.xlu0 %5034
      %5036 = vrot.lane.b32.xlu0 %v4961, 2
      %v5037 = vpop.permute.xlu0 %5036
      %5038 = vrot.lane.b32.xlu0 %v4962, 2
      %v5039 = vpop.permute.xlu0 %5038
      %5040 = vrot.lane.b32.xlu0 %v4963, 2
      %v5041 = vpop.permute.xlu0 %5040
      %5042 = vrot.lane.b32.xlu0 %v4964, 2
      %v5043 = vpop.permute.xlu0 %5042
      %5044 = vrot.lane.b32.xlu0 %v4965, 2
      %v5045 = vpop.permute.xlu0 %5044
      %5046 = vrot.lane.b32.xlu0 %v4966, 2
      %v5047 = vpop.permute.xlu0 %5046
      %5048 = vrot.lane.b32.xlu0 %v4967, 2
      %v5049 = vpop.permute.xlu0 %5048
      %5050 = vrot.lane.b32.xlu0 %v4968, 2
      %v5051 = vpop.permute.xlu0 %5050
      %5052 = vrot.lane.b32.xlu0 %v4969, 2
      %v5053 = vpop.permute.xlu0 %5052
      %5054 = vrot.lane.b32.xlu0 %v4970, 2
      %v5055 = vpop.permute.xlu0 %5054
      %5056 = vrot.lane.b32.xlu0 %v4971, 2
      %v5057 = vpop.permute.xlu0 %5056
      %5058 = vrot.lane.b32.xlu0 %v4972, 2
      %v5059 = vpop.permute.xlu0 %5058
      %5060 = vrot.lane.b32.xlu0 %v4973, 2
      %v5061 = vpop.permute.xlu0 %5060
      %5062 = vrot.lane.b32.xlu0 %v4974, 2
      %v5063 = vpop.permute.xlu0 %5062
      %5064 = vrot.lane.b32.xlu0 %v4975, 2
      %v5065 = vpop.permute.xlu0 %5064
      %5066 = vrot.lane.b32.xlu0 %v4976, 2
      %v5067 = vpop.permute.xlu0 %5066
      %5068 = vrot.lane.b32.xlu0 %v4977, 2
      %v5069 = vpop.permute.xlu0 %5068
      %5070 = vrot.lane.b32.xlu0 %v4978, 2
      %v5071 = vpop.permute.xlu0 %5070
      %5072 = vrot.lane.b32.xlu0 %v4979, 2
      %v5073 = vpop.permute.xlu0 %5072
      %5074 = vrot.lane.b32.xlu0 %v4980, 2
      %v5075 = vpop.permute.xlu0 %5074
      %5076 = vrot.lane.b32.xlu0 %v4981, 2
      %v5077 = vpop.permute.xlu0 %5076
      %v5110 = vadd.f32 %v2970, %v5015
      %v5111 = vadd.f32 %v2971, %v5017
      %v5112 = vadd.f32 %v2972, %v5019
      %v5113 = vadd.f32 %v2973, %v5021
      %v5114 = vadd.f32 %v2974, %v5023
      %v5115 = vadd.f32 %v2975, %v5025
      %v5116 = vadd.f32 %v2976, %v5027
      %v5117 = vadd.f32 %v2977, %v5029
      %v5118 = vadd.f32 %v2978, %v5031
      %v5119 = vadd.f32 %v2979, %v5033
      %v5120 = vadd.f32 %v2980, %v5035
      %v5121 = vadd.f32 %v2981, %v5037
      %v5122 = vadd.f32 %v2982, %v5039
      %v5123 = vadd.f32 %v2983, %v5041
      %v5124 = vadd.f32 %v2984, %v5043
      %v5125 = vadd.f32 %v2985, %v5045
      %v5126 = vadd.f32 %v2986, %v5047
      %v5127 = vadd.f32 %v2987, %v5049
      %v5128 = vadd.f32 %v2988, %v5051
      %v5129 = vadd.f32 %v2989, %v5053
      %v5130 = vadd.f32 %v2990, %v5055
      %v5131 = vadd.f32 %v2991, %v5057
      %v5132 = vadd.f32 %v2992, %v5059
      %v5133 = vadd.f32 %v2993, %v5061
      %v5134 = vadd.f32 %v2994, %v5063
      %v5135 = vadd.f32 %v2995, %v5065
      %v5136 = vadd.f32 %v2996, %v5067
      %v5137 = vadd.f32 %v2997, %v5069
      %v5138 = vadd.f32 %v2998, %v5071
      %v5139 = vadd.f32 %v2999, %v5073
      %v5140 = vadd.f32 %v3000, %v5075
      %v5141 = vadd.f32 %v3001, %v5077
      %v5142 = vperm.slane %v3006, 1
      %5144 = vrot.lane.b32.xlu0 %v5142, 10
      %v5145 = vpop.permute.xlu0 %5144
      %v5147 = vadd.f32 %v5110, %v5145
      %v5148 = vadd.f32 %v5111, %v5145
      %v5149 = vadd.f32 %v5112, %v5145
      %v5150 = vadd.f32 %v5113, %v5145
      %v5151 = vadd.f32 %v5114, %v5145
      %v5152 = vadd.f32 %v5115, %v5145
      %v5153 = vadd.f32 %v5116, %v5145
      %v5154 = vadd.f32 %v5117, %v5145
      %v5155 = vadd.f32 %v5118, %v5145
      %v5156 = vadd.f32 %v5119, %v5145
      %v5157 = vadd.f32 %v5120, %v5145
      %v5158 = vadd.f32 %v5121, %v5145
      %v5159 = vadd.f32 %v5122, %v5145
      %v5160 = vadd.f32 %v5123, %v5145
      %v5161 = vadd.f32 %v5124, %v5145
      %v5162 = vadd.f32 %v5125, %v5145
      %v5163 = vadd.f32 %v5126, %v5145
      %v5164 = vadd.f32 %v5127, %v5145
      %v5165 = vadd.f32 %v5128, %v5145
      %v5166 = vadd.f32 %v5129, %v5145
      %v5167 = vadd.f32 %v5130, %v5145
      %v5168 = vadd.f32 %v5131, %v5145
      %v5169 = vadd.f32 %v5132, %v5145
      %v5170 = vadd.f32 %v5133, %v5145
      %v5171 = vadd.f32 %v5134, %v5145
      %v5172 = vadd.f32 %v5135, %v5145
      %v5173 = vadd.f32 %v5136, %v5145
      %v5174 = vadd.f32 %v5137, %v5145
      %v5175 = vadd.f32 %v5138, %v5145
      %v5176 = vadd.f32 %v5139, %v5145
      %v5177 = vadd.f32 %v5140, %v5145
      %v5178 = vadd.f32 %v5141, %v5145
      %5211 = vrot.lane.b32.xlu0 %v5147, 120
      %v5212 = vpop.permute.xlu0 %5211
      %5213 = vrot.lane.b32.xlu0 %v5148, 120
      %v5214 = vpop.permute.xlu0 %5213
      %5215 = vrot.lane.b32.xlu0 %v5149, 120
      %v5216 = vpop.permute.xlu0 %5215
      %5217 = vrot.lane.b32.xlu0 %v5150, 120
      %v5218 = vpop.permute.xlu0 %5217
      %5219 = vrot.lane.b32.xlu0 %v5151, 120
      %v5220 = vpop.permute.xlu0 %5219
      %5221 = vrot.lane.b32.xlu0 %v5152, 120
      %v5222 = vpop.permute.xlu0 %5221
      %5223 = vrot.lane.b32.xlu0 %v5153, 120
      %v5224 = vpop.permute.xlu0 %5223
      %5225 = vrot.lane.b32.xlu0 %v5154, 120
      %v5226 = vpop.permute.xlu0 %5225
      %5227 = vrot.lane.b32.xlu0 %v5155, 120
      %v5228 = vpop.permute.xlu0 %5227
      %5229 = vrot.lane.b32.xlu0 %v5156, 120
      %v5230 = vpop.permute.xlu0 %5229
      %5231 = vrot.lane.b32.xlu0 %v5157, 120
      %v5232 = vpop.permute.xlu0 %5231
      %5233 = vrot.lane.b32.xlu0 %v5158, 120
      %v5234 = vpop.permute.xlu0 %5233
      %5235 = vrot.lane.b32.xlu0 %v5159, 120
      %v5236 = vpop.permute.xlu0 %5235
      %5237 = vrot.lane.b32.xlu0 %v5160, 120
      %v5238 = vpop.permute.xlu0 %5237
      %5239 = vrot.lane.b32.xlu0 %v5161, 120
      %v5240 = vpop.permute.xlu0 %5239
      %5241 = vrot.lane.b32.xlu0 %v5162, 120
      %v5242 = vpop.permute.xlu0 %5241
      %5243 = vrot.lane.b32.xlu0 %v5163, 120
      %v5244 = vpop.permute.xlu0 %5243
      %5245 = vrot.lane.b32.xlu0 %v5164, 120
      %v5246 = vpop.permute.xlu0 %5245
      %5247 = vrot.lane.b32.xlu0 %v5165, 120
      %v5248 = vpop.permute.xlu0 %5247
      %5249 = vrot.lane.b32.xlu0 %v5166, 120
      %v5250 = vpop.permute.xlu0 %5249
      %5251 = vrot.lane.b32.xlu0 %v5167, 120
      %v5252 = vpop.permute.xlu0 %5251
      %5253 = vrot.lane.b32.xlu0 %v5168, 120
      %v5254 = vpop.permute.xlu0 %5253
      %5255 = vrot.lane.b32.xlu0 %v5169, 120
      %v5256 = vpop.permute.xlu0 %5255
      %5257 = vrot.lane.b32.xlu0 %v5170, 120
      %v5258 = vpop.permute.xlu0 %5257
      %5259 = vrot.lane.b32.xlu0 %v5171, 120
      %v5260 = vpop.permute.xlu0 %5259
      %5261 = vrot.lane.b32.xlu0 %v5172, 120
      %v5262 = vpop.permute.xlu0 %5261
      %5263 = vrot.lane.b32.xlu0 %v5173, 120
      %v5264 = vpop.permute.xlu0 %5263
      %5265 = vrot.lane.b32.xlu0 %v5174, 120
      %v5266 = vpop.permute.xlu0 %5265
      %5267 = vrot.lane.b32.xlu0 %v5175, 120
      %v5268 = vpop.permute.xlu0 %5267
      %5269 = vrot.lane.b32.xlu0 %v5176, 120
      %v5270 = vpop.permute.xlu0 %5269
      %5271 = vrot.lane.b32.xlu0 %v5177, 120
      %v5272 = vpop.permute.xlu0 %5271
      %5273 = vrot.lane.b32.xlu0 %v5178, 120
      %v5274 = vpop.permute.xlu0 %5273
      %vm5307 = vcmask 31760
      %5308 = vst.msk [vmem:[#allocation2] sm:$0xff] %vm5307, %v5212
      %5309 = vst.msk [vmem:[#allocation2 + $0x8] sm:$0xff] %vm5307, %v5214
      %5310 = vst.msk [vmem:[#allocation2 + $0x10] sm:$0xff] %vm5307, %v5216
      %5311 = vst.msk [vmem:[#allocation2 + $0x18] sm:$0xff] %vm5307, %v5218
      %5312 = vst.msk [vmem:[#allocation2 + $0x20] sm:$0xff] %vm5307, %v5220
      %5313 = vst.msk [vmem:[#allocation2 + $0x28] sm:$0xff] %vm5307, %v5222
      %5314 = vst.msk [vmem:[#allocation2 + $0x30] sm:$0xff] %vm5307, %v5224
      %5315 = vst.msk [vmem:[#allocation2 + $0x38] sm:$0xff] %vm5307, %v5226
      %5316 = vst.msk [vmem:[#allocation2 + $0x40] sm:$0xff] %vm5307, %v5228
      %5317 = vst.msk [vmem:[#allocation2 + $0x48] sm:$0xff] %vm5307, %v5230
      %5318 = vst.msk [vmem:[#allocation2 + $0x50] sm:$0xff] %vm5307, %v5232
      %5319 = vst.msk [vmem:[#allocation2 + $0x58] sm:$0xff] %vm5307, %v5234
      %5320 = vst.msk [vmem:[#allocation2 + $0x60] sm:$0xff] %vm5307, %v5236
      %5321 = vst.msk [vmem:[#allocation2 + $0x68] sm:$0xff] %vm5307, %v5238
      %5322 = vst.msk [vmem:[#allocation2 + $0x70] sm:$0xff] %vm5307, %v5240
      %5323 = vst.msk [vmem:[#allocation2 + $0x78] sm:$0xff] %vm5307, %v5242
      %5324 = vst.msk [vmem:[#allocation2 + $0x80] sm:$0xff] %vm5307, %v5244
      %5325 = vst.msk [vmem:[#allocation2 + $0x88] sm:$0xff] %vm5307, %v5246
      %5326 = vst.msk [vmem:[#allocation2 + $0x90] sm:$0xff] %vm5307, %v5248
      %5327 = vst.msk [vmem:[#allocation2 + $0x98] sm:$0xff] %vm5307, %v5250
      %5328 = vst.msk [vmem:[#allocation2 + $0xa0] sm:$0xff] %vm5307, %v5252
      %5329 = vst.msk [vmem:[#allocation2 + $0xa8] sm:$0xff] %vm5307, %v5254
      %5330 = vst.msk [vmem:[#allocation2 + $0xb0] sm:$0xff] %vm5307, %v5256
      %5331 = vst.msk [vmem:[#allocation2 + $0xb8] sm:$0xff] %vm5307, %v5258
      %5332 = vst.msk [vmem:[#allocation2 + $0xc0] sm:$0xff] %vm5307, %v5260
      %5333 = vst.msk [vmem:[#allocation2 + $0xc8] sm:$0xff] %vm5307, %v5262
      %5334 = vst.msk [vmem:[#allocation2 + $0xd0] sm:$0xff] %vm5307, %v5264
      %5335 = vst.msk [vmem:[#allocation2 + $0xd8] sm:$0xff] %vm5307, %v5266
      %5336 = vst.msk [vmem:[#allocation2 + $0xe0] sm:$0xff] %vm5307, %v5268
      %5337 = vst.msk [vmem:[#allocation2 + $0xe8] sm:$0xff] %vm5307, %v5270
      %5338 = vst.msk [vmem:[#allocation2 + $0xf0] sm:$0xff] %vm5307, %v5272
      %5339 = vst.msk [vmem:[#allocation2 + $0xf8] sm:$0xff] %vm5307, %v5274
      %v5340 = vrot.slane %v5149, 1
      %v5341 = vrot.slane %v5147, 1
      %v5342 = vrot.slane %v5151, 1
      %v5343 = vrot.slane %v5153, 1
      %v5344 = vrot.slane %v5155, 1
      %v5345 = vrot.slane %v5157, 1
      %v5346 = vrot.slane %v5159, 1
      %v5347 = vrot.slane %v5161, 1
      %v5348 = vrot.slane %v5163, 1
      %v5349 = vrot.slane %v5165, 1
      %v5350 = vrot.slane %v5167, 1
      %v5351 = vrot.slane %v5169, 1
      %v5352 = vrot.slane %v5171, 1
      %v5353 = vrot.slane %v5173, 1
      %v5354 = vrot.slane %v5175, 1
      %v5355 = vrot.slane %v5177, 1
      %v5372 = vrot.slane %v5149, 7
      %v5373 = vrot.slane %v5150, 7
      %v5374 = vsel %vm1254, %v5372, %v5373
      %v5375 = vrot.slane %v5147, 7
      %v5376 = vrot.slane %v5148, 7
      %v5377 = vsel %vm1254, %v5375, %v5376
      %v5378 = vrot.slane %v5151, 7
      %v5379 = vrot.slane %v5152, 7
      %v5380 = vsel %vm1254, %v5378, %v5379
      %v5381 = vrot.slane %v5153, 7
      %v5382 = vrot.slane %v5154, 7
      %v5383 = vsel %vm1254, %v5381, %v5382
      %v5384 = vrot.slane %v5155, 7
      %v5385 = vrot.slane %v5156, 7
      %v5386 = vsel %vm1254, %v5384, %v5385
      %v5387 = vrot.slane %v5157, 7
      %v5388 = vrot.slane %v5158, 7
      %v5389 = vsel %vm1254, %v5387, %v5388
      %v5390 = vrot.slane %v5159, 7
      %v5391 = vrot.slane %v5160, 7
      %v5392 = vsel %vm1254, %v5390, %v5391
      %v5393 = vrot.slane %v5161, 7
      %v5394 = vrot.slane %v5162, 7
      %v5395 = vsel %vm1254, %v5393, %v5394
      %v5396 = vrot.slane %v5163, 7
      %v5397 = vrot.slane %v5164, 7
      %v5398 = vsel %vm1254, %v5396, %v5397
      %v5399 = vrot.slane %v5165, 7
      %v5400 = vrot.slane %v5166, 7
      %v5401 = vsel %vm1254, %v5399, %v5400
      %v5402 = vrot.slane %v5167, 7
      %v5403 = vrot.slane %v5168, 7
      %v5404 = vsel %vm1254, %v5402, %v5403
      %v5405 = vrot.slane %v5169, 7
      %v5406 = vrot.slane %v5170, 7
      %v5407 = vsel %vm1254, %v5405, %v5406
      %v5408 = vrot.slane %v5171, 7
      %v5409 = vrot.slane %v5172, 7
      %v5410 = vsel %vm1254, %v5408, %v5409
      %v5411 = vrot.slane %v5173, 7
      %v5412 = vrot.slane %v5174, 7
      %v5413 = vsel %vm1254, %v5411, %v5412
      %v5414 = vrot.slane %v5175, 7
      %v5415 = vrot.slane %v5176, 7
      %v5416 = vsel %vm1254, %v5414, %v5415
      %v5417 = vrot.slane %v5177, 7
      %v5418 = vrot.slane %v5178, 7
      %v5419 = vsel %vm1254, %v5417, %v5418
      %v5468 = vrot.slane %v5150, 5
      %v5469 = vrot.slane %v5148, 5
      %v5470 = vrot.slane %v5152, 5
      %v5471 = vrot.slane %v5154, 5
      %v5472 = vrot.slane %v5156, 5
      %v5473 = vrot.slane %v5158, 5
      %v5474 = vrot.slane %v5160, 5
      %v5475 = vrot.slane %v5162, 5
      %v5476 = vrot.slane %v5164, 5
      %v5477 = vrot.slane %v5166, 5
      %v5478 = vrot.slane %v5168, 5
      %v5479 = vrot.slane %v5170, 5
      %v5480 = vrot.slane %v5172, 5
      %v5481 = vrot.slane %v5174, 5
      %v5482 = vrot.slane %v5176, 5
      %v5483 = vrot.slane %v5178, 5
      %v5500 = vsel %vm1254, %v5340, %v5372
      %v5501 = vsel %vm1254, %v5341, %v5375
      %v5502 = vsel %vm1254, %v5342, %v5378
      %v5503 = vsel %vm1254, %v5343, %v5381
      %v5504 = vsel %vm1254, %v5344, %v5384
      %v5505 = vsel %vm1254, %v5345, %v5387
      %v5506 = vsel %vm1254, %v5346, %v5390
      %v5507 = vsel %vm1254, %v5347, %v5393
      %v5508 = vsel %vm1254, %v5348, %v5396
      %v5509 = vsel %vm1254, %v5349, %v5399
      %v5510 = vsel %vm1254, %v5350, %v5402
      %v5511 = vsel %vm1254, %v5351, %v5405
      %v5512 = vsel %vm1254, %v5352, %v5408
      %v5513 = vsel %vm1254, %v5353, %v5411
      %v5514 = vsel %vm1254, %v5354, %v5414
      %v5515 = vsel %vm1254, %v5355, %v5417
      %v5516 = vsel %vm1254, %v5373, %v5468
      %v5517 = vsel %vm1254, %v5376, %v5469
      %v5518 = vsel %vm1254, %v5379, %v5470
      %v5519 = vsel %vm1254, %v5382, %v5471
      %v5520 = vsel %vm1254, %v5385, %v5472
      %v5521 = vsel %vm1254, %v5388, %v5473
      %v5522 = vsel %vm1254, %v5391, %v5474
      %v5523 = vsel %vm1254, %v5394, %v5475
      %v5524 = vsel %vm1254, %v5397, %v5476
      %v5525 = vsel %vm1254, %v5400, %v5477
      %v5526 = vsel %vm1254, %v5403, %v5478
      %v5527 = vsel %vm1254, %v5406, %v5479
      %v5528 = vsel %vm1254, %v5409, %v5480
      %v5529 = vsel %vm1254, %v5412, %v5481
      %v5530 = vsel %vm1254, %v5415, %v5482
      %v5531 = vsel %vm1254, %v5418, %v5483
      %v5532 = vperm.slane %v3003, 2
      %5534 = vrot.lane.b32.xlu0 %v5532, 10
      %v5535 = vpop.permute.xlu0 %5534
      %v5537 = vmul.f32 %v5500, %v5535
      %v5538 = vmul.f32 %v5374, %v5535
      %v5539 = vmul.f32 %v5501, %v5535
      %v5540 = vmul.f32 %v5377, %v5535
      %v5541 = vmul.f32 %v5502, %v5535
      %v5542 = vmul.f32 %v5380, %v5535
      %v5543 = vmul.f32 %v5503, %v5535
      %v5544 = vmul.f32 %v5383, %v5535
      %v5545 = vmul.f32 %v5504, %v5535
      %v5546 = vmul.f32 %v5386, %v5535
      %v5547 = vmul.f32 %v5505, %v5535
      %v5548 = vmul.f32 %v5389, %v5535
      %v5549 = vmul.f32 %v5506, %v5535
      %v5550 = vmul.f32 %v5392, %v5535
      %v5551 = vmul.f32 %v5507, %v5535
      %v5552 = vmul.f32 %v5395, %v5535
      %v5553 = vmul.f32 %v5508, %v5535
      %v5554 = vmul.f32 %v5398, %v5535
      %v5555 = vmul.f32 %v5509, %v5535
      %v5556 = vmul.f32 %v5401, %v5535
      %v5557 = vmul.f32 %v5510, %v5535
      %v5558 = vmul.f32 %v5404, %v5535
      %v5559 = vmul.f32 %v5511, %v5535
      %v5560 = vmul.f32 %v5407, %v5535
      %v5561 = vmul.f32 %v5512, %v5535
      %v5562 = vmul.f32 %v5410, %v5535
      %v5563 = vmul.f32 %v5513, %v5535
      %v5564 = vmul.f32 %v5413, %v5535
      %v5565 = vmul.f32 %v5514, %v5535
      %v5566 = vmul.f32 %v5416, %v5535
      %v5567 = vperm.slane %v3003, 3
      %5569 = vrot.lane.b32.xlu0 %v5567, 10
      %v5570 = vpop.permute.xlu0 %5569
      %v5572 = vmul.f32 %v5500, %v5570
      %v5573 = vmul.f32 %v5374, %v5570
      %v5574 = vmul.f32 %v5516, %v5570
      %v5575 = vmul.f32 %v5501, %v5570
      %v5576 = vmul.f32 %v5377, %v5570
      %v5577 = vmul.f32 %v5517, %v5570
      %v5578 = vmul.f32 %v5502, %v5570
      %v5579 = vmul.f32 %v5380, %v5570
      %v5580 = vmul.f32 %v5518, %v5570
      %v5581 = vmul.f32 %v5503, %v5570
      %v5582 = vmul.f32 %v5383, %v5570
      %v5583 = vmul.f32 %v5519, %v5570
      %v5584 = vmul.f32 %v5504, %v5570
      %v5585 = vmul.f32 %v5386, %v5570
      %v5586 = vmul.f32 %v5520, %v5570
      %v5587 = vmul.f32 %v5505, %v5570
      %v5588 = vmul.f32 %v5389, %v5570
      %v5589 = vmul.f32 %v5521, %v5570
      %v5590 = vmul.f32 %v5506, %v5570
      %v5591 = vmul.f32 %v5392, %v5570
      %v5592 = vmul.f32 %v5522, %v5570
      %v5593 = vmul.f32 %v5507, %v5570
      %v5594 = vmul.f32 %v5395, %v5570
      %v5595 = vmul.f32 %v5523, %v5570
      %v5596 = vmul.f32 %v5508, %v5570
      %v5597 = vmul.f32 %v5398, %v5570
      %v5598 = vmul.f32 %v5524, %v5570
      %v5599 = vmul.f32 %v5509, %v5570
      %v5600 = vmul.f32 %v5401, %v5570
      %v5601 = vmul.f32 %v5525, %v5570
      %v5602 = vmul.f32 %v5510, %v5570
      %v5603 = vmul.f32 %v5404, %v5570
      %v5604 = vmul.f32 %v5526, %v5570
      %v5605 = vmul.f32 %v5511, %v5570
      %v5606 = vmul.f32 %v5407, %v5570
      %v5607 = vmul.f32 %v5527, %v5570
      %v5608 = vmul.f32 %v5512, %v5570
      %v5609 = vmul.f32 %v5410, %v5570
      %v5610 = vmul.f32 %v5528, %v5570
      %v5611 = vmul.f32 %v5513, %v5570
      %v5612 = vmul.f32 %v5413, %v5570
      %v5613 = vmul.f32 %v5529, %v5570
      %v5614 = vmul.f32 %v5514, %v5570
      %v5615 = vmul.f32 %v5416, %v5570
      %v5616 = vmul.f32 %v5530, %v5570
      %v5662 = vrot.slane %v5572, 1
      %v5663 = vrot.slane %v5573, 1
      %v5664 = vsel %vm1545, %v5662, %v5663
      %v5665 = vrot.slane %v5574, 1
      %v5666 = vsel %vm1545, %v5663, %v5665
      %v5667 = vrot.slane %v5575, 1
      %v5668 = vrot.slane %v5576, 1
      %v5669 = vsel %vm1545, %v5667, %v5668
      %v5670 = vrot.slane %v5577, 1
      %v5671 = vsel %vm1545, %v5668, %v5670
      %v5672 = vrot.slane %v5578, 1
      %v5673 = vrot.slane %v5579, 1
      %v5674 = vsel %vm1545, %v5672, %v5673
      %v5675 = vrot.slane %v5580, 1
      %v5676 = vsel %vm1545, %v5673, %v5675
      %v5677 = vrot.slane %v5581, 1
      %v5678 = vrot.slane %v5582, 1
      %v5679 = vsel %vm1545, %v5677, %v5678
      %v5680 = vrot.slane %v5583, 1
      %v5681 = vsel %vm1545, %v5678, %v5680
      %v5682 = vrot.slane %v5584, 1
      %v5683 = vrot.slane %v5585, 1
      %v5684 = vsel %vm1545, %v5682, %v5683
      %v5685 = vrot.slane %v5586, 1
      %v5686 = vsel %vm1545, %v5683, %v5685
      %v5687 = vrot.slane %v5587, 1
      %v5688 = vrot.slane %v5588, 1
      %v5689 = vsel %vm1545, %v5687, %v5688
      %v5690 = vrot.slane %v5589, 1
      %v5691 = vsel %vm1545, %v5688, %v5690
      %v5692 = vrot.slane %v5590, 1
      %v5693 = vrot.slane %v5591, 1
      %v5694 = vsel %vm1545, %v5692, %v5693
      %v5695 = vrot.slane %v5592, 1
      %v5696 = vsel %vm1545, %v5693, %v5695
      %v5697 = vrot.slane %v5593, 1
      %v5698 = vrot.slane %v5594, 1
      %v5699 = vsel %vm1545, %v5697, %v5698
      %v5700 = vrot.slane %v5595, 1
      %v5701 = vsel %vm1545, %v5698, %v5700
      %v5702 = vrot.slane %v5596, 1
      %v5703 = vrot.slane %v5597, 1
      %v5704 = vsel %vm1545, %v5702, %v5703
      %v5705 = vrot.slane %v5598, 1
      %v5706 = vsel %vm1545, %v5703, %v5705
      %v5707 = vrot.slane %v5599, 1
      %v5708 = vrot.slane %v5600, 1
      %v5709 = vsel %vm1545, %v5707, %v5708
      %v5710 = vrot.slane %v5601, 1
      %v5711 = vsel %vm1545, %v5708, %v5710
      %v5712 = vrot.slane %v5602, 1
      %v5713 = vrot.slane %v5603, 1
      %v5714 = vsel %vm1545, %v5712, %v5713
      %v5715 = vrot.slane %v5604, 1
      %v5716 = vsel %vm1545, %v5713, %v5715
      %v5717 = vrot.slane %v5605, 1
      %v5718 = vrot.slane %v5606, 1
      %v5719 = vsel %vm1545, %v5717, %v5718
      %v5720 = vrot.slane %v5607, 1
      %v5721 = vsel %vm1545, %v5718, %v5720
      %v5722 = vrot.slane %v5608, 1
      %v5723 = vrot.slane %v5609, 1
      %v5724 = vsel %vm1545, %v5722, %v5723
      %v5725 = vrot.slane %v5610, 1
      %v5726 = vsel %vm1545, %v5723, %v5725
      %v5727 = vrot.slane %v5611, 1
      %v5728 = vrot.slane %v5612, 1
      %v5729 = vsel %vm1545, %v5727, %v5728
      %v5730 = vrot.slane %v5613, 1
      %v5731 = vsel %vm1545, %v5728, %v5730
      %v5732 = vrot.slane %v5614, 1
      %v5733 = vrot.slane %v5615, 1
      %v5734 = vsel %vm1545, %v5732, %v5733
      %v5735 = vrot.slane %v5616, 1
      %v5736 = vsel %vm1545, %v5733, %v5735
      %v5767 = vadd.f32 %v5537, %v5664
      %v5768 = vadd.f32 %v5538, %v5666
      %v5769 = vadd.f32 %v5539, %v5669
      %v5770 = vadd.f32 %v5540, %v5671
      %v5771 = vadd.f32 %v5541, %v5674
      %v5772 = vadd.f32 %v5542, %v5676
      %v5773 = vadd.f32 %v5543, %v5679
      %v5774 = vadd.f32 %v5544, %v5681
      %v5775 = vadd.f32 %v5545, %v5684
      %v5776 = vadd.f32 %v5546, %v5686
      %v5777 = vadd.f32 %v5547, %v5689
      %v5778 = vadd.f32 %v5548, %v5691
      %v5779 = vadd.f32 %v5549, %v5694
      %v5780 = vadd.f32 %v5550, %v5696
      %v5781 = vadd.f32 %v5551, %v5699
      %v5782 = vadd.f32 %v5552, %v5701
      %v5783 = vadd.f32 %v5553, %v5704
      %v5784 = vadd.f32 %v5554, %v5706
      %v5785 = vadd.f32 %v5555, %v5709
      %v5786 = vadd.f32 %v5556, %v5711
      %v5787 = vadd.f32 %v5557, %v5714
      %v5788 = vadd.f32 %v5558, %v5716
      %v5789 = vadd.f32 %v5559, %v5719
      %v5790 = vadd.f32 %v5560, %v5721
      %v5791 = vadd.f32 %v5561, %v5724
      %v5792 = vadd.f32 %v5562, %v5726
      %v5793 = vadd.f32 %v5563, %v5729
      %v5794 = vadd.f32 %v5564, %v5731
      %v5795 = vadd.f32 %v5565, %v5734
      %v5796 = vadd.f32 %v5566, %v5736
      %v5797 = vperm.slane %v3003, 4
      %5799 = vrot.lane.b32.xlu0 %v5797, 10
      %v5800 = vpop.permute.xlu0 %5799
      %v5802 = vmul.f32 %v5500, %v5800
      %v5803 = vmul.f32 %v5374, %v5800
      %v5804 = vmul.f32 %v5516, %v5800
      %v5805 = vmul.f32 %v5501, %v5800
      %v5806 = vmul.f32 %v5377, %v5800
      %v5807 = vmul.f32 %v5517, %v5800
      %v5808 = vmul.f32 %v5502, %v5800
      %v5809 = vmul.f32 %v5380, %v5800
      %v5810 = vmul.f32 %v5518, %v5800
      %v5811 = vmul.f32 %v5503, %v5800
      %v5812 = vmul.f32 %v5383, %v5800
      %v5813 = vmul.f32 %v5519, %v5800
      %v5814 = vmul.f32 %v5504, %v5800
      %v5815 = vmul.f32 %v5386, %v5800
      %v5816 = vmul.f32 %v5520, %v5800
      %v5817 = vmul.f32 %v5505, %v5800
      %v5818 = vmul.f32 %v5389, %v5800
      %v5819 = vmul.f32 %v5521, %v5800
      %v5820 = vmul.f32 %v5506, %v5800
      %v5821 = vmul.f32 %v5392, %v5800
      %v5822 = vmul.f32 %v5522, %v5800
      %v5823 = vmul.f32 %v5507, %v5800
      %v5824 = vmul.f32 %v5395, %v5800
      %v5825 = vmul.f32 %v5523, %v5800
      %v5826 = vmul.f32 %v5508, %v5800
      %v5827 = vmul.f32 %v5398, %v5800
      %v5828 = vmul.f32 %v5524, %v5800
      %v5829 = vmul.f32 %v5509, %v5800
      %v5830 = vmul.f32 %v5401, %v5800
      %v5831 = vmul.f32 %v5525, %v5800
      %v5832 = vmul.f32 %v5510, %v5800
      %v5833 = vmul.f32 %v5404, %v5800
      %v5834 = vmul.f32 %v5526, %v5800
      %v5835 = vmul.f32 %v5511, %v5800
      %v5836 = vmul.f32 %v5407, %v5800
      %v5837 = vmul.f32 %v5527, %v5800
      %v5838 = vmul.f32 %v5512, %v5800
      %v5839 = vmul.f32 %v5410, %v5800
      %v5840 = vmul.f32 %v5528, %v5800
      %v5841 = vmul.f32 %v5513, %v5800
      %v5842 = vmul.f32 %v5413, %v5800
      %v5843 = vmul.f32 %v5529, %v5800
      %v5844 = vmul.f32 %v5514, %v5800
      %v5845 = vmul.f32 %v5416, %v5800
      %v5846 = vmul.f32 %v5530, %v5800
      %v5892 = vrot.slane %v5802, 2
      %v5893 = vrot.slane %v5803, 2
      %v5894 = vsel %vm1776, %v5892, %v5893
      %v5895 = vrot.slane %v5804, 2
      %v5896 = vsel %vm1776, %v5893, %v5895
      %v5897 = vrot.slane %v5805, 2
      %v5898 = vrot.slane %v5806, 2
      %v5899 = vsel %vm1776, %v5897, %v5898
      %v5900 = vrot.slane %v5807, 2
      %v5901 = vsel %vm1776, %v5898, %v5900
      %v5902 = vrot.slane %v5808, 2
      %v5903 = vrot.slane %v5809, 2
      %v5904 = vsel %vm1776, %v5902, %v5903
      %v5905 = vrot.slane %v5810, 2
      %v5906 = vsel %vm1776, %v5903, %v5905
      %v5907 = vrot.slane %v5811, 2
      %v5908 = vrot.slane %v5812, 2
      %v5909 = vsel %vm1776, %v5907, %v5908
      %v5910 = vrot.slane %v5813, 2
      %v5911 = vsel %vm1776, %v5908, %v5910
      %v5912 = vrot.slane %v5814, 2
      %v5913 = vrot.slane %v5815, 2
      %v5914 = vsel %vm1776, %v5912, %v5913
      %v5915 = vrot.slane %v5816, 2
      %v5916 = vsel %vm1776, %v5913, %v5915
      %v5917 = vrot.slane %v5817, 2
      %v5918 = vrot.slane %v5818, 2
      %v5919 = vsel %vm1776, %v5917, %v5918
      %v5920 = vrot.slane %v5819, 2
      %v5921 = vsel %vm1776, %v5918, %v5920
      %v5922 = vrot.slane %v5820, 2
      %v5923 = vrot.slane %v5821, 2
      %v5924 = vsel %vm1776, %v5922, %v5923
      %v5925 = vrot.slane %v5822, 2
      %v5926 = vsel %vm1776, %v5923, %v5925
      %v5927 = vrot.slane %v5823, 2
      %v5928 = vrot.slane %v5824, 2
      %v5929 = vsel %vm1776, %v5927, %v5928
      %v5930 = vrot.slane %v5825, 2
      %v5931 = vsel %vm1776, %v5928, %v5930
      %v5932 = vrot.slane %v5826, 2
      %v5933 = vrot.slane %v5827, 2
      %v5934 = vsel %vm1776, %v5932, %v5933
      %v5935 = vrot.slane %v5828, 2
      %v5936 = vsel %vm1776, %v5933, %v5935
      %v5937 = vrot.slane %v5829, 2
      %v5938 = vrot.slane %v5830, 2
      %v5939 = vsel %vm1776, %v5937, %v5938
      %v5940 = vrot.slane %v5831, 2
      %v5941 = vsel %vm1776, %v5938, %v5940
      %v5942 = vrot.slane %v5832, 2
      %v5943 = vrot.slane %v5833, 2
      %v5944 = vsel %vm1776, %v5942, %v5943
      %v5945 = vrot.slane %v5834, 2
      %v5946 = vsel %vm1776, %v5943, %v5945
      %v5947 = vrot.slane %v5835, 2
      %v5948 = vrot.slane %v5836, 2
      %v5949 = vsel %vm1776, %v5947, %v5948
      %v5950 = vrot.slane %v5837, 2
      %v5951 = vsel %vm1776, %v5948, %v5950
      %v5952 = vrot.slane %v5838, 2
      %v5953 = vrot.slane %v5839, 2
      %v5954 = vsel %vm1776, %v5952, %v5953
      %v5955 = vrot.slane %v5840, 2
      %v5956 = vsel %vm1776, %v5953, %v5955
      %v5957 = vrot.slane %v5841, 2
      %v5958 = vrot.slane %v5842, 2
      %v5959 = vsel %vm1776, %v5957, %v5958
      %v5960 = vrot.slane %v5843, 2
      %v5961 = vsel %vm1776, %v5958, %v5960
      %v5962 = vrot.slane %v5844, 2
      %v5963 = vrot.slane %v5845, 2
      %v5964 = vsel %vm1776, %v5962, %v5963
      %v5965 = vrot.slane %v5846, 2
      %v5966 = vsel %vm1776, %v5963, %v5965
      %v5997 = vadd.f32 %v5767, %v5894
      %v5998 = vadd.f32 %v5768, %v5896
      %v5999 = vadd.f32 %v5769, %v5899
      %v6000 = vadd.f32 %v5770, %v5901
      %v6001 = vadd.f32 %v5771, %v5904
      %v6002 = vadd.f32 %v5772, %v5906
      %v6003 = vadd.f32 %v5773, %v5909
      %v6004 = vadd.f32 %v5774, %v5911
      %v6005 = vadd.f32 %v5775, %v5914
      %v6006 = vadd.f32 %v5776, %v5916
      %v6007 = vadd.f32 %v5777, %v5919
      %v6008 = vadd.f32 %v5778, %v5921
      %v6009 = vadd.f32 %v5779, %v5924
      %v6010 = vadd.f32 %v5780, %v5926
      %v6011 = vadd.f32 %v5781, %v5929
      %v6012 = vadd.f32 %v5782, %v5931
      %v6013 = vadd.f32 %v5783, %v5934
      %v6014 = vadd.f32 %v5784, %v5936
      %v6015 = vadd.f32 %v5785, %v5939
      %v6016 = vadd.f32 %v5786, %v5941
      %v6017 = vadd.f32 %v5787, %v5944
      %v6018 = vadd.f32 %v5788, %v5946
      %v6019 = vadd.f32 %v5789, %v5949
      %v6020 = vadd.f32 %v5790, %v5951
      %v6021 = vadd.f32 %v5791, %v5954
      %v6022 = vadd.f32 %v5792, %v5956
      %v6023 = vadd.f32 %v5793, %v5959
      %v6024 = vadd.f32 %v5794, %v5961
      %v6025 = vadd.f32 %v5795, %v5964
      %v6026 = vadd.f32 %v5796, %v5966
      %v6027 = vperm.slane %v3003, 5
      %6029 = vrot.lane.b32.xlu0 %v6027, 10
      %v6030 = vpop.permute.xlu0 %6029
      %v6032 = vmul.f32 %v5501, %v6030
      %v6033 = vmul.f32 %v5377, %v6030
      %v6034 = vmul.f32 %v5500, %v6030
      %v6035 = vmul.f32 %v5374, %v6030
      %v6036 = vmul.f32 %v5502, %v6030
      %v6037 = vmul.f32 %v5380, %v6030
      %v6038 = vmul.f32 %v5503, %v6030
      %v6039 = vmul.f32 %v5383, %v6030
      %v6040 = vmul.f32 %v5504, %v6030
      %v6041 = vmul.f32 %v5386, %v6030
      %v6042 = vmul.f32 %v5505, %v6030
      %v6043 = vmul.f32 %v5389, %v6030
      %v6044 = vmul.f32 %v5506, %v6030
      %v6045 = vmul.f32 %v5392, %v6030
      %v6046 = vmul.f32 %v5507, %v6030
      %v6047 = vmul.f32 %v5395, %v6030
      %v6048 = vmul.f32 %v5508, %v6030
      %v6049 = vmul.f32 %v5398, %v6030
      %v6050 = vmul.f32 %v5509, %v6030
      %v6051 = vmul.f32 %v5401, %v6030
      %v6052 = vmul.f32 %v5510, %v6030
      %v6053 = vmul.f32 %v5404, %v6030
      %v6054 = vmul.f32 %v5511, %v6030
      %v6055 = vmul.f32 %v5407, %v6030
      %v6056 = vmul.f32 %v5512, %v6030
      %v6057 = vmul.f32 %v5410, %v6030
      %v6058 = vmul.f32 %v5513, %v6030
      %v6059 = vmul.f32 %v5413, %v6030
      %v6060 = vmul.f32 %v5514, %v6030
      %v6061 = vmul.f32 %v5416, %v6030
      %v6062 = vmul.f32 %v5515, %v6030
      %v6063 = vmul.f32 %v5419, %v6030
      %v6064 = vadd.f32 %v5997, %v6032
      %v6065 = vadd.f32 %v5998, %v6033
      %v6066 = vadd.f32 %v5999, %v6034
      %v6067 = vadd.f32 %v6000, %v6035
      %v6068 = vadd.f32 %v5997, %v6036
      %v6069 = vadd.f32 %v5998, %v6037
      %v6070 = vadd.f32 %v6001, %v6038
      %v6071 = vadd.f32 %v6002, %v6039
      %v6072 = vadd.f32 %v6003, %v6040
      %v6073 = vadd.f32 %v6004, %v6041
      %v6074 = vadd.f32 %v6005, %v6042
      %v6075 = vadd.f32 %v6006, %v6043
      %v6076 = vadd.f32 %v6007, %v6044
      %v6077 = vadd.f32 %v6008, %v6045
      %v6078 = vadd.f32 %v6009, %v6046
      %v6079 = vadd.f32 %v6010, %v6047
      %v6080 = vadd.f32 %v6011, %v6048
      %v6081 = vadd.f32 %v6012, %v6049
      %v6082 = vadd.f32 %v6013, %v6050
      %v6083 = vadd.f32 %v6014, %v6051
      %v6084 = vadd.f32 %v6015, %v6052
      %v6085 = vadd.f32 %v6016, %v6053
      %v6086 = vadd.f32 %v6017, %v6054
      %v6087 = vadd.f32 %v6018, %v6055
      %v6088 = vadd.f32 %v6019, %v6056
      %v6089 = vadd.f32 %v6020, %v6057
      %v6090 = vadd.f32 %v6021, %v6058
      %v6091 = vadd.f32 %v6022, %v6059
      %v6092 = vadd.f32 %v6023, %v6060
      %v6093 = vadd.f32 %v6024, %v6061
      %v6094 = vadd.f32 %v6025, %v6062
      %v6095 = vadd.f32 %v6026, %v6063
      %v6096 = vperm.slane %v3003, 6
      %6098 = vrot.lane.b32.xlu0 %v6096, 10
      %v6099 = vpop.permute.xlu0 %6098
      %v6101 = vmul.f32 %v5501, %v6099
      %v6102 = vmul.f32 %v5377, %v6099
      %v6103 = vmul.f32 %v5517, %v6099
      %v6104 = vmul.f32 %v5500, %v6099
      %v6105 = vmul.f32 %v5374, %v6099
      %v6106 = vmul.f32 %v5516, %v6099
      %v6107 = vmul.f32 %v5502, %v6099
      %v6108 = vmul.f32 %v5380, %v6099
      %v6109 = vmul.f32 %v5518, %v6099
      %v6110 = vmul.f32 %v5503, %v6099
      %v6111 = vmul.f32 %v5383, %v6099
      %v6112 = vmul.f32 %v5519, %v6099
      %v6113 = vmul.f32 %v5504, %v6099
      %v6114 = vmul.f32 %v5386, %v6099
      %v6115 = vmul.f32 %v5520, %v6099
      %v6116 = vmul.f32 %v5505, %v6099
      %v6117 = vmul.f32 %v5389, %v6099
      %v6118 = vmul.f32 %v5521, %v6099
      %v6119 = vmul.f32 %v5506, %v6099
      %v6120 = vmul.f32 %v5392, %v6099
      %v6121 = vmul.f32 %v5522, %v6099
      %v6122 = vmul.f32 %v5507, %v6099
      %v6123 = vmul.f32 %v5395, %v6099
      %v6124 = vmul.f32 %v5523, %v6099
      %v6125 = vmul.f32 %v5508, %v6099
      %v6126 = vmul.f32 %v5398, %v6099
      %v6127 = vmul.f32 %v5524, %v6099
      %v6128 = vmul.f32 %v5509, %v6099
      %v6129 = vmul.f32 %v5401, %v6099
      %v6130 = vmul.f32 %v5525, %v6099
      %v6131 = vmul.f32 %v5510, %v6099
      %v6132 = vmul.f32 %v5404, %v6099
      %v6133 = vmul.f32 %v5526, %v6099
      %v6134 = vmul.f32 %v5511, %v6099
      %v6135 = vmul.f32 %v5407, %v6099
      %v6136 = vmul.f32 %v5527, %v6099
      %v6137 = vmul.f32 %v5512, %v6099
      %v6138 = vmul.f32 %v5410, %v6099
      %v6139 = vmul.f32 %v5528, %v6099
      %v6140 = vmul.f32 %v5513, %v6099
      %v6141 = vmul.f32 %v5413, %v6099
      %v6142 = vmul.f32 %v5529, %v6099
      %v6143 = vmul.f32 %v5514, %v6099
      %v6144 = vmul.f32 %v5416, %v6099
      %v6145 = vmul.f32 %v5530, %v6099
      %v6146 = vmul.f32 %v5515, %v6099
      %v6147 = vmul.f32 %v5419, %v6099
      %v6148 = vmul.f32 %v5531, %v6099
      %v6197 = vrot.slane %v6101, 1
      %v6198 = vrot.slane %v6102, 1
      %v6199 = vsel %vm1545, %v6197, %v6198
      %v6200 = vrot.slane %v6103, 1
      %v6201 = vsel %vm1545, %v6198, %v6200
      %v6202 = vrot.slane %v6104, 1
      %v6203 = vrot.slane %v6105, 1
      %v6204 = vsel %vm1545, %v6202, %v6203
      %v6205 = vrot.slane %v6106, 1
      %v6206 = vsel %vm1545, %v6203, %v6205
      %v6207 = vrot.slane %v6107, 1
      %v6208 = vrot.slane %v6108, 1
      %v6209 = vsel %vm1545, %v6207, %v6208
      %v6210 = vrot.slane %v6109, 1
      %v6211 = vsel %vm1545, %v6208, %v6210
      %v6212 = vrot.slane %v6110, 1
      %v6213 = vrot.slane %v6111, 1
      %v6214 = vsel %vm1545, %v6212, %v6213
      %v6215 = vrot.slane %v6112, 1
      %v6216 = vsel %vm1545, %v6213, %v6215
      %v6217 = vrot.slane %v6113, 1
      %v6218 = vrot.slane %v6114, 1
      %v6219 = vsel %vm1545, %v6217, %v6218
      %v6220 = vrot.slane %v6115, 1
      %v6221 = vsel %vm1545, %v6218, %v6220
      %v6222 = vrot.slane %v6116, 1
      %v6223 = vrot.slane %v6117, 1
      %v6224 = vsel %vm1545, %v6222, %v6223
      %v6225 = vrot.slane %v6118, 1
      %v6226 = vsel %vm1545, %v6223, %v6225
      %v6227 = vrot.slane %v6119, 1
      %v6228 = vrot.slane %v6120, 1
      %v6229 = vsel %vm1545, %v6227, %v6228
      %v6230 = vrot.slane %v6121, 1
      %v6231 = vsel %vm1545, %v6228, %v6230
      %v6232 = vrot.slane %v6122, 1
      %v6233 = vrot.slane %v6123, 1
      %v6234 = vsel %vm1545, %v6232, %v6233
      %v6235 = vrot.slane %v6124, 1
      %v6236 = vsel %vm1545, %v6233, %v6235
      %v6237 = vrot.slane %v6125, 1
      %v6238 = vrot.slane %v6126, 1
      %v6239 = vsel %vm1545, %v6237, %v6238
      %v6240 = vrot.slane %v6127, 1
      %v6241 = vsel %vm1545, %v6238, %v6240
      %v6242 = vrot.slane %v6128, 1
      %v6243 = vrot.slane %v6129, 1
      %v6244 = vsel %vm1545, %v6242, %v6243
      %v6245 = vrot.slane %v6130, 1
      %v6246 = vsel %vm1545, %v6243, %v6245
      %v6247 = vrot.slane %v6131, 1
      %v6248 = vrot.slane %v6132, 1
      %v6249 = vsel %vm1545, %v6247, %v6248
      %v6250 = vrot.slane %v6133, 1
      %v6251 = vsel %vm1545, %v6248, %v6250
      %v6252 = vrot.slane %v6134, 1
      %v6253 = vrot.slane %v6135, 1
      %v6254 = vsel %vm1545, %v6252, %v6253
      %v6255 = vrot.slane %v6136, 1
      %v6256 = vsel %vm1545, %v6253, %v6255
      %v6257 = vrot.slane %v6137, 1
      %v6258 = vrot.slane %v6138, 1
      %v6259 = vsel %vm1545, %v6257, %v6258
      %v6260 = vrot.slane %v6139, 1
      %v6261 = vsel %vm1545, %v6258, %v6260
      %v6262 = vrot.slane %v6140, 1
      %v6263 = vrot.slane %v6141, 1
      %v6264 = vsel %vm1545, %v6262, %v6263
      %v6265 = vrot.slane %v6142, 1
      %v6266 = vsel %vm1545, %v6263, %v6265
      %v6267 = vrot.slane %v6143, 1
      %v6268 = vrot.slane %v6144, 1
      %v6269 = vsel %vm1545, %v6267, %v6268
      %v6270 = vrot.slane %v6145, 1
      %v6271 = vsel %vm1545, %v6268, %v6270
      %v6272 = vrot.slane %v6146, 1
      %v6273 = vrot.slane %v6147, 1
      %v6274 = vsel %vm1545, %v6272, %v6273
      %v6275 = vrot.slane %v6148, 1
      %v6276 = vsel %vm1545, %v6273, %v6275
      %v6309 = vadd.f32 %v6064, %v6199
      %v6310 = vadd.f32 %v6065, %v6201
      %v6311 = vadd.f32 %v6066, %v6204
      %v6312 = vadd.f32 %v6067, %v6206
      %v6313 = vadd.f32 %v6068, %v6209
      %v6314 = vadd.f32 %v6069, %v6211
      %v6315 = vadd.f32 %v6070, %v6214
      %v6316 = vadd.f32 %v6071, %v6216
      %v6317 = vadd.f32 %v6072, %v6219
      %v6318 = vadd.f32 %v6073, %v6221
      %v6319 = vadd.f32 %v6074, %v6224
      %v6320 = vadd.f32 %v6075, %v6226
      %v6321 = vadd.f32 %v6076, %v6229
      %v6322 = vadd.f32 %v6077, %v6231
      %v6323 = vadd.f32 %v6078, %v6234
      %v6324 = vadd.f32 %v6079, %v6236
      %v6325 = vadd.f32 %v6080, %v6239
      %v6326 = vadd.f32 %v6081, %v6241
      %v6327 = vadd.f32 %v6082, %v6244
      %v6328 = vadd.f32 %v6083, %v6246
      %v6329 = vadd.f32 %v6084, %v6249
      %v6330 = vadd.f32 %v6085, %v6251
      %v6331 = vadd.f32 %v6086, %v6254
      %v6332 = vadd.f32 %v6087, %v6256
      %v6333 = vadd.f32 %v6088, %v6259
      %v6334 = vadd.f32 %v6089, %v6261
      %v6335 = vadd.f32 %v6090, %v6264
      %v6336 = vadd.f32 %v6091, %v6266
      %v6337 = vadd.f32 %v6092, %v6269
      %v6338 = vadd.f32 %v6093, %v6271
      %v6339 = vadd.f32 %v6094, %v6274
      %v6340 = vadd.f32 %v6095, %v6276
      %v6341 = vperm.slane %v3003, 7
      %6343 = vrot.lane.b32.xlu0 %v6341, 10
      %v6344 = vpop.permute.xlu0 %6343
      %v6346 = vmul.f32 %v5501, %v6344
      %v6347 = vmul.f32 %v5377, %v6344
      %v6348 = vmul.f32 %v5517, %v6344
      %v6349 = vmul.f32 %v5500, %v6344
      %v6350 = vmul.f32 %v5374, %v6344
      %v6351 = vmul.f32 %v5516, %v6344
      %v6352 = vmul.f32 %v5502, %v6344
      %v6353 = vmul.f32 %v5380, %v6344
      %v6354 = vmul.f32 %v5518, %v6344
      %v6355 = vmul.f32 %v5503, %v6344
      %v6356 = vmul.f32 %v5383, %v6344
      %v6357 = vmul.f32 %v5519, %v6344
      %v6358 = vmul.f32 %v5504, %v6344
      %v6359 = vmul.f32 %v5386, %v6344
      %v6360 = vmul.f32 %v5520, %v6344
      %v6361 = vmul.f32 %v5505, %v6344
      %v6362 = vmul.f32 %v5389, %v6344
      %v6363 = vmul.f32 %v5521, %v6344
      %v6364 = vmul.f32 %v5506, %v6344
      %v6365 = vmul.f32 %v5392, %v6344
      %v6366 = vmul.f32 %v5522, %v6344
      %v6367 = vmul.f32 %v5507, %v6344
      %v6368 = vmul.f32 %v5395, %v6344
      %v6369 = vmul.f32 %v5523, %v6344
      %v6370 = vmul.f32 %v5508, %v6344
      %v6371 = vmul.f32 %v5398, %v6344
      %v6372 = vmul.f32 %v5524, %v6344
      %v6373 = vmul.f32 %v5509, %v6344
      %v6374 = vmul.f32 %v5401, %v6344
      %v6375 = vmul.f32 %v5525, %v6344
      %v6376 = vmul.f32 %v5510, %v6344
      %v6377 = vmul.f32 %v5404, %v6344
      %v6378 = vmul.f32 %v5526, %v6344
      %v6379 = vmul.f32 %v5511, %v6344
      %v6380 = vmul.f32 %v5407, %v6344
      %v6381 = vmul.f32 %v5527, %v6344
      %v6382 = vmul.f32 %v5512, %v6344
      %v6383 = vmul.f32 %v5410, %v6344
      %v6384 = vmul.f32 %v5528, %v6344
      %v6385 = vmul.f32 %v5513, %v6344
      %v6386 = vmul.f32 %v5413, %v6344
      %v6387 = vmul.f32 %v5529, %v6344
      %v6388 = vmul.f32 %v5514, %v6344
      %v6389 = vmul.f32 %v5416, %v6344
      %v6390 = vmul.f32 %v5530, %v6344
      %v6391 = vmul.f32 %v5515, %v6344
      %v6392 = vmul.f32 %v5419, %v6344
      %v6393 = vmul.f32 %v5531, %v6344
      %v6442 = vrot.slane %v6346, 2
      %v6443 = vrot.slane %v6347, 2
      %v6444 = vsel %vm1776, %v6442, %v6443
      %v6445 = vrot.slane %v6348, 2
      %v6446 = vsel %vm1776, %v6443, %v6445
      %v6447 = vrot.slane %v6349, 2
      %v6448 = vrot.slane %v6350, 2
      %v6449 = vsel %vm1776, %v6447, %v6448
      %v6450 = vrot.slane %v6351, 2
      %v6451 = vsel %vm1776, %v6448, %v6450
      %v6452 = vrot.slane %v6352, 2
      %v6453 = vrot.slane %v6353, 2
      %v6454 = vsel %vm1776, %v6452, %v6453
      %v6455 = vrot.slane %v6354, 2
      %v6456 = vsel %vm1776, %v6453, %v6455
      %v6457 = vrot.slane %v6355, 2
      %v6458 = vrot.slane %v6356, 2
      %v6459 = vsel %vm1776, %v6457, %v6458
      %v6460 = vrot.slane %v6357, 2
      %v6461 = vsel %vm1776, %v6458, %v6460
      %v6462 = vrot.slane %v6358, 2
      %v6463 = vrot.slane %v6359, 2
      %v6464 = vsel %vm1776, %v6462, %v6463
      %v6465 = vrot.slane %v6360, 2
      %v6466 = vsel %vm1776, %v6463, %v6465
      %v6467 = vrot.slane %v6361, 2
      %v6468 = vrot.slane %v6362, 2
      %v6469 = vsel %vm1776, %v6467, %v6468
      %v6470 = vrot.slane %v6363, 2
      %v6471 = vsel %vm1776, %v6468, %v6470
      %v6472 = vrot.slane %v6364, 2
      %v6473 = vrot.slane %v6365, 2
      %v6474 = vsel %vm1776, %v6472, %v6473
      %v6475 = vrot.slane %v6366, 2
      %v6476 = vsel %vm1776, %v6473, %v6475
      %v6477 = vrot.slane %v6367, 2
      %v6478 = vrot.slane %v6368, 2
      %v6479 = vsel %vm1776, %v6477, %v6478
      %v6480 = vrot.slane %v6369, 2
      %v6481 = vsel %vm1776, %v6478, %v6480
      %v6482 = vrot.slane %v6370, 2
      %v6483 = vrot.slane %v6371, 2
      %v6484 = vsel %vm1776, %v6482, %v6483
      %v6485 = vrot.slane %v6372, 2
      %v6486 = vsel %vm1776, %v6483, %v6485
      %v6487 = vrot.slane %v6373, 2
      %v6488 = vrot.slane %v6374, 2
      %v6489 = vsel %vm1776, %v6487, %v6488
      %v6490 = vrot.slane %v6375, 2
      %v6491 = vsel %vm1776, %v6488, %v6490
      %v6492 = vrot.slane %v6376, 2
      %v6493 = vrot.slane %v6377, 2
      %v6494 = vsel %vm1776, %v6492, %v6493
      %v6495 = vrot.slane %v6378, 2
      %v6496 = vsel %vm1776, %v6493, %v6495
      %v6497 = vrot.slane %v6379, 2
      %v6498 = vrot.slane %v6380, 2
      %v6499 = vsel %vm1776, %v6497, %v6498
      %v6500 = vrot.slane %v6381, 2
      %v6501 = vsel %vm1776, %v6498, %v6500
      %v6502 = vrot.slane %v6382, 2
      %v6503 = vrot.slane %v6383, 2
      %v6504 = vsel %vm1776, %v6502, %v6503
      %v6505 = vrot.slane %v6384, 2
      %v6506 = vsel %vm1776, %v6503, %v6505
      %v6507 = vrot.slane %v6385, 2
      %v6508 = vrot.slane %v6386, 2
      %v6509 = vsel %vm1776, %v6507, %v6508
      %v6510 = vrot.slane %v6387, 2
      %v6511 = vsel %vm1776, %v6508, %v6510
      %v6512 = vrot.slane %v6388, 2
      %v6513 = vrot.slane %v6389, 2
      %v6514 = vsel %vm1776, %v6512, %v6513
      %v6515 = vrot.slane %v6390, 2
      %v6516 = vsel %vm1776, %v6513, %v6515
      %v6517 = vrot.slane %v6391, 2
      %v6518 = vrot.slane %v6392, 2
      %v6519 = vsel %vm1776, %v6517, %v6518
      %v6520 = vrot.slane %v6393, 2
      %v6521 = vsel %vm1776, %v6518, %v6520
      %v6554 = vadd.f32 %v6309, %v6444
      %v6555 = vadd.f32 %v6310, %v6446
      %v6556 = vadd.f32 %v6311, %v6449
      %v6557 = vadd.f32 %v6312, %v6451
      %v6558 = vadd.f32 %v6313, %v6454
      %v6559 = vadd.f32 %v6314, %v6456
      %v6560 = vadd.f32 %v6315, %v6459
      %v6561 = vadd.f32 %v6316, %v6461
      %v6562 = vadd.f32 %v6317, %v6464
      %v6563 = vadd.f32 %v6318, %v6466
      %v6564 = vadd.f32 %v6319, %v6469
      %v6565 = vadd.f32 %v6320, %v6471
      %v6566 = vadd.f32 %v6321, %v6474
      %v6567 = vadd.f32 %v6322, %v6476
      %v6568 = vadd.f32 %v6323, %v6479
      %v6569 = vadd.f32 %v6324, %v6481
      %v6570 = vadd.f32 %v6325, %v6484
      %v6571 = vadd.f32 %v6326, %v6486
      %v6572 = vadd.f32 %v6327, %v6489
      %v6573 = vadd.f32 %v6328, %v6491
      %v6574 = vadd.f32 %v6329, %v6494
      %v6575 = vadd.f32 %v6330, %v6496
      %v6576 = vadd.f32 %v6331, %v6499
      %v6577 = vadd.f32 %v6332, %v6501
      %v6578 = vadd.f32 %v6333, %v6504
      %v6579 = vadd.f32 %v6334, %v6506
      %v6580 = vadd.f32 %v6335, %v6509
      %v6581 = vadd.f32 %v6336, %v6511
      %v6582 = vadd.f32 %v6337, %v6514
      %v6583 = vadd.f32 %v6338, %v6516
      %v6584 = vadd.f32 %v6339, %v6519
      %v6585 = vadd.f32 %v6340, %v6521
      %v6586 = vperm.slane %v3004, 0
      %6588 = vrot.lane.b32.xlu0 %v6586, 10
      %v6589 = vpop.permute.xlu0 %6588
      %v6591 = vmul.f32 %v5500, %v6589
      %v6592 = vmul.f32 %v5374, %v6589
      %v6593 = vmul.f32 %v5502, %v6589
      %v6594 = vmul.f32 %v5380, %v6589
      %v6595 = vmul.f32 %v5503, %v6589
      %v6596 = vmul.f32 %v5383, %v6589
      %v6597 = vmul.f32 %v5504, %v6589
      %v6598 = vmul.f32 %v5386, %v6589
      %v6599 = vmul.f32 %v5505, %v6589
      %v6600 = vmul.f32 %v5389, %v6589
      %v6601 = vmul.f32 %v5506, %v6589
      %v6602 = vmul.f32 %v5392, %v6589
      %v6603 = vmul.f32 %v5507, %v6589
      %v6604 = vmul.f32 %v5395, %v6589
      %v6605 = vmul.f32 %v5508, %v6589
      %v6606 = vmul.f32 %v5398, %v6589
      %v6607 = vmul.f32 %v5509, %v6589
      %v6608 = vmul.f32 %v5401, %v6589
      %v6609 = vmul.f32 %v5510, %v6589
      %v6610 = vmul.f32 %v5404, %v6589
      %v6611 = vmul.f32 %v5511, %v6589
      %v6612 = vmul.f32 %v5407, %v6589
      %v6613 = vmul.f32 %v5512, %v6589
      %v6614 = vmul.f32 %v5410, %v6589
      %v6615 = vmul.f32 %v5513, %v6589
      %v6616 = vmul.f32 %v5413, %v6589
      %v6617 = vmul.f32 %v5514, %v6589
      %v6618 = vmul.f32 %v5416, %v6589
      %v6619 = vmul.f32 %v5515, %v6589
      %v6620 = vmul.f32 %v5419, %v6589
      %v6621 = vadd.f32 %v6554, %v6591
      %v6622 = vadd.f32 %v6555, %v6592
      %v6623 = vadd.f32 %v6556, %v6593
      %v6624 = vadd.f32 %v6557, %v6594
      %v6625 = vadd.f32 %v6558, %v6595
      %v6626 = vadd.f32 %v6559, %v6596
      %v6627 = vadd.f32 %v6560, %v6597
      %v6628 = vadd.f32 %v6561, %v6598
      %v6629 = vadd.f32 %v6562, %v6599
      %v6630 = vadd.f32 %v6563, %v6600
      %v6631 = vadd.f32 %v6564, %v6601
      %v6632 = vadd.f32 %v6565, %v6602
      %v6633 = vadd.f32 %v6566, %v6603
      %v6634 = vadd.f32 %v6567, %v6604
      %v6635 = vadd.f32 %v6568, %v6605
      %v6636 = vadd.f32 %v6569, %v6606
      %v6637 = vadd.f32 %v6570, %v6607
      %v6638 = vadd.f32 %v6571, %v6608
      %v6639 = vadd.f32 %v6572, %v6609
      %v6640 = vadd.f32 %v6573, %v6610
      %v6641 = vadd.f32 %v6574, %v6611
      %v6642 = vadd.f32 %v6575, %v6612
      %v6643 = vadd.f32 %v6576, %v6613
      %v6644 = vadd.f32 %v6577, %v6614
      %v6645 = vadd.f32 %v6578, %v6615
      %v6646 = vadd.f32 %v6579, %v6616
      %v6647 = vadd.f32 %v6580, %v6617
      %v6648 = vadd.f32 %v6581, %v6618
      %v6649 = vadd.f32 %v6582, %v6619
      %v6650 = vadd.f32 %v6583, %v6620
      %v6651 = vadd.f32 %v6584, %v6617
      %v6652 = vadd.f32 %v6585, %v6618
      %v6653 = vperm.slane %v3004, 1
      %6655 = vrot.lane.b32.xlu0 %v6653, 10
      %v6656 = vpop.permute.xlu0 %6655
      %v6658 = vmul.f32 %v5500, %v6656
      %v6659 = vmul.f32 %v5374, %v6656
      %v6660 = vmul.f32 %v5516, %v6656
      %v6661 = vmul.f32 %v5502, %v6656
      %v6662 = vmul.f32 %v5380, %v6656
      %v6663 = vmul.f32 %v5518, %v6656
      %v6664 = vmul.f32 %v5503, %v6656
      %v6665 = vmul.f32 %v5383, %v6656
      %v6666 = vmul.f32 %v5519, %v6656
      %v6667 = vmul.f32 %v5504, %v6656
      %v6668 = vmul.f32 %v5386, %v6656
      %v6669 = vmul.f32 %v5520, %v6656
      %v6670 = vmul.f32 %v5505, %v6656
      %v6671 = vmul.f32 %v5389, %v6656
      %v6672 = vmul.f32 %v5521, %v6656
      %v6673 = vmul.f32 %v5506, %v6656
      %v6674 = vmul.f32 %v5392, %v6656
      %v6675 = vmul.f32 %v5522, %v6656
      %v6676 = vmul.f32 %v5507, %v6656
      %v6677 = vmul.f32 %v5395, %v6656
      %v6678 = vmul.f32 %v5523, %v6656
      %v6679 = vmul.f32 %v5508, %v6656
      %v6680 = vmul.f32 %v5398, %v6656
      %v6681 = vmul.f32 %v5524, %v6656
      %v6682 = vmul.f32 %v5509, %v6656
      %v6683 = vmul.f32 %v5401, %v6656
      %v6684 = vmul.f32 %v5525, %v6656
      %v6685 = vmul.f32 %v5510, %v6656
      %v6686 = vmul.f32 %v5404, %v6656
      %v6687 = vmul.f32 %v5526, %v6656
      %v6688 = vmul.f32 %v5511, %v6656
      %v6689 = vmul.f32 %v5407, %v6656
      %v6690 = vmul.f32 %v5527, %v6656
      %v6691 = vmul.f32 %v5512, %v6656
      %v6692 = vmul.f32 %v5410, %v6656
      %v6693 = vmul.f32 %v5528, %v6656
      %v6694 = vmul.f32 %v5513, %v6656
      %v6695 = vmul.f32 %v5413, %v6656
      %v6696 = vmul.f32 %v5529, %v6656
      %v6697 = vmul.f32 %v5514, %v6656
      %v6698 = vmul.f32 %v5416, %v6656
      %v6699 = vmul.f32 %v5530, %v6656
      %v6700 = vmul.f32 %v5515, %v6656
      %v6701 = vmul.f32 %v5419, %v6656
      %v6702 = vmul.f32 %v5531, %v6656
      %v6748 = vrot.slane %v6658, 1
      %v6749 = vrot.slane %v6659, 1
      %v6750 = vsel %vm1545, %v6748, %v6749
      %v6751 = vrot.slane %v6660, 1
      %v6752 = vsel %vm1545, %v6749, %v6751
      %v6753 = vrot.slane %v6661, 1
      %v6754 = vrot.slane %v6662, 1
      %v6755 = vsel %vm1545, %v6753, %v6754
      %v6756 = vrot.slane %v6663, 1
      %v6757 = vsel %vm1545, %v6754, %v6756
      %v6758 = vrot.slane %v6664, 1
      %v6759 = vrot.slane %v6665, 1
      %v6760 = vsel %vm1545, %v6758, %v6759
      %v6761 = vrot.slane %v6666, 1
      %v6762 = vsel %vm1545, %v6759, %v6761
      %v6763 = vrot.slane %v6667, 1
      %v6764 = vrot.slane %v6668, 1
      %v6765 = vsel %vm1545, %v6763, %v6764
      %v6766 = vrot.slane %v6669, 1
      %v6767 = vsel %vm1545, %v6764, %v6766
      %v6768 = vrot.slane %v6670, 1
      %v6769 = vrot.slane %v6671, 1
      %v6770 = vsel %vm1545, %v6768, %v6769
      %v6771 = vrot.slane %v6672, 1
      %v6772 = vsel %vm1545, %v6769, %v6771
      %v6773 = vrot.slane %v6673, 1
      %v6774 = vrot.slane %v6674, 1
      %v6775 = vsel %vm1545, %v6773, %v6774
      %v6776 = vrot.slane %v6675, 1
      %v6777 = vsel %vm1545, %v6774, %v6776
      %v6778 = vrot.slane %v6676, 1
      %v6779 = vrot.slane %v6677, 1
      %v6780 = vsel %vm1545, %v6778, %v6779
      %v6781 = vrot.slane %v6678, 1
      %v6782 = vsel %vm1545, %v6779, %v6781
      %v6783 = vrot.slane %v6679, 1
      %v6784 = vrot.slane %v6680, 1
      %v6785 = vsel %vm1545, %v6783, %v6784
      %v6786 = vrot.slane %v6681, 1
      %v6787 = vsel %vm1545, %v6784, %v6786
      %v6788 = vrot.slane %v6682, 1
      %v6789 = vrot.slane %v6683, 1
      %v6790 = vsel %vm1545, %v6788, %v6789
      %v6791 = vrot.slane %v6684, 1
      %v6792 = vsel %vm1545, %v6789, %v6791
      %v6793 = vrot.slane %v6685, 1
      %v6794 = vrot.slane %v6686, 1
      %v6795 = vsel %vm1545, %v6793, %v6794
      %v6796 = vrot.slane %v6687, 1
      %v6797 = vsel %vm1545, %v6794, %v6796
      %v6798 = vrot.slane %v6688, 1
      %v6799 = vrot.slane %v6689, 1
      %v6800 = vsel %vm1545, %v6798, %v6799
      %v6801 = vrot.slane %v6690, 1
      %v6802 = vsel %vm1545, %v6799, %v6801
      %v6803 = vrot.slane %v6691, 1
      %v6804 = vrot.slane %v6692, 1
      %v6805 = vsel %vm1545, %v6803, %v6804
      %v6806 = vrot.slane %v6693, 1
      %v6807 = vsel %vm1545, %v6804, %v6806
      %v6808 = vrot.slane %v6694, 1
      %v6809 = vrot.slane %v6695, 1
      %v6810 = vsel %vm1545, %v6808, %v6809
      %v6811 = vrot.slane %v6696, 1
      %v6812 = vsel %vm1545, %v6809, %v6811
      %v6813 = vrot.slane %v6697, 1
      %v6814 = vrot.slane %v6698, 1
      %v6815 = vsel %vm1545, %v6813, %v6814
      %v6816 = vrot.slane %v6699, 1
      %v6817 = vsel %vm1545, %v6814, %v6816
      %v6818 = vrot.slane %v6700, 1
      %v6819 = vrot.slane %v6701, 1
      %v6820 = vsel %vm1545, %v6818, %v6819
      %v6821 = vrot.slane %v6702, 1
      %v6822 = vsel %vm1545, %v6819, %v6821
      %v6853 = vadd.f32 %v6621, %v6750
      %v6854 = vadd.f32 %v6622, %v6752
      %v6855 = vadd.f32 %v6623, %v6755
      %v6856 = vadd.f32 %v6624, %v6757
      %v6857 = vadd.f32 %v6625, %v6760
      %v6858 = vadd.f32 %v6626, %v6762
      %v6859 = vadd.f32 %v6627, %v6765
      %v6860 = vadd.f32 %v6628, %v6767
      %v6861 = vadd.f32 %v6629, %v6770
      %v6862 = vadd.f32 %v6630, %v6772
      %v6863 = vadd.f32 %v6631, %v6775
      %v6864 = vadd.f32 %v6632, %v6777
      %v6865 = vadd.f32 %v6633, %v6780
      %v6866 = vadd.f32 %v6634, %v6782
      %v6867 = vadd.f32 %v6635, %v6785
      %v6868 = vadd.f32 %v6636, %v6787
      %v6869 = vadd.f32 %v6637, %v6790
      %v6870 = vadd.f32 %v6638, %v6792
      %v6871 = vadd.f32 %v6639, %v6795
      %v6872 = vadd.f32 %v6640, %v6797
      %v6873 = vadd.f32 %v6641, %v6800
      %v6874 = vadd.f32 %v6642, %v6802
      %v6875 = vadd.f32 %v6643, %v6805
      %v6876 = vadd.f32 %v6644, %v6807
      %v6877 = vadd.f32 %v6645, %v6810
      %v6878 = vadd.f32 %v6646, %v6812
      %v6879 = vadd.f32 %v6647, %v6815
      %v6880 = vadd.f32 %v6648, %v6817
      %v6881 = vadd.f32 %v6649, %v6820
      %v6882 = vadd.f32 %v6650, %v6822
      %v6883 = vadd.f32 %v6651, %v6815
      %v6884 = vadd.f32 %v6652, %v6817
      %v6885 = vperm.slane %v3004, 2
      %6887 = vrot.lane.b32.xlu0 %v6885, 10
      %v6888 = vpop.permute.xlu0 %6887
      %v6890 = vmul.f32 %v5500, %v6888
      %v6891 = vmul.f32 %v5374, %v6888
      %v6892 = vmul.f32 %v5516, %v6888
      %v6893 = vmul.f32 %v5502, %v6888
      %v6894 = vmul.f32 %v5380, %v6888
      %v6895 = vmul.f32 %v5518, %v6888
      %v6896 = vmul.f32 %v5503, %v6888
      %v6897 = vmul.f32 %v5383, %v6888
      %v6898 = vmul.f32 %v5519, %v6888
      %v6899 = vmul.f32 %v5504, %v6888
      %v6900 = vmul.f32 %v5386, %v6888
      %v6901 = vmul.f32 %v5520, %v6888
      %v6902 = vmul.f32 %v5505, %v6888
      %v6903 = vmul.f32 %v5389, %v6888
      %v6904 = vmul.f32 %v5521, %v6888
      %v6905 = vmul.f32 %v5506, %v6888
      %v6906 = vmul.f32 %v5392, %v6888
      %v6907 = vmul.f32 %v5522, %v6888
      %v6908 = vmul.f32 %v5507, %v6888
      %v6909 = vmul.f32 %v5395, %v6888
      %v6910 = vmul.f32 %v5523, %v6888
      %v6911 = vmul.f32 %v5508, %v6888
      %v6912 = vmul.f32 %v5398, %v6888
      %v6913 = vmul.f32 %v5524, %v6888
      %v6914 = vmul.f32 %v5509, %v6888
      %v6915 = vmul.f32 %v5401, %v6888
      %v6916 = vmul.f32 %v5525, %v6888
      %v6917 = vmul.f32 %v5510, %v6888
      %v6918 = vmul.f32 %v5404, %v6888
      %v6919 = vmul.f32 %v5526, %v6888
      %v6920 = vmul.f32 %v5511, %v6888
      %v6921 = vmul.f32 %v5407, %v6888
      %v6922 = vmul.f32 %v5527, %v6888
      %v6923 = vmul.f32 %v5512, %v6888
      %v6924 = vmul.f32 %v5410, %v6888
      %v6925 = vmul.f32 %v5528, %v6888
      %v6926 = vmul.f32 %v5513, %v6888
      %v6927 = vmul.f32 %v5413, %v6888
      %v6928 = vmul.f32 %v5529, %v6888
      %v6929 = vmul.f32 %v5514, %v6888
      %v6930 = vmul.f32 %v5416, %v6888
      %v6931 = vmul.f32 %v5530, %v6888
      %v6932 = vmul.f32 %v5515, %v6888
      %v6933 = vmul.f32 %v5419, %v6888
      %v6934 = vmul.f32 %v5531, %v6888
      %v6980 = vrot.slane %v6890, 2
      %v6981 = vrot.slane %v6891, 2
      %v6982 = vsel %vm1776, %v6980, %v6981
      %v6983 = vrot.slane %v6892, 2
      %v6984 = vsel %vm1776, %v6981, %v6983
      %v6985 = vrot.slane %v6893, 2
      %v6986 = vrot.slane %v6894, 2
      %v6987 = vsel %vm1776, %v6985, %v6986
      %v6988 = vrot.slane %v6895, 2
      %v6989 = vsel %vm1776, %v6986, %v6988
      %v6990 = vrot.slane %v6896, 2
      %v6991 = vrot.slane %v6897, 2
      %v6992 = vsel %vm1776, %v6990, %v6991
      %v6993 = vrot.slane %v6898, 2
      %v6994 = vsel %vm1776, %v6991, %v6993
      %v6995 = vrot.slane %v6899, 2
      %v6996 = vrot.slane %v6900, 2
      %v6997 = vsel %vm1776, %v6995, %v6996
      %v6998 = vrot.slane %v6901, 2
      %v6999 = vsel %vm1776, %v6996, %v6998
      %v7000 = vrot.slane %v6902, 2
      %v7001 = vrot.slane %v6903, 2
      %v7002 = vsel %vm1776, %v7000, %v7001
      %v7003 = vrot.slane %v6904, 2
      %v7004 = vsel %vm1776, %v7001, %v7003
      %v7005 = vrot.slane %v6905, 2
      %v7006 = vrot.slane %v6906, 2
      %v7007 = vsel %vm1776, %v7005, %v7006
      %v7008 = vrot.slane %v6907, 2
      %v7009 = vsel %vm1776, %v7006, %v7008
      %v7010 = vrot.slane %v6908, 2
      %v7011 = vrot.slane %v6909, 2
      %v7012 = vsel %vm1776, %v7010, %v7011
      %v7013 = vrot.slane %v6910, 2
      %v7014 = vsel %vm1776, %v7011, %v7013
      %v7015 = vrot.slane %v6911, 2
      %v7016 = vrot.slane %v6912, 2
      %v7017 = vsel %vm1776, %v7015, %v7016
      %v7018 = vrot.slane %v6913, 2
      %v7019 = vsel %vm1776, %v7016, %v7018
      %v7020 = vrot.slane %v6914, 2
      %v7021 = vrot.slane %v6915, 2
      %v7022 = vsel %vm1776, %v7020, %v7021
      %v7023 = vrot.slane %v6916, 2
      %v7024 = vsel %vm1776, %v7021, %v7023
      %v7025 = vrot.slane %v6917, 2
      %v7026 = vrot.slane %v6918, 2
      %v7027 = vsel %vm1776, %v7025, %v7026
      %v7028 = vrot.slane %v6919, 2
      %v7029 = vsel %vm1776, %v7026, %v7028
      %v7030 = vrot.slane %v6920, 2
      %v7031 = vrot.slane %v6921, 2
      %v7032 = vsel %vm1776, %v7030, %v7031
      %v7033 = vrot.slane %v6922, 2
      %v7034 = vsel %vm1776, %v7031, %v7033
      %v7035 = vrot.slane %v6923, 2
      %v7036 = vrot.slane %v6924, 2
      %v7037 = vsel %vm1776, %v7035, %v7036
      %v7038 = vrot.slane %v6925, 2
      %v7039 = vsel %vm1776, %v7036, %v7038
      %v7040 = vrot.slane %v6926, 2
      %v7041 = vrot.slane %v6927, 2
      %v7042 = vsel %vm1776, %v7040, %v7041
      %v7043 = vrot.slane %v6928, 2
      %v7044 = vsel %vm1776, %v7041, %v7043
      %v7045 = vrot.slane %v6929, 2
      %v7046 = vrot.slane %v6930, 2
      %v7047 = vsel %vm1776, %v7045, %v7046
      %v7048 = vrot.slane %v6931, 2
      %v7049 = vsel %vm1776, %v7046, %v7048
      %v7050 = vrot.slane %v6932, 2
      %v7051 = vrot.slane %v6933, 2
      %v7052 = vsel %vm1776, %v7050, %v7051
      %v7053 = vrot.slane %v6934, 2
      %v7054 = vsel %vm1776, %v7051, %v7053
      %v7085 = vadd.f32 %v6853, %v6982
      %v7086 = vadd.f32 %v6854, %v6984
      %v7087 = vadd.f32 %v6855, %v6987
      %v7088 = vadd.f32 %v6856, %v6989
      %v7089 = vadd.f32 %v6857, %v6992
      %v7090 = vadd.f32 %v6858, %v6994
      %v7091 = vadd.f32 %v6859, %v6997
      %v7092 = vadd.f32 %v6860, %v6999
      %v7093 = vadd.f32 %v6861, %v7002
      %v7094 = vadd.f32 %v6862, %v7004
      %v7095 = vadd.f32 %v6863, %v7007
      %v7096 = vadd.f32 %v6864, %v7009
      %v7097 = vadd.f32 %v6865, %v7012
      %v7098 = vadd.f32 %v6866, %v7014
      %v7099 = vadd.f32 %v6867, %v7017
      %v7100 = vadd.f32 %v6868, %v7019
      %v7101 = vadd.f32 %v6869, %v7022
      %v7102 = vadd.f32 %v6870, %v7024
      %v7103 = vadd.f32 %v6871, %v7027
      %v7104 = vadd.f32 %v6872, %v7029
      %v7105 = vadd.f32 %v6873, %v7032
      %v7106 = vadd.f32 %v6874, %v7034
      %v7107 = vadd.f32 %v6875, %v7037
      %v7108 = vadd.f32 %v6876, %v7039
      %v7109 = vadd.f32 %v6877, %v7042
      %v7110 = vadd.f32 %v6878, %v7044
      %v7111 = vadd.f32 %v6879, %v7047
      %v7112 = vadd.f32 %v6880, %v7049
      %v7113 = vadd.f32 %v6881, %v7052
      %v7114 = vadd.f32 %v6882, %v7054
      %v7115 = vadd.f32 %v6883, %v7047
      %v7116 = vadd.f32 %v6884, %v7049
      %7149 = vrot.lane.b32.xlu0 %v7085, 2
      %v7150 = vpop.permute.xlu0 %7149
      %7151 = vrot.lane.b32.xlu0 %v7086, 2
      %v7152 = vpop.permute.xlu0 %7151
      %7153 = vrot.lane.b32.xlu0 %v7087, 2
      %v7154 = vpop.permute.xlu0 %7153
      %7155 = vrot.lane.b32.xlu0 %v7088, 2
      %v7156 = vpop.permute.xlu0 %7155
      %7157 = vrot.lane.b32.xlu0 %v7089, 2
      %v7158 = vpop.permute.xlu0 %7157
      %7159 = vrot.lane.b32.xlu0 %v7090, 2
      %v7160 = vpop.permute.xlu0 %7159
      %7161 = vrot.lane.b32.xlu0 %v7091, 2
      %v7162 = vpop.permute.xlu0 %7161
      %7163 = vrot.lane.b32.xlu0 %v7092, 2
      %v7164 = vpop.permute.xlu0 %7163
      %7165 = vrot.lane.b32.xlu0 %v7093, 2
      %v7166 = vpop.permute.xlu0 %7165
      %7167 = vrot.lane.b32.xlu0 %v7094, 2
      %v7168 = vpop.permute.xlu0 %7167
      %7169 = vrot.lane.b32.xlu0 %v7095, 2
      %v7170 = vpop.permute.xlu0 %7169
      %7171 = vrot.lane.b32.xlu0 %v7096, 2
      %v7172 = vpop.permute.xlu0 %7171
      %7173 = vrot.lane.b32.xlu0 %v7097, 2
      %v7174 = vpop.permute.xlu0 %7173
      %7175 = vrot.lane.b32.xlu0 %v7098, 2
      %v7176 = vpop.permute.xlu0 %7175
      %7177 = vrot.lane.b32.xlu0 %v7099, 2
      %v7178 = vpop.permute.xlu0 %7177
      %7179 = vrot.lane.b32.xlu0 %v7100, 2
      %v7180 = vpop.permute.xlu0 %7179
      %7181 = vrot.lane.b32.xlu0 %v7101, 2
      %v7182 = vpop.permute.xlu0 %7181
      %7183 = vrot.lane.b32.xlu0 %v7102, 2
      %v7184 = vpop.permute.xlu0 %7183
      %7185 = vrot.lane.b32.xlu0 %v7103, 2
      %v7186 = vpop.permute.xlu0 %7185
      %7187 = vrot.lane.b32.xlu0 %v7104, 2
      %v7188 = vpop.permute.xlu0 %7187
      %7189 = vrot.lane.b32.xlu0 %v7105, 2
      %v7190 = vpop.permute.xlu0 %7189
      %7191 = vrot.lane.b32.xlu0 %v7106, 2
      %v7192 = vpop.permute.xlu0 %7191
      %7193 = vrot.lane.b32.xlu0 %v7107, 2
      %v7194 = vpop.permute.xlu0 %7193
      %7195 = vrot.lane.b32.xlu0 %v7108, 2
      %v7196 = vpop.permute.xlu0 %7195
      %7197 = vrot.lane.b32.xlu0 %v7109, 2
      %v7198 = vpop.permute.xlu0 %7197
      %7199 = vrot.lane.b32.xlu0 %v7110, 2
      %v7200 = vpop.permute.xlu0 %7199
      %7201 = vrot.lane.b32.xlu0 %v7111, 2
      %v7202 = vpop.permute.xlu0 %7201
      %7203 = vrot.lane.b32.xlu0 %v7112, 2
      %v7204 = vpop.permute.xlu0 %7203
      %7205 = vrot.lane.b32.xlu0 %v7113, 2
      %v7206 = vpop.permute.xlu0 %7205
      %7207 = vrot.lane.b32.xlu0 %v7114, 2
      %v7208 = vpop.permute.xlu0 %7207
      %7209 = vrot.lane.b32.xlu0 %v7115, 2
      %v7210 = vpop.permute.xlu0 %7209
      %7211 = vrot.lane.b32.xlu0 %v7116, 2
      %v7212 = vpop.permute.xlu0 %7211
      %v7245 = vadd.f32 %v2970, %v7150
      %v7246 = vadd.f32 %v2971, %v7152
      %v7247 = vadd.f32 %v2972, %v7154
      %v7248 = vadd.f32 %v2973, %v7156
      %v7249 = vadd.f32 %v2974, %v7158
      %v7250 = vadd.f32 %v2975, %v7160
      %v7251 = vadd.f32 %v2976, %v7162
      %v7252 = vadd.f32 %v2977, %v7164
      %v7253 = vadd.f32 %v2978, %v7166
      %v7254 = vadd.f32 %v2979, %v7168
      %v7255 = vadd.f32 %v2980, %v7170
      %v7256 = vadd.f32 %v2981, %v7172
      %v7257 = vadd.f32 %v2982, %v7174
      %v7258 = vadd.f32 %v2983, %v7176
      %v7259 = vadd.f32 %v2984, %v7178
      %v7260 = vadd.f32 %v2985, %v7180
      %v7261 = vadd.f32 %v2986, %v7182
      %v7262 = vadd.f32 %v2987, %v7184
      %v7263 = vadd.f32 %v2988, %v7186
      %v7264 = vadd.f32 %v2989, %v7188
      %v7265 = vadd.f32 %v2990, %v7190
      %v7266 = vadd.f32 %v2991, %v7192
      %v7267 = vadd.f32 %v2992, %v7194
      %v7268 = vadd.f32 %v2993, %v7196
      %v7269 = vadd.f32 %v2994, %v7198
      %v7270 = vadd.f32 %v2995, %v7200
      %v7271 = vadd.f32 %v2996, %v7202
      %v7272 = vadd.f32 %v2997, %v7204
      %v7273 = vadd.f32 %v2998, %v7206
      %v7274 = vadd.f32 %v2999, %v7208
      %v7275 = vadd.f32 %v3000, %v7210
      %v7276 = vadd.f32 %v3001, %v7212
      %v7277 = vperm.slane %v3006, 2
      %7279 = vrot.lane.b32.xlu0 %v7277, 12
      %v7280 = vpop.permute.xlu0 %7279
      %v7282 = vadd.f32 %v7245, %v7280
      %v7283 = vadd.f32 %v7246, %v7280
      %v7284 = vadd.f32 %v7247, %v7280
      %v7285 = vadd.f32 %v7248, %v7280
      %v7286 = vadd.f32 %v7249, %v7280
      %v7287 = vadd.f32 %v7250, %v7280
      %v7288 = vadd.f32 %v7251, %v7280
      %v7289 = vadd.f32 %v7252, %v7280
      %v7290 = vadd.f32 %v7253, %v7280
      %v7291 = vadd.f32 %v7254, %v7280
      %v7292 = vadd.f32 %v7255, %v7280
      %v7293 = vadd.f32 %v7256, %v7280
      %v7294 = vadd.f32 %v7257, %v7280
      %v7295 = vadd.f32 %v7258, %v7280
      %v7296 = vadd.f32 %v7259, %v7280
      %v7297 = vadd.f32 %v7260, %v7280
      %v7298 = vadd.f32 %v7261, %v7280
      %v7299 = vadd.f32 %v7262, %v7280
      %v7300 = vadd.f32 %v7263, %v7280
      %v7301 = vadd.f32 %v7264, %v7280
      %v7302 = vadd.f32 %v7265, %v7280
      %v7303 = vadd.f32 %v7266, %v7280
      %v7304 = vadd.f32 %v7267, %v7280
      %v7305 = vadd.f32 %v7268, %v7280
      %v7306 = vadd.f32 %v7269, %v7280
      %v7307 = vadd.f32 %v7270, %v7280
      %v7308 = vadd.f32 %v7271, %v7280
      %v7309 = vadd.f32 %v7272, %v7280
      %v7310 = vadd.f32 %v7273, %v7280
      %v7311 = vadd.f32 %v7274, %v7280
      %v7312 = vadd.f32 %v7275, %v7280
      %v7313 = vadd.f32 %v7276, %v7280
      %7346 = vrot.lane.b32.xlu0 %v7282, 120
      %v7347 = vpop.permute.xlu0 %7346
      %7348 = vrot.lane.b32.xlu0 %v7283, 120
      %v7349 = vpop.permute.xlu0 %7348
      %7350 = vrot.lane.b32.xlu0 %v7284, 120
      %v7351 = vpop.permute.xlu0 %7350
      %7352 = vrot.lane.b32.xlu0 %v7285, 120
      %v7353 = vpop.permute.xlu0 %7352
      %7354 = vrot.lane.b32.xlu0 %v7286, 120
      %v7355 = vpop.permute.xlu0 %7354
      %7356 = vrot.lane.b32.xlu0 %v7287, 120
      %v7357 = vpop.permute.xlu0 %7356
      %7358 = vrot.lane.b32.xlu0 %v7288, 120
      %v7359 = vpop.permute.xlu0 %7358
      %7360 = vrot.lane.b32.xlu0 %v7289, 120
      %v7361 = vpop.permute.xlu0 %7360
      %7362 = vrot.lane.b32.xlu0 %v7290, 120
      %v7363 = vpop.permute.xlu0 %7362
      %7364 = vrot.lane.b32.xlu0 %v7291, 120
      %v7365 = vpop.permute.xlu0 %7364
      %7366 = vrot.lane.b32.xlu0 %v7292, 120
      %v7367 = vpop.permute.xlu0 %7366
      %7368 = vrot.lane.b32.xlu0 %v7293, 120
      %v7369 = vpop.permute.xlu0 %7368
      %7370 = vrot.lane.b32.xlu0 %v7294, 120
      %v7371 = vpop.permute.xlu0 %7370
      %7372 = vrot.lane.b32.xlu0 %v7295, 120
      %v7373 = vpop.permute.xlu0 %7372
      %7374 = vrot.lane.b32.xlu0 %v7296, 120
      %v7375 = vpop.permute.xlu0 %7374
      %7376 = vrot.lane.b32.xlu0 %v7297, 120
      %v7377 = vpop.permute.xlu0 %7376
      %7378 = vrot.lane.b32.xlu0 %v7298, 120
      %v7379 = vpop.permute.xlu0 %7378
      %7380 = vrot.lane.b32.xlu0 %v7299, 120
      %v7381 = vpop.permute.xlu0 %7380
      %7382 = vrot.lane.b32.xlu0 %v7300, 120
      %v7383 = vpop.permute.xlu0 %7382
      %7384 = vrot.lane.b32.xlu0 %v7301, 120
      %v7385 = vpop.permute.xlu0 %7384
      %7386 = vrot.lane.b32.xlu0 %v7302, 120
      %v7387 = vpop.permute.xlu0 %7386
      %7388 = vrot.lane.b32.xlu0 %v7303, 120
      %v7389 = vpop.permute.xlu0 %7388
      %7390 = vrot.lane.b32.xlu0 %v7304, 120
      %v7391 = vpop.permute.xlu0 %7390
      %7392 = vrot.lane.b32.xlu0 %v7305, 120
      %v7393 = vpop.permute.xlu0 %7392
      %7394 = vrot.lane.b32.xlu0 %v7306, 120
      %v7395 = vpop.permute.xlu0 %7394
      %7396 = vrot.lane.b32.xlu0 %v7307, 120
      %v7397 = vpop.permute.xlu0 %7396
      %7398 = vrot.lane.b32.xlu0 %v7308, 120
      %v7399 = vpop.permute.xlu0 %7398
      %7400 = vrot.lane.b32.xlu0 %v7309, 120
      %v7401 = vpop.permute.xlu0 %7400
      %7402 = vrot.lane.b32.xlu0 %v7310, 120
      %v7403 = vpop.permute.xlu0 %7402
      %7404 = vrot.lane.b32.xlu0 %v7311, 120
      %v7405 = vpop.permute.xlu0 %7404
      %7406 = vrot.lane.b32.xlu0 %v7312, 120
      %v7407 = vpop.permute.xlu0 %7406
      %7408 = vrot.lane.b32.xlu0 %v7313, 120
      %v7409 = vpop.permute.xlu0 %7408
      %vm7442 = vcmask 48160
      %7443 = vst.msk [vmem:[#allocation2] sm:$0xff] %vm7442, %v7347
      %7444 = vst.msk [vmem:[#allocation2 + $0x8] sm:$0xff] %vm7442, %v7349
      %7445 = vst.msk [vmem:[#allocation2 + $0x10] sm:$0xff] %vm7442, %v7351
      %7446 = vst.msk [vmem:[#allocation2 + $0x18] sm:$0xff] %vm7442, %v7353
      %7447 = vst.msk [vmem:[#allocation2 + $0x20] sm:$0xff] %vm7442, %v7355
      %7448 = vst.msk [vmem:[#allocation2 + $0x28] sm:$0xff] %vm7442, %v7357
      %7449 = vst.msk [vmem:[#allocation2 + $0x30] sm:$0xff] %vm7442, %v7359
      %7450 = vst.msk [vmem:[#allocation2 + $0x38] sm:$0xff] %vm7442, %v7361
      %7451 = vst.msk [vmem:[#allocation2 + $0x40] sm:$0xff] %vm7442, %v7363
      %7452 = vst.msk [vmem:[#allocation2 + $0x48] sm:$0xff] %vm7442, %v7365
      %7453 = vst.msk [vmem:[#allocation2 + $0x50] sm:$0xff] %vm7442, %v7367
      %7454 = vst.msk [vmem:[#allocation2 + $0x58] sm:$0xff] %vm7442, %v7369
      %7455 = vst.msk [vmem:[#allocation2 + $0x60] sm:$0xff] %vm7442, %v7371
      %7456 = vst.msk [vmem:[#allocation2 + $0x68] sm:$0xff] %vm7442, %v7373
      %7457 = vst.msk [vmem:[#allocation2 + $0x70] sm:$0xff] %vm7442, %v7375
      %7458 = vst.msk [vmem:[#allocation2 + $0x78] sm:$0xff] %vm7442, %v7377
      %7459 = vst.msk [vmem:[#allocation2 + $0x80] sm:$0xff] %vm7442, %v7379
      %7460 = vst.msk [vmem:[#allocation2 + $0x88] sm:$0xff] %vm7442, %v7381
      %7461 = vst.msk [vmem:[#allocation2 + $0x90] sm:$0xff] %vm7442, %v7383
      %7462 = vst.msk [vmem:[#allocation2 + $0x98] sm:$0xff] %vm7442, %v7385
      %7463 = vst.msk [vmem:[#allocation2 + $0xa0] sm:$0xff] %vm7442, %v7387
      %7464 = vst.msk [vmem:[#allocation2 + $0xa8] sm:$0xff] %vm7442, %v7389
      %7465 = vst.msk [vmem:[#allocation2 + $0xb0] sm:$0xff] %vm7442, %v7391
      %7466 = vst.msk [vmem:[#allocation2 + $0xb8] sm:$0xff] %vm7442, %v7393
      %7467 = vst.msk [vmem:[#allocation2 + $0xc0] sm:$0xff] %vm7442, %v7395
      %7468 = vst.msk [vmem:[#allocation2 + $0xc8] sm:$0xff] %vm7442, %v7397
      %7469 = vst.msk [vmem:[#allocation2 + $0xd0] sm:$0xff] %vm7442, %v7399
      %7470 = vst.msk [vmem:[#allocation2 + $0xd8] sm:$0xff] %vm7442, %v7401
      %7471 = vst.msk [vmem:[#allocation2 + $0xe0] sm:$0xff] %vm7442, %v7403
      %7472 = vst.msk [vmem:[#allocation2 + $0xe8] sm:$0xff] %vm7442, %v7405
      %7473 = vst.msk [vmem:[#allocation2 + $0xf0] sm:$0xff] %vm7442, %v7407
      %7474 = vst.msk [vmem:[#allocation2 + $0xf8] sm:$0xff] %vm7442, %v7409
      %v7475 = vrot.slane %v7284, 1
      %v7476 = vrot.slane %v7282, 1
      %v7477 = vrot.slane %v7286, 1
      %v7478 = vrot.slane %v7288, 1
      %v7479 = vrot.slane %v7290, 1
      %v7480 = vrot.slane %v7292, 1
      %v7481 = vrot.slane %v7294, 1
      %v7482 = vrot.slane %v7296, 1
      %v7483 = vrot.slane %v7298, 1
      %v7484 = vrot.slane %v7300, 1
      %v7485 = vrot.slane %v7302, 1
      %v7486 = vrot.slane %v7304, 1
      %v7487 = vrot.slane %v7306, 1
      %v7488 = vrot.slane %v7308, 1
      %v7489 = vrot.slane %v7310, 1
      %v7490 = vrot.slane %v7312, 1
      %v7507 = vrot.slane %v7284, 7
      %v7508 = vrot.slane %v7285, 7
      %v7509 = vsel %vm1254, %v7507, %v7508
      %v7510 = vrot.slane %v7282, 7
      %v7511 = vrot.slane %v7283, 7
      %v7512 = vsel %vm1254, %v7510, %v7511
      %v7513 = vrot.slane %v7286, 7
      %v7514 = vrot.slane %v7287, 7
      %v7515 = vsel %vm1254, %v7513, %v7514
      %v7516 = vrot.slane %v7288, 7
      %v7517 = vrot.slane %v7289, 7
      %v7518 = vsel %vm1254, %v7516, %v7517
      %v7519 = vrot.slane %v7290, 7
      %v7520 = vrot.slane %v7291, 7
      %v7521 = vsel %vm1254, %v7519, %v7520
      %v7522 = vrot.slane %v7292, 7
      %v7523 = vrot.slane %v7293, 7
      %v7524 = vsel %vm1254, %v7522, %v7523
      %v7525 = vrot.slane %v7294, 7
      %v7526 = vrot.slane %v7295, 7
      %v7527 = vsel %vm1254, %v7525, %v7526
      %v7528 = vrot.slane %v7296, 7
      %v7529 = vrot.slane %v7297, 7
      %v7530 = vsel %vm1254, %v7528, %v7529
      %v7531 = vrot.slane %v7298, 7
      %v7532 = vrot.slane %v7299, 7
      %v7533 = vsel %vm1254, %v7531, %v7532
      %v7534 = vrot.slane %v7300, 7
      %v7535 = vrot.slane %v7301, 7
      %v7536 = vsel %vm1254, %v7534, %v7535
      %v7537 = vrot.slane %v7302, 7
      %v7538 = vrot.slane %v7303, 7
      %v7539 = vsel %vm1254, %v7537, %v7538
      %v7540 = vrot.slane %v7304, 7
      %v7541 = vrot.slane %v7305, 7
      %v7542 = vsel %vm1254, %v7540, %v7541
      %v7543 = vrot.slane %v7306, 7
      %v7544 = vrot.slane %v7307, 7
      %v7545 = vsel %vm1254, %v7543, %v7544
      %v7546 = vrot.slane %v7308, 7
      %v7547 = vrot.slane %v7309, 7
      %v7548 = vsel %vm1254, %v7546, %v7547
      %v7549 = vrot.slane %v7310, 7
      %v7550 = vrot.slane %v7311, 7
      %v7551 = vsel %vm1254, %v7549, %v7550
      %v7552 = vrot.slane %v7312, 7
      %v7553 = vrot.slane %v7313, 7
      %v7554 = vsel %vm1254, %v7552, %v7553
      %v7603 = vrot.slane %v7285, 5
      %v7604 = vrot.slane %v7283, 5
      %v7605 = vrot.slane %v7287, 5
      %v7606 = vrot.slane %v7289, 5
      %v7607 = vrot.slane %v7291, 5
      %v7608 = vrot.slane %v7293, 5
      %v7609 = vrot.slane %v7295, 5
      %v7610 = vrot.slane %v7297, 5
      %v7611 = vrot.slane %v7299, 5
      %v7612 = vrot.slane %v7301, 5
      %v7613 = vrot.slane %v7303, 5
      %v7614 = vrot.slane %v7305, 5
      %v7615 = vrot.slane %v7307, 5
      %v7616 = vrot.slane %v7309, 5
      %v7617 = vrot.slane %v7311, 5
      %v7618 = vrot.slane %v7313, 5
      %v7635 = vsel %vm1254, %v7475, %v7507
      %v7636 = vsel %vm1254, %v7476, %v7510
      %v7637 = vsel %vm1254, %v7477, %v7513
      %v7638 = vsel %vm1254, %v7478, %v7516
      %v7639 = vsel %vm1254, %v7479, %v7519
      %v7640 = vsel %vm1254, %v7480, %v7522
      %v7641 = vsel %vm1254, %v7481, %v7525
      %v7642 = vsel %vm1254, %v7482, %v7528
      %v7643 = vsel %vm1254, %v7483, %v7531
      %v7644 = vsel %vm1254, %v7484, %v7534
      %v7645 = vsel %vm1254, %v7485, %v7537
      %v7646 = vsel %vm1254, %v7486, %v7540
      %v7647 = vsel %vm1254, %v7487, %v7543
      %v7648 = vsel %vm1254, %v7488, %v7546
      %v7649 = vsel %vm1254, %v7489, %v7549
      %v7650 = vsel %vm1254, %v7490, %v7552
      %v7651 = vsel %vm1254, %v7508, %v7603
      %v7652 = vsel %vm1254, %v7511, %v7604
      %v7653 = vsel %vm1254, %v7514, %v7605
      %v7654 = vsel %vm1254, %v7517, %v7606
      %v7655 = vsel %vm1254, %v7520, %v7607
      %v7656 = vsel %vm1254, %v7523, %v7608
      %v7657 = vsel %vm1254, %v7526, %v7609
      %v7658 = vsel %vm1254, %v7529, %v7610
      %v7659 = vsel %vm1254, %v7532, %v7611
      %v7660 = vsel %vm1254, %v7535, %v7612
      %v7661 = vsel %vm1254, %v7538, %v7613
      %v7662 = vsel %vm1254, %v7541, %v7614
      %v7663 = vsel %vm1254, %v7544, %v7615
      %v7664 = vsel %vm1254, %v7547, %v7616
      %v7665 = vsel %vm1254, %v7550, %v7617
      %v7666 = vsel %vm1254, %v7553, %v7618
      %v7667 = vperm.slane %v3004, 3
      %7669 = vrot.lane.b32.xlu0 %v7667, 12
      %v7670 = vpop.permute.xlu0 %7669
      %v7672 = vmul.f32 %v7635, %v7670
      %v7673 = vmul.f32 %v7509, %v7670
      %v7674 = vmul.f32 %v7636, %v7670
      %v7675 = vmul.f32 %v7512, %v7670
      %v7676 = vmul.f32 %v7637, %v7670
      %v7677 = vmul.f32 %v7515, %v7670
      %v7678 = vmul.f32 %v7638, %v7670
      %v7679 = vmul.f32 %v7518, %v7670
      %v7680 = vmul.f32 %v7639, %v7670
      %v7681 = vmul.f32 %v7521, %v7670
      %v7682 = vmul.f32 %v7640, %v7670
      %v7683 = vmul.f32 %v7524, %v7670
      %v7684 = vmul.f32 %v7641, %v7670
      %v7685 = vmul.f32 %v7527, %v7670
      %v7686 = vmul.f32 %v7642, %v7670
      %v7687 = vmul.f32 %v7530, %v7670
      %v7688 = vmul.f32 %v7643, %v7670
      %v7689 = vmul.f32 %v7533, %v7670
      %v7690 = vmul.f32 %v7644, %v7670
      %v7691 = vmul.f32 %v7536, %v7670
      %v7692 = vmul.f32 %v7645, %v7670
      %v7693 = vmul.f32 %v7539, %v7670
      %v7694 = vmul.f32 %v7646, %v7670
      %v7695 = vmul.f32 %v7542, %v7670
      %v7696 = vmul.f32 %v7647, %v7670
      %v7697 = vmul.f32 %v7545, %v7670
      %v7698 = vmul.f32 %v7648, %v7670
      %v7699 = vmul.f32 %v7548, %v7670
      %v7700 = vmul.f32 %v7649, %v7670
      %v7701 = vmul.f32 %v7551, %v7670
      %v7702 = vperm.slane %v3004, 4
      %7704 = vrot.lane.b32.xlu0 %v7702, 12
      %v7705 = vpop.permute.xlu0 %7704
      %v7707 = vmul.f32 %v7635, %v7705
      %v7708 = vmul.f32 %v7509, %v7705
      %v7709 = vmul.f32 %v7651, %v7705
      %v7710 = vmul.f32 %v7636, %v7705
      %v7711 = vmul.f32 %v7512, %v7705
      %v7712 = vmul.f32 %v7652, %v7705
      %v7713 = vmul.f32 %v7637, %v7705
      %v7714 = vmul.f32 %v7515, %v7705
      %v7715 = vmul.f32 %v7653, %v7705
      %v7716 = vmul.f32 %v7638, %v7705
      %v7717 = vmul.f32 %v7518, %v7705
      %v7718 = vmul.f32 %v7654, %v7705
      %v7719 = vmul.f32 %v7639, %v7705
      %v7720 = vmul.f32 %v7521, %v7705
      %v7721 = vmul.f32 %v7655, %v7705
      %v7722 = vmul.f32 %v7640, %v7705
      %v7723 = vmul.f32 %v7524, %v7705
      %v7724 = vmul.f32 %v7656, %v7705
      %v7725 = vmul.f32 %v7641, %v7705
      %v7726 = vmul.f32 %v7527, %v7705
      %v7727 = vmul.f32 %v7657, %v7705
      %v7728 = vmul.f32 %v7642, %v7705
      %v7729 = vmul.f32 %v7530, %v7705
      %v7730 = vmul.f32 %v7658, %v7705
      %v7731 = vmul.f32 %v7643, %v7705
      %v7732 = vmul.f32 %v7533, %v7705
      %v7733 = vmul.f32 %v7659, %v7705
      %v7734 = vmul.f32 %v7644, %v7705
      %v7735 = vmul.f32 %v7536, %v7705
      %v7736 = vmul.f32 %v7660, %v7705
      %v7737 = vmul.f32 %v7645, %v7705
      %v7738 = vmul.f32 %v7539, %v7705
      %v7739 = vmul.f32 %v7661, %v7705
      %v7740 = vmul.f32 %v7646, %v7705
      %v7741 = vmul.f32 %v7542, %v7705
      %v7742 = vmul.f32 %v7662, %v7705
      %v7743 = vmul.f32 %v7647, %v7705
      %v7744 = vmul.f32 %v7545, %v7705
      %v7745 = vmul.f32 %v7663, %v7705
      %v7746 = vmul.f32 %v7648, %v7705
      %v7747 = vmul.f32 %v7548, %v7705
      %v7748 = vmul.f32 %v7664, %v7705
      %v7749 = vmul.f32 %v7649, %v7705
      %v7750 = vmul.f32 %v7551, %v7705
      %v7751 = vmul.f32 %v7665, %v7705
      %v7797 = vrot.slane %v7707, 1
      %v7798 = vrot.slane %v7708, 1
      %v7799 = vsel %vm1545, %v7797, %v7798
      %v7800 = vrot.slane %v7709, 1
      %v7801 = vsel %vm1545, %v7798, %v7800
      %v7802 = vrot.slane %v7710, 1
      %v7803 = vrot.slane %v7711, 1
      %v7804 = vsel %vm1545, %v7802, %v7803
      %v7805 = vrot.slane %v7712, 1
      %v7806 = vsel %vm1545, %v7803, %v7805
      %v7807 = vrot.slane %v7713, 1
      %v7808 = vrot.slane %v7714, 1
      %v7809 = vsel %vm1545, %v7807, %v7808
      %v7810 = vrot.slane %v7715, 1
      %v7811 = vsel %vm1545, %v7808, %v7810
      %v7812 = vrot.slane %v7716, 1
      %v7813 = vrot.slane %v7717, 1
      %v7814 = vsel %vm1545, %v7812, %v7813
      %v7815 = vrot.slane %v7718, 1
      %v7816 = vsel %vm1545, %v7813, %v7815
      %v7817 = vrot.slane %v7719, 1
      %v7818 = vrot.slane %v7720, 1
      %v7819 = vsel %vm1545, %v7817, %v7818
      %v7820 = vrot.slane %v7721, 1
      %v7821 = vsel %vm1545, %v7818, %v7820
      %v7822 = vrot.slane %v7722, 1
      %v7823 = vrot.slane %v7723, 1
      %v7824 = vsel %vm1545, %v7822, %v7823
      %v7825 = vrot.slane %v7724, 1
      %v7826 = vsel %vm1545, %v7823, %v7825
      %v7827 = vrot.slane %v7725, 1
      %v7828 = vrot.slane %v7726, 1
      %v7829 = vsel %vm1545, %v7827, %v7828
      %v7830 = vrot.slane %v7727, 1
      %v7831 = vsel %vm1545, %v7828, %v7830
      %v7832 = vrot.slane %v7728, 1
      %v7833 = vrot.slane %v7729, 1
      %v7834 = vsel %vm1545, %v7832, %v7833
      %v7835 = vrot.slane %v7730, 1
      %v7836 = vsel %vm1545, %v7833, %v7835
      %v7837 = vrot.slane %v7731, 1
      %v7838 = vrot.slane %v7732, 1
      %v7839 = vsel %vm1545, %v7837, %v7838
      %v7840 = vrot.slane %v7733, 1
      %v7841 = vsel %vm1545, %v7838, %v7840
      %v7842 = vrot.slane %v7734, 1
      %v7843 = vrot.slane %v7735, 1
      %v7844 = vsel %vm1545, %v7842, %v7843
      %v7845 = vrot.slane %v7736, 1
      %v7846 = vsel %vm1545, %v7843, %v7845
      %v7847 = vrot.slane %v7737, 1
      %v7848 = vrot.slane %v7738, 1
      %v7849 = vsel %vm1545, %v7847, %v7848
      %v7850 = vrot.slane %v7739, 1
      %v7851 = vsel %vm1545, %v7848, %v7850
      %v7852 = vrot.slane %v7740, 1
      %v7853 = vrot.slane %v7741, 1
      %v7854 = vsel %vm1545, %v7852, %v7853
      %v7855 = vrot.slane %v7742, 1
      %v7856 = vsel %vm1545, %v7853, %v7855
      %v7857 = vrot.slane %v7743, 1
      %v7858 = vrot.slane %v7744, 1
      %v7859 = vsel %vm1545, %v7857, %v7858
      %v7860 = vrot.slane %v7745, 1
      %v7861 = vsel %vm1545, %v7858, %v7860
      %v7862 = vrot.slane %v7746, 1
      %v7863 = vrot.slane %v7747, 1
      %v7864 = vsel %vm1545, %v7862, %v7863
      %v7865 = vrot.slane %v7748, 1
      %v7866 = vsel %vm1545, %v7863, %v7865
      %v7867 = vrot.slane %v7749, 1
      %v7868 = vrot.slane %v7750, 1
      %v7869 = vsel %vm1545, %v7867, %v7868
      %v7870 = vrot.slane %v7751, 1
      %v7871 = vsel %vm1545, %v7868, %v7870
      %v7902 = vadd.f32 %v7672, %v7799
      %v7903 = vadd.f32 %v7673, %v7801
      %v7904 = vadd.f32 %v7674, %v7804
      %v7905 = vadd.f32 %v7675, %v7806
      %v7906 = vadd.f32 %v7676, %v7809
      %v7907 = vadd.f32 %v7677, %v7811
      %v7908 = vadd.f32 %v7678, %v7814
      %v7909 = vadd.f32 %v7679, %v7816
      %v7910 = vadd.f32 %v7680, %v7819
      %v7911 = vadd.f32 %v7681, %v7821
      %v7912 = vadd.f32 %v7682, %v7824
      %v7913 = vadd.f32 %v7683, %v7826
      %v7914 = vadd.f32 %v7684, %v7829
      %v7915 = vadd.f32 %v7685, %v7831
      %v7916 = vadd.f32 %v7686, %v7834
      %v7917 = vadd.f32 %v7687, %v7836
      %v7918 = vadd.f32 %v7688, %v7839
      %v7919 = vadd.f32 %v7689, %v7841
      %v7920 = vadd.f32 %v7690, %v7844
      %v7921 = vadd.f32 %v7691, %v7846
      %v7922 = vadd.f32 %v7692, %v7849
      %v7923 = vadd.f32 %v7693, %v7851
      %v7924 = vadd.f32 %v7694, %v7854
      %v7925 = vadd.f32 %v7695, %v7856
      %v7926 = vadd.f32 %v7696, %v7859
      %v7927 = vadd.f32 %v7697, %v7861
      %v7928 = vadd.f32 %v7698, %v7864
      %v7929 = vadd.f32 %v7699, %v7866
      %v7930 = vadd.f32 %v7700, %v7869
      %v7931 = vadd.f32 %v7701, %v7871
      %v7932 = vperm.slane %v3004, 5
      %7934 = vrot.lane.b32.xlu0 %v7932, 12
      %v7935 = vpop.permute.xlu0 %7934
      %v7937 = vmul.f32 %v7635, %v7935
      %v7938 = vmul.f32 %v7509, %v7935
      %v7939 = vmul.f32 %v7651, %v7935
      %v7940 = vmul.f32 %v7636, %v7935
      %v7941 = vmul.f32 %v7512, %v7935
      %v7942 = vmul.f32 %v7652, %v7935
      %v7943 = vmul.f32 %v7637, %v7935
      %v7944 = vmul.f32 %v7515, %v7935
      %v7945 = vmul.f32 %v7653, %v7935
      %v7946 = vmul.f32 %v7638, %v7935
      %v7947 = vmul.f32 %v7518, %v7935
      %v7948 = vmul.f32 %v7654, %v7935
      %v7949 = vmul.f32 %v7639, %v7935
      %v7950 = vmul.f32 %v7521, %v7935
      %v7951 = vmul.f32 %v7655, %v7935
      %v7952 = vmul.f32 %v7640, %v7935
      %v7953 = vmul.f32 %v7524, %v7935
      %v7954 = vmul.f32 %v7656, %v7935
      %v7955 = vmul.f32 %v7641, %v7935
      %v7956 = vmul.f32 %v7527, %v7935
      %v7957 = vmul.f32 %v7657, %v7935
      %v7958 = vmul.f32 %v7642, %v7935
      %v7959 = vmul.f32 %v7530, %v7935
      %v7960 = vmul.f32 %v7658, %v7935
      %v7961 = vmul.f32 %v7643, %v7935
      %v7962 = vmul.f32 %v7533, %v7935
      %v7963 = vmul.f32 %v7659, %v7935
      %v7964 = vmul.f32 %v7644, %v7935
      %v7965 = vmul.f32 %v7536, %v7935
      %v7966 = vmul.f32 %v7660, %v7935
      %v7967 = vmul.f32 %v7645, %v7935
      %v7968 = vmul.f32 %v7539, %v7935
      %v7969 = vmul.f32 %v7661, %v7935
      %v7970 = vmul.f32 %v7646, %v7935
      %v7971 = vmul.f32 %v7542, %v7935
      %v7972 = vmul.f32 %v7662, %v7935
      %v7973 = vmul.f32 %v7647, %v7935
      %v7974 = vmul.f32 %v7545, %v7935
      %v7975 = vmul.f32 %v7663, %v7935
      %v7976 = vmul.f32 %v7648, %v7935
      %v7977 = vmul.f32 %v7548, %v7935
      %v7978 = vmul.f32 %v7664, %v7935
      %v7979 = vmul.f32 %v7649, %v7935
      %v7980 = vmul.f32 %v7551, %v7935
      %v7981 = vmul.f32 %v7665, %v7935
      %v8027 = vrot.slane %v7937, 2
      %v8028 = vrot.slane %v7938, 2
      %v8029 = vsel %vm1776, %v8027, %v8028
      %v8030 = vrot.slane %v7939, 2
      %v8031 = vsel %vm1776, %v8028, %v8030
      %v8032 = vrot.slane %v7940, 2
      %v8033 = vrot.slane %v7941, 2
      %v8034 = vsel %vm1776, %v8032, %v8033
      %v8035 = vrot.slane %v7942, 2
      %v8036 = vsel %vm1776, %v8033, %v8035
      %v8037 = vrot.slane %v7943, 2
      %v8038 = vrot.slane %v7944, 2
      %v8039 = vsel %vm1776, %v8037, %v8038
      %v8040 = vrot.slane %v7945, 2
      %v8041 = vsel %vm1776, %v8038, %v8040
      %v8042 = vrot.slane %v7946, 2
      %v8043 = vrot.slane %v7947, 2
      %v8044 = vsel %vm1776, %v8042, %v8043
      %v8045 = vrot.slane %v7948, 2
      %v8046 = vsel %vm1776, %v8043, %v8045
      %v8047 = vrot.slane %v7949, 2
      %v8048 = vrot.slane %v7950, 2
      %v8049 = vsel %vm1776, %v8047, %v8048
      %v8050 = vrot.slane %v7951, 2
      %v8051 = vsel %vm1776, %v8048, %v8050
      %v8052 = vrot.slane %v7952, 2
      %v8053 = vrot.slane %v7953, 2
      %v8054 = vsel %vm1776, %v8052, %v8053
      %v8055 = vrot.slane %v7954, 2
      %v8056 = vsel %vm1776, %v8053, %v8055
      %v8057 = vrot.slane %v7955, 2
      %v8058 = vrot.slane %v7956, 2
      %v8059 = vsel %vm1776, %v8057, %v8058
      %v8060 = vrot.slane %v7957, 2
      %v8061 = vsel %vm1776, %v8058, %v8060
      %v8062 = vrot.slane %v7958, 2
      %v8063 = vrot.slane %v7959, 2
      %v8064 = vsel %vm1776, %v8062, %v8063
      %v8065 = vrot.slane %v7960, 2
      %v8066 = vsel %vm1776, %v8063, %v8065
      %v8067 = vrot.slane %v7961, 2
      %v8068 = vrot.slane %v7962, 2
      %v8069 = vsel %vm1776, %v8067, %v8068
      %v8070 = vrot.slane %v7963, 2
      %v8071 = vsel %vm1776, %v8068, %v8070
      %v8072 = vrot.slane %v7964, 2
      %v8073 = vrot.slane %v7965, 2
      %v8074 = vsel %vm1776, %v8072, %v8073
      %v8075 = vrot.slane %v7966, 2
      %v8076 = vsel %vm1776, %v8073, %v8075
      %v8077 = vrot.slane %v7967, 2
      %v8078 = vrot.slane %v7968, 2
      %v8079 = vsel %vm1776, %v8077, %v8078
      %v8080 = vrot.slane %v7969, 2
      %v8081 = vsel %vm1776, %v8078, %v8080
      %v8082 = vrot.slane %v7970, 2
      %v8083 = vrot.slane %v7971, 2
      %v8084 = vsel %vm1776, %v8082, %v8083
      %v8085 = vrot.slane %v7972, 2
      %v8086 = vsel %vm1776, %v8083, %v8085
      %v8087 = vrot.slane %v7973, 2
      %v8088 = vrot.slane %v7974, 2
      %v8089 = vsel %vm1776, %v8087, %v8088
      %v8090 = vrot.slane %v7975, 2
      %v8091 = vsel %vm1776, %v8088, %v8090
      %v8092 = vrot.slane %v7976, 2
      %v8093 = vrot.slane %v7977, 2
      %v8094 = vsel %vm1776, %v8092, %v8093
      %v8095 = vrot.slane %v7978, 2
      %v8096 = vsel %vm1776, %v8093, %v8095
      %v8097 = vrot.slane %v7979, 2
      %v8098 = vrot.slane %v7980, 2
      %v8099 = vsel %vm1776, %v8097, %v8098
      %v8100 = vrot.slane %v7981, 2
      %v8101 = vsel %vm1776, %v8098, %v8100
      %v8132 = vadd.f32 %v7902, %v8029
      %v8133 = vadd.f32 %v7903, %v8031
      %v8134 = vadd.f32 %v7904, %v8034
      %v8135 = vadd.f32 %v7905, %v8036
      %v8136 = vadd.f32 %v7906, %v8039
      %v8137 = vadd.f32 %v7907, %v8041
      %v8138 = vadd.f32 %v7908, %v8044
      %v8139 = vadd.f32 %v7909, %v8046
      %v8140 = vadd.f32 %v7910, %v8049
      %v8141 = vadd.f32 %v7911, %v8051
      %v8142 = vadd.f32 %v7912, %v8054
      %v8143 = vadd.f32 %v7913, %v8056
      %v8144 = vadd.f32 %v7914, %v8059
      %v8145 = vadd.f32 %v7915, %v8061
      %v8146 = vadd.f32 %v7916, %v8064
      %v8147 = vadd.f32 %v7917, %v8066
      %v8148 = vadd.f32 %v7918, %v8069
      %v8149 = vadd.f32 %v7919, %v8071
      %v8150 = vadd.f32 %v7920, %v8074
      %v8151 = vadd.f32 %v7921, %v8076
      %v8152 = vadd.f32 %v7922, %v8079
      %v8153 = vadd.f32 %v7923, %v8081
      %v8154 = vadd.f32 %v7924, %v8084
      %v8155 = vadd.f32 %v7925, %v8086
      %v8156 = vadd.f32 %v7926, %v8089
      %v8157 = vadd.f32 %v7927, %v8091
      %v8158 = vadd.f32 %v7928, %v8094
      %v8159 = vadd.f32 %v7929, %v8096
      %v8160 = vadd.f32 %v7930, %v8099
      %v8161 = vadd.f32 %v7931, %v8101
      %v8162 = vperm.slane %v3004, 6
      %8164 = vrot.lane.b32.xlu0 %v8162, 12
      %v8165 = vpop.permute.xlu0 %8164
      %v8167 = vmul.f32 %v7636, %v8165
      %v8168 = vmul.f32 %v7512, %v8165
      %v8169 = vmul.f32 %v7635, %v8165
      %v8170 = vmul.f32 %v7509, %v8165
      %v8171 = vmul.f32 %v7637, %v8165
      %v8172 = vmul.f32 %v7515, %v8165
      %v8173 = vmul.f32 %v7638, %v8165
      %v8174 = vmul.f32 %v7518, %v8165
      %v8175 = vmul.f32 %v7639, %v8165
      %v8176 = vmul.f32 %v7521, %v8165
      %v8177 = vmul.f32 %v7640, %v8165
      %v8178 = vmul.f32 %v7524, %v8165
      %v8179 = vmul.f32 %v7641, %v8165
      %v8180 = vmul.f32 %v7527, %v8165
      %v8181 = vmul.f32 %v7642, %v8165
      %v8182 = vmul.f32 %v7530, %v8165
      %v8183 = vmul.f32 %v7643, %v8165
      %v8184 = vmul.f32 %v7533, %v8165
      %v8185 = vmul.f32 %v7644, %v8165
      %v8186 = vmul.f32 %v7536, %v8165
      %v8187 = vmul.f32 %v7645, %v8165
      %v8188 = vmul.f32 %v7539, %v8165
      %v8189 = vmul.f32 %v7646, %v8165
      %v8190 = vmul.f32 %v7542, %v8165
      %v8191 = vmul.f32 %v7647, %v8165
      %v8192 = vmul.f32 %v7545, %v8165
      %v8193 = vmul.f32 %v7648, %v8165
      %v8194 = vmul.f32 %v7548, %v8165
      %v8195 = vmul.f32 %v7649, %v8165
      %v8196 = vmul.f32 %v7551, %v8165
      %v8197 = vmul.f32 %v7650, %v8165
      %v8198 = vmul.f32 %v7554, %v8165
      %v8199 = vadd.f32 %v8132, %v8167
      %v8200 = vadd.f32 %v8133, %v8168
      %v8201 = vadd.f32 %v8134, %v8169
      %v8202 = vadd.f32 %v8135, %v8170
      %v8203 = vadd.f32 %v8132, %v8171
      %v8204 = vadd.f32 %v8133, %v8172
      %v8205 = vadd.f32 %v8136, %v8173
      %v8206 = vadd.f32 %v8137, %v8174
      %v8207 = vadd.f32 %v8138, %v8175
      %v8208 = vadd.f32 %v8139, %v8176
      %v8209 = vadd.f32 %v8140, %v8177
      %v8210 = vadd.f32 %v8141, %v8178
      %v8211 = vadd.f32 %v8142, %v8179
      %v8212 = vadd.f32 %v8143, %v8180
      %v8213 = vadd.f32 %v8144, %v8181
      %v8214 = vadd.f32 %v8145, %v8182
      %v8215 = vadd.f32 %v8146, %v8183
      %v8216 = vadd.f32 %v8147, %v8184
      %v8217 = vadd.f32 %v8148, %v8185
      %v8218 = vadd.f32 %v8149, %v8186
      %v8219 = vadd.f32 %v8150, %v8187
      %v8220 = vadd.f32 %v8151, %v8188
      %v8221 = vadd.f32 %v8152, %v8189
      %v8222 = vadd.f32 %v8153, %v8190
      %v8223 = vadd.f32 %v8154, %v8191
      %v8224 = vadd.f32 %v8155, %v8192
      %v8225 = vadd.f32 %v8156, %v8193
      %v8226 = vadd.f32 %v8157, %v8194
      %v8227 = vadd.f32 %v8158, %v8195
      %v8228 = vadd.f32 %v8159, %v8196
      %v8229 = vadd.f32 %v8160, %v8197
      %v8230 = vadd.f32 %v8161, %v8198
      %v8231 = vperm.slane %v3004, 7
      %8233 = vrot.lane.b32.xlu0 %v8231, 12
      %v8234 = vpop.permute.xlu0 %8233
      %v8236 = vmul.f32 %v7636, %v8234
      %v8237 = vmul.f32 %v7512, %v8234
      %v8238 = vmul.f32 %v7652, %v8234
      %v8239 = vmul.f32 %v7635, %v8234
      %v8240 = vmul.f32 %v7509, %v8234
      %v8241 = vmul.f32 %v7651, %v8234
      %v8242 = vmul.f32 %v7637, %v8234
      %v8243 = vmul.f32 %v7515, %v8234
      %v8244 = vmul.f32 %v7653, %v8234
      %v8245 = vmul.f32 %v7638, %v8234
      %v8246 = vmul.f32 %v7518, %v8234
      %v8247 = vmul.f32 %v7654, %v8234
      %v8248 = vmul.f32 %v7639, %v8234
      %v8249 = vmul.f32 %v7521, %v8234
      %v8250 = vmul.f32 %v7655, %v8234
      %v8251 = vmul.f32 %v7640, %v8234
      %v8252 = vmul.f32 %v7524, %v8234
      %v8253 = vmul.f32 %v7656, %v8234
      %v8254 = vmul.f32 %v7641, %v8234
      %v8255 = vmul.f32 %v7527, %v8234
      %v8256 = vmul.f32 %v7657, %v8234
      %v8257 = vmul.f32 %v7642, %v8234
      %v8258 = vmul.f32 %v7530, %v8234
      %v8259 = vmul.f32 %v7658, %v8234
      %v8260 = vmul.f32 %v7643, %v8234
      %v8261 = vmul.f32 %v7533, %v8234
      %v8262 = vmul.f32 %v7659, %v8234
      %v8263 = vmul.f32 %v7644, %v8234
      %v8264 = vmul.f32 %v7536, %v8234
      %v8265 = vmul.f32 %v7660, %v8234
      %v8266 = vmul.f32 %v7645, %v8234
      %v8267 = vmul.f32 %v7539, %v8234
      %v8268 = vmul.f32 %v7661, %v8234
      %v8269 = vmul.f32 %v7646, %v8234
      %v8270 = vmul.f32 %v7542, %v8234
      %v8271 = vmul.f32 %v7662, %v8234
      %v8272 = vmul.f32 %v7647, %v8234
      %v8273 = vmul.f32 %v7545, %v8234
      %v8274 = vmul.f32 %v7663, %v8234
      %v8275 = vmul.f32 %v7648, %v8234
      %v8276 = vmul.f32 %v7548, %v8234
      %v8277 = vmul.f32 %v7664, %v8234
      %v8278 = vmul.f32 %v7649, %v8234
      %v8279 = vmul.f32 %v7551, %v8234
      %v8280 = vmul.f32 %v7665, %v8234
      %v8281 = vmul.f32 %v7650, %v8234
      %v8282 = vmul.f32 %v7554, %v8234
      %v8283 = vmul.f32 %v7666, %v8234
      %v8332 = vrot.slane %v8236, 1
      %v8333 = vrot.slane %v8237, 1
      %v8334 = vsel %vm1545, %v8332, %v8333
      %v8335 = vrot.slane %v8238, 1
      %v8336 = vsel %vm1545, %v8333, %v8335
      %v8337 = vrot.slane %v8239, 1
      %v8338 = vrot.slane %v8240, 1
      %v8339 = vsel %vm1545, %v8337, %v8338
      %v8340 = vrot.slane %v8241, 1
      %v8341 = vsel %vm1545, %v8338, %v8340
      %v8342 = vrot.slane %v8242, 1
      %v8343 = vrot.slane %v8243, 1
      %v8344 = vsel %vm1545, %v8342, %v8343
      %v8345 = vrot.slane %v8244, 1
      %v8346 = vsel %vm1545, %v8343, %v8345
      %v8347 = vrot.slane %v8245, 1
      %v8348 = vrot.slane %v8246, 1
      %v8349 = vsel %vm1545, %v8347, %v8348
      %v8350 = vrot.slane %v8247, 1
      %v8351 = vsel %vm1545, %v8348, %v8350
      %v8352 = vrot.slane %v8248, 1
      %v8353 = vrot.slane %v8249, 1
      %v8354 = vsel %vm1545, %v8352, %v8353
      %v8355 = vrot.slane %v8250, 1
      %v8356 = vsel %vm1545, %v8353, %v8355
      %v8357 = vrot.slane %v8251, 1
      %v8358 = vrot.slane %v8252, 1
      %v8359 = vsel %vm1545, %v8357, %v8358
      %v8360 = vrot.slane %v8253, 1
      %v8361 = vsel %vm1545, %v8358, %v8360
      %v8362 = vrot.slane %v8254, 1
      %v8363 = vrot.slane %v8255, 1
      %v8364 = vsel %vm1545, %v8362, %v8363
      %v8365 = vrot.slane %v8256, 1
      %v8366 = vsel %vm1545, %v8363, %v8365
      %v8367 = vrot.slane %v8257, 1
      %v8368 = vrot.slane %v8258, 1
      %v8369 = vsel %vm1545, %v8367, %v8368
      %v8370 = vrot.slane %v8259, 1
      %v8371 = vsel %vm1545, %v8368, %v8370
      %v8372 = vrot.slane %v8260, 1
      %v8373 = vrot.slane %v8261, 1
      %v8374 = vsel %vm1545, %v8372, %v8373
      %v8375 = vrot.slane %v8262, 1
      %v8376 = vsel %vm1545, %v8373, %v8375
      %v8377 = vrot.slane %v8263, 1
      %v8378 = vrot.slane %v8264, 1
      %v8379 = vsel %vm1545, %v8377, %v8378
      %v8380 = vrot.slane %v8265, 1
      %v8381 = vsel %vm1545, %v8378, %v8380
      %v8382 = vrot.slane %v8266, 1
      %v8383 = vrot.slane %v8267, 1
      %v8384 = vsel %vm1545, %v8382, %v8383
      %v8385 = vrot.slane %v8268, 1
      %v8386 = vsel %vm1545, %v8383, %v8385
      %v8387 = vrot.slane %v8269, 1
      %v8388 = vrot.slane %v8270, 1
      %v8389 = vsel %vm1545, %v8387, %v8388
      %v8390 = vrot.slane %v8271, 1
      %v8391 = vsel %vm1545, %v8388, %v8390
      %v8392 = vrot.slane %v8272, 1
      %v8393 = vrot.slane %v8273, 1
      %v8394 = vsel %vm1545, %v8392, %v8393
      %v8395 = vrot.slane %v8274, 1
      %v8396 = vsel %vm1545, %v8393, %v8395
      %v8397 = vrot.slane %v8275, 1
      %v8398 = vrot.slane %v8276, 1
      %v8399 = vsel %vm1545, %v8397, %v8398
      %v8400 = vrot.slane %v8277, 1
      %v8401 = vsel %vm1545, %v8398, %v8400
      %v8402 = vrot.slane %v8278, 1
      %v8403 = vrot.slane %v8279, 1
      %v8404 = vsel %vm1545, %v8402, %v8403
      %v8405 = vrot.slane %v8280, 1
      %v8406 = vsel %vm1545, %v8403, %v8405
      %v8407 = vrot.slane %v8281, 1
      %v8408 = vrot.slane %v8282, 1
      %v8409 = vsel %vm1545, %v8407, %v8408
      %v8410 = vrot.slane %v8283, 1
      %v8411 = vsel %vm1545, %v8408, %v8410
      %v8444 = vadd.f32 %v8199, %v8334
      %v8445 = vadd.f32 %v8200, %v8336
      %v8446 = vadd.f32 %v8201, %v8339
      %v8447 = vadd.f32 %v8202, %v8341
      %v8448 = vadd.f32 %v8203, %v8344
      %v8449 = vadd.f32 %v8204, %v8346
      %v8450 = vadd.f32 %v8205, %v8349
      %v8451 = vadd.f32 %v8206, %v8351
      %v8452 = vadd.f32 %v8207, %v8354
      %v8453 = vadd.f32 %v8208, %v8356
      %v8454 = vadd.f32 %v8209, %v8359
      %v8455 = vadd.f32 %v8210, %v8361
      %v8456 = vadd.f32 %v8211, %v8364
      %v8457 = vadd.f32 %v8212, %v8366
      %v8458 = vadd.f32 %v8213, %v8369
      %v8459 = vadd.f32 %v8214, %v8371
      %v8460 = vadd.f32 %v8215, %v8374
      %v8461 = vadd.f32 %v8216, %v8376
      %v8462 = vadd.f32 %v8217, %v8379
      %v8463 = vadd.f32 %v8218, %v8381
      %v8464 = vadd.f32 %v8219, %v8384
      %v8465 = vadd.f32 %v8220, %v8386
      %v8466 = vadd.f32 %v8221, %v8389
      %v8467 = vadd.f32 %v8222, %v8391
      %v8468 = vadd.f32 %v8223, %v8394
      %v8469 = vadd.f32 %v8224, %v8396
      %v8470 = vadd.f32 %v8225, %v8399
      %v8471 = vadd.f32 %v8226, %v8401
      %v8472 = vadd.f32 %v8227, %v8404
      %v8473 = vadd.f32 %v8228, %v8406
      %v8474 = vadd.f32 %v8229, %v8409
      %v8475 = vadd.f32 %v8230, %v8411
      %v8476 = vperm.slane %v3005, 0
      %8478 = vrot.lane.b32.xlu0 %v8476, 12
      %v8479 = vpop.permute.xlu0 %8478
      %v8481 = vmul.f32 %v7636, %v8479
      %v8482 = vmul.f32 %v7512, %v8479
      %v8483 = vmul.f32 %v7652, %v8479
      %v8484 = vmul.f32 %v7635, %v8479
      %v8485 = vmul.f32 %v7509, %v8479
      %v8486 = vmul.f32 %v7651, %v8479
      %v8487 = vmul.f32 %v7637, %v8479
      %v8488 = vmul.f32 %v7515, %v8479
      %v8489 = vmul.f32 %v7653, %v8479
      %v8490 = vmul.f32 %v7638, %v8479
      %v8491 = vmul.f32 %v7518, %v8479
      %v8492 = vmul.f32 %v7654, %v8479
      %v8493 = vmul.f32 %v7639, %v8479
      %v8494 = vmul.f32 %v7521, %v8479
      %v8495 = vmul.f32 %v7655, %v8479
      %v8496 = vmul.f32 %v7640, %v8479
      %v8497 = vmul.f32 %v7524, %v8479
      %v8498 = vmul.f32 %v7656, %v8479
      %v8499 = vmul.f32 %v7641, %v8479
      %v8500 = vmul.f32 %v7527, %v8479
      %v8501 = vmul.f32 %v7657, %v8479
      %v8502 = vmul.f32 %v7642, %v8479
      %v8503 = vmul.f32 %v7530, %v8479
      %v8504 = vmul.f32 %v7658, %v8479
      %v8505 = vmul.f32 %v7643, %v8479
      %v8506 = vmul.f32 %v7533, %v8479
      %v8507 = vmul.f32 %v7659, %v8479
      %v8508 = vmul.f32 %v7644, %v8479
      %v8509 = vmul.f32 %v7536, %v8479
      %v8510 = vmul.f32 %v7660, %v8479
      %v8511 = vmul.f32 %v7645, %v8479
      %v8512 = vmul.f32 %v7539, %v8479
      %v8513 = vmul.f32 %v7661, %v8479
      %v8514 = vmul.f32 %v7646, %v8479
      %v8515 = vmul.f32 %v7542, %v8479
      %v8516 = vmul.f32 %v7662, %v8479
      %v8517 = vmul.f32 %v7647, %v8479
      %v8518 = vmul.f32 %v7545, %v8479
      %v8519 = vmul.f32 %v7663, %v8479
      %v8520 = vmul.f32 %v7648, %v8479
      %v8521 = vmul.f32 %v7548, %v8479
      %v8522 = vmul.f32 %v7664, %v8479
      %v8523 = vmul.f32 %v7649, %v8479
      %v8524 = vmul.f32 %v7551, %v8479
      %v8525 = vmul.f32 %v7665, %v8479
      %v8526 = vmul.f32 %v7650, %v8479
      %v8527 = vmul.f32 %v7554, %v8479
      %v8528 = vmul.f32 %v7666, %v8479
      %v8577 = vrot.slane %v8481, 2
      %v8578 = vrot.slane %v8482, 2
      %v8579 = vsel %vm1776, %v8577, %v8578
      %v8580 = vrot.slane %v8483, 2
      %v8581 = vsel %vm1776, %v8578, %v8580
      %v8582 = vrot.slane %v8484, 2
      %v8583 = vrot.slane %v8485, 2
      %v8584 = vsel %vm1776, %v8582, %v8583
      %v8585 = vrot.slane %v8486, 2
      %v8586 = vsel %vm1776, %v8583, %v8585
      %v8587 = vrot.slane %v8487, 2
      %v8588 = vrot.slane %v8488, 2
      %v8589 = vsel %vm1776, %v8587, %v8588
      %v8590 = vrot.slane %v8489, 2
      %v8591 = vsel %vm1776, %v8588, %v8590
      %v8592 = vrot.slane %v8490, 2
      %v8593 = vrot.slane %v8491, 2
      %v8594 = vsel %vm1776, %v8592, %v8593
      %v8595 = vrot.slane %v8492, 2
      %v8596 = vsel %vm1776, %v8593, %v8595
      %v8597 = vrot.slane %v8493, 2
      %v8598 = vrot.slane %v8494, 2
      %v8599 = vsel %vm1776, %v8597, %v8598
      %v8600 = vrot.slane %v8495, 2
      %v8601 = vsel %vm1776, %v8598, %v8600
      %v8602 = vrot.slane %v8496, 2
      %v8603 = vrot.slane %v8497, 2
      %v8604 = vsel %vm1776, %v8602, %v8603
      %v8605 = vrot.slane %v8498, 2
      %v8606 = vsel %vm1776, %v8603, %v8605
      %v8607 = vrot.slane %v8499, 2
      %v8608 = vrot.slane %v8500, 2
      %v8609 = vsel %vm1776, %v8607, %v8608
      %v8610 = vrot.slane %v8501, 2
      %v8611 = vsel %vm1776, %v8608, %v8610
      %v8612 = vrot.slane %v8502, 2
      %v8613 = vrot.slane %v8503, 2
      %v8614 = vsel %vm1776, %v8612, %v8613
      %v8615 = vrot.slane %v8504, 2
      %v8616 = vsel %vm1776, %v8613, %v8615
      %v8617 = vrot.slane %v8505, 2
      %v8618 = vrot.slane %v8506, 2
      %v8619 = vsel %vm1776, %v8617, %v8618
      %v8620 = vrot.slane %v8507, 2
      %v8621 = vsel %vm1776, %v8618, %v8620
      %v8622 = vrot.slane %v8508, 2
      %v8623 = vrot.slane %v8509, 2
      %v8624 = vsel %vm1776, %v8622, %v8623
      %v8625 = vrot.slane %v8510, 2
      %v8626 = vsel %vm1776, %v8623, %v8625
      %v8627 = vrot.slane %v8511, 2
      %v8628 = vrot.slane %v8512, 2
      %v8629 = vsel %vm1776, %v8627, %v8628
      %v8630 = vrot.slane %v8513, 2
      %v8631 = vsel %vm1776, %v8628, %v8630
      %v8632 = vrot.slane %v8514, 2
      %v8633 = vrot.slane %v8515, 2
      %v8634 = vsel %vm1776, %v8632, %v8633
      %v8635 = vrot.slane %v8516, 2
      %v8636 = vsel %vm1776, %v8633, %v8635
      %v8637 = vrot.slane %v8517, 2
      %v8638 = vrot.slane %v8518, 2
      %v8639 = vsel %vm1776, %v8637, %v8638
      %v8640 = vrot.slane %v8519, 2
      %v8641 = vsel %vm1776, %v8638, %v8640
      %v8642 = vrot.slane %v8520, 2
      %v8643 = vrot.slane %v8521, 2
      %v8644 = vsel %vm1776, %v8642, %v8643
      %v8645 = vrot.slane %v8522, 2
      %v8646 = vsel %vm1776, %v8643, %v8645
      %v8647 = vrot.slane %v8523, 2
      %v8648 = vrot.slane %v8524, 2
      %v8649 = vsel %vm1776, %v8647, %v8648
      %v8650 = vrot.slane %v8525, 2
      %v8651 = vsel %vm1776, %v8648, %v8650
      %v8652 = vrot.slane %v8526, 2
      %v8653 = vrot.slane %v8527, 2
      %v8654 = vsel %vm1776, %v8652, %v8653
      %v8655 = vrot.slane %v8528, 2
      %v8656 = vsel %vm1776, %v8653, %v8655
      %v8689 = vadd.f32 %v8444, %v8579
      %v8690 = vadd.f32 %v8445, %v8581
      %v8691 = vadd.f32 %v8446, %v8584
      %v8692 = vadd.f32 %v8447, %v8586
      %v8693 = vadd.f32 %v8448, %v8589
      %v8694 = vadd.f32 %v8449, %v8591
      %v8695 = vadd.f32 %v8450, %v8594
      %v8696 = vadd.f32 %v8451, %v8596
      %v8697 = vadd.f32 %v8452, %v8599
      %v8698 = vadd.f32 %v8453, %v8601
      %v8699 = vadd.f32 %v8454, %v8604
      %v8700 = vadd.f32 %v8455, %v8606
      %v8701 = vadd.f32 %v8456, %v8609
      %v8702 = vadd.f32 %v8457, %v8611
      %v8703 = vadd.f32 %v8458, %v8614
      %v8704 = vadd.f32 %v8459, %v8616
      %v8705 = vadd.f32 %v8460, %v8619
      %v8706 = vadd.f32 %v8461, %v8621
      %v8707 = vadd.f32 %v8462, %v8624
      %v8708 = vadd.f32 %v8463, %v8626
      %v8709 = vadd.f32 %v8464, %v8629
      %v8710 = vadd.f32 %v8465, %v8631
      %v8711 = vadd.f32 %v8466, %v8634
      %v8712 = vadd.f32 %v8467, %v8636
      %v8713 = vadd.f32 %v8468, %v8639
      %v8714 = vadd.f32 %v8469, %v8641
      %v8715 = vadd.f32 %v8470, %v8644
      %v8716 = vadd.f32 %v8471, %v8646
      %v8717 = vadd.f32 %v8472, %v8649
      %v8718 = vadd.f32 %v8473, %v8651
      %v8719 = vadd.f32 %v8474, %v8654
      %v8720 = vadd.f32 %v8475, %v8656
      %v8721 = vperm.slane %v3005, 1
      %8723 = vrot.lane.b32.xlu0 %v8721, 12
      %v8724 = vpop.permute.xlu0 %8723
      %v8726 = vmul.f32 %v7635, %v8724
      %v8727 = vmul.f32 %v7509, %v8724
      %v8728 = vmul.f32 %v7637, %v8724
      %v8729 = vmul.f32 %v7515, %v8724
      %v8730 = vmul.f32 %v7638, %v8724
      %v8731 = vmul.f32 %v7518, %v8724
      %v8732 = vmul.f32 %v7639, %v8724
      %v8733 = vmul.f32 %v7521, %v8724
      %v8734 = vmul.f32 %v7640, %v8724
      %v8735 = vmul.f32 %v7524, %v8724
      %v8736 = vmul.f32 %v7641, %v8724
      %v8737 = vmul.f32 %v7527, %v8724
      %v8738 = vmul.f32 %v7642, %v8724
      %v8739 = vmul.f32 %v7530, %v8724
      %v8740 = vmul.f32 %v7643, %v8724
      %v8741 = vmul.f32 %v7533, %v8724
      %v8742 = vmul.f32 %v7644, %v8724
      %v8743 = vmul.f32 %v7536, %v8724
      %v8744 = vmul.f32 %v7645, %v8724
      %v8745 = vmul.f32 %v7539, %v8724
      %v8746 = vmul.f32 %v7646, %v8724
      %v8747 = vmul.f32 %v7542, %v8724
      %v8748 = vmul.f32 %v7647, %v8724
      %v8749 = vmul.f32 %v7545, %v8724
      %v8750 = vmul.f32 %v7648, %v8724
      %v8751 = vmul.f32 %v7548, %v8724
      %v8752 = vmul.f32 %v7649, %v8724
      %v8753 = vmul.f32 %v7551, %v8724
      %v8754 = vmul.f32 %v7650, %v8724
      %v8755 = vmul.f32 %v7554, %v8724
      %v8756 = vadd.f32 %v8689, %v8726
      %v8757 = vadd.f32 %v8690, %v8727
      %v8758 = vadd.f32 %v8691, %v8728
      %v8759 = vadd.f32 %v8692, %v8729
      %v8760 = vadd.f32 %v8693, %v8730
      %v8761 = vadd.f32 %v8694, %v8731
      %v8762 = vadd.f32 %v8695, %v8732
      %v8763 = vadd.f32 %v8696, %v8733
      %v8764 = vadd.f32 %v8697, %v8734
      %v8765 = vadd.f32 %v8698, %v8735
      %v8766 = vadd.f32 %v8699, %v8736
      %v8767 = vadd.f32 %v8700, %v8737
      %v8768 = vadd.f32 %v8701, %v8738
      %v8769 = vadd.f32 %v8702, %v8739
      %v8770 = vadd.f32 %v8703, %v8740
      %v8771 = vadd.f32 %v8704, %v8741
      %v8772 = vadd.f32 %v8705, %v8742
      %v8773 = vadd.f32 %v8706, %v8743
      %v8774 = vadd.f32 %v8707, %v8744
      %v8775 = vadd.f32 %v8708, %v8745
      %v8776 = vadd.f32 %v8709, %v8746
      %v8777 = vadd.f32 %v8710, %v8747
      %v8778 = vadd.f32 %v8711, %v8748
      %v8779 = vadd.f32 %v8712, %v8749
      %v8780 = vadd.f32 %v8713, %v8750
      %v8781 = vadd.f32 %v8714, %v8751
      %v8782 = vadd.f32 %v8715, %v8752
      %v8783 = vadd.f32 %v8716, %v8753
      %v8784 = vadd.f32 %v8717, %v8754
      %v8785 = vadd.f32 %v8718, %v8755
      %v8786 = vadd.f32 %v8719, %v8752
      %v8787 = vadd.f32 %v8720, %v8753
      %v8788 = vperm.slane %v3005, 2
      %8790 = vrot.lane.b32.xlu0 %v8788, 12
      %v8791 = vpop.permute.xlu0 %8790
      %v8793 = vmul.f32 %v7635, %v8791
      %v8794 = vmul.f32 %v7509, %v8791
      %v8795 = vmul.f32 %v7651, %v8791
      %v8796 = vmul.f32 %v7637, %v8791
      %v8797 = vmul.f32 %v7515, %v8791
      %v8798 = vmul.f32 %v7653, %v8791
      %v8799 = vmul.f32 %v7638, %v8791
      %v8800 = vmul.f32 %v7518, %v8791
      %v8801 = vmul.f32 %v7654, %v8791
      %v8802 = vmul.f32 %v7639, %v8791
      %v8803 = vmul.f32 %v7521, %v8791
      %v8804 = vmul.f32 %v7655, %v8791
      %v8805 = vmul.f32 %v7640, %v8791
      %v8806 = vmul.f32 %v7524, %v8791
      %v8807 = vmul.f32 %v7656, %v8791
      %v8808 = vmul.f32 %v7641, %v8791
      %v8809 = vmul.f32 %v7527, %v8791
      %v8810 = vmul.f32 %v7657, %v8791
      %v8811 = vmul.f32 %v7642, %v8791
      %v8812 = vmul.f32 %v7530, %v8791
      %v8813 = vmul.f32 %v7658, %v8791
      %v8814 = vmul.f32 %v7643, %v8791
      %v8815 = vmul.f32 %v7533, %v8791
      %v8816 = vmul.f32 %v7659, %v8791
      %v8817 = vmul.f32 %v7644, %v8791
      %v8818 = vmul.f32 %v7536, %v8791
      %v8819 = vmul.f32 %v7660, %v8791
      %v8820 = vmul.f32 %v7645, %v8791
      %v8821 = vmul.f32 %v7539, %v8791
      %v8822 = vmul.f32 %v7661, %v8791
      %v8823 = vmul.f32 %v7646, %v8791
      %v8824 = vmul.f32 %v7542, %v8791
      %v8825 = vmul.f32 %v7662, %v8791
      %v8826 = vmul.f32 %v7647, %v8791
      %v8827 = vmul.f32 %v7545, %v8791
      %v8828 = vmul.f32 %v7663, %v8791
      %v8829 = vmul.f32 %v7648, %v8791
      %v8830 = vmul.f32 %v7548, %v8791
      %v8831 = vmul.f32 %v7664, %v8791
      %v8832 = vmul.f32 %v7649, %v8791
      %v8833 = vmul.f32 %v7551, %v8791
      %v8834 = vmul.f32 %v7665, %v8791
      %v8835 = vmul.f32 %v7650, %v8791
      %v8836 = vmul.f32 %v7554, %v8791
      %v8837 = vmul.f32 %v7666, %v8791
      %v8883 = vrot.slane %v8793, 1
      %v8884 = vrot.slane %v8794, 1
      %v8885 = vsel %vm1545, %v8883, %v8884
      %v8886 = vrot.slane %v8795, 1
      %v8887 = vsel %vm1545, %v8884, %v8886
      %v8888 = vrot.slane %v8796, 1
      %v8889 = vrot.slane %v8797, 1
      %v8890 = vsel %vm1545, %v8888, %v8889
      %v8891 = vrot.slane %v8798, 1
      %v8892 = vsel %vm1545, %v8889, %v8891
      %v8893 = vrot.slane %v8799, 1
      %v8894 = vrot.slane %v8800, 1
      %v8895 = vsel %vm1545, %v8893, %v8894
      %v8896 = vrot.slane %v8801, 1
      %v8897 = vsel %vm1545, %v8894, %v8896
      %v8898 = vrot.slane %v8802, 1
      %v8899 = vrot.slane %v8803, 1
      %v8900 = vsel %vm1545, %v8898, %v8899
      %v8901 = vrot.slane %v8804, 1
      %v8902 = vsel %vm1545, %v8899, %v8901
      %v8903 = vrot.slane %v8805, 1
      %v8904 = vrot.slane %v8806, 1
      %v8905 = vsel %vm1545, %v8903, %v8904
      %v8906 = vrot.slane %v8807, 1
      %v8907 = vsel %vm1545, %v8904, %v8906
      %v8908 = vrot.slane %v8808, 1
      %v8909 = vrot.slane %v8809, 1
      %v8910 = vsel %vm1545, %v8908, %v8909
      %v8911 = vrot.slane %v8810, 1
      %v8912 = vsel %vm1545, %v8909, %v8911
      %v8913 = vrot.slane %v8811, 1
      %v8914 = vrot.slane %v8812, 1
      %v8915 = vsel %vm1545, %v8913, %v8914
      %v8916 = vrot.slane %v8813, 1
      %v8917 = vsel %vm1545, %v8914, %v8916
      %v8918 = vrot.slane %v8814, 1
      %v8919 = vrot.slane %v8815, 1
      %v8920 = vsel %vm1545, %v8918, %v8919
      %v8921 = vrot.slane %v8816, 1
      %v8922 = vsel %vm1545, %v8919, %v8921
      %v8923 = vrot.slane %v8817, 1
      %v8924 = vrot.slane %v8818, 1
      %v8925 = vsel %vm1545, %v8923, %v8924
      %v8926 = vrot.slane %v8819, 1
      %v8927 = vsel %vm1545, %v8924, %v8926
      %v8928 = vrot.slane %v8820, 1
      %v8929 = vrot.slane %v8821, 1
      %v8930 = vsel %vm1545, %v8928, %v8929
      %v8931 = vrot.slane %v8822, 1
      %v8932 = vsel %vm1545, %v8929, %v8931
      %v8933 = vrot.slane %v8823, 1
      %v8934 = vrot.slane %v8824, 1
      %v8935 = vsel %vm1545, %v8933, %v8934
      %v8936 = vrot.slane %v8825, 1
      %v8937 = vsel %vm1545, %v8934, %v8936
      %v8938 = vrot.slane %v8826, 1
      %v8939 = vrot.slane %v8827, 1
      %v8940 = vsel %vm1545, %v8938, %v8939
      %v8941 = vrot.slane %v8828, 1
      %v8942 = vsel %vm1545, %v8939, %v8941
      %v8943 = vrot.slane %v8829, 1
      %v8944 = vrot.slane %v8830, 1
      %v8945 = vsel %vm1545, %v8943, %v8944
      %v8946 = vrot.slane %v8831, 1
      %v8947 = vsel %vm1545, %v8944, %v8946
      %v8948 = vrot.slane %v8832, 1
      %v8949 = vrot.slane %v8833, 1
      %v8950 = vsel %vm1545, %v8948, %v8949
      %v8951 = vrot.slane %v8834, 1
      %v8952 = vsel %vm1545, %v8949, %v8951
      %v8953 = vrot.slane %v8835, 1
      %v8954 = vrot.slane %v8836, 1
      %v8955 = vsel %vm1545, %v8953, %v8954
      %v8956 = vrot.slane %v8837, 1
      %v8957 = vsel %vm1545, %v8954, %v8956
      %v8988 = vadd.f32 %v8756, %v8885
      %v8989 = vadd.f32 %v8757, %v8887
      %v8990 = vadd.f32 %v8758, %v8890
      %v8991 = vadd.f32 %v8759, %v8892
      %v8992 = vadd.f32 %v8760, %v8895
      %v8993 = vadd.f32 %v8761, %v8897
      %v8994 = vadd.f32 %v8762, %v8900
      %v8995 = vadd.f32 %v8763, %v8902
      %v8996 = vadd.f32 %v8764, %v8905
      %v8997 = vadd.f32 %v8765, %v8907
      %v8998 = vadd.f32 %v8766, %v8910
      %v8999 = vadd.f32 %v8767, %v8912
      %v9000 = vadd.f32 %v8768, %v8915
      %v9001 = vadd.f32 %v8769, %v8917
      %v9002 = vadd.f32 %v8770, %v8920
      %v9003 = vadd.f32 %v8771, %v8922
      %v9004 = vadd.f32 %v8772, %v8925
      %v9005 = vadd.f32 %v8773, %v8927
      %v9006 = vadd.f32 %v8774, %v8930
      %v9007 = vadd.f32 %v8775, %v8932
      %v9008 = vadd.f32 %v8776, %v8935
      %v9009 = vadd.f32 %v8777, %v8937
      %v9010 = vadd.f32 %v8778, %v8940
      %v9011 = vadd.f32 %v8779, %v8942
      %v9012 = vadd.f32 %v8780, %v8945
      %v9013 = vadd.f32 %v8781, %v8947
      %v9014 = vadd.f32 %v8782, %v8950
      %v9015 = vadd.f32 %v8783, %v8952
      %v9016 = vadd.f32 %v8784, %v8955
      %v9017 = vadd.f32 %v8785, %v8957
      %v9018 = vadd.f32 %v8786, %v8950
      %v9019 = vadd.f32 %v8787, %v8952
      %v9020 = vperm.slane %v3005, 3
      %9022 = vrot.lane.b32.xlu0 %v9020, 12
      %v9023 = vpop.permute.xlu0 %9022
      %v9025 = vmul.f32 %v7635, %v9023
      %v9026 = vmul.f32 %v7509, %v9023
      %v9027 = vmul.f32 %v7651, %v9023
      %v9028 = vmul.f32 %v7637, %v9023
      %v9029 = vmul.f32 %v7515, %v9023
      %v9030 = vmul.f32 %v7653, %v9023
      %v9031 = vmul.f32 %v7638, %v9023
      %v9032 = vmul.f32 %v7518, %v9023
      %v9033 = vmul.f32 %v7654, %v9023
      %v9034 = vmul.f32 %v7639, %v9023
      %v9035 = vmul.f32 %v7521, %v9023
      %v9036 = vmul.f32 %v7655, %v9023
      %v9037 = vmul.f32 %v7640, %v9023
      %v9038 = vmul.f32 %v7524, %v9023
      %v9039 = vmul.f32 %v7656, %v9023
      %v9040 = vmul.f32 %v7641, %v9023
      %v9041 = vmul.f32 %v7527, %v9023
      %v9042 = vmul.f32 %v7657, %v9023
      %v9043 = vmul.f32 %v7642, %v9023
      %v9044 = vmul.f32 %v7530, %v9023
      %v9045 = vmul.f32 %v7658, %v9023
      %v9046 = vmul.f32 %v7643, %v9023
      %v9047 = vmul.f32 %v7533, %v9023
      %v9048 = vmul.f32 %v7659, %v9023
      %v9049 = vmul.f32 %v7644, %v9023
      %v9050 = vmul.f32 %v7536, %v9023
      %v9051 = vmul.f32 %v7660, %v9023
      %v9052 = vmul.f32 %v7645, %v9023
      %v9053 = vmul.f32 %v7539, %v9023
      %v9054 = vmul.f32 %v7661, %v9023
      %v9055 = vmul.f32 %v7646, %v9023
      %v9056 = vmul.f32 %v7542, %v9023
      %v9057 = vmul.f32 %v7662, %v9023
      %v9058 = vmul.f32 %v7647, %v9023
      %v9059 = vmul.f32 %v7545, %v9023
      %v9060 = vmul.f32 %v7663, %v9023
      %v9061 = vmul.f32 %v7648, %v9023
      %v9062 = vmul.f32 %v7548, %v9023
      %v9063 = vmul.f32 %v7664, %v9023
      %v9064 = vmul.f32 %v7649, %v9023
      %v9065 = vmul.f32 %v7551, %v9023
      %v9066 = vmul.f32 %v7665, %v9023
      %v9067 = vmul.f32 %v7650, %v9023
      %v9068 = vmul.f32 %v7554, %v9023
      %v9069 = vmul.f32 %v7666, %v9023
      %v9115 = vrot.slane %v9025, 2
      %v9116 = vrot.slane %v9026, 2
      %v9117 = vsel %vm1776, %v9115, %v9116
      %v9118 = vrot.slane %v9027, 2
      %v9119 = vsel %vm1776, %v9116, %v9118
      %v9120 = vrot.slane %v9028, 2
      %v9121 = vrot.slane %v9029, 2
      %v9122 = vsel %vm1776, %v9120, %v9121
      %v9123 = vrot.slane %v9030, 2
      %v9124 = vsel %vm1776, %v9121, %v9123
      %v9125 = vrot.slane %v9031, 2
      %v9126 = vrot.slane %v9032, 2
      %v9127 = vsel %vm1776, %v9125, %v9126
      %v9128 = vrot.slane %v9033, 2
      %v9129 = vsel %vm1776, %v9126, %v9128
      %v9130 = vrot.slane %v9034, 2
      %v9131 = vrot.slane %v9035, 2
      %v9132 = vsel %vm1776, %v9130, %v9131
      %v9133 = vrot.slane %v9036, 2
      %v9134 = vsel %vm1776, %v9131, %v9133
      %v9135 = vrot.slane %v9037, 2
      %v9136 = vrot.slane %v9038, 2
      %v9137 = vsel %vm1776, %v9135, %v9136
      %v9138 = vrot.slane %v9039, 2
      %v9139 = vsel %vm1776, %v9136, %v9138
      %v9140 = vrot.slane %v9040, 2
      %v9141 = vrot.slane %v9041, 2
      %v9142 = vsel %vm1776, %v9140, %v9141
      %v9143 = vrot.slane %v9042, 2
      %v9144 = vsel %vm1776, %v9141, %v9143
      %v9145 = vrot.slane %v9043, 2
      %v9146 = vrot.slane %v9044, 2
      %v9147 = vsel %vm1776, %v9145, %v9146
      %v9148 = vrot.slane %v9045, 2
      %v9149 = vsel %vm1776, %v9146, %v9148
      %v9150 = vrot.slane %v9046, 2
      %v9151 = vrot.slane %v9047, 2
      %v9152 = vsel %vm1776, %v9150, %v9151
      %v9153 = vrot.slane %v9048, 2
      %v9154 = vsel %vm1776, %v9151, %v9153
      %v9155 = vrot.slane %v9049, 2
      %v9156 = vrot.slane %v9050, 2
      %v9157 = vsel %vm1776, %v9155, %v9156
      %v9158 = vrot.slane %v9051, 2
      %v9159 = vsel %vm1776, %v9156, %v9158
      %v9160 = vrot.slane %v9052, 2
      %v9161 = vrot.slane %v9053, 2
      %v9162 = vsel %vm1776, %v9160, %v9161
      %v9163 = vrot.slane %v9054, 2
      %v9164 = vsel %vm1776, %v9161, %v9163
      %v9165 = vrot.slane %v9055, 2
      %v9166 = vrot.slane %v9056, 2
      %v9167 = vsel %vm1776, %v9165, %v9166
      %v9168 = vrot.slane %v9057, 2
      %v9169 = vsel %vm1776, %v9166, %v9168
      %v9170 = vrot.slane %v9058, 2
      %v9171 = vrot.slane %v9059, 2
      %v9172 = vsel %vm1776, %v9170, %v9171
      %v9173 = vrot.slane %v9060, 2
      %v9174 = vsel %vm1776, %v9171, %v9173
      %v9175 = vrot.slane %v9061, 2
      %v9176 = vrot.slane %v9062, 2
      %v9177 = vsel %vm1776, %v9175, %v9176
      %v9178 = vrot.slane %v9063, 2
      %v9179 = vsel %vm1776, %v9176, %v9178
      %v9180 = vrot.slane %v9064, 2
      %v9181 = vrot.slane %v9065, 2
      %v9182 = vsel %vm1776, %v9180, %v9181
      %v9183 = vrot.slane %v9066, 2
      %v9184 = vsel %vm1776, %v9181, %v9183
      %v9185 = vrot.slane %v9067, 2
      %v9186 = vrot.slane %v9068, 2
      %v9187 = vsel %vm1776, %v9185, %v9186
      %v9188 = vrot.slane %v9069, 2
      %v9189 = vsel %vm1776, %v9186, %v9188
      %v9220 = vadd.f32 %v8988, %v9117
      %v9221 = vadd.f32 %v8989, %v9119
      %v9222 = vadd.f32 %v8990, %v9122
      %v9223 = vadd.f32 %v8991, %v9124
      %v9224 = vadd.f32 %v8992, %v9127
      %v9225 = vadd.f32 %v8993, %v9129
      %v9226 = vadd.f32 %v8994, %v9132
      %v9227 = vadd.f32 %v8995, %v9134
      %v9228 = vadd.f32 %v8996, %v9137
      %v9229 = vadd.f32 %v8997, %v9139
      %v9230 = vadd.f32 %v8998, %v9142
      %v9231 = vadd.f32 %v8999, %v9144
      %v9232 = vadd.f32 %v9000, %v9147
      %v9233 = vadd.f32 %v9001, %v9149
      %v9234 = vadd.f32 %v9002, %v9152
      %v9235 = vadd.f32 %v9003, %v9154
      %v9236 = vadd.f32 %v9004, %v9157
      %v9237 = vadd.f32 %v9005, %v9159
      %v9238 = vadd.f32 %v9006, %v9162
      %v9239 = vadd.f32 %v9007, %v9164
      %v9240 = vadd.f32 %v9008, %v9167
      %v9241 = vadd.f32 %v9009, %v9169
      %v9242 = vadd.f32 %v9010, %v9172
      %v9243 = vadd.f32 %v9011, %v9174
      %v9244 = vadd.f32 %v9012, %v9177
      %v9245 = vadd.f32 %v9013, %v9179
      %v9246 = vadd.f32 %v9014, %v9182
      %v9247 = vadd.f32 %v9015, %v9184
      %v9248 = vadd.f32 %v9016, %v9187
      %v9249 = vadd.f32 %v9017, %v9189
      %v9250 = vadd.f32 %v9018, %v9182
      %v9251 = vadd.f32 %v9019, %v9184
      %9284 = vrot.lane.b32.xlu0 %v9220, 2
      %v9285 = vpop.permute.xlu0 %9284
      %9286 = vrot.lane.b32.xlu0 %v9221, 2
      %v9287 = vpop.permute.xlu0 %9286
      %9288 = vrot.lane.b32.xlu0 %v9222, 2
      %v9289 = vpop.permute.xlu0 %9288
      %9290 = vrot.lane.b32.xlu0 %v9223, 2
      %v9291 = vpop.permute.xlu0 %9290
      %9292 = vrot.lane.b32.xlu0 %v9224, 2
      %v9293 = vpop.permute.xlu0 %9292
      %9294 = vrot.lane.b32.xlu0 %v9225, 2
      %v9295 = vpop.permute.xlu0 %9294
      %9296 = vrot.lane.b32.xlu0 %v9226, 2
      %v9297 = vpop.permute.xlu0 %9296
      %9298 = vrot.lane.b32.xlu0 %v9227, 2
      %v9299 = vpop.permute.xlu0 %9298
      %9300 = vrot.lane.b32.xlu0 %v9228, 2
      %v9301 = vpop.permute.xlu0 %9300
      %9302 = vrot.lane.b32.xlu0 %v9229, 2
      %v9303 = vpop.permute.xlu0 %9302
      %9304 = vrot.lane.b32.xlu0 %v9230, 2
      %v9305 = vpop.permute.xlu0 %9304
      %9306 = vrot.lane.b32.xlu0 %v9231, 2
      %v9307 = vpop.permute.xlu0 %9306
      %9308 = vrot.lane.b32.xlu0 %v9232, 2
      %v9309 = vpop.permute.xlu0 %9308
      %9310 = vrot.lane.b32.xlu0 %v9233, 2
      %v9311 = vpop.permute.xlu0 %9310
      %9312 = vrot.lane.b32.xlu0 %v9234, 2
      %v9313 = vpop.permute.xlu0 %9312
      %9314 = vrot.lane.b32.xlu0 %v9235, 2
      %v9315 = vpop.permute.xlu0 %9314
      %9316 = vrot.lane.b32.xlu0 %v9236, 2
      %v9317 = vpop.permute.xlu0 %9316
      %9318 = vrot.lane.b32.xlu0 %v9237, 2
      %v9319 = vpop.permute.xlu0 %9318
      %9320 = vrot.lane.b32.xlu0 %v9238, 2
      %v9321 = vpop.permute.xlu0 %9320
      %9322 = vrot.lane.b32.xlu0 %v9239, 2
      %v9323 = vpop.permute.xlu0 %9322
      %9324 = vrot.lane.b32.xlu0 %v9240, 2
      %v9325 = vpop.permute.xlu0 %9324
      %9326 = vrot.lane.b32.xlu0 %v9241, 2
      %v9327 = vpop.permute.xlu0 %9326
      %9328 = vrot.lane.b32.xlu0 %v9242, 2
      %v9329 = vpop.permute.xlu0 %9328
      %9330 = vrot.lane.b32.xlu0 %v9243, 2
      %v9331 = vpop.permute.xlu0 %9330
      %9332 = vrot.lane.b32.xlu0 %v9244, 2
      %v9333 = vpop.permute.xlu0 %9332
      %9334 = vrot.lane.b32.xlu0 %v9245, 2
      %v9335 = vpop.permute.xlu0 %9334
      %9336 = vrot.lane.b32.xlu0 %v9246, 2
      %v9337 = vpop.permute.xlu0 %9336
      %9338 = vrot.lane.b32.xlu0 %v9247, 2
      %v9339 = vpop.permute.xlu0 %9338
      %9340 = vrot.lane.b32.xlu0 %v9248, 2
      %v9341 = vpop.permute.xlu0 %9340
      %9342 = vrot.lane.b32.xlu0 %v9249, 2
      %v9343 = vpop.permute.xlu0 %9342
      %9344 = vrot.lane.b32.xlu0 %v9250, 2
      %v9345 = vpop.permute.xlu0 %9344
      %9346 = vrot.lane.b32.xlu0 %v9251, 2
      %v9347 = vpop.permute.xlu0 %9346
      %v9380 = vadd.f32 %v2970, %v9285
      %v9381 = vadd.f32 %v2971, %v9287
      %v9382 = vadd.f32 %v2972, %v9289
      %v9383 = vadd.f32 %v2973, %v9291
      %v9384 = vadd.f32 %v2974, %v9293
      %v9385 = vadd.f32 %v2975, %v9295
      %v9386 = vadd.f32 %v2976, %v9297
      %v9387 = vadd.f32 %v2977, %v9299
      %v9388 = vadd.f32 %v2978, %v9301
      %v9389 = vadd.f32 %v2979, %v9303
      %v9390 = vadd.f32 %v2980, %v9305
      %v9391 = vadd.f32 %v2981, %v9307
      %v9392 = vadd.f32 %v2982, %v9309
      %v9393 = vadd.f32 %v2983, %v9311
      %v9394 = vadd.f32 %v2984, %v9313
      %v9395 = vadd.f32 %v2985, %v9315
      %v9396 = vadd.f32 %v2986, %v9317
      %v9397 = vadd.f32 %v2987, %v9319
      %v9398 = vadd.f32 %v2988, %v9321
      %v9399 = vadd.f32 %v2989, %v9323
      %v9400 = vadd.f32 %v2990, %v9325
      %v9401 = vadd.f32 %v2991, %v9327
      %v9402 = vadd.f32 %v2992, %v9329
      %v9403 = vadd.f32 %v2993, %v9331
      %v9404 = vadd.f32 %v2994, %v9333
      %v9405 = vadd.f32 %v2995, %v9335
      %v9406 = vadd.f32 %v2996, %v9337
      %v9407 = vadd.f32 %v2997, %v9339
      %v9408 = vadd.f32 %v2998, %v9341
      %v9409 = vadd.f32 %v2999, %v9343
      %v9410 = vadd.f32 %v3000, %v9345
      %v9411 = vadd.f32 %v3001, %v9347
      %v9412 = vperm.slane %v3006, 3
      %9414 = vrot.lane.b32.xlu0 %v9412, 14
      %v9415 = vpop.permute.xlu0 %9414
      %v9417 = vadd.f32 %v9380, %v9415
      %v9418 = vadd.f32 %v9381, %v9415
      %v9419 = vadd.f32 %v9382, %v9415
      %v9420 = vadd.f32 %v9383, %v9415
      %v9421 = vadd.f32 %v9384, %v9415
      %v9422 = vadd.f32 %v9385, %v9415
      %v9423 = vadd.f32 %v9386, %v9415
      %v9424 = vadd.f32 %v9387, %v9415
      %v9425 = vadd.f32 %v9388, %v9415
      %v9426 = vadd.f32 %v9389, %v9415
      %v9427 = vadd.f32 %v9390, %v9415
      %v9428 = vadd.f32 %v9391, %v9415
      %v9429 = vadd.f32 %v9392, %v9415
      %v9430 = vadd.f32 %v9393, %v9415
      %v9431 = vadd.f32 %v9394, %v9415
      %v9432 = vadd.f32 %v9395, %v9415
      %v9433 = vadd.f32 %v9396, %v9415
      %v9434 = vadd.f32 %v9397, %v9415
      %v9435 = vadd.f32 %v9398, %v9415
      %v9436 = vadd.f32 %v9399, %v9415
      %v9437 = vadd.f32 %v9400, %v9415
      %v9438 = vadd.f32 %v9401, %v9415
      %v9439 = vadd.f32 %v9402, %v9415
      %v9440 = vadd.f32 %v9403, %v9415
      %v9441 = vadd.f32 %v9404, %v9415
      %v9442 = vadd.f32 %v9405, %v9415
      %v9443 = vadd.f32 %v9406, %v9415
      %v9444 = vadd.f32 %v9407, %v9415
      %v9445 = vadd.f32 %v9408, %v9415
      %v9446 = vadd.f32 %v9409, %v9415
      %v9447 = vadd.f32 %v9410, %v9415
      %v9448 = vadd.f32 %v9411, %v9415
      %9481 = vrot.lane.b32.xlu0 %v9417, 120
      %v9482 = vpop.permute.xlu0 %9481
      %9483 = vrot.lane.b32.xlu0 %v9418, 120
      %v9484 = vpop.permute.xlu0 %9483
      %9485 = vrot.lane.b32.xlu0 %v9419, 120
      %v9486 = vpop.permute.xlu0 %9485
      %9487 = vrot.lane.b32.xlu0 %v9420, 120
      %v9488 = vpop.permute.xlu0 %9487
      %9489 = vrot.lane.b32.xlu0 %v9421, 120
      %v9490 = vpop.permute.xlu0 %9489
      %9491 = vrot.lane.b32.xlu0 %v9422, 120
      %v9492 = vpop.permute.xlu0 %9491
      %9493 = vrot.lane.b32.xlu0 %v9423, 120
      %v9494 = vpop.permute.xlu0 %9493
      %9495 = vrot.lane.b32.xlu0 %v9424, 120
      %v9496 = vpop.permute.xlu0 %9495
      %9497 = vrot.lane.b32.xlu0 %v9425, 120
      %v9498 = vpop.permute.xlu0 %9497
      %9499 = vrot.lane.b32.xlu0 %v9426, 120
      %v9500 = vpop.permute.xlu0 %9499
      %9501 = vrot.lane.b32.xlu0 %v9427, 120
      %v9502 = vpop.permute.xlu0 %9501
      %9503 = vrot.lane.b32.xlu0 %v9428, 120
      %v9504 = vpop.permute.xlu0 %9503
      %9505 = vrot.lane.b32.xlu0 %v9429, 120
      %v9506 = vpop.permute.xlu0 %9505
      %9507 = vrot.lane.b32.xlu0 %v9430, 120
      %v9508 = vpop.permute.xlu0 %9507
      %9509 = vrot.lane.b32.xlu0 %v9431, 120
      %v9510 = vpop.permute.xlu0 %9509
      %9511 = vrot.lane.b32.xlu0 %v9432, 120
      %v9512 = vpop.permute.xlu0 %9511
      %9513 = vrot.lane.b32.xlu0 %v9433, 120
      %v9514 = vpop.permute.xlu0 %9513
      %9515 = vrot.lane.b32.xlu0 %v9434, 120
      %v9516 = vpop.permute.xlu0 %9515
      %9517 = vrot.lane.b32.xlu0 %v9435, 120
      %v9518 = vpop.permute.xlu0 %9517
      %9519 = vrot.lane.b32.xlu0 %v9436, 120
      %v9520 = vpop.permute.xlu0 %9519
      %9521 = vrot.lane.b32.xlu0 %v9437, 120
      %v9522 = vpop.permute.xlu0 %9521
      %9523 = vrot.lane.b32.xlu0 %v9438, 120
      %v9524 = vpop.permute.xlu0 %9523
      %9525 = vrot.lane.b32.xlu0 %v9439, 120
      %v9526 = vpop.permute.xlu0 %9525
      %9527 = vrot.lane.b32.xlu0 %v9440, 120
      %v9528 = vpop.permute.xlu0 %9527
      %9529 = vrot.lane.b32.xlu0 %v9441, 120
      %v9530 = vpop.permute.xlu0 %9529
      %9531 = vrot.lane.b32.xlu0 %v9442, 120
      %v9532 = vpop.permute.xlu0 %9531
      %9533 = vrot.lane.b32.xlu0 %v9443, 120
      %v9534 = vpop.permute.xlu0 %9533
      %9535 = vrot.lane.b32.xlu0 %v9444, 120
      %v9536 = vpop.permute.xlu0 %9535
      %9537 = vrot.lane.b32.xlu0 %v9445, 120
      %v9538 = vpop.permute.xlu0 %9537
      %9539 = vrot.lane.b32.xlu0 %v9446, 120
      %v9540 = vpop.permute.xlu0 %9539
      %9541 = vrot.lane.b32.xlu0 %v9447, 120
      %v9542 = vpop.permute.xlu0 %9541
      %9543 = vrot.lane.b32.xlu0 %v9448, 120
      %v9544 = vpop.permute.xlu0 %9543
      %vm9577 = vcmask 64560
      %9578 = vst.msk [vmem:[#allocation2] sm:$0xff] %vm9577, %v9482
      %9579 = vst.msk [vmem:[#allocation2 + $0x8] sm:$0xff] %vm9577, %v9484
      %9580 = vst.msk [vmem:[#allocation2 + $0x10] sm:$0xff] %vm9577, %v9486
      %9581 = vst.msk [vmem:[#allocation2 + $0x18] sm:$0xff] %vm9577, %v9488
      %9582 = vst.msk [vmem:[#allocation2 + $0x20] sm:$0xff] %vm9577, %v9490
      %9583 = vst.msk [vmem:[#allocation2 + $0x28] sm:$0xff] %vm9577, %v9492
      %9584 = vst.msk [vmem:[#allocation2 + $0x30] sm:$0xff] %vm9577, %v9494
      %9585 = vst.msk [vmem:[#allocation2 + $0x38] sm:$0xff] %vm9577, %v9496
      %9586 = vst.msk [vmem:[#allocation2 + $0x40] sm:$0xff] %vm9577, %v9498
      %9587 = vst.msk [vmem:[#allocation2 + $0x48] sm:$0xff] %vm9577, %v9500
      %9588 = vst.msk [vmem:[#allocation2 + $0x50] sm:$0xff] %vm9577, %v9502
      %9589 = vst.msk [vmem:[#allocation2 + $0x58] sm:$0xff] %vm9577, %v9504
      %9590 = vst.msk [vmem:[#allocation2 + $0x60] sm:$0xff] %vm9577, %v9506
      %9591 = vst.msk [vmem:[#allocation2 + $0x68] sm:$0xff] %vm9577, %v9508
      %9592 = vst.msk [vmem:[#allocation2 + $0x70] sm:$0xff] %vm9577, %v9510
      %9593 = vst.msk [vmem:[#allocation2 + $0x78] sm:$0xff] %vm9577, %v9512
      %9594 = vst.msk [vmem:[#allocation2 + $0x80] sm:$0xff] %vm9577, %v9514
      %9595 = vst.msk [vmem:[#allocation2 + $0x88] sm:$0xff] %vm9577, %v9516
      %9596 = vst.msk [vmem:[#allocation2 + $0x90] sm:$0xff] %vm9577, %v9518
      %9597 = vst.msk [vmem:[#allocation2 + $0x98] sm:$0xff] %vm9577, %v9520
      %9598 = vst.msk [vmem:[#allocation2 + $0xa0] sm:$0xff] %vm9577, %v9522
      %9599 = vst.msk [vmem:[#allocation2 + $0xa8] sm:$0xff] %vm9577, %v9524
      %9600 = vst.msk [vmem:[#allocation2 + $0xb0] sm:$0xff] %vm9577, %v9526
      %9601 = vst.msk [vmem:[#allocation2 + $0xb8] sm:$0xff] %vm9577, %v9528
      %9602 = vst.msk [vmem:[#allocation2 + $0xc0] sm:$0xff] %vm9577, %v9530
      %9603 = vst.msk [vmem:[#allocation2 + $0xc8] sm:$0xff] %vm9577, %v9532
      %9604 = vst.msk [vmem:[#allocation2 + $0xd0] sm:$0xff] %vm9577, %v9534
      %9605 = vst.msk [vmem:[#allocation2 + $0xd8] sm:$0xff] %vm9577, %v9536
      %9606 = vst.msk [vmem:[#allocation2 + $0xe0] sm:$0xff] %vm9577, %v9538
      %9607 = vst.msk [vmem:[#allocation2 + $0xe8] sm:$0xff] %vm9577, %v9540
      %9608 = vst.msk [vmem:[#allocation2 + $0xf0] sm:$0xff] %vm9577, %v9542
      %9609 = vst.msk [vmem:[#allocation2 + $0xf8] sm:$0xff] %vm9577, %v9544
      %v9610 = vld [vmem:[#allocation2] sm:$0xff]
      %v9611 = vld [vmem:[#allocation2 + $0x8] sm:$0xff]
      %v9612 = vld [vmem:[#allocation2 + $0x10] sm:$0xff]
      %v9613 = vld [vmem:[#allocation2 + $0x18] sm:$0xff]
      %v9614 = vld [vmem:[#allocation2 + $0x20] sm:$0xff]
      %v9615 = vld [vmem:[#allocation2 + $0x28] sm:$0xff]
      %v9616 = vld [vmem:[#allocation2 + $0x30] sm:$0xff]
      %v9617 = vld [vmem:[#allocation2 + $0x38] sm:$0xff]
      %v9618 = vld [vmem:[#allocation2 + $0x40] sm:$0xff]
      %v9619 = vld [vmem:[#allocation2 + $0x48] sm:$0xff]
      %v9620 = vld [vmem:[#allocation2 + $0x50] sm:$0xff]
      %v9621 = vld [vmem:[#allocation2 + $0x58] sm:$0xff]
      %v9622 = vld [vmem:[#allocation2 + $0x60] sm:$0xff]
      %v9623 = vld [vmem:[#allocation2 + $0x68] sm:$0xff]
      %v9624 = vld [vmem:[#allocation2 + $0x70] sm:$0xff]
      %v9625 = vld [vmem:[#allocation2 + $0x78] sm:$0xff]
      %v9626 = vld [vmem:[#allocation2 + $0x80] sm:$0xff]
      %v9627 = vld [vmem:[#allocation2 + $0x88] sm:$0xff]
      %v9628 = vld [vmem:[#allocation2 + $0x90] sm:$0xff]
      %v9629 = vld [vmem:[#allocation2 + $0x98] sm:$0xff]
      %v9630 = vld [vmem:[#allocation2 + $0xa0] sm:$0xff]
      %v9631 = vld [vmem:[#allocation2 + $0xa8] sm:$0xff]
      %v9632 = vld [vmem:[#allocation2 + $0xb0] sm:$0xff]
      %v9633 = vld [vmem:[#allocation2 + $0xb8] sm:$0xff]
      %v9634 = vld [vmem:[#allocation2 + $0xc0] sm:$0xff]
      %v9635 = vld [vmem:[#allocation2 + $0xc8] sm:$0xff]
      %v9636 = vld [vmem:[#allocation2 + $0xd0] sm:$0xff]
      %v9637 = vld [vmem:[#allocation2 + $0xd8] sm:$0xff]
      %v9638 = vld [vmem:[#allocation2 + $0xe0] sm:$0xff]
      %v9639 = vld [vmem:[#allocation2 + $0xe8] sm:$0xff]
      %v9640 = vld [vmem:[#allocation2 + $0xf0] sm:$0xff]
      %v9641 = vld [vmem:[#allocation2 + $0xf8] sm:$0xff]
      %v9642 = vmul.f32 %v9610, %v722
      %v9643 = vmul.f32 %v9611, %v737
      %v9644 = vmul.f32 %v9612, %v752
      %v9645 = vmul.f32 %v9613, %v767
      %v9646 = vmul.f32 %v9614, %v782
      %v9647 = vmul.f32 %v9615, %v797
      %v9648 = vmul.f32 %v9616, %v812
      %v9649 = vmul.f32 %v9617, %v827
      %v9650 = vmul.f32 %v9618, %v842
      %v9651 = vmul.f32 %v9619, %v857
      %v9652 = vmul.f32 %v9620, %v872
      %v9653 = vmul.f32 %v9621, %v887
      %v9654 = vmul.f32 %v9622, %v902
      %v9655 = vmul.f32 %v9623, %v917
      %v9656 = vmul.f32 %v9624, %v932
      %v9657 = vmul.f32 %v9625, %v947
      %v9658 = vmul.f32 %v9626, %v962
      %v9659 = vmul.f32 %v9627, %v977
      %v9660 = vmul.f32 %v9628, %v992
      %v9661 = vmul.f32 %v9629, %v1007
      %v9662 = vmul.f32 %v9630, %v1022
      %v9663 = vmul.f32 %v9631, %v1037
      %v9664 = vmul.f32 %v9632, %v1052
      %v9665 = vmul.f32 %v9633, %v1067
      %v9666 = vmul.f32 %v9634, %v1082
      %v9667 = vmul.f32 %v9635, %v1097
      %v9668 = vmul.f32 %v9636, %v1112
      %v9669 = vmul.f32 %v9637, %v1127
      %v9670 = vmul.f32 %v9638, %v1142
      %v9671 = vmul.f32 %v9639, %v1157
      %v9672 = vmul.f32 %v9640, %v1172
      %v9673 = vmul.f32 %v9641, %v1187
      %v9674 = vld [vmem:[%s6] sm:$0xff]
      %v9675 = vld [vmem:[%s7] sm:$0x1]
      %v9677 = vperm.slane %v9675, 0
      %v9680 = vsel %vm370, %v9642, 0
      %v9683 = vsel %vm370, %v9643, 0
      %v9686 = vsel %vm370, %v9644, 0
      %v9689 = vsel %vm370, %v9645, 0
      %v9692 = vsel %vm370, %v9646, 0
      %v9695 = vsel %vm370, %v9647, 0
      %v9698 = vsel %vm370, %v9648, 0
      %v9701 = vsel %vm370, %v9649, 0
      %v9704 = vsel %vm370, %v9650, 0
      %v9707 = vsel %vm370, %v9651, 0
      %v9710 = vsel %vm370, %v9652, 0
      %v9713 = vsel %vm370, %v9653, 0
      %v9716 = vsel %vm370, %v9654, 0
      %v9719 = vsel %vm370, %v9655, 0
      %v9722 = vsel %vm370, %v9656, 0
      %v9725 = vsel %vm370, %v9657, 0
      %v9728 = vsel %vm370, %v9658, 0
      %v9731 = vsel %vm370, %v9659, 0
      %v9734 = vsel %vm370, %v9660, 0
      %v9737 = vsel %vm370, %v9661, 0
      %v9740 = vsel %vm370, %v9662, 0
      %v9743 = vsel %vm370, %v9663, 0
      %v9746 = vsel %vm370, %v9664, 0
      %v9749 = vsel %vm370, %v9665, 0
      %v9752 = vsel %vm370, %v9666, 0
      %v9755 = vsel %vm370, %v9667, 0
      %v9758 = vsel %vm370, %v9668, 0
      %v9761 = vsel %vm370, %v9669, 0
      %v9764 = vsel %vm370, %v9670, 0
      %v9767 = vsel %vm370, %v9671, 0
      %v9770 = vsel %vm370, %v9672, 0
      %v9773 = vsel %vm370, %v9673, 0
      %9775 = vmatpush.msra.mxu0 0.0
      %9776 = vmatpush.msra.mxu0 0.0
      %9777 = vmatpush.msra.mxu0 0.0
      %9778 = vmatpush.msra.mxu0 0.0
      %9779 = vmatpush.msra.mxu0 0.0
      %9780 = vmatpush.msra.mxu0 0.0
      %9781 = vmatpush.msra.mxu0 0.0
      %9782 = vmatpush.msra.mxu0 0.0
      %9783 = vmatpush.msra.mxu0 0.0
      %9784 = vmatpush.msra.mxu0 0.0
      %9785 = vmatpush.msra.mxu0 0.0
      %9786 = vmatpush.msra.mxu0 0.0
      %9787 = vmatpush.msra.mxu0 0.0
      %9788 = vmatpush.msra.mxu0 0.0
      %9789 = vmatpush.msra.mxu0 0.0
      %9790 = vmatpush.msra.mxu0 %v9674
      %9791 = vmatmul.f32.gmra.mxu0 %v9680
      %v9792 = vpop.f32.mrf.mxu0
      %v9793 = vadd.f32 %v9677, %v9792
      %9794 = vmatmul.f32.gmra.mxu0 %v9683
      %v9795 = vpop.f32.mrf.mxu0
      %v9796 = vadd.f32 %v9677, %v9795
      %9797 = vmatmul.f32.gmra.mxu0 %v9686
      %v9798 = vpop.f32.mrf.mxu0
      %v9799 = vadd.f32 %v9677, %v9798
      %9800 = vmatmul.f32.gmra.mxu0 %v9689
      %v9801 = vpop.f32.mrf.mxu0
      %v9802 = vadd.f32 %v9677, %v9801
      %9803 = vmatmul.f32.gmra.mxu0 %v9692
      %v9804 = vpop.f32.mrf.mxu0
      %v9805 = vadd.f32 %v9677, %v9804
      %9806 = vmatmul.f32.gmra.mxu0 %v9695
      %v9807 = vpop.f32.mrf.mxu0
      %v9808 = vadd.f32 %v9677, %v9807
      %9809 = vmatmul.f32.gmra.mxu0 %v9698
      %v9810 = vpop.f32.mrf.mxu0
      %v9811 = vadd.f32 %v9677, %v9810
      %9812 = vmatmul.f32.gmra.mxu0 %v9701
      %v9813 = vpop.f32.mrf.mxu0
      %v9814 = vadd.f32 %v9677, %v9813
      %9815 = vmatmul.f32.gmra.mxu0 %v9704
      %v9816 = vpop.f32.mrf.mxu0
      %v9817 = vadd.f32 %v9677, %v9816
      %9818 = vmatmul.f32.gmra.mxu0 %v9707
      %v9819 = vpop.f32.mrf.mxu0
      %v9820 = vadd.f32 %v9677, %v9819
      %9821 = vmatmul.f32.gmra.mxu0 %v9710
      %v9822 = vpop.f32.mrf.mxu0
      %v9823 = vadd.f32 %v9677, %v9822
      %9824 = vmatmul.f32.gmra.mxu0 %v9713
      %v9825 = vpop.f32.mrf.mxu0
      %v9826 = vadd.f32 %v9677, %v9825
      %9827 = vmatmul.f32.gmra.mxu0 %v9716
      %v9828 = vpop.f32.mrf.mxu0
      %v9829 = vadd.f32 %v9677, %v9828
      %9830 = vmatmul.f32.gmra.mxu0 %v9719
      %v9831 = vpop.f32.mrf.mxu0
      %v9832 = vadd.f32 %v9677, %v9831
      %9833 = vmatmul.f32.gmra.mxu0 %v9722
      %v9834 = vpop.f32.mrf.mxu0
      %v9835 = vadd.f32 %v9677, %v9834
      %9836 = vmatmul.f32.gmra.mxu0 %v9725
      %v9837 = vpop.f32.mrf.mxu0
      %v9838 = vadd.f32 %v9677, %v9837
      %9839 = vmatmul.f32.gmra.mxu0 %v9728
      %v9840 = vpop.f32.mrf.mxu0
      %v9841 = vadd.f32 %v9677, %v9840
      %9842 = vmatmul.f32.gmra.mxu0 %v9731
      %v9843 = vpop.f32.mrf.mxu0
      %v9844 = vadd.f32 %v9677, %v9843
      %9845 = vmatmul.f32.gmra.mxu0 %v9734
      %v9846 = vpop.f32.mrf.mxu0
      %v9847 = vadd.f32 %v9677, %v9846
      %9848 = vmatmul.f32.gmra.mxu0 %v9737
      %v9849 = vpop.f32.mrf.mxu0
      %v9850 = vadd.f32 %v9677, %v9849
      %9851 = vmatmul.f32.gmra.mxu0 %v9740
      %v9852 = vpop.f32.mrf.mxu0
      %v9853 = vadd.f32 %v9677, %v9852
      %9854 = vmatmul.f32.gmra.mxu0 %v9743
      %v9855 = vpop.f32.mrf.mxu0
      %v9856 = vadd.f32 %v9677, %v9855
      %9857 = vmatmul.f32.gmra.mxu0 %v9746
      %v9858 = vpop.f32.mrf.mxu0
      %v9859 = vadd.f32 %v9677, %v9858
      %9860 = vmatmul.f32.gmra.mxu0 %v9749
      %v9861 = vpop.f32.mrf.mxu0
      %v9862 = vadd.f32 %v9677, %v9861
      %9863 = vmatmul.f32.gmra.mxu0 %v9752
      %v9864 = vpop.f32.mrf.mxu0
      %v9865 = vadd.f32 %v9677, %v9864
      %9866 = vmatmul.f32.gmra.mxu0 %v9755
      %v9867 = vpop.f32.mrf.mxu0
      %v9868 = vadd.f32 %v9677, %v9867
      %9869 = vmatmul.f32.gmra.mxu0 %v9758
      %v9870 = vpop.f32.mrf.mxu0
      %v9871 = vadd.f32 %v9677, %v9870
      %9872 = vmatmul.f32.gmra.mxu0 %v9761
      %v9873 = vpop.f32.mrf.mxu0
      %v9874 = vadd.f32 %v9677, %v9873
      %9875 = vmatmul.f32.gmra.mxu0 %v9764
      %v9876 = vpop.f32.mrf.mxu0
      %v9877 = vadd.f32 %v9677, %v9876
      %9878 = vmatmul.f32.gmra.mxu0 %v9767
      %v9879 = vpop.f32.mrf.mxu0
      %v9880 = vadd.f32 %v9677, %v9879
      %9881 = vmatmul.f32.gmra.mxu0 %v9770
      %v9882 = vpop.f32.mrf.mxu0
      %v9883 = vadd.f32 %v9677, %v9882
      %9884 = vmatmul.f32.gmra.mxu0 %v9773
      %v9885 = vpop.f32.mrf.mxu0
      %v9886 = vadd.f32 %v9677, %v9885
      %9887 = vdwg.mxu0
      %v9888 = vld [vmem:[%s8] sm:$0x1]
      %v9890 = vperm.slane %v9888, 0
      %v9892 = vmul.f32 %v9890, %v9793
      %v9893 = vmul.f32 %v9890, %v9796
      %v9894 = vmul.f32 %v9890, %v9799
      %v9895 = vmul.f32 %v9890, %v9802
      %v9896 = vmul.f32 %v9890, %v9805
      %v9897 = vmul.f32 %v9890, %v9808
      %v9898 = vmul.f32 %v9890, %v9811
      %v9899 = vmul.f32 %v9890, %v9814
      %v9900 = vmul.f32 %v9890, %v9817
      %v9901 = vmul.f32 %v9890, %v9820
      %v9902 = vmul.f32 %v9890, %v9823
      %v9903 = vmul.f32 %v9890, %v9826
      %v9904 = vmul.f32 %v9890, %v9829
      %v9905 = vmul.f32 %v9890, %v9832
      %v9906 = vmul.f32 %v9890, %v9835
      %v9907 = vmul.f32 %v9890, %v9838
      %v9908 = vmul.f32 %v9890, %v9841
      %v9909 = vmul.f32 %v9890, %v9844
      %v9910 = vmul.f32 %v9890, %v9847
      %v9911 = vmul.f32 %v9890, %v9850
      %v9912 = vmul.f32 %v9890, %v9853
      %v9913 = vmul.f32 %v9890, %v9856
      %v9914 = vmul.f32 %v9890, %v9859
      %v9915 = vmul.f32 %v9890, %v9862
      %v9916 = vmul.f32 %v9890, %v9865
      %v9917 = vmul.f32 %v9890, %v9868
      %v9918 = vmul.f32 %v9890, %v9871
      %v9919 = vmul.f32 %v9890, %v9874
      %v9920 = vmul.f32 %v9890, %v9877
      %v9921 = vmul.f32 %v9890, %v9880
      %v9922 = vmul.f32 %v9890, %v9883
      %v9923 = vmul.f32 %v9890, %v9886
      %v9924 = vld [vmem:[%s327] sm:$0xff]
      %v9925 = vld [vmem:[%s327 + $0x8] sm:$0xff]
      %v9926 = vld [vmem:[%s327 + $0x10] sm:$0xff]
      %v9927 = vld [vmem:[%s327 + $0x18] sm:$0xff]
      %v9928 = vld [vmem:[%s327 + $0x20] sm:$0xff]
      %v9929 = vld [vmem:[%s327 + $0x28] sm:$0xff]
      %v9930 = vld [vmem:[%s327 + $0x30] sm:$0xff]
      %v9931 = vld [vmem:[%s327 + $0x38] sm:$0xff]
      %v9932 = vld [vmem:[%s327 + $0x40] sm:$0xff]
      %v9933 = vld [vmem:[%s327 + $0x48] sm:$0xff]
      %v9934 = vld [vmem:[%s327 + $0x50] sm:$0xff]
      %v9935 = vld [vmem:[%s327 + $0x58] sm:$0xff]
      %v9936 = vld [vmem:[%s327 + $0x60] sm:$0xff]
      %v9937 = vld [vmem:[%s327 + $0x68] sm:$0xff]
      %v9938 = vld [vmem:[%s327 + $0x70] sm:$0xff]
      %v9939 = vld [vmem:[%s327 + $0x78] sm:$0xff]
      %v9940 = vld [vmem:[%s327 + $0x80] sm:$0xff]
      %v9941 = vld [vmem:[%s327 + $0x88] sm:$0xff]
      %v9942 = vld [vmem:[%s327 + $0x90] sm:$0xff]
      %v9943 = vld [vmem:[%s327 + $0x98] sm:$0xff]
      %v9944 = vld [vmem:[%s327 + $0xa0] sm:$0xff]
      %v9945 = vld [vmem:[%s327 + $0xa8] sm:$0xff]
      %v9946 = vld [vmem:[%s327 + $0xb0] sm:$0xff]
      %v9947 = vld [vmem:[%s327 + $0xb8] sm:$0xff]
      %v9948 = vld [vmem:[%s327 + $0xc0] sm:$0xff]
      %v9949 = vld [vmem:[%s327 + $0xc8] sm:$0xff]
      %v9950 = vld [vmem:[%s327 + $0xd0] sm:$0xff]
      %v9951 = vld [vmem:[%s327 + $0xd8] sm:$0xff]
      %v9952 = vld [vmem:[%s327 + $0xe0] sm:$0xff]
      %v9953 = vld [vmem:[%s327 + $0xe8] sm:$0xff]
      %v9954 = vld [vmem:[%s327 + $0xf0] sm:$0xff]
      %v9955 = vld [vmem:[%s327 + $0xf8] sm:$0xff]
      %v9956 = vadd.f32 %v9892, %v9924
      %v9957 = vadd.f32 %v9893, %v9925
      %v9958 = vadd.f32 %v9894, %v9926
      %v9959 = vadd.f32 %v9895, %v9927
      %v9960 = vadd.f32 %v9896, %v9928
      %v9961 = vadd.f32 %v9897, %v9929
      %v9962 = vadd.f32 %v9898, %v9930
      %v9963 = vadd.f32 %v9899, %v9931
      %v9964 = vadd.f32 %v9900, %v9932
      %v9965 = vadd.f32 %v9901, %v9933
      %v9966 = vadd.f32 %v9902, %v9934
      %v9967 = vadd.f32 %v9903, %v9935
      %v9968 = vadd.f32 %v9904, %v9936
      %v9969 = vadd.f32 %v9905, %v9937
      %v9970 = vadd.f32 %v9906, %v9938
      %v9971 = vadd.f32 %v9907, %v9939
      %v9972 = vadd.f32 %v9908, %v9940
      %v9973 = vadd.f32 %v9909, %v9941
      %v9974 = vadd.f32 %v9910, %v9942
      %v9975 = vadd.f32 %v9911, %v9943
      %v9976 = vadd.f32 %v9912, %v9944
      %v9977 = vadd.f32 %v9913, %v9945
      %v9978 = vadd.f32 %v9914, %v9946
      %v9979 = vadd.f32 %v9915, %v9947
      %v9980 = vadd.f32 %v9916, %v9948
      %v9981 = vadd.f32 %v9917, %v9949
      %v9982 = vadd.f32 %v9918, %v9950
      %v9983 = vadd.f32 %v9919, %v9951
      %v9984 = vadd.f32 %v9920, %v9952
      %v9985 = vadd.f32 %v9921, %v9953
      %v9986 = vadd.f32 %v9922, %v9954
      %v9987 = vadd.f32 %v9923, %v9955
      %9988 = vst.msk [vmem:[%s332] sm:$0xff] %vm370, %v9956
      %9989 = vst.msk [vmem:[%s332 + $0x8] sm:$0xff] %vm370, %v9957
      %9990 = vst.msk [vmem:[%s332 + $0x10] sm:$0xff] %vm370, %v9958
      %9991 = vst.msk [vmem:[%s332 + $0x18] sm:$0xff] %vm370, %v9959
      %9992 = vst.msk [vmem:[%s332 + $0x20] sm:$0xff] %vm370, %v9960
      %9993 = vst.msk [vmem:[%s332 + $0x28] sm:$0xff] %vm370, %v9961
      %9994 = vst.msk [vmem:[%s332 + $0x30] sm:$0xff] %vm370, %v9962
      %9995 = vst.msk [vmem:[%s332 + $0x38] sm:$0xff] %vm370, %v9963
      %9996 = vst.msk [vmem:[%s332 + $0x40] sm:$0xff] %vm370, %v9964
      %9997 = vst.msk [vmem:[%s332 + $0x48] sm:$0xff] %vm370, %v9965
      %9998 = vst.msk [vmem:[%s332 + $0x50] sm:$0xff] %vm370, %v9966
      %9999 = vst.msk [vmem:[%s332 + $0x58] sm:$0xff] %vm370, %v9967
      %10000 = vst.msk [vmem:[%s332 + $0x60] sm:$0xff] %vm370, %v9968
      %10001 = vst.msk [vmem:[%s332 + $0x68] sm:$0xff] %vm370, %v9969
      %10002 = vst.msk [vmem:[%s332 + $0x70] sm:$0xff] %vm370, %v9970
      %10003 = vst.msk [vmem:[%s332 + $0x78] sm:$0xff] %vm370, %v9971
      %10004 = vst.msk [vmem:[%s332 + $0x80] sm:$0xff] %vm370, %v9972
      %10005 = vst.msk [vmem:[%s332 + $0x88] sm:$0xff] %vm370, %v9973
      %10006 = vst.msk [vmem:[%s332 + $0x90] sm:$0xff] %vm370, %v9974
      %10007 = vst.msk [vmem:[%s332 + $0x98] sm:$0xff] %vm370, %v9975
      %10008 = vst.msk [vmem:[%s332 + $0xa0] sm:$0xff] %vm370, %v9976
      %10009 = vst.msk [vmem:[%s332 + $0xa8] sm:$0xff] %vm370, %v9977
      %10010 = vst.msk [vmem:[%s332 + $0xb0] sm:$0xff] %vm370, %v9978
      %10011 = vst.msk [vmem:[%s332 + $0xb8] sm:$0xff] %vm370, %v9979
      %10012 = vst.msk [vmem:[%s332 + $0xc0] sm:$0xff] %vm370, %v9980
      %10013 = vst.msk [vmem:[%s332 + $0xc8] sm:$0xff] %vm370, %v9981
      %10014 = vst.msk [vmem:[%s332 + $0xd0] sm:$0xff] %vm370, %v9982
      %10015 = vst.msk [vmem:[%s332 + $0xd8] sm:$0xff] %vm370, %v9983
      %10016 = vst.msk [vmem:[%s332 + $0xe0] sm:$0xff] %vm370, %v9984
      %10017 = vst.msk [vmem:[%s332 + $0xe8] sm:$0xff] %vm370, %v9985
      %10018 = vst.msk [vmem:[%s332 + $0xf0] sm:$0xff] %vm370, %v9986
      %10019 = vst.msk [vmem:[%s332 + $0xf8] sm:$0xff] %vm370, %v9987
      %p10020 = scmp.lt.s32.totalorder %s20, 1
      %s10021 = scalar_select %p10020, %s20, 1
      %s10022 = smul.addr %s10021, 32
      %s10023 = smul.addr %s10022, 8
      %s10024 = scalar_lea.vmem %s9, %s10023
      // Predicated region
      $region57: #{convblock_pallas.1} parent=55 // pred_check
        %p10025 = pneg %p232
      $region58: #{convblock_pallas.1} parent=55 // pred_check_branch
        %10027 = sbr.rel (%p10025) target = $region60
      $region59: #{convblock_pallas.1} parent=55 // pred_region
        _
      $region60: #{convblock_pallas.1} parent=55 // pred_fallthru
        _
    $region56: #{convblock_pallas.1} parent=5 // pred_fallthru
      _
    %p10028 = scmp.le.s32.totalorder 2, %s15
    // Predicated region
    $region61: #{convblock_pallas.1} parent=5 // pred_check
      %p10029 = pneg %p10028
    $region62: #{convblock_pallas.1} parent=5 // pred_check_branch
      %10031 = sbr.rel (%p10029) target = $region64
    $region63: #{convblock_pallas.1} parent=5 // pred_region
      %s10032 = ssub.s32 %s15, 2
      // Predicated region
      $region65: #{convblock_pallas.1} parent=63 // pred_check
        %p10033 = pneg %p238
      $region66: #{convblock_pallas.1} parent=63 // pred_check_branch
        %10035 = sbr.rel (%p10033) target = $region68
      $region67: #{convblock_pallas.1} parent=63 // pred_region
        %p10036 = scmp.lt.s32.totalorder %s21, 1
        %s10037 = scalar_select %p10036, %s21, 1
        %s10038 = smul.addr %s10037, 32
        %s10039 = smul.addr %s10038, 8
        %s10040 = scalar_lea.vmem %s9, %s10039
      $region68: #{convblock_pallas.1} parent=63 // pred_fallthru
        _
    $region64: #{convblock_pallas.1} parent=5 // pred_fallthru
      _
  $region6: #{convblock_pallas.1} parent=0 // loop_footer
    %s19 = sadd.s32 1, %s15
  $region7: #{convblock_pallas.1} parent=0 // loop_footer_branch
    %14 = sbr.rel target = $region3
  $region8: #{convblock_pallas.1} parent=0 // loop_exit
    _

</llo_original>
